<compile_context>
chip_gen: v6e
topology: v6e:2x2x1
jax: 0.10.0
libtpu: 0.0.40
codegen_flags: <defaults>
</compile_context>

<pallas_src>
import jax
import jax.numpy as jnp
from jax import lax
from jax.experimental import pallas as pl
from jax.experimental.pallas import tpu as pltpu

KSIZE = 7
PAD = 3
NTAPS = KSIZE * KSIZE
SUBLANE = 8
LANE = 128
INV_SQRT2 = 0.7071067811865476


def _round_up(x, m):
    return ((x + m - 1) // m) * m


def convnext_kernel(xpad_hbm, dw_ref, w1_ref, b1_ref, w2_ref, b2_ref,
                    out_ref, xbuf_ref, sem_ref):
    """One (image, H-tile) step of the fused ConvNeXt block.

    xpad_hbm : (N, H+6, Wp, Cp) bf16 zero-padded input, left in HBM (pl.ANY)
    dw_ref   : (49, Cp) f32 depthwise taps with BN scale folded in, row = ky*7+kx
    w1_ref   : (Cp, Hdp) bf16 expand weights   b1_ref: (1, Hdp) f32 (BN shift folded)
    w2_ref   : (Hdp, Cp) bf16 project weights  b2_ref: (1, Cp)  f32
    out_ref  : (tile_h, W, Cp) f32 (batch dim squeezed by the BlockSpec)
    xbuf_ref : (2, tile_h+6, Wp, Cp) bf16 double-buffered halo scratch
    sem_ref  : (2,) DMA semaphores
    """
    th, W, Cp = out_ref.shape
    Wp = xbuf_ref.shape[2]
    halo = th + 2 * PAD

    n = pl.program_id(0)
    i = pl.program_id(1)
    n_tiles = pl.num_programs(1)
    slot = i % 2

    def start_halo_copy(img, row0, buf_slot):
        pltpu.make_async_copy(
            xpad_hbm.at[img, pl.ds(row0, halo)],
            xbuf_ref.at[buf_slot],
            sem_ref.at[buf_slot]).start()

    # Prime the pipeline on the first tile of every image (keeps the pattern
    # self-contained per image so the batch axis can be core-parallel).
    @pl.when(i == 0)
    def _():
        start_halo_copy(n, 0, 0)

    # Prefetch the next tile's halo window while this tile computes.
    @pl.when(i + 1 < n_tiles)
    def _():
        start_halo_copy(n, (i + 1) * th, 1 - slot)

    # Wait for the current tile's halo window.
    pltpu.make_async_copy(
        xpad_hbm.at[n, pl.ds(0, halo)],
        xbuf_ref.at[slot],
        sem_ref.at[slot]).wait()

    dw = dw_ref[...]            # (49, Cp)  f32
    w1 = w1_ref[...]            # (Cp, Hdp) bf16
    b1 = b1_ref[...]            # (1, Hdp)  f32
    w2 = w2_ref[...]            # (Hdp, Cp) bf16
    b2 = b2_ref[...]            # (1, Cp)   f32

    rs = SUBLANE if th % SUBLANE == 0 else th
    n_strips = th // rs

    # Static (fully unrolled) strip loop: per-strip accumulators stay resident,
    # and the scheduler can overlap strip s's matmuls with strip s+1's taps.
    for s in range(n_strips):
        r0 = s * rs
        # Halo window for this strip (rows r0 .. r0+rs+6), kept bf16.
        xw = xbuf_ref[slot, pl.ds(r0, rs + 2 * PAD), :, :]        # (rs+6, Wp, Cp)

        # Depthwise 7x7: 49 shifted MACs, two independent accumulators.
        acc0 = jnp.zeros((rs, W, Cp), jnp.float32)
        acc1 = jnp.zeros((rs, W, Cp), jnp.float32)
        for ky in range(KSIZE):
            slab = xw[ky:ky + rs].astype(jnp.float32)             # (rs, Wp, Cp)
            for kx in range(KSIZE):
                j = ky * KSIZE + kx
                tap = slab[:, kx:kx + W, :]                       # static slice
                if j % 2 == 0:
                    acc0 = acc0 + tap * dw[j]                     # (Cp,) broadcasts
                else:
                    acc1 = acc1 + tap * dw[j]
        spatial = acc0 + acc1                                     # BN scale folded in

        # Pointwise convs = matmuls over channels (MXU, bf16 in / f32 acc).
        flat = spatial.reshape(rs * W, Cp)
        h = jnp.dot(flat.astype(jnp.bfloat16), w1,
                    preferred_element_type=jnp.float32) + b1
        h = 0.5 * h * (1.0 + lax.erf(h * INV_SQRT2))              # exact erf GELU
        y = jnp.dot(h.astype(jnp.bfloat16), w2,
                    preferred_element_type=jnp.float32) + b2

        # Residual from the interior of the halo window; store the strip once.
        res = xw[PAD:PAD + rs, PAD:PAD + W, :].astype(jnp.float32)
        out_ref[r0:r0 + rs] = (res + y.reshape(rs, W, Cp)).astype(out_ref.dtype)


def _vmem_capacity_bytes():
    try:
        return int(pltpu.get_tpu_info().vmem_capacity_bytes)
    except Exception:
        return 64 * 1024 * 1024        # conservative fallback (v7x per-TC VMEM)


def _pick_tile_h(H, W, Wp, Cp, Hdp, vmem_limit):
    """Largest 8-aligned divisor of H whose realistic per-step footprint fits."""
    # Tile-size-independent footprint: double-buffered parameter blocks +
    # the per-strip intermediates the body actually materializes.
    weights = 2 * (NTAPS * Cp * 4 + Cp * Hdp * 2 + Hdp * 4 + Hdp * Cp * 2 + Cp * 4)
    rs = SUBLANE
    strip = ((rs + 2 * PAD) * Wp * Cp * 4          # upcast halo slabs
             + 3 * rs * W * Cp * 4                 # acc0, acc1, spatial
             + rs * W * Cp * 2                     # bf16 matmul LHS
             + rs * W * Hdp * (4 + 2)              # h (f32) + bf16 copy
             + 2 * rs * W * Cp * 4)                # residual + output strip
    budget = int((vmem_limit - weights - strip) * 0.6)   # headroom for spills/DMA
    cands = sorted((t for t in range(1, H + 1) if H % t == 0),
                   key=lambda t: (t % SUBLANE != 0, -t))  # prefer 8-aligned, largest
    for th in cands:
        xbuf = 2 * (th + 2 * PAD) * Wp * Cp * 2    # double-buffered bf16 halo
        outb = 2 * th * W * Cp * 4                 # double-buffered output block
        if xbuf + outb <= budget:
            return th
    return cands[-1]                               # smallest divisor: correct, just slow


def convnext_block_forward(x_nchw, params, eps=1e-5, tile_h=None):
    """Wrapper: NCHW in/out; grid = (batch, H-tiles); batch axis core-parallel."""
    N, C, H, W = x_nchw.shape

    dw_w = params["dw_w"]                       # (C, 1, 7, 7)  PyTorch depthwise layout
    dw_b = params["dw_b"]                       # (C,)
    gamma, beta = params["bn_gamma"], params["bn_beta"]
    mean, var = params["bn_mean"], params["bn_var"]
    w1, b1 = params["pw1_w"], params["pw1_b"]   # (Hd, C, 1, 1), (Hd,)
    w2, b2 = params["pw2_w"], params["pw2_b"]   # (C, Hd, 1, 1), (C,)
    Hd = w1.shape[0]

    Cp = _round_up(C, LANE)                     # lane-dense channels
    Hdp = _round_up(Hd, LANE)                   # lane-dense hidden dim
    Wp = _round_up(W + 2 * PAD, SUBLANE)        # sublane-aligned padded width

    # NHWC bf16 activations in HBM (halves halo DMA traffic and scratch).
    x = jnp.transpose(x_nchw, (0, 2, 3, 1)).astype(jnp.bfloat16)
    xpad = jnp.pad(x, ((0, 0), (PAD, PAD), (PAD, Wp - W - PAD), (0, Cp - C)))

    # Fold BatchNorm (eval mode, running stats) completely into the weights.
    scale = gamma / jnp.sqrt(var + eps)                                # (C,)
    shift = (dw_b - mean) * scale + beta                               # (C,)
    dw_taps = dw_w.reshape(C, NTAPS).T * scale[None, :]                # (49, C)
    w1_mat = w1.reshape(Hd, C).T                                       # (C, Hd)
    b1_row = b1 + shift @ w1_mat                                       # (Hd,) BN shift folded
    w2_mat = w2.reshape(C, Hd).T                                       # (Hd, C)

    # Zero-pad channels / hidden dim to lane multiples (padded channels stay 0).
    dw_taps = jnp.pad(dw_taps, ((0, 0), (0, Cp - C))).astype(jnp.float32)
    w1_p = jnp.pad(w1_mat, ((0, Cp - C), (0, Hdp - Hd))).astype(jnp.bfloat16)
    b1_p = jnp.pad(b1_row, (0, Hdp - Hd)).reshape(1, Hdp).astype(jnp.float32)
    w2_p = jnp.pad(w2_mat, ((0, Hdp - Hd), (0, Cp - C))).astype(jnp.bfloat16)
    b2_p = jnp.pad(b2, (0, Cp - C)).reshape(1, Cp).astype(jnp.float32)

    vmem_cap = _vmem_capacity_bytes()
    vmem_limit = min(vmem_cap * 3 // 4, 100 * 1024 * 1024)   # ~96 MiB v5e/v6e, ~48 MiB v7x
    if tile_h is None:
        tile_h = _pick_tile_h(H, W, Wp, Cp, Hdp, vmem_limit)
    assert H % tile_h == 0, "tile_h must divide H"
    n_tiles = H // tile_h

    out_nhwc = pl.pallas_call(
        convnext_kernel,
        out_shape=jax.ShapeDtypeStruct((N, H, W, Cp), jnp.float32),
        grid=(N, n_tiles),
        in_specs=[
            pl.BlockSpec(memory_space=pl.ANY),                         # padded acts stay in HBM
            pl.BlockSpec((NTAPS, Cp), lambda n, i: (0, 0)),
            pl.BlockSpec((Cp, Hdp), lambda n, i: (0, 0)),
            pl.BlockSpec((1, Hdp), lambda n, i: (0, 0)),
            pl.BlockSpec((Hdp, Cp), lambda n, i: (0, 0)),
            pl.BlockSpec((1, Cp), lambda n, i: (0, 0)),
        ],
        out_specs=pl.BlockSpec((None, tile_h, W, Cp), lambda n, i: (n, i, 0, 0)),
        scratch_shapes=[
            pltpu.VMEM((2, tile_h + 2 * PAD, Wp, Cp), jnp.bfloat16),   # double-buffered halo
            pltpu.SemaphoreType.DMA((2,)),
        ],
        compiler_params=pltpu.CompilerParams(
            dimension_semantics=("parallel", "arbitrary"),
            vmem_limit_bytes=int(vmem_limit)),
    )(xpad, dw_taps, w1_p, b1_p, w2_p, b2_p)

    out = out_nhwc[..., :C]                                            # drop channel padding
    return jnp.transpose(out, (0, 3, 1, 2))                            # back to NCHW


def convnext_block_reference(x, params, eps=1e-5):
    """Pure-JAX NCHW reference matching the PyTorch forward (eval mode)."""
    dn = ("NCHW", "OIHW", "NCHW")
    C = x.shape[1]
    out = lax.conv_general_dilated(x, params["dw_w"], (1, 1),
                                   [(PAD, PAD), (PAD, PAD)],
                                   dimension_numbers=dn, feature_group_count=C)
    out = out + params["dw_b"][None, :, None, None]
    scale = params["bn_gamma"] / jnp.sqrt(params["bn_var"] + eps)
    out = (out - params["bn_mean"][None, :, None, None]) * scale[None, :, None, None] \
          + params["bn_beta"][None, :, None, None]
    out = lax.conv_general_dilated(out, params["pw1_w"], (1, 1), [(0, 0), (0, 0)],
                                   dimension_numbers=dn)
    out = out + params["pw1_b"][None, :, None, None]
    out = 0.5 * out * (1.0 + lax.erf(out * INV_SQRT2))
    out = lax.conv_general_dilated(out, params["pw2_w"], (1, 1), [(0, 0), (0, 0)],
                                   dimension_numbers=dn)
    out = out + params["pw2_b"][None, :, None, None]
    return x + out  # StochasticDepth is identity in eval mode


if __name__ == "__main__":
    N, C, H, W = 2, 4, 16, 16
    expansion_ratio = 4
    Hd = C * expansion_ratio  # hidden_dim; out_channels == in_channels for the residual

    key = jax.random.PRNGKey(0)
    ks = jax.random.split(key, 7)
    params = {
        "dw_w": jax.random.normal(ks[0], (C, 1, KSIZE, KSIZE), jnp.float32) * 0.1,
        "dw_b": jax.random.normal(ks[1], (C,), jnp.float32) * 0.05,
        "bn_gamma": jnp.linspace(0.8, 1.2, C, dtype=jnp.float32),
        "bn_beta": jnp.linspace(-0.1, 0.1, C, dtype=jnp.float32),
        "bn_mean": jnp.linspace(-0.2, 0.2, C, dtype=jnp.float32),
        "bn_var": jnp.linspace(0.5, 1.5, C, dtype=jnp.float32),
        "pw1_w": jax.random.normal(ks[2], (Hd, C, 1, 1), jnp.float32) * 0.1,
        "pw1_b": jax.random.normal(ks[3], (Hd,), jnp.float32) * 0.05,
        "pw2_w": jax.random.normal(ks[4], (C, Hd, 1, 1), jnp.float32) * 0.1,
        "pw2_b": jax.random.normal(ks[5], (C,), jnp.float32) * 0.05,
    }
    x = jax.random.normal(ks[6], (N, C, H, W), jnp.float32)

    ref = jax.block_until_ready(convnext_block_reference(x, params))

    # Auto-chosen tile (largest fitting divisor of H).
    out = jax.block_until_ready(convnext_block_forward(x, params))
    assert out.shape == (N, C, H, W)
    # bf16 activations/weights inside the kernel vs. a pure-f32 reference.
    assert bool(jnp.allclose(out, ref, rtol=2e-2, atol=2e-2)), "mismatch (auto tile)"

    # Force multiple H-tiles to exercise the double-buffered halo-prefetch path.
    out2 = jax.block_until_ready(convnext_block_forward(x, params, tile_h=8))
    assert bool(jnp.allclose(out2, ref, rtol=2e-2, atol=2e-2)), "mismatch (tile_h=8)"

    print("KERNEL_OK")
</pallas_src>

<mosaic_0001>
module attributes {stable_mosaic.version = 11 : i64} {
  func.func @convnext_kernel(%arg0: i32, %arg1: i32, %arg2: memref<2x22x24x128xbf16, #tpu.memory_space<any>>, %arg3: memref<49x128xf32, #tpu.memory_space<vmem>>, %arg4: memref<128x128xbf16, #tpu.memory_space<vmem>>, %arg5: memref<1x128xf32, #tpu.memory_space<vmem>>, %arg6: memref<128x128xbf16, #tpu.memory_space<vmem>>, %arg7: memref<1x128xf32, #tpu.memory_space<vmem>>, %arg8: memref<1x16x16x128xf32, #tpu.memory_space<vmem>>, %arg9: memref<2x22x24x128xbf16, #tpu.memory_space<vmem>>, %arg10: memref<2x!tpu.dma_semaphore, #tpu.memory_space<semaphore_mem>>) attributes {dimension_semantics = [#tpu.dimension_semantics<parallel>, #tpu.dimension_semantics<arbitrary>], iteration_bounds = array<i64: 2, 1>, scalar_prefetch = 0 : i64, scratch_operands = 2 : i64, tpu.core_type = #tpu.core_type<tc>, window_params = [{}, {pipeline_mode = #tpu.pipeline_mode<synchronous>, transform_indices = @transform_1, window_bounds = array<i64: 49, 128>}, {pipeline_mode = #tpu.pipeline_mode<synchronous>, transform_indices = @transform_2, window_bounds = array<i64: 128, 128>}, {pipeline_mode = #tpu.pipeline_mode<synchronous>, transform_indices = @transform_3, window_bounds = array<i64: 1, 128>}, {pipeline_mode = #tpu.pipeline_mode<synchronous>, transform_indices = @transform_4, window_bounds = array<i64: 128, 128>}, {pipeline_mode = #tpu.pipeline_mode<synchronous>, transform_indices = @transform_5, window_bounds = array<i64: 1, 128>}, {transform_indices = @transform_6, window_bounds = array<i64: 1, 16, 16, 128>}]} {
    %c2_i32 = arith.constant 2 : i32
    %c0_i32 = arith.constant 0 : i32
    %0 = arith.cmpi eq, %c2_i32, %c0_i32 : i32
    %c1_i32 = arith.constant 1 : i32
    %1 = arith.select %0, %c1_i32, %c2_i32 : i32
    %2 = arith.remsi %arg1, %1 : i32
    %c0_i32_0 = arith.constant 0 : i32
    %3 = arith.cmpi ne, %2, %c0_i32_0 : i32
    %c0_i32_1 = arith.constant 0 : i32
    %4 = arith.cmpi slt, %2, %c0_i32_1 : i32
    %c0_i32_2 = arith.constant 0 : i32
    %5 = arith.cmpi slt, %1, %c0_i32_2 : i32
    %6 = arith.xori %4, %5 : i1
    %7 = arith.andi %6, %3 : i1
    %8 = arith.addi %2, %1 : i32
    %9 = arith.select %7, %8, %2 : i32
    %c0_i32_3 = arith.constant 0 : i32
    %10 = arith.cmpi eq, %arg1, %c0_i32_3 : i32
    %11 = arith.extui %10 : i1 to i32
    %c0_i32_4 = arith.constant 0 : i32
    %12 = arith.cmpi ne, %11, %c0_i32_4 : i32
    scf.if %12 {
      %c0_i32_49 = arith.constant 0 : i32
      %c0_i32_50 = arith.constant 0 : i32
      %c0_i32_51 = arith.constant 0 : i32
      %c0_i32_52 = arith.constant 0 : i32
      %c0_i32_53 = arith.constant 0 : i32
      %802 = tpu.memref_slice %arg2[%arg0, %c0_i32_51, %c0_i32_52, %c0_i32_53] : memref<2x22x24x128xbf16, #tpu.memory_space<any>> -> memref<1x22x24x128xbf16, #tpu.memory_space<any>>
      %803 = tpu.memref_squeeze %802 : memref<1x22x24x128xbf16, #tpu.memory_space<any>> -> memref<22x24x128xbf16, #tpu.memory_space<any>>
      %c0_i32_54 = arith.constant 0 : i32
      %c0_i32_55 = arith.constant 0 : i32
      %c0_i32_56 = arith.constant 0 : i32
      %804 = tpu.memref_slice %arg9[%c0_i32_49, %c0_i32_54, %c0_i32_55, %c0_i32_56] : memref<2x22x24x128xbf16, #tpu.memory_space<vmem>> -> memref<1x22x24x128xbf16, #tpu.memory_space<vmem>>
      %805 = tpu.memref_squeeze %804 : memref<1x22x24x128xbf16, #tpu.memory_space<vmem>> -> memref<22x24x128xbf16, #tpu.memory_space<vmem>>
      %806 = tpu.memref_slice %arg10[%c0_i32_50] : memref<2x!tpu.dma_semaphore, #tpu.memory_space<semaphore_mem>> -> memref<1x!tpu.dma_semaphore, #tpu.memory_space<semaphore_mem>>
      %807 = tpu.memref_squeeze %806 : memref<1x!tpu.dma_semaphore, #tpu.memory_space<semaphore_mem>> -> memref<!tpu.dma_semaphore, #tpu.memory_space<semaphore_mem>>
      tpu.enqueue_dma source(%803 : memref<22x24x128xbf16, #tpu.memory_space<any>>) target(%805 : memref<22x24x128xbf16, #tpu.memory_space<vmem>>) target_semaphore(%807 : memref<!tpu.dma_semaphore, #tpu.memory_space<semaphore_mem>>)
    } else {
    }
    %c1_i32_5 = arith.constant 1 : i32
    %13 = arith.addi %arg1, %c1_i32_5 : i32
    %c1_i32_6 = arith.constant 1 : i32
    %14 = arith.cmpi slt, %13, %c1_i32_6 : i32
    %15 = arith.extui %14 : i1 to i32
    %c0_i32_7 = arith.constant 0 : i32
    %16 = arith.cmpi ne, %15, %c0_i32_7 : i32
    scf.if %16 {
      %c1_i32_49 = arith.constant 1 : i32
      %802 = arith.addi %arg1, %c1_i32_49 : i32
      %c16_i32 = arith.constant 16 : i32
      %803 = arith.muli %802, %c16_i32 : i32
      %c1_i32_50 = arith.constant 1 : i32
      %804 = arith.subi %c1_i32_50, %9 : i32
      %c0_i32_51 = arith.constant 0 : i32
      %c0_i32_52 = arith.constant 0 : i32
      %805 = tpu.memref_slice %arg2[%arg0, %803, %c0_i32_51, %c0_i32_52] : memref<2x22x24x128xbf16, #tpu.memory_space<any>> -> memref<1x22x24x128xbf16, #tpu.memory_space<any>>
      %806 = tpu.memref_squeeze %805 : memref<1x22x24x128xbf16, #tpu.memory_space<any>> -> memref<22x24x128xbf16, #tpu.memory_space<any>>
      %c0_i32_53 = arith.constant 0 : i32
      %c0_i32_54 = arith.constant 0 : i32
      %c0_i32_55 = arith.constant 0 : i32
      %807 = tpu.memref_slice %arg9[%804, %c0_i32_53, %c0_i32_54, %c0_i32_55] : memref<2x22x24x128xbf16, #tpu.memory_space<vmem>> -> memref<1x22x24x128xbf16, #tpu.memory_space<vmem>>
      %808 = tpu.memref_squeeze %807 : memref<1x22x24x128xbf16, #tpu.memory_space<vmem>> -> memref<22x24x128xbf16, #tpu.memory_space<vmem>>
      %809 = tpu.memref_slice %arg10[%804] : memref<2x!tpu.dma_semaphore, #tpu.memory_space<semaphore_mem>> -> memref<1x!tpu.dma_semaphore, #tpu.memory_space<semaphore_mem>>
      %810 = tpu.memref_squeeze %809 : memref<1x!tpu.dma_semaphore, #tpu.memory_space<semaphore_mem>> -> memref<!tpu.dma_semaphore, #tpu.memory_space<semaphore_mem>>
      tpu.enqueue_dma source(%806 : memref<22x24x128xbf16, #tpu.memory_space<any>>) target(%808 : memref<22x24x128xbf16, #tpu.memory_space<vmem>>) target_semaphore(%810 : memref<!tpu.dma_semaphore, #tpu.memory_space<semaphore_mem>>)
    } else {
    }
    %c0_i32_8 = arith.constant 0 : i32
    %c0_i32_9 = arith.constant 0 : i32
    %c0_i32_10 = arith.constant 0 : i32
    %17 = tpu.memref_slice %arg2[%arg0, %c0_i32_8, %c0_i32_9, %c0_i32_10] : memref<2x22x24x128xbf16, #tpu.memory_space<any>> -> memref<1x22x24x128xbf16, #tpu.memory_space<any>>
    %18 = tpu.memref_squeeze %17 : memref<1x22x24x128xbf16, #tpu.memory_space<any>> -> memref<22x24x128xbf16, #tpu.memory_space<any>>
    %c0_i32_11 = arith.constant 0 : i32
    %c0_i32_12 = arith.constant 0 : i32
    %c0_i32_13 = arith.constant 0 : i32
    %19 = tpu.memref_slice %arg9[%9, %c0_i32_11, %c0_i32_12, %c0_i32_13] : memref<2x22x24x128xbf16, #tpu.memory_space<vmem>> -> memref<1x22x24x128xbf16, #tpu.memory_space<vmem>>
    %20 = tpu.memref_squeeze %19 : memref<1x22x24x128xbf16, #tpu.memory_space<vmem>> -> memref<22x24x128xbf16, #tpu.memory_space<vmem>>
    %21 = tpu.memref_slice %arg10[%9] : memref<2x!tpu.dma_semaphore, #tpu.memory_space<semaphore_mem>> -> memref<1x!tpu.dma_semaphore, #tpu.memory_space<semaphore_mem>>
    %22 = tpu.memref_squeeze %21 : memref<1x!tpu.dma_semaphore, #tpu.memory_space<semaphore_mem>> -> memref<!tpu.dma_semaphore, #tpu.memory_space<semaphore_mem>>
    tpu.wait_dma2 semaphore(%22 : memref<!tpu.dma_semaphore, #tpu.memory_space<semaphore_mem>>) src(%18 : memref<22x24x128xbf16, #tpu.memory_space<any>>) dst(%20 : memref<22x24x128xbf16, #tpu.memory_space<vmem>>)
    %c0 = arith.constant 0 : index
    %c0_14 = arith.constant 0 : index
    %23 = vector.load %arg3[%c0, %c0_14] : memref<49x128xf32, #tpu.memory_space<vmem>>, vector<49x128xf32>
    %c0_15 = arith.constant 0 : index
    %c0_16 = arith.constant 0 : index
    %24 = vector.load %arg4[%c0_15, %c0_16] : memref<128x128xbf16, #tpu.memory_space<vmem>>, vector<128x128xbf16>
    %c0_17 = arith.constant 0 : index
    %c0_18 = arith.constant 0 : index
    %25 = vector.load %arg5[%c0_17, %c0_18] : memref<1x128xf32, #tpu.memory_space<vmem>>, vector<1x128xf32>
    %c0_19 = arith.constant 0 : index
    %c0_20 = arith.constant 0 : index
    %26 = vector.load %arg6[%c0_19, %c0_20] : memref<128x128xbf16, #tpu.memory_space<vmem>>, vector<128x128xbf16>
    %c0_21 = arith.constant 0 : index
    %c0_22 = arith.constant 0 : index
    %27 = vector.load %arg7[%c0_21, %c0_22] : memref<1x128xf32, #tpu.memory_space<vmem>>, vector<1x128xf32>
    %28 = arith.index_cast %9 : i32 to index
    %c0_23 = arith.constant 0 : index
    %c0_24 = arith.constant 0 : index
    %c0_25 = arith.constant 0 : index
    %29 = vector.load %arg9[%28, %c0_23, %c0_24, %c0_25] : memref<2x22x24x128xbf16, #tpu.memory_space<vmem>>, vector<1x14x24x128xbf16>
    %30 = vector.shape_cast %29 : vector<1x14x24x128xbf16> to vector<14x24x128xbf16>
    %cst = arith.constant 0.000000e+00 : f32
    %31 = vector.broadcast %cst : f32 to vector<8x16x128xf32>
    %cst_26 = arith.constant 0.000000e+00 : f32
    %32 = vector.broadcast %cst_26 : f32 to vector<8x16x128xf32>
    %33 = vector.extract_strided_slice %30 {offsets = [0, 0, 0], sizes = [8, 24, 128], strides = [1, 1, 1]} : vector<14x24x128xbf16> to vector<8x24x128xbf16>
    %34 = arith.extf %33 : vector<8x24x128xbf16> to vector<8x24x128xf32>
    %35 = vector.extract_strided_slice %34 {offsets = [0, 0, 0], sizes = [8, 16, 128], strides = [1, 1, 1]} : vector<8x24x128xf32> to vector<8x16x128xf32>
    %36 = vector.extract_strided_slice %23 {offsets = [0, 0], sizes = [1, 128], strides = [1, 1]} : vector<49x128xf32> to vector<1x128xf32>
    %37 = vector.shape_cast %36 : vector<1x128xf32> to vector<128xf32>
    %38 = vector.shape_cast %37 : vector<128xf32> to vector<1x1x128xf32>
    %39 = vector.broadcast %38 : vector<1x1x128xf32> to vector<8x16x128xf32>
    %40 = arith.mulf %35, %39 : vector<8x16x128xf32>
    %41 = arith.addf %31, %40 : vector<8x16x128xf32>
    %42 = vector.extract_strided_slice %34 {offsets = [0, 1, 0], sizes = [8, 16, 128], strides = [1, 1, 1]} : vector<8x24x128xf32> to vector<8x16x128xf32>
    %43 = vector.extract_strided_slice %23 {offsets = [1, 0], sizes = [1, 128], strides = [1, 1]} : vector<49x128xf32> to vector<1x128xf32>
    %44 = vector.shape_cast %43 : vector<1x128xf32> to vector<128xf32>
    %45 = vector.shape_cast %44 : vector<128xf32> to vector<1x1x128xf32>
    %46 = vector.broadcast %45 : vector<1x1x128xf32> to vector<8x16x128xf32>
    %47 = arith.mulf %42, %46 : vector<8x16x128xf32>
    %48 = arith.addf %32, %47 : vector<8x16x128xf32>
    %49 = vector.extract_strided_slice %34 {offsets = [0, 2, 0], sizes = [8, 16, 128], strides = [1, 1, 1]} : vector<8x24x128xf32> to vector<8x16x128xf32>
    %50 = vector.extract_strided_slice %23 {offsets = [2, 0], sizes = [1, 128], strides = [1, 1]} : vector<49x128xf32> to vector<1x128xf32>
    %51 = vector.shape_cast %50 : vector<1x128xf32> to vector<128xf32>
    %52 = vector.shape_cast %51 : vector<128xf32> to vector<1x1x128xf32>
    %53 = vector.broadcast %52 : vector<1x1x128xf32> to vector<8x16x128xf32>
    %54 = arith.mulf %49, %53 : vector<8x16x128xf32>
    %55 = arith.addf %41, %54 : vector<8x16x128xf32>
    %56 = vector.extract_strided_slice %34 {offsets = [0, 3, 0], sizes = [8, 16, 128], strides = [1, 1, 1]} : vector<8x24x128xf32> to vector<8x16x128xf32>
    %57 = vector.extract_strided_slice %23 {offsets = [3, 0], sizes = [1, 128], strides = [1, 1]} : vector<49x128xf32> to vector<1x128xf32>
    %58 = vector.shape_cast %57 : vector<1x128xf32> to vector<128xf32>
    %59 = vector.shape_cast %58 : vector<128xf32> to vector<1x1x128xf32>
    %60 = vector.broadcast %59 : vector<1x1x128xf32> to vector<8x16x128xf32>
    %61 = arith.mulf %56, %60 : vector<8x16x128xf32>
    %62 = arith.addf %48, %61 : vector<8x16x128xf32>
    %63 = vector.extract_strided_slice %34 {offsets = [0, 4, 0], sizes = [8, 16, 128], strides = [1, 1, 1]} : vector<8x24x128xf32> to vector<8x16x128xf32>
    %64 = vector.extract_strided_slice %23 {offsets = [4, 0], sizes = [1, 128], strides = [1, 1]} : vector<49x128xf32> to vector<1x128xf32>
    %65 = vector.shape_cast %64 : vector<1x128xf32> to vector<128xf32>
    %66 = vector.shape_cast %65 : vector<128xf32> to vector<1x1x128xf32>
    %67 = vector.broadcast %66 : vector<1x1x128xf32> to vector<8x16x128xf32>
    %68 = arith.mulf %63, %67 : vector<8x16x128xf32>
    %69 = arith.addf %55, %68 : vector<8x16x128xf32>
    %70 = vector.extract_strided_slice %34 {offsets = [0, 5, 0], sizes = [8, 16, 128], strides = [1, 1, 1]} : vector<8x24x128xf32> to vector<8x16x128xf32>
    %71 = vector.extract_strided_slice %23 {offsets = [5, 0], sizes = [1, 128], strides = [1, 1]} : vector<49x128xf32> to vector<1x128xf32>
    %72 = vector.shape_cast %71 : vector<1x128xf32> to vector<128xf32>
    %73 = vector.shape_cast %72 : vector<128xf32> to vector<1x1x128xf32>
    %74 = vector.broadcast %73 : vector<1x1x128xf32> to vector<8x16x128xf32>
    %75 = arith.mulf %70, %74 : vector<8x16x128xf32>
    %76 = arith.addf %62, %75 : vector<8x16x128xf32>
    %77 = vector.extract_strided_slice %34 {offsets = [0, 6, 0], sizes = [8, 16, 128], strides = [1, 1, 1]} : vector<8x24x128xf32> to vector<8x16x128xf32>
    %78 = vector.extract_strided_slice %23 {offsets = [6, 0], sizes = [1, 128], strides = [1, 1]} : vector<49x128xf32> to vector<1x128xf32>
    %79 = vector.shape_cast %78 : vector<1x128xf32> to vector<128xf32>
    %80 = vector.shape_cast %79 : vector<128xf32> to vector<1x1x128xf32>
    %81 = vector.broadcast %80 : vector<1x1x128xf32> to vector<8x16x128xf32>
    %82 = arith.mulf %77, %81 : vector<8x16x128xf32>
    %83 = arith.addf %69, %82 : vector<8x16x128xf32>
    %84 = vector.extract_strided_slice %30 {offsets = [1, 0, 0], sizes = [8, 24, 128], strides = [1, 1, 1]} : vector<14x24x128xbf16> to vector<8x24x128xbf16>
    %85 = arith.extf %84 : vector<8x24x128xbf16> to vector<8x24x128xf32>
    %86 = vector.extract_strided_slice %85 {offsets = [0, 0, 0], sizes = [8, 16, 128], strides = [1, 1, 1]} : vector<8x24x128xf32> to vector<8x16x128xf32>
    %87 = vector.extract_strided_slice %23 {offsets = [7, 0], sizes = [1, 128], strides = [1, 1]} : vector<49x128xf32> to vector<1x128xf32>
    %88 = vector.shape_cast %87 : vector<1x128xf32> to vector<128xf32>
    %89 = vector.shape_cast %88 : vector<128xf32> to vector<1x1x128xf32>
    %90 = vector.broadcast %89 : vector<1x1x128xf32> to vector<8x16x128xf32>
    %91 = arith.mulf %86, %90 : vector<8x16x128xf32>
    %92 = arith.addf %76, %91 : vector<8x16x128xf32>
    %93 = vector.extract_strided_slice %85 {offsets = [0, 1, 0], sizes = [8, 16, 128], strides = [1, 1, 1]} : vector<8x24x128xf32> to vector<8x16x128xf32>
    %94 = vector.extract_strided_slice %23 {offsets = [8, 0], sizes = [1, 128], strides = [1, 1]} : vector<49x128xf32> to vector<1x128xf32>
    %95 = vector.shape_cast %94 : vector<1x128xf32> to vector<128xf32>
    %96 = vector.shape_cast %95 : vector<128xf32> to vector<1x1x128xf32>
    %97 = vector.broadcast %96 : vector<1x1x128xf32> to vector<8x16x128xf32>
    %98 = arith.mulf %93, %97 : vector<8x16x128xf32>
    %99 = arith.addf %83, %98 : vector<8x16x128xf32>
    %100 = vector.extract_strided_slice %85 {offsets = [0, 2, 0], sizes = [8, 16, 128], strides = [1, 1, 1]} : vector<8x24x128xf32> to vector<8x16x128xf32>
    %101 = vector.extract_strided_slice %23 {offsets = [9, 0], sizes = [1, 128], strides = [1, 1]} : vector<49x128xf32> to vector<1x128xf32>
    %102 = vector.shape_cast %101 : vector<1x128xf32> to vector<128xf32>
    %103 = vector.shape_cast %102 : vector<128xf32> to vector<1x1x128xf32>
    %104 = vector.broadcast %103 : vector<1x1x128xf32> to vector<8x16x128xf32>
    %105 = arith.mulf %100, %104 : vector<8x16x128xf32>
    %106 = arith.addf %92, %105 : vector<8x16x128xf32>
    %107 = vector.extract_strided_slice %85 {offsets = [0, 3, 0], sizes = [8, 16, 128], strides = [1, 1, 1]} : vector<8x24x128xf32> to vector<8x16x128xf32>
    %108 = vector.extract_strided_slice %23 {offsets = [10, 0], sizes = [1, 128], strides = [1, 1]} : vector<49x128xf32> to vector<1x128xf32>
    %109 = vector.shape_cast %108 : vector<1x128xf32> to vector<128xf32>
    %110 = vector.shape_cast %109 : vector<128xf32> to vector<1x1x128xf32>
    %111 = vector.broadcast %110 : vector<1x1x128xf32> to vector<8x16x128xf32>
    %112 = arith.mulf %107, %111 : vector<8x16x128xf32>
    %113 = arith.addf %99, %112 : vector<8x16x128xf32>
    %114 = vector.extract_strided_slice %85 {offsets = [0, 4, 0], sizes = [8, 16, 128], strides = [1, 1, 1]} : vector<8x24x128xf32> to vector<8x16x128xf32>
    %115 = vector.extract_strided_slice %23 {offsets = [11, 0], sizes = [1, 128], strides = [1, 1]} : vector<49x128xf32> to vector<1x128xf32>
    %116 = vector.shape_cast %115 : vector<1x128xf32> to vector<128xf32>
    %117 = vector.shape_cast %116 : vector<128xf32> to vector<1x1x128xf32>
    %118 = vector.broadcast %117 : vector<1x1x128xf32> to vector<8x16x128xf32>
    %119 = arith.mulf %114, %118 : vector<8x16x128xf32>
    %120 = arith.addf %106, %119 : vector<8x16x128xf32>
    %121 = vector.extract_strided_slice %85 {offsets = [0, 5, 0], sizes = [8, 16, 128], strides = [1, 1, 1]} : vector<8x24x128xf32> to vector<8x16x128xf32>
    %122 = vector.extract_strided_slice %23 {offsets = [12, 0], sizes = [1, 128], strides = [1, 1]} : vector<49x128xf32> to vector<1x128xf32>
    %123 = vector.shape_cast %122 : vector<1x128xf32> to vector<128xf32>
    %124 = vector.shape_cast %123 : vector<128xf32> to vector<1x1x128xf32>
    %125 = vector.broadcast %124 : vector<1x1x128xf32> to vector<8x16x128xf32>
    %126 = arith.mulf %121, %125 : vector<8x16x128xf32>
    %127 = arith.addf %113, %126 : vector<8x16x128xf32>
    %128 = vector.extract_strided_slice %85 {offsets = [0, 6, 0], sizes = [8, 16, 128], strides = [1, 1, 1]} : vector<8x24x128xf32> to vector<8x16x128xf32>
    %129 = vector.extract_strided_slice %23 {offsets = [13, 0], sizes = [1, 128], strides = [1, 1]} : vector<49x128xf32> to vector<1x128xf32>
    %130 = vector.shape_cast %129 : vector<1x128xf32> to vector<128xf32>
    %131 = vector.shape_cast %130 : vector<128xf32> to vector<1x1x128xf32>
    %132 = vector.broadcast %131 : vector<1x1x128xf32> to vector<8x16x128xf32>
    %133 = arith.mulf %128, %132 : vector<8x16x128xf32>
    %134 = arith.addf %120, %133 : vector<8x16x128xf32>
    %135 = vector.extract_strided_slice %30 {offsets = [2, 0, 0], sizes = [8, 24, 128], strides = [1, 1, 1]} : vector<14x24x128xbf16> to vector<8x24x128xbf16>
    %136 = arith.extf %135 : vector<8x24x128xbf16> to vector<8x24x128xf32>
    %137 = vector.extract_strided_slice %136 {offsets = [0, 0, 0], sizes = [8, 16, 128], strides = [1, 1, 1]} : vector<8x24x128xf32> to vector<8x16x128xf32>
    %138 = vector.extract_strided_slice %23 {offsets = [14, 0], sizes = [1, 128], strides = [1, 1]} : vector<49x128xf32> to vector<1x128xf32>
    %139 = vector.shape_cast %138 : vector<1x128xf32> to vector<128xf32>
    %140 = vector.shape_cast %139 : vector<128xf32> to vector<1x1x128xf32>
    %141 = vector.broadcast %140 : vector<1x1x128xf32> to vector<8x16x128xf32>
    %142 = arith.mulf %137, %141 : vector<8x16x128xf32>
    %143 = arith.addf %127, %142 : vector<8x16x128xf32>
    %144 = vector.extract_strided_slice %136 {offsets = [0, 1, 0], sizes = [8, 16, 128], strides = [1, 1, 1]} : vector<8x24x128xf32> to vector<8x16x128xf32>
    %145 = vector.extract_strided_slice %23 {offsets = [15, 0], sizes = [1, 128], strides = [1, 1]} : vector<49x128xf32> to vector<1x128xf32>
    %146 = vector.shape_cast %145 : vector<1x128xf32> to vector<128xf32>
    %147 = vector.shape_cast %146 : vector<128xf32> to vector<1x1x128xf32>
    %148 = vector.broadcast %147 : vector<1x1x128xf32> to vector<8x16x128xf32>
    %149 = arith.mulf %144, %148 : vector<8x16x128xf32>
    %150 = arith.addf %134, %149 : vector<8x16x128xf32>
    %151 = vector.extract_strided_slice %136 {offsets = [0, 2, 0], sizes = [8, 16, 128], strides = [1, 1, 1]} : vector<8x24x128xf32> to vector<8x16x128xf32>
    %152 = vector.extract_strided_slice %23 {offsets = [16, 0], sizes = [1, 128], strides = [1, 1]} : vector<49x128xf32> to vector<1x128xf32>
    %153 = vector.shape_cast %152 : vector<1x128xf32> to vector<128xf32>
    %154 = vector.shape_cast %153 : vector<128xf32> to vector<1x1x128xf32>
    %155 = vector.broadcast %154 : vector<1x1x128xf32> to vector<8x16x128xf32>
    %156 = arith.mulf %151, %155 : vector<8x16x128xf32>
    %157 = arith.addf %143, %156 : vector<8x16x128xf32>
    %158 = vector.extract_strided_slice %136 {offsets = [0, 3, 0], sizes = [8, 16, 128], strides = [1, 1, 1]} : vector<8x24x128xf32> to vector<8x16x128xf32>
    %159 = vector.extract_strided_slice %23 {offsets = [17, 0], sizes = [1, 128], strides = [1, 1]} : vector<49x128xf32> to vector<1x128xf32>
    %160 = vector.shape_cast %159 : vector<1x128xf32> to vector<128xf32>
    %161 = vector.shape_cast %160 : vector<128xf32> to vector<1x1x128xf32>
    %162 = vector.broadcast %161 : vector<1x1x128xf32> to vector<8x16x128xf32>
    %163 = arith.mulf %158, %162 : vector<8x16x128xf32>
    %164 = arith.addf %150, %163 : vector<8x16x128xf32>
    %165 = vector.extract_strided_slice %136 {offsets = [0, 4, 0], sizes = [8, 16, 128], strides = [1, 1, 1]} : vector<8x24x128xf32> to vector<8x16x128xf32>
    %166 = vector.extract_strided_slice %23 {offsets = [18, 0], sizes = [1, 128], strides = [1, 1]} : vector<49x128xf32> to vector<1x128xf32>
    %167 = vector.shape_cast %166 : vector<1x128xf32> to vector<128xf32>
    %168 = vector.shape_cast %167 : vector<128xf32> to vector<1x1x128xf32>
    %169 = vector.broadcast %168 : vector<1x1x128xf32> to vector<8x16x128xf32>
    %170 = arith.mulf %165, %169 : vector<8x16x128xf32>
    %171 = arith.addf %157, %170 : vector<8x16x128xf32>
    %172 = vector.extract_strided_slice %136 {offsets = [0, 5, 0], sizes = [8, 16, 128], strides = [1, 1, 1]} : vector<8x24x128xf32> to vector<8x16x128xf32>
    %173 = vector.extract_strided_slice %23 {offsets = [19, 0], sizes = [1, 128], strides = [1, 1]} : vector<49x128xf32> to vector<1x128xf32>
    %174 = vector.shape_cast %173 : vector<1x128xf32> to vector<128xf32>
    %175 = vector.shape_cast %174 : vector<128xf32> to vector<1x1x128xf32>
    %176 = vector.broadcast %175 : vector<1x1x128xf32> to vector<8x16x128xf32>
    %177 = arith.mulf %172, %176 : vector<8x16x128xf32>
    %178 = arith.addf %164, %177 : vector<8x16x128xf32>
    %179 = vector.extract_strided_slice %136 {offsets = [0, 6, 0], sizes = [8, 16, 128], strides = [1, 1, 1]} : vector<8x24x128xf32> to vector<8x16x128xf32>
    %180 = vector.extract_strided_slice %23 {offsets = [20, 0], sizes = [1, 128], strides = [1, 1]} : vector<49x128xf32> to vector<1x128xf32>
    %181 = vector.shape_cast %180 : vector<1x128xf32> to vector<128xf32>
    %182 = vector.shape_cast %181 : vector<128xf32> to vector<1x1x128xf32>
    %183 = vector.broadcast %182 : vector<1x1x128xf32> to vector<8x16x128xf32>
    %184 = arith.mulf %179, %183 : vector<8x16x128xf32>
    %185 = arith.addf %171, %184 : vector<8x16x128xf32>
    %186 = vector.extract_strided_slice %30 {offsets = [3, 0, 0], sizes = [8, 24, 128], strides = [1, 1, 1]} : vector<14x24x128xbf16> to vector<8x24x128xbf16>
    %187 = arith.extf %186 : vector<8x24x128xbf16> to vector<8x24x128xf32>
    %188 = vector.extract_strided_slice %187 {offsets = [0, 0, 0], sizes = [8, 16, 128], strides = [1, 1, 1]} : vector<8x24x128xf32> to vector<8x16x128xf32>
    %189 = vector.extract_strided_slice %23 {offsets = [21, 0], sizes = [1, 128], strides = [1, 1]} : vector<49x128xf32> to vector<1x128xf32>
    %190 = vector.shape_cast %189 : vector<1x128xf32> to vector<128xf32>
    %191 = vector.shape_cast %190 : vector<128xf32> to vector<1x1x128xf32>
    %192 = vector.broadcast %191 : vector<1x1x128xf32> to vector<8x16x128xf32>
    %193 = arith.mulf %188, %192 : vector<8x16x128xf32>
    %194 = arith.addf %178, %193 : vector<8x16x128xf32>
    %195 = vector.extract_strided_slice %187 {offsets = [0, 1, 0], sizes = [8, 16, 128], strides = [1, 1, 1]} : vector<8x24x128xf32> to vector<8x16x128xf32>
    %196 = vector.extract_strided_slice %23 {offsets = [22, 0], sizes = [1, 128], strides = [1, 1]} : vector<49x128xf32> to vector<1x128xf32>
    %197 = vector.shape_cast %196 : vector<1x128xf32> to vector<128xf32>
    %198 = vector.shape_cast %197 : vector<128xf32> to vector<1x1x128xf32>
    %199 = vector.broadcast %198 : vector<1x1x128xf32> to vector<8x16x128xf32>
    %200 = arith.mulf %195, %199 : vector<8x16x128xf32>
    %201 = arith.addf %185, %200 : vector<8x16x128xf32>
    %202 = vector.extract_strided_slice %187 {offsets = [0, 2, 0], sizes = [8, 16, 128], strides = [1, 1, 1]} : vector<8x24x128xf32> to vector<8x16x128xf32>
    %203 = vector.extract_strided_slice %23 {offsets = [23, 0], sizes = [1, 128], strides = [1, 1]} : vector<49x128xf32> to vector<1x128xf32>
    %204 = vector.shape_cast %203 : vector<1x128xf32> to vector<128xf32>
    %205 = vector.shape_cast %204 : vector<128xf32> to vector<1x1x128xf32>
    %206 = vector.broadcast %205 : vector<1x1x128xf32> to vector<8x16x128xf32>
    %207 = arith.mulf %202, %206 : vector<8x16x128xf32>
    %208 = arith.addf %194, %207 : vector<8x16x128xf32>
    %209 = vector.extract_strided_slice %187 {offsets = [0, 3, 0], sizes = [8, 16, 128], strides = [1, 1, 1]} : vector<8x24x128xf32> to vector<8x16x128xf32>
    %210 = vector.extract_strided_slice %23 {offsets = [24, 0], sizes = [1, 128], strides = [1, 1]} : vector<49x128xf32> to vector<1x128xf32>
    %211 = vector.shape_cast %210 : vector<1x128xf32> to vector<128xf32>
    %212 = vector.shape_cast %211 : vector<128xf32> to vector<1x1x128xf32>
    %213 = vector.broadcast %212 : vector<1x1x128xf32> to vector<8x16x128xf32>
    %214 = arith.mulf %209, %213 : vector<8x16x128xf32>
    %215 = arith.addf %201, %214 : vector<8x16x128xf32>
    %216 = vector.extract_strided_slice %187 {offsets = [0, 4, 0], sizes = [8, 16, 128], strides = [1, 1, 1]} : vector<8x24x128xf32> to vector<8x16x128xf32>
    %217 = vector.extract_strided_slice %23 {offsets = [25, 0], sizes = [1, 128], strides = [1, 1]} : vector<49x128xf32> to vector<1x128xf32>
    %218 = vector.shape_cast %217 : vector<1x128xf32> to vector<128xf32>
    %219 = vector.shape_cast %218 : vector<128xf32> to vector<1x1x128xf32>
    %220 = vector.broadcast %219 : vector<1x1x128xf32> to vector<8x16x128xf32>
    %221 = arith.mulf %216, %220 : vector<8x16x128xf32>
    %222 = arith.addf %208, %221 : vector<8x16x128xf32>
    %223 = vector.extract_strided_slice %187 {offsets = [0, 5, 0], sizes = [8, 16, 128], strides = [1, 1, 1]} : vector<8x24x128xf32> to vector<8x16x128xf32>
    %224 = vector.extract_strided_slice %23 {offsets = [26, 0], sizes = [1, 128], strides = [1, 1]} : vector<49x128xf32> to vector<1x128xf32>
    %225 = vector.shape_cast %224 : vector<1x128xf32> to vector<128xf32>
    %226 = vector.shape_cast %225 : vector<128xf32> to vector<1x1x128xf32>
    %227 = vector.broadcast %226 : vector<1x1x128xf32> to vector<8x16x128xf32>
    %228 = arith.mulf %223, %227 : vector<8x16x128xf32>
    %229 = arith.addf %215, %228 : vector<8x16x128xf32>
    %230 = vector.extract_strided_slice %187 {offsets = [0, 6, 0], sizes = [8, 16, 128], strides = [1, 1, 1]} : vector<8x24x128xf32> to vector<8x16x128xf32>
    %231 = vector.extract_strided_slice %23 {offsets = [27, 0], sizes = [1, 128], strides = [1, 1]} : vector<49x128xf32> to vector<1x128xf32>
    %232 = vector.shape_cast %231 : vector<1x128xf32> to vector<128xf32>
    %233 = vector.shape_cast %232 : vector<128xf32> to vector<1x1x128xf32>
    %234 = vector.broadcast %233 : vector<1x1x128xf32> to vector<8x16x128xf32>
    %235 = arith.mulf %230, %234 : vector<8x16x128xf32>
    %236 = arith.addf %222, %235 : vector<8x16x128xf32>
    %237 = vector.extract_strided_slice %30 {offsets = [4, 0, 0], sizes = [8, 24, 128], strides = [1, 1, 1]} : vector<14x24x128xbf16> to vector<8x24x128xbf16>
    %238 = arith.extf %237 : vector<8x24x128xbf16> to vector<8x24x128xf32>
    %239 = vector.extract_strided_slice %238 {offsets = [0, 0, 0], sizes = [8, 16, 128], strides = [1, 1, 1]} : vector<8x24x128xf32> to vector<8x16x128xf32>
    %240 = vector.extract_strided_slice %23 {offsets = [28, 0], sizes = [1, 128], strides = [1, 1]} : vector<49x128xf32> to vector<1x128xf32>
    %241 = vector.shape_cast %240 : vector<1x128xf32> to vector<128xf32>
    %242 = vector.shape_cast %241 : vector<128xf32> to vector<1x1x128xf32>
    %243 = vector.broadcast %242 : vector<1x1x128xf32> to vector<8x16x128xf32>
    %244 = arith.mulf %239, %243 : vector<8x16x128xf32>
    %245 = arith.addf %229, %244 : vector<8x16x128xf32>
    %246 = vector.extract_strided_slice %238 {offsets = [0, 1, 0], sizes = [8, 16, 128], strides = [1, 1, 1]} : vector<8x24x128xf32> to vector<8x16x128xf32>
    %247 = vector.extract_strided_slice %23 {offsets = [29, 0], sizes = [1, 128], strides = [1, 1]} : vector<49x128xf32> to vector<1x128xf32>
    %248 = vector.shape_cast %247 : vector<1x128xf32> to vector<128xf32>
    %249 = vector.shape_cast %248 : vector<128xf32> to vector<1x1x128xf32>
    %250 = vector.broadcast %249 : vector<1x1x128xf32> to vector<8x16x128xf32>
    %251 = arith.mulf %246, %250 : vector<8x16x128xf32>
    %252 = arith.addf %236, %251 : vector<8x16x128xf32>
    %253 = vector.extract_strided_slice %238 {offsets = [0, 2, 0], sizes = [8, 16, 128], strides = [1, 1, 1]} : vector<8x24x128xf32> to vector<8x16x128xf32>
    %254 = vector.extract_strided_slice %23 {offsets = [30, 0], sizes = [1, 128], strides = [1, 1]} : vector<49x128xf32> to vector<1x128xf32>
    %255 = vector.shape_cast %254 : vector<1x128xf32> to vector<128xf32>
    %256 = vector.shape_cast %255 : vector<128xf32> to vector<1x1x128xf32>
    %257 = vector.broadcast %256 : vector<1x1x128xf32> to vector<8x16x128xf32>
    %258 = arith.mulf %253, %257 : vector<8x16x128xf32>
    %259 = arith.addf %245, %258 : vector<8x16x128xf32>
    %260 = vector.extract_strided_slice %238 {offsets = [0, 3, 0], sizes = [8, 16, 128], strides = [1, 1, 1]} : vector<8x24x128xf32> to vector<8x16x128xf32>
    %261 = vector.extract_strided_slice %23 {offsets = [31, 0], sizes = [1, 128], strides = [1, 1]} : vector<49x128xf32> to vector<1x128xf32>
    %262 = vector.shape_cast %261 : vector<1x128xf32> to vector<128xf32>
    %263 = vector.shape_cast %262 : vector<128xf32> to vector<1x1x128xf32>
    %264 = vector.broadcast %263 : vector<1x1x128xf32> to vector<8x16x128xf32>
    %265 = arith.mulf %260, %264 : vector<8x16x128xf32>
    %266 = arith.addf %252, %265 : vector<8x16x128xf32>
    %267 = vector.extract_strided_slice %238 {offsets = [0, 4, 0], sizes = [8, 16, 128], strides = [1, 1, 1]} : vector<8x24x128xf32> to vector<8x16x128xf32>
    %268 = vector.extract_strided_slice %23 {offsets = [32, 0], sizes = [1, 128], strides = [1, 1]} : vector<49x128xf32> to vector<1x128xf32>
    %269 = vector.shape_cast %268 : vector<1x128xf32> to vector<128xf32>
    %270 = vector.shape_cast %269 : vector<128xf32> to vector<1x1x128xf32>
    %271 = vector.broadcast %270 : vector<1x1x128xf32> to vector<8x16x128xf32>
    %272 = arith.mulf %267, %271 : vector<8x16x128xf32>
    %273 = arith.addf %259, %272 : vector<8x16x128xf32>
    %274 = vector.extract_strided_slice %238 {offsets = [0, 5, 0], sizes = [8, 16, 128], strides = [1, 1, 1]} : vector<8x24x128xf32> to vector<8x16x128xf32>
    %275 = vector.extract_strided_slice %23 {offsets = [33, 0], sizes = [1, 128], strides = [1, 1]} : vector<49x128xf32> to vector<1x128xf32>
    %276 = vector.shape_cast %275 : vector<1x128xf32> to vector<128xf32>
    %277 = vector.shape_cast %276 : vector<128xf32> to vector<1x1x128xf32>
    %278 = vector.broadcast %277 : vector<1x1x128xf32> to vector<8x16x128xf32>
    %279 = arith.mulf %274, %278 : vector<8x16x128xf32>
    %280 = arith.addf %266, %279 : vector<8x16x128xf32>
    %281 = vector.extract_strided_slice %238 {offsets = [0, 6, 0], sizes = [8, 16, 128], strides = [1, 1, 1]} : vector<8x24x128xf32> to vector<8x16x128xf32>
    %282 = vector.extract_strided_slice %23 {offsets = [34, 0], sizes = [1, 128], strides = [1, 1]} : vector<49x128xf32> to vector<1x128xf32>
    %283 = vector.shape_cast %282 : vector<1x128xf32> to vector<128xf32>
    %284 = vector.shape_cast %283 : vector<128xf32> to vector<1x1x128xf32>
    %285 = vector.broadcast %284 : vector<1x1x128xf32> to vector<8x16x128xf32>
    %286 = arith.mulf %281, %285 : vector<8x16x128xf32>
    %287 = arith.addf %273, %286 : vector<8x16x128xf32>
    %288 = vector.extract_strided_slice %30 {offsets = [5, 0, 0], sizes = [8, 24, 128], strides = [1, 1, 1]} : vector<14x24x128xbf16> to vector<8x24x128xbf16>
    %289 = arith.extf %288 : vector<8x24x128xbf16> to vector<8x24x128xf32>
    %290 = vector.extract_strided_slice %289 {offsets = [0, 0, 0], sizes = [8, 16, 128], strides = [1, 1, 1]} : vector<8x24x128xf32> to vector<8x16x128xf32>
    %291 = vector.extract_strided_slice %23 {offsets = [35, 0], sizes = [1, 128], strides = [1, 1]} : vector<49x128xf32> to vector<1x128xf32>
    %292 = vector.shape_cast %291 : vector<1x128xf32> to vector<128xf32>
    %293 = vector.shape_cast %292 : vector<128xf32> to vector<1x1x128xf32>
    %294 = vector.broadcast %293 : vector<1x1x128xf32> to vector<8x16x128xf32>
    %295 = arith.mulf %290, %294 : vector<8x16x128xf32>
    %296 = arith.addf %280, %295 : vector<8x16x128xf32>
    %297 = vector.extract_strided_slice %289 {offsets = [0, 1, 0], sizes = [8, 16, 128], strides = [1, 1, 1]} : vector<8x24x128xf32> to vector<8x16x128xf32>
    %298 = vector.extract_strided_slice %23 {offsets = [36, 0], sizes = [1, 128], strides = [1, 1]} : vector<49x128xf32> to vector<1x128xf32>
    %299 = vector.shape_cast %298 : vector<1x128xf32> to vector<128xf32>
    %300 = vector.shape_cast %299 : vector<128xf32> to vector<1x1x128xf32>
    %301 = vector.broadcast %300 : vector<1x1x128xf32> to vector<8x16x128xf32>
    %302 = arith.mulf %297, %301 : vector<8x16x128xf32>
    %303 = arith.addf %287, %302 : vector<8x16x128xf32>
    %304 = vector.extract_strided_slice %289 {offsets = [0, 2, 0], sizes = [8, 16, 128], strides = [1, 1, 1]} : vector<8x24x128xf32> to vector<8x16x128xf32>
    %305 = vector.extract_strided_slice %23 {offsets = [37, 0], sizes = [1, 128], strides = [1, 1]} : vector<49x128xf32> to vector<1x128xf32>
    %306 = vector.shape_cast %305 : vector<1x128xf32> to vector<128xf32>
    %307 = vector.shape_cast %306 : vector<128xf32> to vector<1x1x128xf32>
    %308 = vector.broadcast %307 : vector<1x1x128xf32> to vector<8x16x128xf32>
    %309 = arith.mulf %304, %308 : vector<8x16x128xf32>
    %310 = arith.addf %296, %309 : vector<8x16x128xf32>
    %311 = vector.extract_strided_slice %289 {offsets = [0, 3, 0], sizes = [8, 16, 128], strides = [1, 1, 1]} : vector<8x24x128xf32> to vector<8x16x128xf32>
    %312 = vector.extract_strided_slice %23 {offsets = [38, 0], sizes = [1, 128], strides = [1, 1]} : vector<49x128xf32> to vector<1x128xf32>
    %313 = vector.shape_cast %312 : vector<1x128xf32> to vector<128xf32>
    %314 = vector.shape_cast %313 : vector<128xf32> to vector<1x1x128xf32>
    %315 = vector.broadcast %314 : vector<1x1x128xf32> to vector<8x16x128xf32>
    %316 = arith.mulf %311, %315 : vector<8x16x128xf32>
    %317 = arith.addf %303, %316 : vector<8x16x128xf32>
    %318 = vector.extract_strided_slice %289 {offsets = [0, 4, 0], sizes = [8, 16, 128], strides = [1, 1, 1]} : vector<8x24x128xf32> to vector<8x16x128xf32>
    %319 = vector.extract_strided_slice %23 {offsets = [39, 0], sizes = [1, 128], strides = [1, 1]} : vector<49x128xf32> to vector<1x128xf32>
    %320 = vector.shape_cast %319 : vector<1x128xf32> to vector<128xf32>
    %321 = vector.shape_cast %320 : vector<128xf32> to vector<1x1x128xf32>
    %322 = vector.broadcast %321 : vector<1x1x128xf32> to vector<8x16x128xf32>
    %323 = arith.mulf %318, %322 : vector<8x16x128xf32>
    %324 = arith.addf %310, %323 : vector<8x16x128xf32>
    %325 = vector.extract_strided_slice %289 {offsets = [0, 5, 0], sizes = [8, 16, 128], strides = [1, 1, 1]} : vector<8x24x128xf32> to vector<8x16x128xf32>
    %326 = vector.extract_strided_slice %23 {offsets = [40, 0], sizes = [1, 128], strides = [1, 1]} : vector<49x128xf32> to vector<1x128xf32>
    %327 = vector.shape_cast %326 : vector<1x128xf32> to vector<128xf32>
    %328 = vector.shape_cast %327 : vector<128xf32> to vector<1x1x128xf32>
    %329 = vector.broadcast %328 : vector<1x1x128xf32> to vector<8x16x128xf32>
    %330 = arith.mulf %325, %329 : vector<8x16x128xf32>
    %331 = arith.addf %317, %330 : vector<8x16x128xf32>
    %332 = vector.extract_strided_slice %289 {offsets = [0, 6, 0], sizes = [8, 16, 128], strides = [1, 1, 1]} : vector<8x24x128xf32> to vector<8x16x128xf32>
    %333 = vector.extract_strided_slice %23 {offsets = [41, 0], sizes = [1, 128], strides = [1, 1]} : vector<49x128xf32> to vector<1x128xf32>
    %334 = vector.shape_cast %333 : vector<1x128xf32> to vector<128xf32>
    %335 = vector.shape_cast %334 : vector<128xf32> to vector<1x1x128xf32>
    %336 = vector.broadcast %335 : vector<1x1x128xf32> to vector<8x16x128xf32>
    %337 = arith.mulf %332, %336 : vector<8x16x128xf32>
    %338 = arith.addf %324, %337 : vector<8x16x128xf32>
    %339 = vector.extract_strided_slice %30 {offsets = [6, 0, 0], sizes = [8, 24, 128], strides = [1, 1, 1]} : vector<14x24x128xbf16> to vector<8x24x128xbf16>
    %340 = arith.extf %339 : vector<8x24x128xbf16> to vector<8x24x128xf32>
    %341 = vector.extract_strided_slice %340 {offsets = [0, 0, 0], sizes = [8, 16, 128], strides = [1, 1, 1]} : vector<8x24x128xf32> to vector<8x16x128xf32>
    %342 = vector.extract_strided_slice %23 {offsets = [42, 0], sizes = [1, 128], strides = [1, 1]} : vector<49x128xf32> to vector<1x128xf32>
    %343 = vector.shape_cast %342 : vector<1x128xf32> to vector<128xf32>
    %344 = vector.shape_cast %343 : vector<128xf32> to vector<1x1x128xf32>
    %345 = vector.broadcast %344 : vector<1x1x128xf32> to vector<8x16x128xf32>
    %346 = arith.mulf %341, %345 : vector<8x16x128xf32>
    %347 = arith.addf %331, %346 : vector<8x16x128xf32>
    %348 = vector.extract_strided_slice %340 {offsets = [0, 1, 0], sizes = [8, 16, 128], strides = [1, 1, 1]} : vector<8x24x128xf32> to vector<8x16x128xf32>
    %349 = vector.extract_strided_slice %23 {offsets = [43, 0], sizes = [1, 128], strides = [1, 1]} : vector<49x128xf32> to vector<1x128xf32>
    %350 = vector.shape_cast %349 : vector<1x128xf32> to vector<128xf32>
    %351 = vector.shape_cast %350 : vector<128xf32> to vector<1x1x128xf32>
    %352 = vector.broadcast %351 : vector<1x1x128xf32> to vector<8x16x128xf32>
    %353 = arith.mulf %348, %352 : vector<8x16x128xf32>
    %354 = arith.addf %338, %353 : vector<8x16x128xf32>
    %355 = vector.extract_strided_slice %340 {offsets = [0, 2, 0], sizes = [8, 16, 128], strides = [1, 1, 1]} : vector<8x24x128xf32> to vector<8x16x128xf32>
    %356 = vector.extract_strided_slice %23 {offsets = [44, 0], sizes = [1, 128], strides = [1, 1]} : vector<49x128xf32> to vector<1x128xf32>
    %357 = vector.shape_cast %356 : vector<1x128xf32> to vector<128xf32>
    %358 = vector.shape_cast %357 : vector<128xf32> to vector<1x1x128xf32>
    %359 = vector.broadcast %358 : vector<1x1x128xf32> to vector<8x16x128xf32>
    %360 = arith.mulf %355, %359 : vector<8x16x128xf32>
    %361 = arith.addf %347, %360 : vector<8x16x128xf32>
    %362 = vector.extract_strided_slice %340 {offsets = [0, 3, 0], sizes = [8, 16, 128], strides = [1, 1, 1]} : vector<8x24x128xf32> to vector<8x16x128xf32>
    %363 = vector.extract_strided_slice %23 {offsets = [45, 0], sizes = [1, 128], strides = [1, 1]} : vector<49x128xf32> to vector<1x128xf32>
    %364 = vector.shape_cast %363 : vector<1x128xf32> to vector<128xf32>
    %365 = vector.shape_cast %364 : vector<128xf32> to vector<1x1x128xf32>
    %366 = vector.broadcast %365 : vector<1x1x128xf32> to vector<8x16x128xf32>
    %367 = arith.mulf %362, %366 : vector<8x16x128xf32>
    %368 = arith.addf %354, %367 : vector<8x16x128xf32>
    %369 = vector.extract_strided_slice %340 {offsets = [0, 4, 0], sizes = [8, 16, 128], strides = [1, 1, 1]} : vector<8x24x128xf32> to vector<8x16x128xf32>
    %370 = vector.extract_strided_slice %23 {offsets = [46, 0], sizes = [1, 128], strides = [1, 1]} : vector<49x128xf32> to vector<1x128xf32>
    %371 = vector.shape_cast %370 : vector<1x128xf32> to vector<128xf32>
    %372 = vector.shape_cast %371 : vector<128xf32> to vector<1x1x128xf32>
    %373 = vector.broadcast %372 : vector<1x1x128xf32> to vector<8x16x128xf32>
    %374 = arith.mulf %369, %373 : vector<8x16x128xf32>
    %375 = arith.addf %361, %374 : vector<8x16x128xf32>
    %376 = vector.extract_strided_slice %340 {offsets = [0, 5, 0], sizes = [8, 16, 128], strides = [1, 1, 1]} : vector<8x24x128xf32> to vector<8x16x128xf32>
    %377 = vector.extract_strided_slice %23 {offsets = [47, 0], sizes = [1, 128], strides = [1, 1]} : vector<49x128xf32> to vector<1x128xf32>
    %378 = vector.shape_cast %377 : vector<1x128xf32> to vector<128xf32>
    %379 = vector.shape_cast %378 : vector<128xf32> to vector<1x1x128xf32>
    %380 = vector.broadcast %379 : vector<1x1x128xf32> to vector<8x16x128xf32>
    %381 = arith.mulf %376, %380 : vector<8x16x128xf32>
    %382 = arith.addf %368, %381 : vector<8x16x128xf32>
    %383 = vector.extract_strided_slice %340 {offsets = [0, 6, 0], sizes = [8, 16, 128], strides = [1, 1, 1]} : vector<8x24x128xf32> to vector<8x16x128xf32>
    %384 = vector.extract_strided_slice %23 {offsets = [48, 0], sizes = [1, 128], strides = [1, 1]} : vector<49x128xf32> to vector<1x128xf32>
    %385 = vector.shape_cast %384 : vector<1x128xf32> to vector<128xf32>
    %386 = vector.shape_cast %385 : vector<128xf32> to vector<1x1x128xf32>
    %387 = vector.broadcast %386 : vector<1x1x128xf32> to vector<8x16x128xf32>
    %388 = arith.mulf %383, %387 : vector<8x16x128xf32>
    %389 = arith.addf %375, %388 : vector<8x16x128xf32>
    %390 = arith.addf %389, %382 : vector<8x16x128xf32>
    %391 = vector.shape_cast %390 : vector<8x16x128xf32> to vector<128x128xf32>
    %392 = arith.truncf %391 : vector<128x128xf32> to vector<128x128xbf16>
    %cst_27 = arith.constant dense<0.000000e+00> : vector<128x128xf32>
    %393 = tpu.matmul %392, %24, %cst_27 {dimension_numbers = #tpu.dot_dimension_numbers<[1], [0], [0], [1], [0, 0, 1, 1], [], []>} : vector<128x128xbf16>, vector<128x128xbf16>, vector<128x128xf32> -> vector<128x128xf32>
    %394 = vector.broadcast %25 : vector<1x128xf32> to vector<128x128xf32>
    %395 = arith.addf %393, %394 : vector<128x128xf32>
    %cst_28 = arith.constant 5.000000e-01 : f32
    %396 = vector.broadcast %cst_28 : f32 to vector<128x128xf32>
    %397 = arith.mulf %396, %395 : vector<128x128xf32>
    %cst_29 = arith.constant 0.707106769 : f32
    %398 = vector.broadcast %cst_29 : f32 to vector<128x128xf32>
    %399 = arith.mulf %395, %398 : vector<128x128xf32>
    %400 = math.erf %399 : vector<128x128xf32>
    %cst_30 = arith.constant 1.000000e+00 : f32
    %401 = vector.broadcast %cst_30 : f32 to vector<128x128xf32>
    %402 = arith.addf %401, %400 : vector<128x128xf32>
    %403 = arith.mulf %397, %402 : vector<128x128xf32>
    %404 = arith.truncf %403 : vector<128x128xf32> to vector<128x128xbf16>
    %cst_31 = arith.constant dense<0.000000e+00> : vector<128x128xf32>
    %405 = tpu.matmul %404, %26, %cst_31 {dimension_numbers = #tpu.dot_dimension_numbers<[1], [0], [0], [1], [0, 0, 1, 1], [], []>} : vector<128x128xbf16>, vector<128x128xbf16>, vector<128x128xf32> -> vector<128x128xf32>
    %406 = vector.broadcast %27 : vector<1x128xf32> to vector<128x128xf32>
    %407 = arith.addf %405, %406 : vector<128x128xf32>
    %408 = vector.extract_strided_slice %30 {offsets = [3, 3, 0], sizes = [8, 16, 128], strides = [1, 1, 1]} : vector<14x24x128xbf16> to vector<8x16x128xbf16>
    %409 = arith.extf %408 : vector<8x16x128xbf16> to vector<8x16x128xf32>
    %410 = vector.shape_cast %407 : vector<128x128xf32> to vector<8x16x128xf32>
    %411 = arith.addf %409, %410 : vector<8x16x128xf32>
    %c0_32 = arith.constant 0 : index
    %c0_33 = arith.constant 0 : index
    %c0_34 = arith.constant 0 : index
    %c0_35 = arith.constant 0 : index
    %412 = vector.load %arg8[%c0_32, %c0_33, %c0_34, %c0_35] : memref<1x16x16x128xf32, #tpu.memory_space<vmem>>, vector<1x8x16x128xf32>
    %413 = vector.shape_cast %412 : vector<1x8x16x128xf32> to vector<8x16x128xf32>
    %414 = vector.shape_cast %411 : vector<8x16x128xf32> to vector<1x8x16x128xf32>
    tpu.vector_store %arg8[%c0_32, %c0_33, %c0_34, %c0_35], %414 {strides = array<i32>} : memref<1x16x16x128xf32, #tpu.memory_space<vmem>>, vector<1x8x16x128xf32>,
    %415 = arith.index_cast %9 : i32 to index
    %c8 = arith.constant 8 : index
    %c0_36 = arith.constant 0 : index
    %c0_37 = arith.constant 0 : index
    %416 = vector.load %arg9[%415, %c8, %c0_36, %c0_37] : memref<2x22x24x128xbf16, #tpu.memory_space<vmem>>, vector<1x14x24x128xbf16>
    %417 = vector.shape_cast %416 : vector<1x14x24x128xbf16> to vector<14x24x128xbf16>
    %cst_38 = arith.constant 0.000000e+00 : f32
    %418 = vector.broadcast %cst_38 : f32 to vector<8x16x128xf32>
    %cst_39 = arith.constant 0.000000e+00 : f32
    %419 = vector.broadcast %cst_39 : f32 to vector<8x16x128xf32>
    %420 = vector.extract_strided_slice %417 {offsets = [0, 0, 0], sizes = [8, 24, 128], strides = [1, 1, 1]} : vector<14x24x128xbf16> to vector<8x24x128xbf16>
    %421 = arith.extf %420 : vector<8x24x128xbf16> to vector<8x24x128xf32>
    %422 = vector.extract_strided_slice %421 {offsets = [0, 0, 0], sizes = [8, 16, 128], strides = [1, 1, 1]} : vector<8x24x128xf32> to vector<8x16x128xf32>
    %423 = vector.extract_strided_slice %23 {offsets = [0, 0], sizes = [1, 128], strides = [1, 1]} : vector<49x128xf32> to vector<1x128xf32>
    %424 = vector.shape_cast %423 : vector<1x128xf32> to vector<128xf32>
    %425 = vector.shape_cast %424 : vector<128xf32> to vector<1x1x128xf32>
    %426 = vector.broadcast %425 : vector<1x1x128xf32> to vector<8x16x128xf32>
    %427 = arith.mulf %422, %426 : vector<8x16x128xf32>
    %428 = arith.addf %418, %427 : vector<8x16x128xf32>
    %429 = vector.extract_strided_slice %421 {offsets = [0, 1, 0], sizes = [8, 16, 128], strides = [1, 1, 1]} : vector<8x24x128xf32> to vector<8x16x128xf32>
    %430 = vector.extract_strided_slice %23 {offsets = [1, 0], sizes = [1, 128], strides = [1, 1]} : vector<49x128xf32> to vector<1x128xf32>
    %431 = vector.shape_cast %430 : vector<1x128xf32> to vector<128xf32>
    %432 = vector.shape_cast %431 : vector<128xf32> to vector<1x1x128xf32>
    %433 = vector.broadcast %432 : vector<1x1x128xf32> to vector<8x16x128xf32>
    %434 = arith.mulf %429, %433 : vector<8x16x128xf32>
    %435 = arith.addf %419, %434 : vector<8x16x128xf32>
    %436 = vector.extract_strided_slice %421 {offsets = [0, 2, 0], sizes = [8, 16, 128], strides = [1, 1, 1]} : vector<8x24x128xf32> to vector<8x16x128xf32>
    %437 = vector.extract_strided_slice %23 {offsets = [2, 0], sizes = [1, 128], strides = [1, 1]} : vector<49x128xf32> to vector<1x128xf32>
    %438 = vector.shape_cast %437 : vector<1x128xf32> to vector<128xf32>
    %439 = vector.shape_cast %438 : vector<128xf32> to vector<1x1x128xf32>
    %440 = vector.broadcast %439 : vector<1x1x128xf32> to vector<8x16x128xf32>
    %441 = arith.mulf %436, %440 : vector<8x16x128xf32>
    %442 = arith.addf %428, %441 : vector<8x16x128xf32>
    %443 = vector.extract_strided_slice %421 {offsets = [0, 3, 0], sizes = [8, 16, 128], strides = [1, 1, 1]} : vector<8x24x128xf32> to vector<8x16x128xf32>
    %444 = vector.extract_strided_slice %23 {offsets = [3, 0], sizes = [1, 128], strides = [1, 1]} : vector<49x128xf32> to vector<1x128xf32>
    %445 = vector.shape_cast %444 : vector<1x128xf32> to vector<128xf32>
    %446 = vector.shape_cast %445 : vector<128xf32> to vector<1x1x128xf32>
    %447 = vector.broadcast %446 : vector<1x1x128xf32> to vector<8x16x128xf32>
    %448 = arith.mulf %443, %447 : vector<8x16x128xf32>
    %449 = arith.addf %435, %448 : vector<8x16x128xf32>
    %450 = vector.extract_strided_slice %421 {offsets = [0, 4, 0], sizes = [8, 16, 128], strides = [1, 1, 1]} : vector<8x24x128xf32> to vector<8x16x128xf32>
    %451 = vector.extract_strided_slice %23 {offsets = [4, 0], sizes = [1, 128], strides = [1, 1]} : vector<49x128xf32> to vector<1x128xf32>
    %452 = vector.shape_cast %451 : vector<1x128xf32> to vector<128xf32>
    %453 = vector.shape_cast %452 : vector<128xf32> to vector<1x1x128xf32>
    %454 = vector.broadcast %453 : vector<1x1x128xf32> to vector<8x16x128xf32>
    %455 = arith.mulf %450, %454 : vector<8x16x128xf32>
    %456 = arith.addf %442, %455 : vector<8x16x128xf32>
    %457 = vector.extract_strided_slice %421 {offsets = [0, 5, 0], sizes = [8, 16, 128], strides = [1, 1, 1]} : vector<8x24x128xf32> to vector<8x16x128xf32>
    %458 = vector.extract_strided_slice %23 {offsets = [5, 0], sizes = [1, 128], strides = [1, 1]} : vector<49x128xf32> to vector<1x128xf32>
    %459 = vector.shape_cast %458 : vector<1x128xf32> to vector<128xf32>
    %460 = vector.shape_cast %459 : vector<128xf32> to vector<1x1x128xf32>
    %461 = vector.broadcast %460 : vector<1x1x128xf32> to vector<8x16x128xf32>
    %462 = arith.mulf %457, %461 : vector<8x16x128xf32>
    %463 = arith.addf %449, %462 : vector<8x16x128xf32>
    %464 = vector.extract_strided_slice %421 {offsets = [0, 6, 0], sizes = [8, 16, 128], strides = [1, 1, 1]} : vector<8x24x128xf32> to vector<8x16x128xf32>
    %465 = vector.extract_strided_slice %23 {offsets = [6, 0], sizes = [1, 128], strides = [1, 1]} : vector<49x128xf32> to vector<1x128xf32>
    %466 = vector.shape_cast %465 : vector<1x128xf32> to vector<128xf32>
    %467 = vector.shape_cast %466 : vector<128xf32> to vector<1x1x128xf32>
    %468 = vector.broadcast %467 : vector<1x1x128xf32> to vector<8x16x128xf32>
    %469 = arith.mulf %464, %468 : vector<8x16x128xf32>
    %470 = arith.addf %456, %469 : vector<8x16x128xf32>
    %471 = vector.extract_strided_slice %417 {offsets = [1, 0, 0], sizes = [8, 24, 128], strides = [1, 1, 1]} : vector<14x24x128xbf16> to vector<8x24x128xbf16>
    %472 = arith.extf %471 : vector<8x24x128xbf16> to vector<8x24x128xf32>
    %473 = vector.extract_strided_slice %472 {offsets = [0, 0, 0], sizes = [8, 16, 128], strides = [1, 1, 1]} : vector<8x24x128xf32> to vector<8x16x128xf32>
    %474 = vector.extract_strided_slice %23 {offsets = [7, 0], sizes = [1, 128], strides = [1, 1]} : vector<49x128xf32> to vector<1x128xf32>
    %475 = vector.shape_cast %474 : vector<1x128xf32> to vector<128xf32>
    %476 = vector.shape_cast %475 : vector<128xf32> to vector<1x1x128xf32>
    %477 = vector.broadcast %476 : vector<1x1x128xf32> to vector<8x16x128xf32>
    %478 = arith.mulf %473, %477 : vector<8x16x128xf32>
    %479 = arith.addf %463, %478 : vector<8x16x128xf32>
    %480 = vector.extract_strided_slice %472 {offsets = [0, 1, 0], sizes = [8, 16, 128], strides = [1, 1, 1]} : vector<8x24x128xf32> to vector<8x16x128xf32>
    %481 = vector.extract_strided_slice %23 {offsets = [8, 0], sizes = [1, 128], strides = [1, 1]} : vector<49x128xf32> to vector<1x128xf32>
    %482 = vector.shape_cast %481 : vector<1x128xf32> to vector<128xf32>
    %483 = vector.shape_cast %482 : vector<128xf32> to vector<1x1x128xf32>
    %484 = vector.broadcast %483 : vector<1x1x128xf32> to vector<8x16x128xf32>
    %485 = arith.mulf %480, %484 : vector<8x16x128xf32>
    %486 = arith.addf %470, %485 : vector<8x16x128xf32>
    %487 = vector.extract_strided_slice %472 {offsets = [0, 2, 0], sizes = [8, 16, 128], strides = [1, 1, 1]} : vector<8x24x128xf32> to vector<8x16x128xf32>
    %488 = vector.extract_strided_slice %23 {offsets = [9, 0], sizes = [1, 128], strides = [1, 1]} : vector<49x128xf32> to vector<1x128xf32>
    %489 = vector.shape_cast %488 : vector<1x128xf32> to vector<128xf32>
    %490 = vector.shape_cast %489 : vector<128xf32> to vector<1x1x128xf32>
    %491 = vector.broadcast %490 : vector<1x1x128xf32> to vector<8x16x128xf32>
    %492 = arith.mulf %487, %491 : vector<8x16x128xf32>
    %493 = arith.addf %479, %492 : vector<8x16x128xf32>
    %494 = vector.extract_strided_slice %472 {offsets = [0, 3, 0], sizes = [8, 16, 128], strides = [1, 1, 1]} : vector<8x24x128xf32> to vector<8x16x128xf32>
    %495 = vector.extract_strided_slice %23 {offsets = [10, 0], sizes = [1, 128], strides = [1, 1]} : vector<49x128xf32> to vector<1x128xf32>
    %496 = vector.shape_cast %495 : vector<1x128xf32> to vector<128xf32>
    %497 = vector.shape_cast %496 : vector<128xf32> to vector<1x1x128xf32>
    %498 = vector.broadcast %497 : vector<1x1x128xf32> to vector<8x16x128xf32>
    %499 = arith.mulf %494, %498 : vector<8x16x128xf32>
    %500 = arith.addf %486, %499 : vector<8x16x128xf32>
    %501 = vector.extract_strided_slice %472 {offsets = [0, 4, 0], sizes = [8, 16, 128], strides = [1, 1, 1]} : vector<8x24x128xf32> to vector<8x16x128xf32>
    %502 = vector.extract_strided_slice %23 {offsets = [11, 0], sizes = [1, 128], strides = [1, 1]} : vector<49x128xf32> to vector<1x128xf32>
    %503 = vector.shape_cast %502 : vector<1x128xf32> to vector<128xf32>
    %504 = vector.shape_cast %503 : vector<128xf32> to vector<1x1x128xf32>
    %505 = vector.broadcast %504 : vector<1x1x128xf32> to vector<8x16x128xf32>
    %506 = arith.mulf %501, %505 : vector<8x16x128xf32>
    %507 = arith.addf %493, %506 : vector<8x16x128xf32>
    %508 = vector.extract_strided_slice %472 {offsets = [0, 5, 0], sizes = [8, 16, 128], strides = [1, 1, 1]} : vector<8x24x128xf32> to vector<8x16x128xf32>
    %509 = vector.extract_strided_slice %23 {offsets = [12, 0], sizes = [1, 128], strides = [1, 1]} : vector<49x128xf32> to vector<1x128xf32>
    %510 = vector.shape_cast %509 : vector<1x128xf32> to vector<128xf32>
    %511 = vector.shape_cast %510 : vector<128xf32> to vector<1x1x128xf32>
    %512 = vector.broadcast %511 : vector<1x1x128xf32> to vector<8x16x128xf32>
    %513 = arith.mulf %508, %512 : vector<8x16x128xf32>
    %514 = arith.addf %500, %513 : vector<8x16x128xf32>
    %515 = vector.extract_strided_slice %472 {offsets = [0, 6, 0], sizes = [8, 16, 128], strides = [1, 1, 1]} : vector<8x24x128xf32> to vector<8x16x128xf32>
    %516 = vector.extract_strided_slice %23 {offsets = [13, 0], sizes = [1, 128], strides = [1, 1]} : vector<49x128xf32> to vector<1x128xf32>
    %517 = vector.shape_cast %516 : vector<1x128xf32> to vector<128xf32>
    %518 = vector.shape_cast %517 : vector<128xf32> to vector<1x1x128xf32>
    %519 = vector.broadcast %518 : vector<1x1x128xf32> to vector<8x16x128xf32>
    %520 = arith.mulf %515, %519 : vector<8x16x128xf32>
    %521 = arith.addf %507, %520 : vector<8x16x128xf32>
    %522 = vector.extract_strided_slice %417 {offsets = [2, 0, 0], sizes = [8, 24, 128], strides = [1, 1, 1]} : vector<14x24x128xbf16> to vector<8x24x128xbf16>
    %523 = arith.extf %522 : vector<8x24x128xbf16> to vector<8x24x128xf32>
    %524 = vector.extract_strided_slice %523 {offsets = [0, 0, 0], sizes = [8, 16, 128], strides = [1, 1, 1]} : vector<8x24x128xf32> to vector<8x16x128xf32>
    %525 = vector.extract_strided_slice %23 {offsets = [14, 0], sizes = [1, 128], strides = [1, 1]} : vector<49x128xf32> to vector<1x128xf32>
    %526 = vector.shape_cast %525 : vector<1x128xf32> to vector<128xf32>
    %527 = vector.shape_cast %526 : vector<128xf32> to vector<1x1x128xf32>
    %528 = vector.broadcast %527 : vector<1x1x128xf32> to vector<8x16x128xf32>
    %529 = arith.mulf %524, %528 : vector<8x16x128xf32>
    %530 = arith.addf %514, %529 : vector<8x16x128xf32>
    %531 = vector.extract_strided_slice %523 {offsets = [0, 1, 0], sizes = [8, 16, 128], strides = [1, 1, 1]} : vector<8x24x128xf32> to vector<8x16x128xf32>
    %532 = vector.extract_strided_slice %23 {offsets = [15, 0], sizes = [1, 128], strides = [1, 1]} : vector<49x128xf32> to vector<1x128xf32>
    %533 = vector.shape_cast %532 : vector<1x128xf32> to vector<128xf32>
    %534 = vector.shape_cast %533 : vector<128xf32> to vector<1x1x128xf32>
    %535 = vector.broadcast %534 : vector<1x1x128xf32> to vector<8x16x128xf32>
    %536 = arith.mulf %531, %535 : vector<8x16x128xf32>
    %537 = arith.addf %521, %536 : vector<8x16x128xf32>
    %538 = vector.extract_strided_slice %523 {offsets = [0, 2, 0], sizes = [8, 16, 128], strides = [1, 1, 1]} : vector<8x24x128xf32> to vector<8x16x128xf32>
    %539 = vector.extract_strided_slice %23 {offsets = [16, 0], sizes = [1, 128], strides = [1, 1]} : vector<49x128xf32> to vector<1x128xf32>
    %540 = vector.shape_cast %539 : vector<1x128xf32> to vector<128xf32>
    %541 = vector.shape_cast %540 : vector<128xf32> to vector<1x1x128xf32>
    %542 = vector.broadcast %541 : vector<1x1x128xf32> to vector<8x16x128xf32>
    %543 = arith.mulf %538, %542 : vector<8x16x128xf32>
    %544 = arith.addf %530, %543 : vector<8x16x128xf32>
    %545 = vector.extract_strided_slice %523 {offsets = [0, 3, 0], sizes = [8, 16, 128], strides = [1, 1, 1]} : vector<8x24x128xf32> to vector<8x16x128xf32>
    %546 = vector.extract_strided_slice %23 {offsets = [17, 0], sizes = [1, 128], strides = [1, 1]} : vector<49x128xf32> to vector<1x128xf32>
    %547 = vector.shape_cast %546 : vector<1x128xf32> to vector<128xf32>
    %548 = vector.shape_cast %547 : vector<128xf32> to vector<1x1x128xf32>
    %549 = vector.broadcast %548 : vector<1x1x128xf32> to vector<8x16x128xf32>
    %550 = arith.mulf %545, %549 : vector<8x16x128xf32>
    %551 = arith.addf %537, %550 : vector<8x16x128xf32>
    %552 = vector.extract_strided_slice %523 {offsets = [0, 4, 0], sizes = [8, 16, 128], strides = [1, 1, 1]} : vector<8x24x128xf32> to vector<8x16x128xf32>
    %553 = vector.extract_strided_slice %23 {offsets = [18, 0], sizes = [1, 128], strides = [1, 1]} : vector<49x128xf32> to vector<1x128xf32>
    %554 = vector.shape_cast %553 : vector<1x128xf32> to vector<128xf32>
    %555 = vector.shape_cast %554 : vector<128xf32> to vector<1x1x128xf32>
    %556 = vector.broadcast %555 : vector<1x1x128xf32> to vector<8x16x128xf32>
    %557 = arith.mulf %552, %556 : vector<8x16x128xf32>
    %558 = arith.addf %544, %557 : vector<8x16x128xf32>
    %559 = vector.extract_strided_slice %523 {offsets = [0, 5, 0], sizes = [8, 16, 128], strides = [1, 1, 1]} : vector<8x24x128xf32> to vector<8x16x128xf32>
    %560 = vector.extract_strided_slice %23 {offsets = [19, 0], sizes = [1, 128], strides = [1, 1]} : vector<49x128xf32> to vector<1x128xf32>
    %561 = vector.shape_cast %560 : vector<1x128xf32> to vector<128xf32>
    %562 = vector.shape_cast %561 : vector<128xf32> to vector<1x1x128xf32>
    %563 = vector.broadcast %562 : vector<1x1x128xf32> to vector<8x16x128xf32>
    %564 = arith.mulf %559, %563 : vector<8x16x128xf32>
    %565 = arith.addf %551, %564 : vector<8x16x128xf32>
    %566 = vector.extract_strided_slice %523 {offsets = [0, 6, 0], sizes = [8, 16, 128], strides = [1, 1, 1]} : vector<8x24x128xf32> to vector<8x16x128xf32>
    %567 = vector.extract_strided_slice %23 {offsets = [20, 0], sizes = [1, 128], strides = [1, 1]} : vector<49x128xf32> to vector<1x128xf32>
    %568 = vector.shape_cast %567 : vector<1x128xf32> to vector<128xf32>
    %569 = vector.shape_cast %568 : vector<128xf32> to vector<1x1x128xf32>
    %570 = vector.broadcast %569 : vector<1x1x128xf32> to vector<8x16x128xf32>
    %571 = arith.mulf %566, %570 : vector<8x16x128xf32>
    %572 = arith.addf %558, %571 : vector<8x16x128xf32>
    %573 = vector.extract_strided_slice %417 {offsets = [3, 0, 0], sizes = [8, 24, 128], strides = [1, 1, 1]} : vector<14x24x128xbf16> to vector<8x24x128xbf16>
    %574 = arith.extf %573 : vector<8x24x128xbf16> to vector<8x24x128xf32>
    %575 = vector.extract_strided_slice %574 {offsets = [0, 0, 0], sizes = [8, 16, 128], strides = [1, 1, 1]} : vector<8x24x128xf32> to vector<8x16x128xf32>
    %576 = vector.extract_strided_slice %23 {offsets = [21, 0], sizes = [1, 128], strides = [1, 1]} : vector<49x128xf32> to vector<1x128xf32>
    %577 = vector.shape_cast %576 : vector<1x128xf32> to vector<128xf32>
    %578 = vector.shape_cast %577 : vector<128xf32> to vector<1x1x128xf32>
    %579 = vector.broadcast %578 : vector<1x1x128xf32> to vector<8x16x128xf32>
    %580 = arith.mulf %575, %579 : vector<8x16x128xf32>
    %581 = arith.addf %565, %580 : vector<8x16x128xf32>
    %582 = vector.extract_strided_slice %574 {offsets = [0, 1, 0], sizes = [8, 16, 128], strides = [1, 1, 1]} : vector<8x24x128xf32> to vector<8x16x128xf32>
    %583 = vector.extract_strided_slice %23 {offsets = [22, 0], sizes = [1, 128], strides = [1, 1]} : vector<49x128xf32> to vector<1x128xf32>
    %584 = vector.shape_cast %583 : vector<1x128xf32> to vector<128xf32>
    %585 = vector.shape_cast %584 : vector<128xf32> to vector<1x1x128xf32>
    %586 = vector.broadcast %585 : vector<1x1x128xf32> to vector<8x16x128xf32>
    %587 = arith.mulf %582, %586 : vector<8x16x128xf32>
    %588 = arith.addf %572, %587 : vector<8x16x128xf32>
    %589 = vector.extract_strided_slice %574 {offsets = [0, 2, 0], sizes = [8, 16, 128], strides = [1, 1, 1]} : vector<8x24x128xf32> to vector<8x16x128xf32>
    %590 = vector.extract_strided_slice %23 {offsets = [23, 0], sizes = [1, 128], strides = [1, 1]} : vector<49x128xf32> to vector<1x128xf32>
    %591 = vector.shape_cast %590 : vector<1x128xf32> to vector<128xf32>
    %592 = vector.shape_cast %591 : vector<128xf32> to vector<1x1x128xf32>
    %593 = vector.broadcast %592 : vector<1x1x128xf32> to vector<8x16x128xf32>
    %594 = arith.mulf %589, %593 : vector<8x16x128xf32>
    %595 = arith.addf %581, %594 : vector<8x16x128xf32>
    %596 = vector.extract_strided_slice %574 {offsets = [0, 3, 0], sizes = [8, 16, 128], strides = [1, 1, 1]} : vector<8x24x128xf32> to vector<8x16x128xf32>
    %597 = vector.extract_strided_slice %23 {offsets = [24, 0], sizes = [1, 128], strides = [1, 1]} : vector<49x128xf32> to vector<1x128xf32>
    %598 = vector.shape_cast %597 : vector<1x128xf32> to vector<128xf32>
    %599 = vector.shape_cast %598 : vector<128xf32> to vector<1x1x128xf32>
    %600 = vector.broadcast %599 : vector<1x1x128xf32> to vector<8x16x128xf32>
    %601 = arith.mulf %596, %600 : vector<8x16x128xf32>
    %602 = arith.addf %588, %601 : vector<8x16x128xf32>
    %603 = vector.extract_strided_slice %574 {offsets = [0, 4, 0], sizes = [8, 16, 128], strides = [1, 1, 1]} : vector<8x24x128xf32> to vector<8x16x128xf32>
    %604 = vector.extract_strided_slice %23 {offsets = [25, 0], sizes = [1, 128], strides = [1, 1]} : vector<49x128xf32> to vector<1x128xf32>
    %605 = vector.shape_cast %604 : vector<1x128xf32> to vector<128xf32>
    %606 = vector.shape_cast %605 : vector<128xf32> to vector<1x1x128xf32>
    %607 = vector.broadcast %606 : vector<1x1x128xf32> to vector<8x16x128xf32>
    %608 = arith.mulf %603, %607 : vector<8x16x128xf32>
    %609 = arith.addf %595, %608 : vector<8x16x128xf32>
    %610 = vector.extract_strided_slice %574 {offsets = [0, 5, 0], sizes = [8, 16, 128], strides = [1, 1, 1]} : vector<8x24x128xf32> to vector<8x16x128xf32>
    %611 = vector.extract_strided_slice %23 {offsets = [26, 0], sizes = [1, 128], strides = [1, 1]} : vector<49x128xf32> to vector<1x128xf32>
    %612 = vector.shape_cast %611 : vector<1x128xf32> to vector<128xf32>
    %613 = vector.shape_cast %612 : vector<128xf32> to vector<1x1x128xf32>
    %614 = vector.broadcast %613 : vector<1x1x128xf32> to vector<8x16x128xf32>
    %615 = arith.mulf %610, %614 : vector<8x16x128xf32>
    %616 = arith.addf %602, %615 : vector<8x16x128xf32>
    %617 = vector.extract_strided_slice %574 {offsets = [0, 6, 0], sizes = [8, 16, 128], strides = [1, 1, 1]} : vector<8x24x128xf32> to vector<8x16x128xf32>
    %618 = vector.extract_strided_slice %23 {offsets = [27, 0], sizes = [1, 128], strides = [1, 1]} : vector<49x128xf32> to vector<1x128xf32>
    %619 = vector.shape_cast %618 : vector<1x128xf32> to vector<128xf32>
    %620 = vector.shape_cast %619 : vector<128xf32> to vector<1x1x128xf32>
    %621 = vector.broadcast %620 : vector<1x1x128xf32> to vector<8x16x128xf32>
    %622 = arith.mulf %617, %621 : vector<8x16x128xf32>
    %623 = arith.addf %609, %622 : vector<8x16x128xf32>
    %624 = vector.extract_strided_slice %417 {offsets = [4, 0, 0], sizes = [8, 24, 128], strides = [1, 1, 1]} : vector<14x24x128xbf16> to vector<8x24x128xbf16>
    %625 = arith.extf %624 : vector<8x24x128xbf16> to vector<8x24x128xf32>
    %626 = vector.extract_strided_slice %625 {offsets = [0, 0, 0], sizes = [8, 16, 128], strides = [1, 1, 1]} : vector<8x24x128xf32> to vector<8x16x128xf32>
    %627 = vector.extract_strided_slice %23 {offsets = [28, 0], sizes = [1, 128], strides = [1, 1]} : vector<49x128xf32> to vector<1x128xf32>
    %628 = vector.shape_cast %627 : vector<1x128xf32> to vector<128xf32>
    %629 = vector.shape_cast %628 : vector<128xf32> to vector<1x1x128xf32>
    %630 = vector.broadcast %629 : vector<1x1x128xf32> to vector<8x16x128xf32>
    %631 = arith.mulf %626, %630 : vector<8x16x128xf32>
    %632 = arith.addf %616, %631 : vector<8x16x128xf32>
    %633 = vector.extract_strided_slice %625 {offsets = [0, 1, 0], sizes = [8, 16, 128], strides = [1, 1, 1]} : vector<8x24x128xf32> to vector<8x16x128xf32>
    %634 = vector.extract_strided_slice %23 {offsets = [29, 0], sizes = [1, 128], strides = [1, 1]} : vector<49x128xf32> to vector<1x128xf32>
    %635 = vector.shape_cast %634 : vector<1x128xf32> to vector<128xf32>
    %636 = vector.shape_cast %635 : vector<128xf32> to vector<1x1x128xf32>
    %637 = vector.broadcast %636 : vector<1x1x128xf32> to vector<8x16x128xf32>
    %638 = arith.mulf %633, %637 : vector<8x16x128xf32>
    %639 = arith.addf %623, %638 : vector<8x16x128xf32>
    %640 = vector.extract_strided_slice %625 {offsets = [0, 2, 0], sizes = [8, 16, 128], strides = [1, 1, 1]} : vector<8x24x128xf32> to vector<8x16x128xf32>
    %641 = vector.extract_strided_slice %23 {offsets = [30, 0], sizes = [1, 128], strides = [1, 1]} : vector<49x128xf32> to vector<1x128xf32>
    %642 = vector.shape_cast %641 : vector<1x128xf32> to vector<128xf32>
    %643 = vector.shape_cast %642 : vector<128xf32> to vector<1x1x128xf32>
    %644 = vector.broadcast %643 : vector<1x1x128xf32> to vector<8x16x128xf32>
    %645 = arith.mulf %640, %644 : vector<8x16x128xf32>
    %646 = arith.addf %632, %645 : vector<8x16x128xf32>
    %647 = vector.extract_strided_slice %625 {offsets = [0, 3, 0], sizes = [8, 16, 128], strides = [1, 1, 1]} : vector<8x24x128xf32> to vector<8x16x128xf32>
    %648 = vector.extract_strided_slice %23 {offsets = [31, 0], sizes = [1, 128], strides = [1, 1]} : vector<49x128xf32> to vector<1x128xf32>
    %649 = vector.shape_cast %648 : vector<1x128xf32> to vector<128xf32>
    %650 = vector.shape_cast %649 : vector<128xf32> to vector<1x1x128xf32>
    %651 = vector.broadcast %650 : vector<1x1x128xf32> to vector<8x16x128xf32>
    %652 = arith.mulf %647, %651 : vector<8x16x128xf32>
    %653 = arith.addf %639, %652 : vector<8x16x128xf32>
    %654 = vector.extract_strided_slice %625 {offsets = [0, 4, 0], sizes = [8, 16, 128], strides = [1, 1, 1]} : vector<8x24x128xf32> to vector<8x16x128xf32>
    %655 = vector.extract_strided_slice %23 {offsets = [32, 0], sizes = [1, 128], strides = [1, 1]} : vector<49x128xf32> to vector<1x128xf32>
    %656 = vector.shape_cast %655 : vector<1x128xf32> to vector<128xf32>
    %657 = vector.shape_cast %656 : vector<128xf32> to vector<1x1x128xf32>
    %658 = vector.broadcast %657 : vector<1x1x128xf32> to vector<8x16x128xf32>
    %659 = arith.mulf %654, %658 : vector<8x16x128xf32>
    %660 = arith.addf %646, %659 : vector<8x16x128xf32>
    %661 = vector.extract_strided_slice %625 {offsets = [0, 5, 0], sizes = [8, 16, 128], strides = [1, 1, 1]} : vector<8x24x128xf32> to vector<8x16x128xf32>
    %662 = vector.extract_strided_slice %23 {offsets = [33, 0], sizes = [1, 128], strides = [1, 1]} : vector<49x128xf32> to vector<1x128xf32>
    %663 = vector.shape_cast %662 : vector<1x128xf32> to vector<128xf32>
    %664 = vector.shape_cast %663 : vector<128xf32> to vector<1x1x128xf32>
    %665 = vector.broadcast %664 : vector<1x1x128xf32> to vector<8x16x128xf32>
    %666 = arith.mulf %661, %665 : vector<8x16x128xf32>
    %667 = arith.addf %653, %666 : vector<8x16x128xf32>
    %668 = vector.extract_strided_slice %625 {offsets = [0, 6, 0], sizes = [8, 16, 128], strides = [1, 1, 1]} : vector<8x24x128xf32> to vector<8x16x128xf32>
    %669 = vector.extract_strided_slice %23 {offsets = [34, 0], sizes = [1, 128], strides = [1, 1]} : vector<49x128xf32> to vector<1x128xf32>
    %670 = vector.shape_cast %669 : vector<1x128xf32> to vector<128xf32>
    %671 = vector.shape_cast %670 : vector<128xf32> to vector<1x1x128xf32>
    %672 = vector.broadcast %671 : vector<1x1x128xf32> to vector<8x16x128xf32>
    %673 = arith.mulf %668, %672 : vector<8x16x128xf32>
    %674 = arith.addf %660, %673 : vector<8x16x128xf32>
    %675 = vector.extract_strided_slice %417 {offsets = [5, 0, 0], sizes = [8, 24, 128], strides = [1, 1, 1]} : vector<14x24x128xbf16> to vector<8x24x128xbf16>
    %676 = arith.extf %675 : vector<8x24x128xbf16> to vector<8x24x128xf32>
    %677 = vector.extract_strided_slice %676 {offsets = [0, 0, 0], sizes = [8, 16, 128], strides = [1, 1, 1]} : vector<8x24x128xf32> to vector<8x16x128xf32>
    %678 = vector.extract_strided_slice %23 {offsets = [35, 0], sizes = [1, 128], strides = [1, 1]} : vector<49x128xf32> to vector<1x128xf32>
    %679 = vector.shape_cast %678 : vector<1x128xf32> to vector<128xf32>
    %680 = vector.shape_cast %679 : vector<128xf32> to vector<1x1x128xf32>
    %681 = vector.broadcast %680 : vector<1x1x128xf32> to vector<8x16x128xf32>
    %682 = arith.mulf %677, %681 : vector<8x16x128xf32>
    %683 = arith.addf %667, %682 : vector<8x16x128xf32>
    %684 = vector.extract_strided_slice %676 {offsets = [0, 1, 0], sizes = [8, 16, 128], strides = [1, 1, 1]} : vector<8x24x128xf32> to vector<8x16x128xf32>
    %685 = vector.extract_strided_slice %23 {offsets = [36, 0], sizes = [1, 128], strides = [1, 1]} : vector<49x128xf32> to vector<1x128xf32>
    %686 = vector.shape_cast %685 : vector<1x128xf32> to vector<128xf32>
    %687 = vector.shape_cast %686 : vector<128xf32> to vector<1x1x128xf32>
    %688 = vector.broadcast %687 : vector<1x1x128xf32> to vector<8x16x128xf32>
    %689 = arith.mulf %684, %688 : vector<8x16x128xf32>
    %690 = arith.addf %674, %689 : vector<8x16x128xf32>
    %691 = vector.extract_strided_slice %676 {offsets = [0, 2, 0], sizes = [8, 16, 128], strides = [1, 1, 1]} : vector<8x24x128xf32> to vector<8x16x128xf32>
    %692 = vector.extract_strided_slice %23 {offsets = [37, 0], sizes = [1, 128], strides = [1, 1]} : vector<49x128xf32> to vector<1x128xf32>
    %693 = vector.shape_cast %692 : vector<1x128xf32> to vector<128xf32>
    %694 = vector.shape_cast %693 : vector<128xf32> to vector<1x1x128xf32>
    %695 = vector.broadcast %694 : vector<1x1x128xf32> to vector<8x16x128xf32>
    %696 = arith.mulf %691, %695 : vector<8x16x128xf32>
    %697 = arith.addf %683, %696 : vector<8x16x128xf32>
    %698 = vector.extract_strided_slice %676 {offsets = [0, 3, 0], sizes = [8, 16, 128], strides = [1, 1, 1]} : vector<8x24x128xf32> to vector<8x16x128xf32>
    %699 = vector.extract_strided_slice %23 {offsets = [38, 0], sizes = [1, 128], strides = [1, 1]} : vector<49x128xf32> to vector<1x128xf32>
    %700 = vector.shape_cast %699 : vector<1x128xf32> to vector<128xf32>
    %701 = vector.shape_cast %700 : vector<128xf32> to vector<1x1x128xf32>
    %702 = vector.broadcast %701 : vector<1x1x128xf32> to vector<8x16x128xf32>
    %703 = arith.mulf %698, %702 : vector<8x16x128xf32>
    %704 = arith.addf %690, %703 : vector<8x16x128xf32>
    %705 = vector.extract_strided_slice %676 {offsets = [0, 4, 0], sizes = [8, 16, 128], strides = [1, 1, 1]} : vector<8x24x128xf32> to vector<8x16x128xf32>
    %706 = vector.extract_strided_slice %23 {offsets = [39, 0], sizes = [1, 128], strides = [1, 1]} : vector<49x128xf32> to vector<1x128xf32>
    %707 = vector.shape_cast %706 : vector<1x128xf32> to vector<128xf32>
    %708 = vector.shape_cast %707 : vector<128xf32> to vector<1x1x128xf32>
    %709 = vector.broadcast %708 : vector<1x1x128xf32> to vector<8x16x128xf32>
    %710 = arith.mulf %705, %709 : vector<8x16x128xf32>
    %711 = arith.addf %697, %710 : vector<8x16x128xf32>
    %712 = vector.extract_strided_slice %676 {offsets = [0, 5, 0], sizes = [8, 16, 128], strides = [1, 1, 1]} : vector<8x24x128xf32> to vector<8x16x128xf32>
    %713 = vector.extract_strided_slice %23 {offsets = [40, 0], sizes = [1, 128], strides = [1, 1]} : vector<49x128xf32> to vector<1x128xf32>
    %714 = vector.shape_cast %713 : vector<1x128xf32> to vector<128xf32>
    %715 = vector.shape_cast %714 : vector<128xf32> to vector<1x1x128xf32>
    %716 = vector.broadcast %715 : vector<1x1x128xf32> to vector<8x16x128xf32>
    %717 = arith.mulf %712, %716 : vector<8x16x128xf32>
    %718 = arith.addf %704, %717 : vector<8x16x128xf32>
    %719 = vector.extract_strided_slice %676 {offsets = [0, 6, 0], sizes = [8, 16, 128], strides = [1, 1, 1]} : vector<8x24x128xf32> to vector<8x16x128xf32>
    %720 = vector.extract_strided_slice %23 {offsets = [41, 0], sizes = [1, 128], strides = [1, 1]} : vector<49x128xf32> to vector<1x128xf32>
    %721 = vector.shape_cast %720 : vector<1x128xf32> to vector<128xf32>
    %722 = vector.shape_cast %721 : vector<128xf32> to vector<1x1x128xf32>
    %723 = vector.broadcast %722 : vector<1x1x128xf32> to vector<8x16x128xf32>
    %724 = arith.mulf %719, %723 : vector<8x16x128xf32>
    %725 = arith.addf %711, %724 : vector<8x16x128xf32>
    %726 = vector.extract_strided_slice %417 {offsets = [6, 0, 0], sizes = [8, 24, 128], strides = [1, 1, 1]} : vector<14x24x128xbf16> to vector<8x24x128xbf16>
    %727 = arith.extf %726 : vector<8x24x128xbf16> to vector<8x24x128xf32>
    %728 = vector.extract_strided_slice %727 {offsets = [0, 0, 0], sizes = [8, 16, 128], strides = [1, 1, 1]} : vector<8x24x128xf32> to vector<8x16x128xf32>
    %729 = vector.extract_strided_slice %23 {offsets = [42, 0], sizes = [1, 128], strides = [1, 1]} : vector<49x128xf32> to vector<1x128xf32>
    %730 = vector.shape_cast %729 : vector<1x128xf32> to vector<128xf32>
    %731 = vector.shape_cast %730 : vector<128xf32> to vector<1x1x128xf32>
    %732 = vector.broadcast %731 : vector<1x1x128xf32> to vector<8x16x128xf32>
    %733 = arith.mulf %728, %732 : vector<8x16x128xf32>
    %734 = arith.addf %718, %733 : vector<8x16x128xf32>
    %735 = vector.extract_strided_slice %727 {offsets = [0, 1, 0], sizes = [8, 16, 128], strides = [1, 1, 1]} : vector<8x24x128xf32> to vector<8x16x128xf32>
    %736 = vector.extract_strided_slice %23 {offsets = [43, 0], sizes = [1, 128], strides = [1, 1]} : vector<49x128xf32> to vector<1x128xf32>
    %737 = vector.shape_cast %736 : vector<1x128xf32> to vector<128xf32>
    %738 = vector.shape_cast %737 : vector<128xf32> to vector<1x1x128xf32>
    %739 = vector.broadcast %738 : vector<1x1x128xf32> to vector<8x16x128xf32>
    %740 = arith.mulf %735, %739 : vector<8x16x128xf32>
    %741 = arith.addf %725, %740 : vector<8x16x128xf32>
    %742 = vector.extract_strided_slice %727 {offsets = [0, 2, 0], sizes = [8, 16, 128], strides = [1, 1, 1]} : vector<8x24x128xf32> to vector<8x16x128xf32>
    %743 = vector.extract_strided_slice %23 {offsets = [44, 0], sizes = [1, 128], strides = [1, 1]} : vector<49x128xf32> to vector<1x128xf32>
    %744 = vector.shape_cast %743 : vector<1x128xf32> to vector<128xf32>
    %745 = vector.shape_cast %744 : vector<128xf32> to vector<1x1x128xf32>
    %746 = vector.broadcast %745 : vector<1x1x128xf32> to vector<8x16x128xf32>
    %747 = arith.mulf %742, %746 : vector<8x16x128xf32>
    %748 = arith.addf %734, %747 : vector<8x16x128xf32>
    %749 = vector.extract_strided_slice %727 {offsets = [0, 3, 0], sizes = [8, 16, 128], strides = [1, 1, 1]} : vector<8x24x128xf32> to vector<8x16x128xf32>
    %750 = vector.extract_strided_slice %23 {offsets = [45, 0], sizes = [1, 128], strides = [1, 1]} : vector<49x128xf32> to vector<1x128xf32>
    %751 = vector.shape_cast %750 : vector<1x128xf32> to vector<128xf32>
    %752 = vector.shape_cast %751 : vector<128xf32> to vector<1x1x128xf32>
    %753 = vector.broadcast %752 : vector<1x1x128xf32> to vector<8x16x128xf32>
    %754 = arith.mulf %749, %753 : vector<8x16x128xf32>
    %755 = arith.addf %741, %754 : vector<8x16x128xf32>
    %756 = vector.extract_strided_slice %727 {offsets = [0, 4, 0], sizes = [8, 16, 128], strides = [1, 1, 1]} : vector<8x24x128xf32> to vector<8x16x128xf32>
    %757 = vector.extract_strided_slice %23 {offsets = [46, 0], sizes = [1, 128], strides = [1, 1]} : vector<49x128xf32> to vector<1x128xf32>
    %758 = vector.shape_cast %757 : vector<1x128xf32> to vector<128xf32>
    %759 = vector.shape_cast %758 : vector<128xf32> to vector<1x1x128xf32>
    %760 = vector.broadcast %759 : vector<1x1x128xf32> to vector<8x16x128xf32>
    %761 = arith.mulf %756, %760 : vector<8x16x128xf32>
    %762 = arith.addf %748, %761 : vector<8x16x128xf32>
    %763 = vector.extract_strided_slice %727 {offsets = [0, 5, 0], sizes = [8, 16, 128], strides = [1, 1, 1]} : vector<8x24x128xf32> to vector<8x16x128xf32>
    %764 = vector.extract_strided_slice %23 {offsets = [47, 0], sizes = [1, 128], strides = [1, 1]} : vector<49x128xf32> to vector<1x128xf32>
    %765 = vector.shape_cast %764 : vector<1x128xf32> to vector<128xf32>
    %766 = vector.shape_cast %765 : vector<128xf32> to vector<1x1x128xf32>
    %767 = vector.broadcast %766 : vector<1x1x128xf32> to vector<8x16x128xf32>
    %768 = arith.mulf %763, %767 : vector<8x16x128xf32>
    %769 = arith.addf %755, %768 : vector<8x16x128xf32>
    %770 = vector.extract_strided_slice %727 {offsets = [0, 6, 0], sizes = [8, 16, 128], strides = [1, 1, 1]} : vector<8x24x128xf32> to vector<8x16x128xf32>
    %771 = vector.extract_strided_slice %23 {offsets = [48, 0], sizes = [1, 128], strides = [1, 1]} : vector<49x128xf32> to vector<1x128xf32>
    %772 = vector.shape_cast %771 : vector<1x128xf32> to vector<128xf32>
    %773 = vector.shape_cast %772 : vector<128xf32> to vector<1x1x128xf32>
    %774 = vector.broadcast %773 : vector<1x1x128xf32> to vector<8x16x128xf32>
    %775 = arith.mulf %770, %774 : vector<8x16x128xf32>
    %776 = arith.addf %762, %775 : vector<8x16x128xf32>
    %777 = arith.addf %776, %769 : vector<8x16x128xf32>
    %778 = vector.shape_cast %777 : vector<8x16x128xf32> to vector<128x128xf32>
    %779 = arith.truncf %778 : vector<128x128xf32> to vector<128x128xbf16>
    %cst_40 = arith.constant dense<0.000000e+00> : vector<128x128xf32>
    %780 = tpu.matmul %779, %24, %cst_40 {dimension_numbers = #tpu.dot_dimension_numbers<[1], [0], [0], [1], [0, 0, 1, 1], [], []>} : vector<128x128xbf16>, vector<128x128xbf16>, vector<128x128xf32> -> vector<128x128xf32>
    %781 = vector.broadcast %25 : vector<1x128xf32> to vector<128x128xf32>
    %782 = arith.addf %780, %781 : vector<128x128xf32>
    %cst_41 = arith.constant 5.000000e-01 : f32
    %783 = vector.broadcast %cst_41 : f32 to vector<128x128xf32>
    %784 = arith.mulf %783, %782 : vector<128x128xf32>
    %cst_42 = arith.constant 0.707106769 : f32
    %785 = vector.broadcast %cst_42 : f32 to vector<128x128xf32>
    %786 = arith.mulf %782, %785 : vector<128x128xf32>
    %787 = math.erf %786 : vector<128x128xf32>
    %cst_43 = arith.constant 1.000000e+00 : f32
    %788 = vector.broadcast %cst_43 : f32 to vector<128x128xf32>
    %789 = arith.addf %788, %787 : vector<128x128xf32>
    %790 = arith.mulf %784, %789 : vector<128x128xf32>
    %791 = arith.truncf %790 : vector<128x128xf32> to vector<128x128xbf16>
    %cst_44 = arith.constant dense<0.000000e+00> : vector<128x128xf32>
    %792 = tpu.matmul %791, %26, %cst_44 {dimension_numbers = #tpu.dot_dimension_numbers<[1], [0], [0], [1], [0, 0, 1, 1], [], []>} : vector<128x128xbf16>, vector<128x128xbf16>, vector<128x128xf32> -> vector<128x128xf32>
    %793 = vector.broadcast %27 : vector<1x128xf32> to vector<128x128xf32>
    %794 = arith.addf %792, %793 : vector<128x128xf32>
    %795 = vector.extract_strided_slice %417 {offsets = [3, 3, 0], sizes = [8, 16, 128], strides = [1, 1, 1]} : vector<14x24x128xbf16> to vector<8x16x128xbf16>
    %796 = arith.extf %795 : vector<8x16x128xbf16> to vector<8x16x128xf32>
    %797 = vector.shape_cast %794 : vector<128x128xf32> to vector<8x16x128xf32>
    %798 = arith.addf %796, %797 : vector<8x16x128xf32>
    %c0_45 = arith.constant 0 : index
    %c8_46 = arith.constant 8 : index
    %c0_47 = arith.constant 0 : index
    %c0_48 = arith.constant 0 : index
    %799 = vector.load %arg8[%c0_45, %c8_46, %c0_47, %c0_48] : memref<1x16x16x128xf32, #tpu.memory_space<vmem>>, vector<1x8x16x128xf32>
    %800 = vector.shape_cast %799 : vector<1x8x16x128xf32> to vector<8x16x128xf32>
    %801 = vector.shape_cast %798 : vector<8x16x128xf32> to vector<1x8x16x128xf32>
    tpu.vector_store %arg8[%c0_45, %c8_46, %c0_47, %c0_48], %801 {strides = array<i32>} : memref<1x16x16x128xf32, #tpu.memory_space<vmem>>, vector<1x8x16x128xf32>,
    return
  }
  func.func @transform_1(%arg0: i32, %arg1: i32) -> (i32, i32) {
    %c0_i32 = arith.constant 0 : i32
    %c0_i32_0 = arith.constant 0 : i32
    %c0_i32_1 = arith.constant 0 : i32
    return %c0_i32, %c0_i32_0 : i32, i32
  }
  func.func @transform_2(%arg0: i32, %arg1: i32) -> (i32, i32) {
    %c0_i32 = arith.constant 0 : i32
    %c0_i32_0 = arith.constant 0 : i32
    %c0_i32_1 = arith.constant 0 : i32
    return %c0_i32, %c0_i32_0 : i32, i32
  }
  func.func @transform_3(%arg0: i32, %arg1: i32) -> (i32, i32) {
    %c0_i32 = arith.constant 0 : i32
    %c0_i32_0 = arith.constant 0 : i32
    %c0_i32_1 = arith.constant 0 : i32
    return %c0_i32, %c0_i32_0 : i32, i32
  }
  func.func @transform_4(%arg0: i32, %arg1: i32) -> (i32, i32) {
    %c0_i32 = arith.constant 0 : i32
    %c0_i32_0 = arith.constant 0 : i32
    %c0_i32_1 = arith.constant 0 : i32
    return %c0_i32, %c0_i32_0 : i32, i32
  }
  func.func @transform_5(%arg0: i32, %arg1: i32) -> (i32, i32) {
    %c0_i32 = arith.constant 0 : i32
    %c0_i32_0 = arith.constant 0 : i32
    %c0_i32_1 = arith.constant 0 : i32
    return %c0_i32, %c0_i32_0 : i32, i32
  }
  func.func @transform_6(%arg0: i32, %arg1: i32) -> (i32, i32, i32, i32) {
    %c0_i32 = arith.constant 0 : i32
    %c0_i32_0 = arith.constant 0 : i32
    %c0_i32_1 = arith.constant 0 : i32
    return %arg0, %arg1, %c0_i32, %c0_i32_0 : i32, i32, i32, i32
  }
}

</mosaic_0001>

<llo_original>
// kernel: tpu_custom_call.1
$region0: #{tpu_custom_call.1}
  #allocation0 [shape = 'u32[]', space=smem, size = 0x4, offset = 0x4, fixed_abs, tag = 'smem constant byte address 0x4 - core index']
  #allocation1 [shape = 'u32[144,128]{1,0:T(1,128)}', space=vmem, size = 0x12000, scoped, tag = 'internal scratch']
  #allocation2 [shape = 'bf16[2,22,24,128]{3,2,1,0:T(8,128)(2,1)}', space=vmem, size = 0x42000, scoped, tag = 'scratch operand']
  #allocation3 [shape = 's32[2]{0}', space=sflag, size = 0x8, scoped, tag = 'scratch operand']
  #allocation11 [shape = 's32[]', space=sflag, size = 0x4, offset = 0, fixed_abs, tag = 'sflag constant byte address 0x0 - dummy sync flag']
  #allocation12 [shape = 's32[]', space=sflag, size = 0x4, offset = 0, fixed_abs, tag = 'sflag constant byte address 0x0 - dummy sync flag']
  #allocation13 [shape = 'u32[]', space=smem, size = 0x4, offset = 0x44, fixed_abs, tag = 'smem constant byte address 0x44 - assertion arg 0']
  #allocation14 [shape = 'u32[]', space=smem, size = 0x4, offset = 0x48, fixed_abs, tag = 'smem constant byte address 0x48 - assertion arg 1']
  #allocation15 [shape = 's32[]', space=sflag, size = 0x4, offset = 0, fixed_abs, tag = 'sflag constant byte address 0x0 - dummy sync flag']
  #allocation16 [shape = 's32[]', space=sflag, size = 0x4, offset = 0, fixed_abs, tag = 'sflag constant byte address 0x0 - dummy sync flag']
  %s0 = inlined_call_operand.hbm [shape: bf16[2,22,24,128], index: 0, kind: input, shape index: {}]
  %s1 = inlined_call_operand.hbm [shape: f32[49,128], index: 1, kind: input, shape index: {}]
  %s2 = inlined_call_operand.hbm [shape: bf16[128,128], index: 2, kind: input, shape index: {}]
  %s3 = inlined_call_operand.vmem [shape: f32[1,128], index: 3, kind: input, shape index: {}]
  %s4 = inlined_call_operand.hbm [shape: bf16[128,128], index: 4, kind: input, shape index: {}]
  %s5 = inlined_call_operand.vmem [shape: f32[1,128], index: 5, kind: input, shape index: {}]
  %s6 = inlined_call_operand.hbm [shape: f32[2,16,16,128], index: 6, kind: output, shape index: {}]
  %s7 = sld [smem:[#allocation0]]
  $region81: #{tpu_custom_call.1} parent=0
    _
  %s9 = ssub.s32 1, %s7
  %s10 = scalar_select 0, %s9, %s7
  $region1: #{tpu_custom_call.1} parent=0
    #allocation4 [shape = 'u8[28672]{0}', space=vmem, size = 0x7000, scoped, tag = 'input window, operand 1, single buffered']
    #allocation5 [shape = 's32[2]{0}', space=sflag, size = 0x8, scoped, tag = 'scoped memory for tpu_custom_call.1']
    #allocation6 [shape = 's32[2]{0}', space=sflag, size = 0x8, scoped, tag = 'scoped memory for tpu_custom_call.1']
    #allocation7 [shape = 'u8[32768]{0}', space=vmem, size = 0x8000, scoped, tag = 'input window, operand 2, single buffered']
    #allocation8 [shape = 's32[1]{0}', space=sflag, size = 0x4, scoped, tag = 'scoped memory for tpu_custom_call.1']
    #allocation9 [shape = 'u8[32768]{0}', space=vmem, size = 0x8000, scoped, tag = 'input window, operand 4, single buffered']
    #allocation10 [shape = 'u8[262144]{0}', space=vmem, size = 0x40000, scoped, tag = 'output window, operand 0']
    %11 = vsyncpa [#allocation5], 0
    %12 = vsyncpa [#allocation8], 0
    %13 = vsyncpa [#allocation6], 0
    %s14 = scalar_lea.sflag [#allocation6], 1
    %15 = vsyncpa %s14, 0
    loop: start=0, step=1, limit=4
    $region2: #{tpu_custom_call.1} parent=1 // loop_pre_header
      _
    $region3: #{tpu_custom_call.1} parent=1 // loop_header
      %s17 = sphi 0, %s21
      %p18 = scmp.ge.s32.totalorder %s17, 4
      %s24 = sphi 0, %s36
      %s25 = sphi 0, %s32
      %s26 = sphi 0, %s24
      %s27 = sphi 0, %s25
      %s28 = sphi 0, %s26
      %s29 = sphi 0, %s27
      %s37 = sphi 0, %s37
      %s39 = sphi 0, %s37
      %s40 = sphi 0, %s39
      %s54 = sphi 0, %s40
      %s58 = sphi 0, %s58
      %s60 = sphi 0, %s58
      %s61 = sphi 0, %s60
      %s75 = sphi 0, %s61
      %s79 = sphi 0, %s79
      %s81 = sphi 0, %s79
      %s82 = sphi 0, %s81
      %s96 = sphi 0, %s82
      %s100 = sphi 0, %s100
      %s102 = sphi 0, %s100
      %s103 = sphi 0, %s102
      %s117 = sphi 0, %s103
      %s121 = sphi 0, %s121
      %s123 = sphi 0, %s121
      %s124 = sphi 0, %s123
      %s138 = sphi 0, %s124
      %s146 = sphi 0, %s148
      %s149 = sphi 0, %s146
      %s150 = sphi 0, %s149
      %s166 = sphi 0, %s150
    $region4: #{tpu_custom_call.1} parent=1 // loop_header_branch
      %20 = sbr.rel (%p18) target = $region8
    $region5: #{tpu_custom_call.1} parent=1 // loop_body
      %s22 = ssub.s32 %s17, 1
      %s23 = ssub.s32 %s17, 2
      %s30 = sadd.s32 1, %s25
      %p31 = scmp.ge.s32.totalorder %s30, 1
      %s32 = scalar_select %p31, 0, %s30
      %s33 = sadd.s32 1, %s24
      %s34 = scalar_select %p31, %s33, %s24
      %p35 = scmp.ge.s32.totalorder %s34, 2
      %s36 = scalar_select %p35, 0, %s34
      %s38 = sadd.s32 %s37, 1
      %p41 = scmp.eq.s32.totalorder %s17, 1
      %p42 = scmp.ne.s32.totalorder %s37, %s39
      %p43 = scmp.eq.s32.totalorder %s17, 0
      %p44 = por %p42, %p43
      %p45 = scmp.ne.s32.totalorder %s37, %s39
      %p46 = scmp.eq.s32.totalorder %s22, 1
      %p47 = por %p45, %p46
      %p48 = scmp.ne.s32.totalorder %s39, %s40
      %p49 = scmp.eq.s32.totalorder %s22, 0
      %p50 = por %p48, %p49
      %p51 = scmp.ne.s32.totalorder %s39, %s40
      %p52 = scmp.eq.s32.totalorder %s23, 1
      %p53 = por %p51, %p52
      %p55 = scmp.ne.s32.totalorder %s40, %s54
      %p56 = scmp.eq.s32.totalorder %s23, 0
      %p57 = por %p55, %p56
      %s59 = sadd.s32 %s58, 1
      %p62 = scmp.eq.s32.totalorder %s17, 1
      %p63 = scmp.ne.s32.totalorder %s58, %s60
      %p64 = scmp.eq.s32.totalorder %s17, 0
      %p65 = por %p63, %p64
      %p66 = scmp.ne.s32.totalorder %s58, %s60
      %p67 = scmp.eq.s32.totalorder %s22, 1
      %p68 = por %p66, %p67
      %p69 = scmp.ne.s32.totalorder %s60, %s61
      %p70 = scmp.eq.s32.totalorder %s22, 0
      %p71 = por %p69, %p70
      %p72 = scmp.ne.s32.totalorder %s60, %s61
      %p73 = scmp.eq.s32.totalorder %s23, 1
      %p74 = por %p72, %p73
      %p76 = scmp.ne.s32.totalorder %s61, %s75
      %p77 = scmp.eq.s32.totalorder %s23, 0
      %p78 = por %p76, %p77
      %s80 = sadd.s32 %s79, 1
      %p83 = scmp.eq.s32.totalorder %s17, 1
      %p84 = scmp.ne.s32.totalorder %s79, %s81
      %p85 = scmp.eq.s32.totalorder %s17, 0
      %p86 = por %p84, %p85
      %p87 = scmp.ne.s32.totalorder %s79, %s81
      %p88 = scmp.eq.s32.totalorder %s22, 1
      %p89 = por %p87, %p88
      %p90 = scmp.ne.s32.totalorder %s81, %s82
      %p91 = scmp.eq.s32.totalorder %s22, 0
      %p92 = por %p90, %p91
      %p93 = scmp.ne.s32.totalorder %s81, %s82
      %p94 = scmp.eq.s32.totalorder %s23, 1
      %p95 = por %p93, %p94
      %p97 = scmp.ne.s32.totalorder %s82, %s96
      %p98 = scmp.eq.s32.totalorder %s23, 0
      %p99 = por %p97, %p98
      %s101 = sadd.s32 %s100, 1
      %p104 = scmp.eq.s32.totalorder %s17, 1
      %p105 = scmp.ne.s32.totalorder %s100, %s102
      %p106 = scmp.eq.s32.totalorder %s17, 0
      %p107 = por %p105, %p106
      %p108 = scmp.ne.s32.totalorder %s100, %s102
      %p109 = scmp.eq.s32.totalorder %s22, 1
      %p110 = por %p108, %p109
      %p111 = scmp.ne.s32.totalorder %s102, %s103
      %p112 = scmp.eq.s32.totalorder %s22, 0
      %p113 = por %p111, %p112
      %p114 = scmp.ne.s32.totalorder %s102, %s103
      %p115 = scmp.eq.s32.totalorder %s23, 1
      %p116 = por %p114, %p115
      %p118 = scmp.ne.s32.totalorder %s103, %s117
      %p119 = scmp.eq.s32.totalorder %s23, 0
      %p120 = por %p118, %p119
      %s122 = sadd.s32 %s121, 1
      %p125 = scmp.eq.s32.totalorder %s17, 1
      %p126 = scmp.ne.s32.totalorder %s121, %s123
      %p127 = scmp.eq.s32.totalorder %s17, 0
      %p128 = por %p126, %p127
      %p129 = scmp.ne.s32.totalorder %s121, %s123
      %p130 = scmp.eq.s32.totalorder %s22, 1
      %p131 = por %p129, %p130
      %p132 = scmp.ne.s32.totalorder %s123, %s124
      %p133 = scmp.eq.s32.totalorder %s22, 0
      %p134 = por %p132, %p133
      %p135 = scmp.ne.s32.totalorder %s123, %s124
      %p136 = scmp.eq.s32.totalorder %s23, 1
      %p137 = por %p135, %p136
      %p139 = scmp.ne.s32.totalorder %s124, %s138
      %p140 = scmp.eq.s32.totalorder %s23, 0
      %p141 = por %p139, %p140
      %s142 = ssub.s32 %s24, %s36
      %s143 = ssub.s32 %s25, %s32
      %s144 = sor.u32 %s142, %s143
      %p145 = scmp.eq.s32.totalorder %s144, 0
      %s147 = sadd.s32 %s146, 1
      %s148 = scalar_select %p145, %s146, %s147
      %p151 = pneg %p145
      %p152 = scmp.eq.s32.totalorder %s17, 1
      %p153 = por %p151, %p152
      %p154 = scmp.ne.s32.totalorder %s146, %s149
      %p155 = scmp.eq.s32.totalorder %s17, 0
      %p156 = por %p154, %p155
      %p157 = scmp.ne.s32.totalorder %s146, %s149
      %p158 = scmp.eq.s32.totalorder %s22, 1
      %p159 = por %p157, %p158
      %p160 = scmp.ne.s32.totalorder %s149, %s150
      %p161 = scmp.eq.s32.totalorder %s22, 0
      %p162 = por %p160, %p161
      %p163 = scmp.ne.s32.totalorder %s149, %s150
      %p164 = scmp.eq.s32.totalorder %s23, 1
      %p165 = por %p163, %p164
      %p167 = scmp.ne.s32.totalorder %s150, %s166
      %p168 = scmp.eq.s32.totalorder %s23, 0
      %p169 = por %p167, %p168
      %p170 = scmp.le.s32.totalorder 1, %s17
      %p171 = scmp.lt.s32.totalorder %s17, 3
      %p172 = pnand %p170, %p171
      %p173 = pneg %p172
      // Predicated region
      $region9: #{tpu_custom_call.1} parent=5 // pred_check
        _
      $region10: #{tpu_custom_call.1} parent=5 // pred_check_branch
        %175 = sbr.rel (%p172) target = $region12
      $region11: #{tpu_custom_call.1} parent=5 // pred_region
        %s176 = ssub.s32 %s17, 1
        // Predicated region
        $region13: #{tpu_custom_call.1} parent=11 // pred_check
          %p177 = pneg %p50
        $region14: #{tpu_custom_call.1} parent=11 // pred_check_branch
          %179 = sbr.rel (%p177) target = $region16
        $region15: #{tpu_custom_call.1} parent=11 // pred_region
          %s181 = ssub.s32 896, 896
          %182 = vsyncadd [#allocation5], %s181
          %s183 = sshll.u32 [#allocation4], 4
          %s184 = int_to_ptr.vmem [resolvable:$true] %s183
          %189 = dma.hbm_to_vmem [thread:$0]  %s1, 896, %s184, [#allocation5], 128, 128, 8
        $region16: #{tpu_custom_call.1} parent=11 // pred_fallthru
          _
        // Predicated region
        $region17: #{tpu_custom_call.1} parent=11 // pred_check
          %p190 = pneg %p71
        $region18: #{tpu_custom_call.1} parent=11 // pred_check_branch
          %192 = sbr.rel (%p190) target = $region20
        $region19: #{tpu_custom_call.1} parent=11 // pred_region
          %s194 = ssub.s32 1024, 1024
          %195 = vsyncadd [#allocation8], %s194
          %s196 = sshll.u32 [#allocation7], 4
          %s197 = int_to_ptr.vmem [resolvable:$true] %s196
          %202 = dma.hbm_to_vmem [thread:$0]  %s2, 1024, %s197, [#allocation8], 64, 64, 4
        $region20: #{tpu_custom_call.1} parent=11 // pred_fallthru
          _
        // Predicated region
        $region21: #{tpu_custom_call.1} parent=11 // pred_check
          %p203 = pneg %p92
        $region22: #{tpu_custom_call.1} parent=11 // pred_check_branch
          %205 = sbr.rel (%p203) target = $region24
        $region23: #{tpu_custom_call.1} parent=11 // pred_region
          _
        $region24: #{tpu_custom_call.1} parent=11 // pred_fallthru
          _
        // Predicated region
        $region25: #{tpu_custom_call.1} parent=11 // pred_check
          %p206 = pneg %p113
        $region26: #{tpu_custom_call.1} parent=11 // pred_check_branch
          %208 = sbr.rel (%p206) target = $region28
        $region27: #{tpu_custom_call.1} parent=11 // pred_region
          %s210 = ssub.s32 1024, 1024
          %211 = vsyncadd [#allocation8], %s210
          %s212 = sshll.u32 [#allocation9], 4
          %s213 = int_to_ptr.vmem [resolvable:$true] %s212
          %218 = dma.hbm_to_vmem [thread:$0]  %s4, 1024, %s213, [#allocation8], 64, 64, 4
        $region28: #{tpu_custom_call.1} parent=11 // pred_fallthru
          _
        // Predicated region
        $region29: #{tpu_custom_call.1} parent=11 // pred_check
          %p219 = pneg %p134
        $region30: #{tpu_custom_call.1} parent=11 // pred_check_branch
          %221 = sbr.rel (%p219) target = $region32
        $region31: #{tpu_custom_call.1} parent=11 // pred_region
          _
        $region32: #{tpu_custom_call.1} parent=11 // pred_fallthru
          _
      $region12: #{tpu_custom_call.1} parent=5 // pred_fallthru
        _
      %p222 = scmp.lt.s32.totalorder %s17, 2
      // Predicated region
      $region33: #{tpu_custom_call.1} parent=5 // pred_check
        %p223 = pneg %p222
      $region34: #{tpu_custom_call.1} parent=5 // pred_check_branch
        %225 = sbr.rel (%p223) target = $region36
      $region35: #{tpu_custom_call.1} parent=5 // pred_region
        _
      $region36: #{tpu_custom_call.1} parent=5 // pred_fallthru
        _
      %p226 = scmp.le.s32.totalorder 1, %s17
      %p227 = scmp.lt.s32.totalorder %s17, 3
      %p228 = pnand %p226, %p227
      %p229 = pneg %p228
      // Predicated region
      $region37: #{tpu_custom_call.1} parent=5 // pred_check
        _
      $region38: #{tpu_custom_call.1} parent=5 // pred_check_branch
        %231 = sbr.rel (%p228) target = $region40
      $region39: #{tpu_custom_call.1} parent=5 // pred_region
        %s232 = ssub.s32 %s17, 1
        // Predicated region
        $region41: #{tpu_custom_call.1} parent=39 // pred_check
          %p233 = pneg %p50
        $region42: #{tpu_custom_call.1} parent=39 // pred_check_branch
          %235 = sbr.rel (%p233) target = $region44
        $region43: #{tpu_custom_call.1} parent=39 // pred_region
          %236 = dma.done [#allocation5], 896
        $region44: #{tpu_custom_call.1} parent=39 // pred_fallthru
          _
        // Predicated region
        $region45: #{tpu_custom_call.1} parent=39 // pred_check
          %p237 = pneg %p71
        $region46: #{tpu_custom_call.1} parent=39 // pred_check_branch
          %239 = sbr.rel (%p237) target = $region48
        $region47: #{tpu_custom_call.1} parent=39 // pred_region
          %240 = dma.done [#allocation8], 1024
        $region48: #{tpu_custom_call.1} parent=39 // pred_fallthru
          _
        // Predicated region
        $region49: #{tpu_custom_call.1} parent=39 // pred_check
          %p241 = pneg %p113
        $region50: #{tpu_custom_call.1} parent=39 // pred_check_branch
          %243 = sbr.rel (%p241) target = $region52
        $region51: #{tpu_custom_call.1} parent=39 // pred_region
          %244 = dma.done [#allocation8], 1024
        $region52: #{tpu_custom_call.1} parent=39 // pred_fallthru
          _
        %p245 = pneg %p50
        %p246 = pneg %p47
        %p247 = pneg %p71
        %p248 = pneg %p68
        %p249 = pneg %p92
        %p250 = pneg %p89
        %p251 = pneg %p113
        %p252 = pneg %p110
        %p253 = pneg %p134
        %p254 = pneg %p131
        %p255 = pneg %p162
        %p256 = pneg %p159
        %s257 = sand.u32 %s149, 1
        %s258 = scalar_lea.sflag [#allocation6], %s257
        %s259 = sand.u32 %s149, 1
        %s260 = smul.addr %s259, 256
        %s261 = scalar_lea.vmem [#allocation10], %s260
        %s262 = smul.u32 16, %s27
        %p264 = scmp.lt.s32.totalorder %s27, 0
        %s265 = ssub.s32 0, %s27
        %s266 = scalar_select %p264, %s265, %s27
        %s267 = sand.u32 %s266, 1
        %s268 = ssub.s32 0, %s267
        %s269 = scalar_select %p264, %s268, %s267
        %p270 = scmp.ne.s32.totalorder %s269, 0
        %p271 = scmp.lt.s32.totalorder %s269, 0
        %p272 = pnand %p271, %p270
        %p273 = pneg %p272
        %s274 = sadd.s32 %s269, 2
        %s275 = scalar_select %p273, %s274, %s269
        %p276 = scmp.eq.s32.totalorder %s27, 0
        // Predicated region
        $region53: #{tpu_custom_call.1} parent=39 // pred_check
          %p277 = pneg %p276
        $region54: #{tpu_custom_call.1} parent=39 // pred_check_branch
          %279 = sbr.rel (%p277) target = $region56
        $region55: #{tpu_custom_call.1} parent=39 // pred_region
          %s280 = smul.u32 %s26, 66
          %s281 = smul.addr %s280, 64
          %s282 = scalar_lea.hbm %s0, %s281
          // Predicated region
          $region57: #{tpu_custom_call.1} parent=55 // pred_check
            _
          $region58: #{tpu_custom_call.1} parent=55 // pred_check_branch
            %284 = sbr.rel target = $region60
          $region59: #{tpu_custom_call.1} parent=55 // pred_region
            %285 = sst [smem:[#allocation13]] [#allocation12]
            %286 = sst [smem:[#allocation14]] [#allocation11]
          $region60: #{tpu_custom_call.1} parent=55 // pred_fallthru
            _
          %288 = shalt.err (0)
          %s290 = sshll.u32 [#allocation2], 4
          %s291 = int_to_ptr.vmem [resolvable:$true] %s290
          %293 = dma.hbm_to_vmem [thread:$0]  %s282, 4224, %s291, [#allocation3]
        $region56: #{tpu_custom_call.1} parent=39 // pred_fallthru
          _
        %s294 = sadd.s32 %s27, 1
        %p295 = scmp.lt.s32.totalorder %s294, 1
        // Predicated region
        $region61: #{tpu_custom_call.1} parent=39 // pred_check
          %p296 = pneg %p295
        $region62: #{tpu_custom_call.1} parent=39 // pred_check_branch
          %298 = sbr.rel (%p296) target = $region64
        $region63: #{tpu_custom_call.1} parent=39 // pred_region
          %s299 = smul.u32 %s294, 16
          %s300 = ssub.s32 1, %s275
          %s301 = smul.u32 %s299, 3
          %s302 = smul.u32 %s26, 66
          %s303 = sadd.s32 %s301, %s302
          %s304 = smul.addr %s303, 64
          %s305 = scalar_lea.hbm %s0, %s304
          %s306 = smul.u32 %s300, 66
          %s307 = smul.addr %s306, 4
          %s308 = scalar_lea.vmem [#allocation2], %s307
          %s309 = scalar_lea.sflag [#allocation3], %s300
          // Predicated region
          $region65: #{tpu_custom_call.1} parent=63 // pred_check
            _
          $region66: #{tpu_custom_call.1} parent=63 // pred_check_branch
            %311 = sbr.rel target = $region68
          $region67: #{tpu_custom_call.1} parent=63 // pred_region
            %312 = sst [smem:[#allocation13]] [#allocation16]
            %313 = sst [smem:[#allocation14]] [#allocation15]
          $region68: #{tpu_custom_call.1} parent=63 // pred_fallthru
            _
          %315 = shalt.err (0)
          %s317 = sshll.u32 %s308, 4
          %s318 = int_to_ptr.vmem [resolvable:$true] %s317
          %320 = dma.hbm_to_vmem [thread:$0]  %s305, 4224, %s318, %s309
        $region64: #{tpu_custom_call.1} parent=39 // pred_fallthru
          _
        %s321 = scalar_lea.sflag [#allocation3], %s275
        %s322 = smul.u32 4, 22
        %s323 = smul.u32 %s322, 3
        %s324 = smul.u32 %s323, 1
        %s325 = sshll.u32 %s324, 4
        %326 = dma.done %s321, %s325
        %v327 = vld [vmem:[#allocation4] sm:$0xff]
        %v328 = vld [vmem:[#allocation4 + $0x8] sm:$0xff]
        %v329 = vld [vmem:[#allocation4 + $0x10] sm:$0xff]
        %v330 = vld [vmem:[#allocation4 + $0x18] sm:$0xff]
        %v331 = vld [vmem:[#allocation4 + $0x20] sm:$0xff]
        %v332 = vld [vmem:[#allocation4 + $0x28] sm:$0xff]
        %v333 = vld [vmem:[#allocation4 + $0x30] sm:$0x1]
        %v334 = vld [vmem:[#allocation7] sm:$0xf]
        %v335 = vld [vmem:[#allocation7 + $0x4] sm:$0xf]
        %v336 = vld [vmem:[#allocation7 + $0x8] sm:$0xf]
        %v337 = vld [vmem:[#allocation7 + $0xc] sm:$0xf]
        %v338 = vld [vmem:[#allocation7 + $0x10] sm:$0xf]
        %v339 = vld [vmem:[#allocation7 + $0x14] sm:$0xf]
        %v340 = vld [vmem:[#allocation7 + $0x18] sm:$0xf]
        %v341 = vld [vmem:[#allocation7 + $0x1c] sm:$0xf]
        %v342 = vld [vmem:[#allocation7 + $0x20] sm:$0xf]
        %v343 = vld [vmem:[#allocation7 + $0x24] sm:$0xf]
        %v344 = vld [vmem:[#allocation7 + $0x28] sm:$0xf]
        %v345 = vld [vmem:[#allocation7 + $0x2c] sm:$0xf]
        %v346 = vld [vmem:[#allocation7 + $0x30] sm:$0xf]
        %v347 = vld [vmem:[#allocation7 + $0x34] sm:$0xf]
        %v348 = vld [vmem:[#allocation7 + $0x38] sm:$0xf]
        %v349 = vld [vmem:[#allocation7 + $0x3c] sm:$0xf]
        %v350 = vld [vmem:[%s3] sm:$0x1]
        %v351 = vld [vmem:[#allocation9] sm:$0xf]
        %v352 = vld [vmem:[#allocation9 + $0x4] sm:$0xf]
        %v353 = vld [vmem:[#allocation9 + $0x8] sm:$0xf]
        %v354 = vld [vmem:[#allocation9 + $0xc] sm:$0xf]
        %v355 = vld [vmem:[#allocation9 + $0x10] sm:$0xf]
        %v356 = vld [vmem:[#allocation9 + $0x14] sm:$0xf]
        %v357 = vld [vmem:[#allocation9 + $0x18] sm:$0xf]
        %v358 = vld [vmem:[#allocation9 + $0x1c] sm:$0xf]
        %v359 = vld [vmem:[#allocation9 + $0x20] sm:$0xf]
        %v360 = vld [vmem:[#allocation9 + $0x24] sm:$0xf]
        %v361 = vld [vmem:[#allocation9 + $0x28] sm:$0xf]
        %v362 = vld [vmem:[#allocation9 + $0x2c] sm:$0xf]
        %v363 = vld [vmem:[#allocation9 + $0x30] sm:$0xf]
        %v364 = vld [vmem:[#allocation9 + $0x34] sm:$0xf]
        %v365 = vld [vmem:[#allocation9 + $0x38] sm:$0xf]
        %v366 = vld [vmem:[#allocation9 + $0x3c] sm:$0xf]
        %v367 = vld [vmem:[%s5] sm:$0x1]
        %s368 = smul.u32 %s275, 66
        %s369 = smul.addr %s368, 4
        %s370 = scalar_lea.vmem [#allocation2], %s369
        %v371 = vld [vmem:[%s370] sm:$0xf]
        %v372 = vld [vmem:[%s370 + $0x4] sm:$0xf]
        %v373 = vld [vmem:[%s370 + $0x8] sm:$0xf]
        %v374 = vld [vmem:[%s370 + $0xc] sm:$0xf]
        %v375 = vld [vmem:[%s370 + $0x10] sm:$0xf]
        %v376 = vld [vmem:[%s370 + $0x14] sm:$0xf]
        %v377 = vld [vmem:[%s370 + $0x18] sm:$0xf]
        %v378 = vld [vmem:[%s370 + $0x1c] sm:$0xf]
        %v379 = vld [vmem:[%s370 + $0x20] sm:$0xf]
        %v380 = vld [vmem:[%s370 + $0x24] sm:$0xf]
        %v381 = vld [vmem:[%s370 + $0x28] sm:$0xf]
        %v382 = vld [vmem:[%s370 + $0x2c] sm:$0xf]
        %v383 = vld [vmem:[%s370 + $0x30] sm:$0xf]
        %v384 = vld [vmem:[%s370 + $0x34] sm:$0xf]
        %v385 = vld [vmem:[%s370 + $0x38] sm:$0xf]
        %v386 = vld [vmem:[%s370 + $0x3c] sm:$0xf]
        %v387 = vld [vmem:[%s370 + $0x40] sm:$0xf]
        %v388 = vld [vmem:[%s370 + $0x44] sm:$0xf]
        %v389 = vld [vmem:[%s370 + $0x48] sm:$0xf]
        %v390 = vld [vmem:[%s370 + $0x4c] sm:$0xf]
        %v391 = vld [vmem:[%s370 + $0x50] sm:$0xf]
        %v392 = vld [vmem:[%s370 + $0x54] sm:$0xf]
        %v393 = vld [vmem:[%s370 + $0x58] sm:$0xf]
        %v394 = vld [vmem:[%s370 + $0x5c] sm:$0xf]
        %v395 = vld [vmem:[%s370 + $0x60] sm:$0xf]
        %v396 = vld [vmem:[%s370 + $0x64] sm:$0xf]
        %v397 = vld [vmem:[%s370 + $0x68] sm:$0xf]
        %v398 = vld [vmem:[%s370 + $0x6c] sm:$0xf]
        %v399 = vld [vmem:[%s370 + $0x70] sm:$0xf]
        %v400 = vld [vmem:[%s370 + $0x74] sm:$0xf]
        %v401 = vld [vmem:[%s370 + $0x78] sm:$0xf]
        %v402 = vld [vmem:[%s370 + $0x7c] sm:$0xf]
        %v403 = vld [vmem:[%s370 + $0x80] sm:$0xf]
        %v404 = vld [vmem:[%s370 + $0x84] sm:$0xf]
        %v405 = vld [vmem:[%s370 + $0x88] sm:$0xf]
        %v406 = vld [vmem:[%s370 + $0x8c] sm:$0xf]
        %v407 = vld [vmem:[%s370 + $0x90] sm:$0xf]
        %v408 = vld [vmem:[%s370 + $0x94] sm:$0xf]
        %v409 = vld [vmem:[%s370 + $0x98] sm:$0xf]
        %v410 = vld [vmem:[%s370 + $0x9c] sm:$0xf]
        %v411 = vld [vmem:[%s370 + $0xa0] sm:$0xf]
        %v412 = vld [vmem:[%s370 + $0xa4] sm:$0xf]
        %v413 = vunpack.c.l.bf16 %v371
        %v414 = vunpack.c.l.bf16 %v372
        %v415 = vunpack.c.l.bf16 %v373
        %v416 = vunpack.c.l.bf16 %v374
        %v417 = vunpack.c.l.bf16 %v375
        %v418 = vunpack.c.l.bf16 %v376
        %v419 = vunpack.c.l.bf16 %v377
        %v420 = vunpack.c.l.bf16 %v378
        %v421 = vunpack.c.l.bf16 %v379
        %v422 = vunpack.c.l.bf16 %v380
        %v423 = vunpack.c.l.bf16 %v381
        %v424 = vunpack.c.l.bf16 %v382
        %v425 = vunpack.c.l.bf16 %v383
        %v426 = vunpack.c.l.bf16 %v384
        %v427 = vunpack.c.l.bf16 %v385
        %v428 = vunpack.c.l.bf16 %v386
        %v429 = vunpack.c.l.bf16 %v387
        %v430 = vunpack.c.l.bf16 %v388
        %v431 = vunpack.c.l.bf16 %v389
        %v432 = vunpack.c.l.bf16 %v390
        %v433 = vunpack.c.l.bf16 %v391
        %v434 = vunpack.c.l.bf16 %v392
        %v435 = vunpack.c.l.bf16 %v393
        %v436 = vunpack.c.l.bf16 %v394
        %v437 = vlaneseq
        %v438 = vshrl.u32 %v437, 7
        %v439 = vsub.s32 0, %v438
        %v440 = vrot.slane %v327, %v439
        %v441 = vmul.f32 %v413, %v440
        %v442 = vmul.f32 %v414, %v440
        %v443 = vmul.f32 %v416, %v440
        %v444 = vmul.f32 %v417, %v440
        %v445 = vmul.f32 %v419, %v440
        %v446 = vmul.f32 %v420, %v440
        %v447 = vmul.f32 %v422, %v440
        %v448 = vmul.f32 %v423, %v440
        %v449 = vmul.f32 %v425, %v440
        %v450 = vmul.f32 %v426, %v440
        %v451 = vmul.f32 %v428, %v440
        %v452 = vmul.f32 %v429, %v440
        %v453 = vmul.f32 %v431, %v440
        %v454 = vmul.f32 %v432, %v440
        %v455 = vmul.f32 %v434, %v440
        %v456 = vmul.f32 %v435, %v440
        %v457 = vadd.f32 %v441, 0.0
        %v458 = vadd.f32 %v442, 0.0
        %v459 = vadd.f32 %v443, 0.0
        %v460 = vadd.f32 %v444, 0.0
        %v461 = vadd.f32 %v445, 0.0
        %v462 = vadd.f32 %v446, 0.0
        %v463 = vadd.f32 %v447, 0.0
        %v464 = vadd.f32 %v448, 0.0
        %v465 = vadd.f32 %v449, 0.0
        %v466 = vadd.f32 %v450, 0.0
        %v467 = vadd.f32 %v451, 0.0
        %v468 = vadd.f32 %v452, 0.0
        %v469 = vadd.f32 %v453, 0.0
        %v470 = vadd.f32 %v454, 0.0
        %v471 = vadd.f32 %v455, 0.0
        %v472 = vadd.f32 %v456, 0.0
        %v473 = vlaneseq
        %v474 = vshrl.u32 %v473, 7
        %v475 = vsub.s32 1, %v474
        %v476 = vrot.slane %v327, %v475
        %v477 = vmul.f32 %v413, %v476
        %v478 = vmul.f32 %v414, %v476
        %v479 = vmul.f32 %v415, %v476
        %v480 = vmul.f32 %v416, %v476
        %v481 = vmul.f32 %v417, %v476
        %v482 = vmul.f32 %v418, %v476
        %v483 = vmul.f32 %v419, %v476
        %v484 = vmul.f32 %v420, %v476
        %v485 = vmul.f32 %v421, %v476
        %v486 = vmul.f32 %v422, %v476
        %v487 = vmul.f32 %v423, %v476
        %v488 = vmul.f32 %v424, %v476
        %v489 = vmul.f32 %v425, %v476
        %v490 = vmul.f32 %v426, %v476
        %v491 = vmul.f32 %v427, %v476
        %v492 = vmul.f32 %v428, %v476
        %v493 = vmul.f32 %v429, %v476
        %v494 = vmul.f32 %v430, %v476
        %v495 = vmul.f32 %v431, %v476
        %v496 = vmul.f32 %v432, %v476
        %v497 = vmul.f32 %v433, %v476
        %v498 = vmul.f32 %v434, %v476
        %v499 = vmul.f32 %v435, %v476
        %v500 = vmul.f32 %v436, %v476
        %v501 = vadd.f32 %v477, 0.0
        %v502 = vadd.f32 %v478, 0.0
        %v503 = vadd.f32 %v479, 0.0
        %v504 = vadd.f32 %v480, 0.0
        %v505 = vadd.f32 %v481, 0.0
        %v506 = vadd.f32 %v482, 0.0
        %v507 = vadd.f32 %v483, 0.0
        %v508 = vadd.f32 %v484, 0.0
        %v509 = vadd.f32 %v485, 0.0
        %v510 = vadd.f32 %v486, 0.0
        %v511 = vadd.f32 %v487, 0.0
        %v512 = vadd.f32 %v488, 0.0
        %v513 = vadd.f32 %v489, 0.0
        %v514 = vadd.f32 %v490, 0.0
        %v515 = vadd.f32 %v491, 0.0
        %v516 = vadd.f32 %v492, 0.0
        %v517 = vadd.f32 %v493, 0.0
        %v518 = vadd.f32 %v494, 0.0
        %v519 = vadd.f32 %v495, 0.0
        %v520 = vadd.f32 %v496, 0.0
        %v521 = vadd.f32 %v497, 0.0
        %v522 = vadd.f32 %v498, 0.0
        %v523 = vadd.f32 %v499, 0.0
        %v524 = vadd.f32 %v500, 0.0
        %v525 = vlaneseq
        %v526 = vshrl.u32 %v525, 7
        %v527 = vsub.s32 2, %v526
        %v528 = vrot.slane %v327, %v527
        %v529 = vmul.f32 %v413, %v528
        %v530 = vmul.f32 %v414, %v528
        %v531 = vmul.f32 %v415, %v528
        %v532 = vmul.f32 %v416, %v528
        %v533 = vmul.f32 %v417, %v528
        %v534 = vmul.f32 %v418, %v528
        %v535 = vmul.f32 %v419, %v528
        %v536 = vmul.f32 %v420, %v528
        %v537 = vmul.f32 %v421, %v528
        %v538 = vmul.f32 %v422, %v528
        %v539 = vmul.f32 %v423, %v528
        %v540 = vmul.f32 %v424, %v528
        %v541 = vmul.f32 %v425, %v528
        %v542 = vmul.f32 %v426, %v528
        %v543 = vmul.f32 %v427, %v528
        %v544 = vmul.f32 %v428, %v528
        %v545 = vmul.f32 %v429, %v528
        %v546 = vmul.f32 %v430, %v528
        %v547 = vmul.f32 %v431, %v528
        %v548 = vmul.f32 %v432, %v528
        %v549 = vmul.f32 %v433, %v528
        %v550 = vmul.f32 %v434, %v528
        %v551 = vmul.f32 %v435, %v528
        %v552 = vmul.f32 %v436, %v528
        %vm577 = vcmask 1045504
        %v578 = vrot.slane %v529, 2
        %v579 = vrot.slane %v530, 2
        %v580 = vsel %vm577, %v578, %v579
        %v581 = vrot.slane %v531, 2
        %v582 = vsel %vm577, %v579, %v581
        %v583 = vrot.slane %v532, 2
        %v584 = vrot.slane %v533, 2
        %v585 = vsel %vm577, %v583, %v584
        %v586 = vrot.slane %v534, 2
        %v587 = vsel %vm577, %v584, %v586
        %v588 = vrot.slane %v535, 2
        %v589 = vrot.slane %v536, 2
        %v590 = vsel %vm577, %v588, %v589
        %v591 = vrot.slane %v537, 2
        %v592 = vsel %vm577, %v589, %v591
        %v593 = vrot.slane %v538, 2
        %v594 = vrot.slane %v539, 2
        %v595 = vsel %vm577, %v593, %v594
        %v596 = vrot.slane %v540, 2
        %v597 = vsel %vm577, %v594, %v596
        %v598 = vrot.slane %v541, 2
        %v599 = vrot.slane %v542, 2
        %v600 = vsel %vm577, %v598, %v599
        %v601 = vrot.slane %v543, 2
        %v602 = vsel %vm577, %v599, %v601
        %v603 = vrot.slane %v544, 2
        %v604 = vrot.slane %v545, 2
        %v605 = vsel %vm577, %v603, %v604
        %v606 = vrot.slane %v546, 2
        %v607 = vsel %vm577, %v604, %v606
        %v608 = vrot.slane %v547, 2
        %v609 = vrot.slane %v548, 2
        %v610 = vsel %vm577, %v608, %v609
        %v611 = vrot.slane %v549, 2
        %v612 = vsel %vm577, %v609, %v611
        %v613 = vrot.slane %v550, 2
        %v614 = vrot.slane %v551, 2
        %v615 = vsel %vm577, %v613, %v614
        %v616 = vrot.slane %v552, 2
        %v617 = vsel %vm577, %v614, %v616
        %v634 = vadd.f32 %v457, %v580
        %v635 = vadd.f32 %v458, %v582
        %v636 = vadd.f32 %v459, %v585
        %v637 = vadd.f32 %v460, %v587
        %v638 = vadd.f32 %v461, %v590
        %v639 = vadd.f32 %v462, %v592
        %v640 = vadd.f32 %v463, %v595
        %v641 = vadd.f32 %v464, %v597
        %v642 = vadd.f32 %v465, %v600
        %v643 = vadd.f32 %v466, %v602
        %v644 = vadd.f32 %v467, %v605
        %v645 = vadd.f32 %v468, %v607
        %v646 = vadd.f32 %v469, %v610
        %v647 = vadd.f32 %v470, %v612
        %v648 = vadd.f32 %v471, %v615
        %v649 = vadd.f32 %v472, %v617
        %v650 = vlaneseq
        %v651 = vshrl.u32 %v650, 7
        %v652 = vsub.s32 3, %v651
        %v653 = vrot.slane %v327, %v652
        %v654 = vmul.f32 %v413, %v653
        %v655 = vmul.f32 %v414, %v653
        %v656 = vmul.f32 %v415, %v653
        %v657 = vmul.f32 %v416, %v653
        %v658 = vmul.f32 %v417, %v653
        %v659 = vmul.f32 %v418, %v653
        %v660 = vmul.f32 %v419, %v653
        %v661 = vmul.f32 %v420, %v653
        %v662 = vmul.f32 %v421, %v653
        %v663 = vmul.f32 %v422, %v653
        %v664 = vmul.f32 %v423, %v653
        %v665 = vmul.f32 %v424, %v653
        %v666 = vmul.f32 %v425, %v653
        %v667 = vmul.f32 %v426, %v653
        %v668 = vmul.f32 %v427, %v653
        %v669 = vmul.f32 %v428, %v653
        %v670 = vmul.f32 %v429, %v653
        %v671 = vmul.f32 %v430, %v653
        %v672 = vmul.f32 %v431, %v653
        %v673 = vmul.f32 %v432, %v653
        %v674 = vmul.f32 %v433, %v653
        %v675 = vmul.f32 %v434, %v653
        %v676 = vmul.f32 %v435, %v653
        %v677 = vmul.f32 %v436, %v653
        %v702 = vrot.slane %v654, 2
        %v703 = vrot.slane %v655, 2
        %v704 = vsel %vm577, %v702, %v703
        %v705 = vrot.slane %v656, 2
        %v706 = vsel %vm577, %v703, %v705
        %v707 = vrot.slane %v657, 2
        %v708 = vrot.slane %v658, 2
        %v709 = vsel %vm577, %v707, %v708
        %v710 = vrot.slane %v659, 2
        %v711 = vsel %vm577, %v708, %v710
        %v712 = vrot.slane %v660, 2
        %v713 = vrot.slane %v661, 2
        %v714 = vsel %vm577, %v712, %v713
        %v715 = vrot.slane %v662, 2
        %v716 = vsel %vm577, %v713, %v715
        %v717 = vrot.slane %v663, 2
        %v718 = vrot.slane %v664, 2
        %v719 = vsel %vm577, %v717, %v718
        %v720 = vrot.slane %v665, 2
        %v721 = vsel %vm577, %v718, %v720
        %v722 = vrot.slane %v666, 2
        %v723 = vrot.slane %v667, 2
        %v724 = vsel %vm577, %v722, %v723
        %v725 = vrot.slane %v668, 2
        %v726 = vsel %vm577, %v723, %v725
        %v727 = vrot.slane %v669, 2
        %v728 = vrot.slane %v670, 2
        %v729 = vsel %vm577, %v727, %v728
        %v730 = vrot.slane %v671, 2
        %v731 = vsel %vm577, %v728, %v730
        %v732 = vrot.slane %v672, 2
        %v733 = vrot.slane %v673, 2
        %v734 = vsel %vm577, %v732, %v733
        %v735 = vrot.slane %v674, 2
        %v736 = vsel %vm577, %v733, %v735
        %v737 = vrot.slane %v675, 2
        %v738 = vrot.slane %v676, 2
        %v739 = vsel %vm577, %v737, %v738
        %v740 = vrot.slane %v677, 2
        %v741 = vsel %vm577, %v738, %v740
        %v766 = vadd.f32 %v501, %v704
        %v767 = vadd.f32 %v502, %v706
        %v768 = vadd.f32 %v503, %v705
        %v769 = vadd.f32 %v504, %v709
        %v770 = vadd.f32 %v505, %v711
        %v771 = vadd.f32 %v506, %v710
        %v772 = vadd.f32 %v507, %v714
        %v773 = vadd.f32 %v508, %v716
        %v774 = vadd.f32 %v509, %v715
        %v775 = vadd.f32 %v510, %v719
        %v776 = vadd.f32 %v511, %v721
        %v777 = vadd.f32 %v512, %v720
        %v778 = vadd.f32 %v513, %v724
        %v779 = vadd.f32 %v514, %v726
        %v780 = vadd.f32 %v515, %v725
        %v781 = vadd.f32 %v516, %v729
        %v782 = vadd.f32 %v517, %v731
        %v783 = vadd.f32 %v518, %v730
        %v784 = vadd.f32 %v519, %v734
        %v785 = vadd.f32 %v520, %v736
        %v786 = vadd.f32 %v521, %v735
        %v787 = vadd.f32 %v522, %v739
        %v788 = vadd.f32 %v523, %v741
        %v789 = vadd.f32 %v524, %v740
        %v790 = vlaneseq
        %v791 = vshrl.u32 %v790, 7
        %v792 = vsub.s32 4, %v791
        %v793 = vrot.slane %v327, %v792
        %v794 = vmul.f32 %v413, %v793
        %v795 = vmul.f32 %v414, %v793
        %v796 = vmul.f32 %v415, %v793
        %v797 = vmul.f32 %v416, %v793
        %v798 = vmul.f32 %v417, %v793
        %v799 = vmul.f32 %v418, %v793
        %v800 = vmul.f32 %v419, %v793
        %v801 = vmul.f32 %v420, %v793
        %v802 = vmul.f32 %v421, %v793
        %v803 = vmul.f32 %v422, %v793
        %v804 = vmul.f32 %v423, %v793
        %v805 = vmul.f32 %v424, %v793
        %v806 = vmul.f32 %v425, %v793
        %v807 = vmul.f32 %v426, %v793
        %v808 = vmul.f32 %v427, %v793
        %v809 = vmul.f32 %v428, %v793
        %v810 = vmul.f32 %v429, %v793
        %v811 = vmul.f32 %v430, %v793
        %v812 = vmul.f32 %v431, %v793
        %v813 = vmul.f32 %v432, %v793
        %v814 = vmul.f32 %v433, %v793
        %v815 = vmul.f32 %v434, %v793
        %v816 = vmul.f32 %v435, %v793
        %v817 = vmul.f32 %v436, %v793
        %vm842 = vcmask 1043456
        %v843 = vrot.slane %v794, 4
        %v844 = vrot.slane %v795, 4
        %v845 = vsel %vm842, %v843, %v844
        %v846 = vrot.slane %v796, 4
        %v847 = vsel %vm842, %v844, %v846
        %v848 = vrot.slane %v797, 4
        %v849 = vrot.slane %v798, 4
        %v850 = vsel %vm842, %v848, %v849
        %v851 = vrot.slane %v799, 4
        %v852 = vsel %vm842, %v849, %v851
        %v853 = vrot.slane %v800, 4
        %v854 = vrot.slane %v801, 4
        %v855 = vsel %vm842, %v853, %v854
        %v856 = vrot.slane %v802, 4
        %v857 = vsel %vm842, %v854, %v856
        %v858 = vrot.slane %v803, 4
        %v859 = vrot.slane %v804, 4
        %v860 = vsel %vm842, %v858, %v859
        %v861 = vrot.slane %v805, 4
        %v862 = vsel %vm842, %v859, %v861
        %v863 = vrot.slane %v806, 4
        %v864 = vrot.slane %v807, 4
        %v865 = vsel %vm842, %v863, %v864
        %v866 = vrot.slane %v808, 4
        %v867 = vsel %vm842, %v864, %v866
        %v868 = vrot.slane %v809, 4
        %v869 = vrot.slane %v810, 4
        %v870 = vsel %vm842, %v868, %v869
        %v871 = vrot.slane %v811, 4
        %v872 = vsel %vm842, %v869, %v871
        %v873 = vrot.slane %v812, 4
        %v874 = vrot.slane %v813, 4
        %v875 = vsel %vm842, %v873, %v874
        %v876 = vrot.slane %v814, 4
        %v877 = vsel %vm842, %v874, %v876
        %v878 = vrot.slane %v815, 4
        %v879 = vrot.slane %v816, 4
        %v880 = vsel %vm842, %v878, %v879
        %v881 = vrot.slane %v817, 4
        %v882 = vsel %vm842, %v879, %v881
        %v899 = vadd.f32 %v634, %v845
        %v900 = vadd.f32 %v635, %v847
        %v901 = vadd.f32 %v636, %v850
        %v902 = vadd.f32 %v637, %v852
        %v903 = vadd.f32 %v638, %v855
        %v904 = vadd.f32 %v639, %v857
        %v905 = vadd.f32 %v640, %v860
        %v906 = vadd.f32 %v641, %v862
        %v907 = vadd.f32 %v642, %v865
        %v908 = vadd.f32 %v643, %v867
        %v909 = vadd.f32 %v644, %v870
        %v910 = vadd.f32 %v645, %v872
        %v911 = vadd.f32 %v646, %v875
        %v912 = vadd.f32 %v647, %v877
        %v913 = vadd.f32 %v648, %v880
        %v914 = vadd.f32 %v649, %v882
        %v915 = vlaneseq
        %v916 = vshrl.u32 %v915, 7
        %v917 = vsub.s32 5, %v916
        %v918 = vrot.slane %v327, %v917
        %v919 = vmul.f32 %v413, %v918
        %v920 = vmul.f32 %v414, %v918
        %v921 = vmul.f32 %v415, %v918
        %v922 = vmul.f32 %v416, %v918
        %v923 = vmul.f32 %v417, %v918
        %v924 = vmul.f32 %v418, %v918
        %v925 = vmul.f32 %v419, %v918
        %v926 = vmul.f32 %v420, %v918
        %v927 = vmul.f32 %v421, %v918
        %v928 = vmul.f32 %v422, %v918
        %v929 = vmul.f32 %v423, %v918
        %v930 = vmul.f32 %v424, %v918
        %v931 = vmul.f32 %v425, %v918
        %v932 = vmul.f32 %v426, %v918
        %v933 = vmul.f32 %v427, %v918
        %v934 = vmul.f32 %v428, %v918
        %v935 = vmul.f32 %v429, %v918
        %v936 = vmul.f32 %v430, %v918
        %v937 = vmul.f32 %v431, %v918
        %v938 = vmul.f32 %v432, %v918
        %v939 = vmul.f32 %v433, %v918
        %v940 = vmul.f32 %v434, %v918
        %v941 = vmul.f32 %v435, %v918
        %v942 = vmul.f32 %v436, %v918
        %v967 = vrot.slane %v919, 4
        %v968 = vrot.slane %v920, 4
        %v969 = vsel %vm842, %v967, %v968
        %v970 = vrot.slane %v921, 4
        %v971 = vsel %vm842, %v968, %v970
        %v972 = vrot.slane %v922, 4
        %v973 = vrot.slane %v923, 4
        %v974 = vsel %vm842, %v972, %v973
        %v975 = vrot.slane %v924, 4
        %v976 = vsel %vm842, %v973, %v975
        %v977 = vrot.slane %v925, 4
        %v978 = vrot.slane %v926, 4
        %v979 = vsel %vm842, %v977, %v978
        %v980 = vrot.slane %v927, 4
        %v981 = vsel %vm842, %v978, %v980
        %v982 = vrot.slane %v928, 4
        %v983 = vrot.slane %v929, 4
        %v984 = vsel %vm842, %v982, %v983
        %v985 = vrot.slane %v930, 4
        %v986 = vsel %vm842, %v983, %v985
        %v987 = vrot.slane %v931, 4
        %v988 = vrot.slane %v932, 4
        %v989 = vsel %vm842, %v987, %v988
        %v990 = vrot.slane %v933, 4
        %v991 = vsel %vm842, %v988, %v990
        %v992 = vrot.slane %v934, 4
        %v993 = vrot.slane %v935, 4
        %v994 = vsel %vm842, %v992, %v993
        %v995 = vrot.slane %v936, 4
        %v996 = vsel %vm842, %v993, %v995
        %v997 = vrot.slane %v937, 4
        %v998 = vrot.slane %v938, 4
        %v999 = vsel %vm842, %v997, %v998
        %v1000 = vrot.slane %v939, 4
        %v1001 = vsel %vm842, %v998, %v1000
        %v1002 = vrot.slane %v940, 4
        %v1003 = vrot.slane %v941, 4
        %v1004 = vsel %vm842, %v1002, %v1003
        %v1005 = vrot.slane %v942, 4
        %v1006 = vsel %vm842, %v1003, %v1005
        %v1031 = vadd.f32 %v766, %v969
        %v1032 = vadd.f32 %v767, %v971
        %v1033 = vadd.f32 %v768, %v970
        %v1034 = vadd.f32 %v769, %v974
        %v1035 = vadd.f32 %v770, %v976
        %v1036 = vadd.f32 %v771, %v975
        %v1037 = vadd.f32 %v772, %v979
        %v1038 = vadd.f32 %v773, %v981
        %v1039 = vadd.f32 %v774, %v980
        %v1040 = vadd.f32 %v775, %v984
        %v1041 = vadd.f32 %v776, %v986
        %v1042 = vadd.f32 %v777, %v985
        %v1043 = vadd.f32 %v778, %v989
        %v1044 = vadd.f32 %v779, %v991
        %v1045 = vadd.f32 %v780, %v990
        %v1046 = vadd.f32 %v781, %v994
        %v1047 = vadd.f32 %v782, %v996
        %v1048 = vadd.f32 %v783, %v995
        %v1049 = vadd.f32 %v784, %v999
        %v1050 = vadd.f32 %v785, %v1001
        %v1051 = vadd.f32 %v786, %v1000
        %v1052 = vadd.f32 %v787, %v1004
        %v1053 = vadd.f32 %v788, %v1006
        %v1054 = vadd.f32 %v789, %v1005
        %v1055 = vlaneseq
        %v1056 = vshrl.u32 %v1055, 7
        %v1057 = vsub.s32 6, %v1056
        %v1058 = vrot.slane %v327, %v1057
        %v1059 = vmul.f32 %v413, %v1058
        %v1060 = vmul.f32 %v414, %v1058
        %v1061 = vmul.f32 %v415, %v1058
        %v1062 = vmul.f32 %v416, %v1058
        %v1063 = vmul.f32 %v417, %v1058
        %v1064 = vmul.f32 %v418, %v1058
        %v1065 = vmul.f32 %v419, %v1058
        %v1066 = vmul.f32 %v420, %v1058
        %v1067 = vmul.f32 %v421, %v1058
        %v1068 = vmul.f32 %v422, %v1058
        %v1069 = vmul.f32 %v423, %v1058
        %v1070 = vmul.f32 %v424, %v1058
        %v1071 = vmul.f32 %v425, %v1058
        %v1072 = vmul.f32 %v426, %v1058
        %v1073 = vmul.f32 %v427, %v1058
        %v1074 = vmul.f32 %v428, %v1058
        %v1075 = vmul.f32 %v429, %v1058
        %v1076 = vmul.f32 %v430, %v1058
        %v1077 = vmul.f32 %v431, %v1058
        %v1078 = vmul.f32 %v432, %v1058
        %v1079 = vmul.f32 %v433, %v1058
        %v1080 = vmul.f32 %v434, %v1058
        %v1081 = vmul.f32 %v435, %v1058
        %v1082 = vmul.f32 %v436, %v1058
        %vm1107 = vcmask 1041408
        %v1108 = vrot.slane %v1059, 6
        %v1109 = vrot.slane %v1060, 6
        %v1110 = vsel %vm1107, %v1108, %v1109
        %v1111 = vrot.slane %v1061, 6
        %v1112 = vsel %vm1107, %v1109, %v1111
        %v1113 = vrot.slane %v1062, 6
        %v1114 = vrot.slane %v1063, 6
        %v1115 = vsel %vm1107, %v1113, %v1114
        %v1116 = vrot.slane %v1064, 6
        %v1117 = vsel %vm1107, %v1114, %v1116
        %v1118 = vrot.slane %v1065, 6
        %v1119 = vrot.slane %v1066, 6
        %v1120 = vsel %vm1107, %v1118, %v1119
        %v1121 = vrot.slane %v1067, 6
        %v1122 = vsel %vm1107, %v1119, %v1121
        %v1123 = vrot.slane %v1068, 6
        %v1124 = vrot.slane %v1069, 6
        %v1125 = vsel %vm1107, %v1123, %v1124
        %v1126 = vrot.slane %v1070, 6
        %v1127 = vsel %vm1107, %v1124, %v1126
        %v1128 = vrot.slane %v1071, 6
        %v1129 = vrot.slane %v1072, 6
        %v1130 = vsel %vm1107, %v1128, %v1129
        %v1131 = vrot.slane %v1073, 6
        %v1132 = vsel %vm1107, %v1129, %v1131
        %v1133 = vrot.slane %v1074, 6
        %v1134 = vrot.slane %v1075, 6
        %v1135 = vsel %vm1107, %v1133, %v1134
        %v1136 = vrot.slane %v1076, 6
        %v1137 = vsel %vm1107, %v1134, %v1136
        %v1138 = vrot.slane %v1077, 6
        %v1139 = vrot.slane %v1078, 6
        %v1140 = vsel %vm1107, %v1138, %v1139
        %v1141 = vrot.slane %v1079, 6
        %v1142 = vsel %vm1107, %v1139, %v1141
        %v1143 = vrot.slane %v1080, 6
        %v1144 = vrot.slane %v1081, 6
        %v1145 = vsel %vm1107, %v1143, %v1144
        %v1146 = vrot.slane %v1082, 6
        %v1147 = vsel %vm1107, %v1144, %v1146
        %v1164 = vadd.f32 %v899, %v1110
        %v1165 = vadd.f32 %v900, %v1112
        %v1166 = vadd.f32 %v901, %v1115
        %v1167 = vadd.f32 %v902, %v1117
        %v1168 = vadd.f32 %v903, %v1120
        %v1169 = vadd.f32 %v904, %v1122
        %v1170 = vadd.f32 %v905, %v1125
        %v1171 = vadd.f32 %v906, %v1127
        %v1172 = vadd.f32 %v907, %v1130
        %v1173 = vadd.f32 %v908, %v1132
        %v1174 = vadd.f32 %v909, %v1135
        %v1175 = vadd.f32 %v910, %v1137
        %v1176 = vadd.f32 %v911, %v1140
        %v1177 = vadd.f32 %v912, %v1142
        %v1178 = vadd.f32 %v913, %v1145
        %v1179 = vadd.f32 %v914, %v1147
        %v1180 = vunpack.c.l.bf16 %v395
        %v1181 = vunpack.c.l.bf16 %v396
        %v1182 = vunpack.c.l.bf16 %v397
        %v1183 = vlaneseq
        %v1184 = vshrl.u32 %v1183, 7
        %v1185 = vsub.s32 7, %v1184
        %v1186 = vrot.slane %v327, %v1185
        %v1187 = vmul.f32 %v416, %v1186
        %v1188 = vmul.f32 %v417, %v1186
        %v1189 = vmul.f32 %v419, %v1186
        %v1190 = vmul.f32 %v420, %v1186
        %v1191 = vmul.f32 %v422, %v1186
        %v1192 = vmul.f32 %v423, %v1186
        %v1193 = vmul.f32 %v425, %v1186
        %v1194 = vmul.f32 %v426, %v1186
        %v1195 = vmul.f32 %v428, %v1186
        %v1196 = vmul.f32 %v429, %v1186
        %v1197 = vmul.f32 %v431, %v1186
        %v1198 = vmul.f32 %v432, %v1186
        %v1199 = vmul.f32 %v434, %v1186
        %v1200 = vmul.f32 %v435, %v1186
        %v1201 = vmul.f32 %v1180, %v1186
        %v1202 = vmul.f32 %v1181, %v1186
        %vm1219 = vcmask 1040384
        %v1220 = vrot.slane %v1187, 7
        %v1221 = vrot.slane %v1188, 7
        %v1222 = vsel %vm1219, %v1220, %v1221
        %v1223 = vrot.slane %v1189, 7
        %v1224 = vrot.slane %v1190, 7
        %v1225 = vsel %vm1219, %v1223, %v1224
        %v1226 = vrot.slane %v1191, 7
        %v1227 = vrot.slane %v1192, 7
        %v1228 = vsel %vm1219, %v1226, %v1227
        %v1229 = vrot.slane %v1193, 7
        %v1230 = vrot.slane %v1194, 7
        %v1231 = vsel %vm1219, %v1229, %v1230
        %v1232 = vrot.slane %v1195, 7
        %v1233 = vrot.slane %v1196, 7
        %v1234 = vsel %vm1219, %v1232, %v1233
        %v1235 = vrot.slane %v1197, 7
        %v1236 = vrot.slane %v1198, 7
        %v1237 = vsel %vm1219, %v1235, %v1236
        %v1238 = vrot.slane %v1199, 7
        %v1239 = vrot.slane %v1200, 7
        %v1240 = vsel %vm1219, %v1238, %v1239
        %v1241 = vrot.slane %v1201, 7
        %v1242 = vrot.slane %v1202, 7
        %v1243 = vsel %vm1219, %v1241, %v1242
        %v1268 = vadd.f32 %v1031, %v1220
        %v1269 = vadd.f32 %v1032, %v1222
        %v1270 = vadd.f32 %v1033, %v1221
        %v1271 = vadd.f32 %v1034, %v1223
        %v1272 = vadd.f32 %v1035, %v1225
        %v1273 = vadd.f32 %v1036, %v1224
        %v1274 = vadd.f32 %v1037, %v1226
        %v1275 = vadd.f32 %v1038, %v1228
        %v1276 = vadd.f32 %v1039, %v1227
        %v1277 = vadd.f32 %v1040, %v1229
        %v1278 = vadd.f32 %v1041, %v1231
        %v1279 = vadd.f32 %v1042, %v1230
        %v1280 = vadd.f32 %v1043, %v1232
        %v1281 = vadd.f32 %v1044, %v1234
        %v1282 = vadd.f32 %v1045, %v1233
        %v1283 = vadd.f32 %v1046, %v1235
        %v1284 = vadd.f32 %v1047, %v1237
        %v1285 = vadd.f32 %v1048, %v1236
        %v1286 = vadd.f32 %v1049, %v1238
        %v1287 = vadd.f32 %v1050, %v1240
        %v1288 = vadd.f32 %v1051, %v1239
        %v1289 = vadd.f32 %v1052, %v1241
        %v1290 = vadd.f32 %v1053, %v1243
        %v1291 = vadd.f32 %v1054, %v1242
        %v1292 = vlaneseq
        %v1293 = vshrl.u32 %v1292, 7
        %v1294 = vsub.s32 0, %v1293
        %v1295 = vrot.slane %v328, %v1294
        %v1296 = vmul.f32 %v416, %v1295
        %v1297 = vmul.f32 %v417, %v1295
        %v1298 = vmul.f32 %v418, %v1295
        %v1299 = vmul.f32 %v419, %v1295
        %v1300 = vmul.f32 %v420, %v1295
        %v1301 = vmul.f32 %v421, %v1295
        %v1302 = vmul.f32 %v422, %v1295
        %v1303 = vmul.f32 %v423, %v1295
        %v1304 = vmul.f32 %v424, %v1295
        %v1305 = vmul.f32 %v425, %v1295
        %v1306 = vmul.f32 %v426, %v1295
        %v1307 = vmul.f32 %v427, %v1295
        %v1308 = vmul.f32 %v428, %v1295
        %v1309 = vmul.f32 %v429, %v1295
        %v1310 = vmul.f32 %v430, %v1295
        %v1311 = vmul.f32 %v431, %v1295
        %v1312 = vmul.f32 %v432, %v1295
        %v1313 = vmul.f32 %v433, %v1295
        %v1314 = vmul.f32 %v434, %v1295
        %v1315 = vmul.f32 %v435, %v1295
        %v1316 = vmul.f32 %v436, %v1295
        %v1317 = vmul.f32 %v1180, %v1295
        %v1318 = vmul.f32 %v1181, %v1295
        %v1319 = vmul.f32 %v1182, %v1295
        %vm1344 = vcmask 1046528
        %v1345 = vrot.slane %v1296, 1
        %v1346 = vrot.slane %v1297, 1
        %v1347 = vsel %vm1344, %v1345, %v1346
        %v1348 = vrot.slane %v1298, 1
        %v1349 = vsel %vm1344, %v1346, %v1348
        %v1350 = vrot.slane %v1299, 1
        %v1351 = vrot.slane %v1300, 1
        %v1352 = vsel %vm1344, %v1350, %v1351
        %v1353 = vrot.slane %v1301, 1
        %v1354 = vsel %vm1344, %v1351, %v1353
        %v1355 = vrot.slane %v1302, 1
        %v1356 = vrot.slane %v1303, 1
        %v1357 = vsel %vm1344, %v1355, %v1356
        %v1358 = vrot.slane %v1304, 1
        %v1359 = vsel %vm1344, %v1356, %v1358
        %v1360 = vrot.slane %v1305, 1
        %v1361 = vrot.slane %v1306, 1
        %v1362 = vsel %vm1344, %v1360, %v1361
        %v1363 = vrot.slane %v1307, 1
        %v1364 = vsel %vm1344, %v1361, %v1363
        %v1365 = vrot.slane %v1308, 1
        %v1366 = vrot.slane %v1309, 1
        %v1367 = vsel %vm1344, %v1365, %v1366
        %v1368 = vrot.slane %v1310, 1
        %v1369 = vsel %vm1344, %v1366, %v1368
        %v1370 = vrot.slane %v1311, 1
        %v1371 = vrot.slane %v1312, 1
        %v1372 = vsel %vm1344, %v1370, %v1371
        %v1373 = vrot.slane %v1313, 1
        %v1374 = vsel %vm1344, %v1371, %v1373
        %v1375 = vrot.slane %v1314, 1
        %v1376 = vrot.slane %v1315, 1
        %v1377 = vsel %vm1344, %v1375, %v1376
        %v1378 = vrot.slane %v1316, 1
        %v1379 = vsel %vm1344, %v1376, %v1378
        %v1380 = vrot.slane %v1317, 1
        %v1381 = vrot.slane %v1318, 1
        %v1382 = vsel %vm1344, %v1380, %v1381
        %v1383 = vrot.slane %v1319, 1
        %v1384 = vsel %vm1344, %v1381, %v1383
        %v1401 = vadd.f32 %v1164, %v1347
        %v1402 = vadd.f32 %v1165, %v1349
        %v1403 = vadd.f32 %v1166, %v1352
        %v1404 = vadd.f32 %v1167, %v1354
        %v1405 = vadd.f32 %v1168, %v1357
        %v1406 = vadd.f32 %v1169, %v1359
        %v1407 = vadd.f32 %v1170, %v1362
        %v1408 = vadd.f32 %v1171, %v1364
        %v1409 = vadd.f32 %v1172, %v1367
        %v1410 = vadd.f32 %v1173, %v1369
        %v1411 = vadd.f32 %v1174, %v1372
        %v1412 = vadd.f32 %v1175, %v1374
        %v1413 = vadd.f32 %v1176, %v1377
        %v1414 = vadd.f32 %v1177, %v1379
        %v1415 = vadd.f32 %v1178, %v1382
        %v1416 = vadd.f32 %v1179, %v1384
        %v1417 = vlaneseq
        %v1418 = vshrl.u32 %v1417, 7
        %v1419 = vsub.s32 1, %v1418
        %v1420 = vrot.slane %v328, %v1419
        %v1421 = vmul.f32 %v416, %v1420
        %v1422 = vmul.f32 %v417, %v1420
        %v1423 = vmul.f32 %v418, %v1420
        %v1424 = vmul.f32 %v419, %v1420
        %v1425 = vmul.f32 %v420, %v1420
        %v1426 = vmul.f32 %v421, %v1420
        %v1427 = vmul.f32 %v422, %v1420
        %v1428 = vmul.f32 %v423, %v1420
        %v1429 = vmul.f32 %v424, %v1420
        %v1430 = vmul.f32 %v425, %v1420
        %v1431 = vmul.f32 %v426, %v1420
        %v1432 = vmul.f32 %v427, %v1420
        %v1433 = vmul.f32 %v428, %v1420
        %v1434 = vmul.f32 %v429, %v1420
        %v1435 = vmul.f32 %v430, %v1420
        %v1436 = vmul.f32 %v431, %v1420
        %v1437 = vmul.f32 %v432, %v1420
        %v1438 = vmul.f32 %v433, %v1420
        %v1439 = vmul.f32 %v434, %v1420
        %v1440 = vmul.f32 %v435, %v1420
        %v1441 = vmul.f32 %v436, %v1420
        %v1442 = vmul.f32 %v1180, %v1420
        %v1443 = vmul.f32 %v1181, %v1420
        %v1444 = vmul.f32 %v1182, %v1420
        %v1469 = vrot.slane %v1421, 1
        %v1470 = vrot.slane %v1422, 1
        %v1471 = vsel %vm1344, %v1469, %v1470
        %v1472 = vrot.slane %v1423, 1
        %v1473 = vsel %vm1344, %v1470, %v1472
        %v1474 = vrot.slane %v1424, 1
        %v1475 = vrot.slane %v1425, 1
        %v1476 = vsel %vm1344, %v1474, %v1475
        %v1477 = vrot.slane %v1426, 1
        %v1478 = vsel %vm1344, %v1475, %v1477
        %v1479 = vrot.slane %v1427, 1
        %v1480 = vrot.slane %v1428, 1
        %v1481 = vsel %vm1344, %v1479, %v1480
        %v1482 = vrot.slane %v1429, 1
        %v1483 = vsel %vm1344, %v1480, %v1482
        %v1484 = vrot.slane %v1430, 1
        %v1485 = vrot.slane %v1431, 1
        %v1486 = vsel %vm1344, %v1484, %v1485
        %v1487 = vrot.slane %v1432, 1
        %v1488 = vsel %vm1344, %v1485, %v1487
        %v1489 = vrot.slane %v1433, 1
        %v1490 = vrot.slane %v1434, 1
        %v1491 = vsel %vm1344, %v1489, %v1490
        %v1492 = vrot.slane %v1435, 1
        %v1493 = vsel %vm1344, %v1490, %v1492
        %v1494 = vrot.slane %v1436, 1
        %v1495 = vrot.slane %v1437, 1
        %v1496 = vsel %vm1344, %v1494, %v1495
        %v1497 = vrot.slane %v1438, 1
        %v1498 = vsel %vm1344, %v1495, %v1497
        %v1499 = vrot.slane %v1439, 1
        %v1500 = vrot.slane %v1440, 1
        %v1501 = vsel %vm1344, %v1499, %v1500
        %v1502 = vrot.slane %v1441, 1
        %v1503 = vsel %vm1344, %v1500, %v1502
        %v1504 = vrot.slane %v1442, 1
        %v1505 = vrot.slane %v1443, 1
        %v1506 = vsel %vm1344, %v1504, %v1505
        %v1507 = vrot.slane %v1444, 1
        %v1508 = vsel %vm1344, %v1505, %v1507
        %v1533 = vadd.f32 %v1268, %v1471
        %v1534 = vadd.f32 %v1269, %v1473
        %v1535 = vadd.f32 %v1270, %v1472
        %v1536 = vadd.f32 %v1271, %v1476
        %v1537 = vadd.f32 %v1272, %v1478
        %v1538 = vadd.f32 %v1273, %v1477
        %v1539 = vadd.f32 %v1274, %v1481
        %v1540 = vadd.f32 %v1275, %v1483
        %v1541 = vadd.f32 %v1276, %v1482
        %v1542 = vadd.f32 %v1277, %v1486
        %v1543 = vadd.f32 %v1278, %v1488
        %v1544 = vadd.f32 %v1279, %v1487
        %v1545 = vadd.f32 %v1280, %v1491
        %v1546 = vadd.f32 %v1281, %v1493
        %v1547 = vadd.f32 %v1282, %v1492
        %v1548 = vadd.f32 %v1283, %v1496
        %v1549 = vadd.f32 %v1284, %v1498
        %v1550 = vadd.f32 %v1285, %v1497
        %v1551 = vadd.f32 %v1286, %v1501
        %v1552 = vadd.f32 %v1287, %v1503
        %v1553 = vadd.f32 %v1288, %v1502
        %v1554 = vadd.f32 %v1289, %v1506
        %v1555 = vadd.f32 %v1290, %v1508
        %v1556 = vadd.f32 %v1291, %v1507
        %v1557 = vlaneseq
        %v1558 = vshrl.u32 %v1557, 7
        %v1559 = vsub.s32 2, %v1558
        %v1560 = vrot.slane %v328, %v1559
        %v1561 = vmul.f32 %v416, %v1560
        %v1562 = vmul.f32 %v417, %v1560
        %v1563 = vmul.f32 %v418, %v1560
        %v1564 = vmul.f32 %v419, %v1560
        %v1565 = vmul.f32 %v420, %v1560
        %v1566 = vmul.f32 %v421, %v1560
        %v1567 = vmul.f32 %v422, %v1560
        %v1568 = vmul.f32 %v423, %v1560
        %v1569 = vmul.f32 %v424, %v1560
        %v1570 = vmul.f32 %v425, %v1560
        %v1571 = vmul.f32 %v426, %v1560
        %v1572 = vmul.f32 %v427, %v1560
        %v1573 = vmul.f32 %v428, %v1560
        %v1574 = vmul.f32 %v429, %v1560
        %v1575 = vmul.f32 %v430, %v1560
        %v1576 = vmul.f32 %v431, %v1560
        %v1577 = vmul.f32 %v432, %v1560
        %v1578 = vmul.f32 %v433, %v1560
        %v1579 = vmul.f32 %v434, %v1560
        %v1580 = vmul.f32 %v435, %v1560
        %v1581 = vmul.f32 %v436, %v1560
        %v1582 = vmul.f32 %v1180, %v1560
        %v1583 = vmul.f32 %v1181, %v1560
        %v1584 = vmul.f32 %v1182, %v1560
        %vm1609 = vcmask 1044480
        %v1610 = vrot.slane %v1561, 3
        %v1611 = vrot.slane %v1562, 3
        %v1612 = vsel %vm1609, %v1610, %v1611
        %v1613 = vrot.slane %v1563, 3
        %v1614 = vsel %vm1609, %v1611, %v1613
        %v1615 = vrot.slane %v1564, 3
        %v1616 = vrot.slane %v1565, 3
        %v1617 = vsel %vm1609, %v1615, %v1616
        %v1618 = vrot.slane %v1566, 3
        %v1619 = vsel %vm1609, %v1616, %v1618
        %v1620 = vrot.slane %v1567, 3
        %v1621 = vrot.slane %v1568, 3
        %v1622 = vsel %vm1609, %v1620, %v1621
        %v1623 = vrot.slane %v1569, 3
        %v1624 = vsel %vm1609, %v1621, %v1623
        %v1625 = vrot.slane %v1570, 3
        %v1626 = vrot.slane %v1571, 3
        %v1627 = vsel %vm1609, %v1625, %v1626
        %v1628 = vrot.slane %v1572, 3
        %v1629 = vsel %vm1609, %v1626, %v1628
        %v1630 = vrot.slane %v1573, 3
        %v1631 = vrot.slane %v1574, 3
        %v1632 = vsel %vm1609, %v1630, %v1631
        %v1633 = vrot.slane %v1575, 3
        %v1634 = vsel %vm1609, %v1631, %v1633
        %v1635 = vrot.slane %v1576, 3
        %v1636 = vrot.slane %v1577, 3
        %v1637 = vsel %vm1609, %v1635, %v1636
        %v1638 = vrot.slane %v1578, 3
        %v1639 = vsel %vm1609, %v1636, %v1638
        %v1640 = vrot.slane %v1579, 3
        %v1641 = vrot.slane %v1580, 3
        %v1642 = vsel %vm1609, %v1640, %v1641
        %v1643 = vrot.slane %v1581, 3
        %v1644 = vsel %vm1609, %v1641, %v1643
        %v1645 = vrot.slane %v1582, 3
        %v1646 = vrot.slane %v1583, 3
        %v1647 = vsel %vm1609, %v1645, %v1646
        %v1648 = vrot.slane %v1584, 3
        %v1649 = vsel %vm1609, %v1646, %v1648
        %v1666 = vadd.f32 %v1401, %v1612
        %v1667 = vadd.f32 %v1402, %v1614
        %v1668 = vadd.f32 %v1403, %v1617
        %v1669 = vadd.f32 %v1404, %v1619
        %v1670 = vadd.f32 %v1405, %v1622
        %v1671 = vadd.f32 %v1406, %v1624
        %v1672 = vadd.f32 %v1407, %v1627
        %v1673 = vadd.f32 %v1408, %v1629
        %v1674 = vadd.f32 %v1409, %v1632
        %v1675 = vadd.f32 %v1410, %v1634
        %v1676 = vadd.f32 %v1411, %v1637
        %v1677 = vadd.f32 %v1412, %v1639
        %v1678 = vadd.f32 %v1413, %v1642
        %v1679 = vadd.f32 %v1414, %v1644
        %v1680 = vadd.f32 %v1415, %v1647
        %v1681 = vadd.f32 %v1416, %v1649
        %v1682 = vlaneseq
        %v1683 = vshrl.u32 %v1682, 7
        %v1684 = vsub.s32 3, %v1683
        %v1685 = vrot.slane %v328, %v1684
        %v1686 = vmul.f32 %v416, %v1685
        %v1687 = vmul.f32 %v417, %v1685
        %v1688 = vmul.f32 %v418, %v1685
        %v1689 = vmul.f32 %v419, %v1685
        %v1690 = vmul.f32 %v420, %v1685
        %v1691 = vmul.f32 %v421, %v1685
        %v1692 = vmul.f32 %v422, %v1685
        %v1693 = vmul.f32 %v423, %v1685
        %v1694 = vmul.f32 %v424, %v1685
        %v1695 = vmul.f32 %v425, %v1685
        %v1696 = vmul.f32 %v426, %v1685
        %v1697 = vmul.f32 %v427, %v1685
        %v1698 = vmul.f32 %v428, %v1685
        %v1699 = vmul.f32 %v429, %v1685
        %v1700 = vmul.f32 %v430, %v1685
        %v1701 = vmul.f32 %v431, %v1685
        %v1702 = vmul.f32 %v432, %v1685
        %v1703 = vmul.f32 %v433, %v1685
        %v1704 = vmul.f32 %v434, %v1685
        %v1705 = vmul.f32 %v435, %v1685
        %v1706 = vmul.f32 %v436, %v1685
        %v1707 = vmul.f32 %v1180, %v1685
        %v1708 = vmul.f32 %v1181, %v1685
        %v1709 = vmul.f32 %v1182, %v1685
        %v1734 = vrot.slane %v1686, 3
        %v1735 = vrot.slane %v1687, 3
        %v1736 = vsel %vm1609, %v1734, %v1735
        %v1737 = vrot.slane %v1688, 3
        %v1738 = vsel %vm1609, %v1735, %v1737
        %v1739 = vrot.slane %v1689, 3
        %v1740 = vrot.slane %v1690, 3
        %v1741 = vsel %vm1609, %v1739, %v1740
        %v1742 = vrot.slane %v1691, 3
        %v1743 = vsel %vm1609, %v1740, %v1742
        %v1744 = vrot.slane %v1692, 3
        %v1745 = vrot.slane %v1693, 3
        %v1746 = vsel %vm1609, %v1744, %v1745
        %v1747 = vrot.slane %v1694, 3
        %v1748 = vsel %vm1609, %v1745, %v1747
        %v1749 = vrot.slane %v1695, 3
        %v1750 = vrot.slane %v1696, 3
        %v1751 = vsel %vm1609, %v1749, %v1750
        %v1752 = vrot.slane %v1697, 3
        %v1753 = vsel %vm1609, %v1750, %v1752
        %v1754 = vrot.slane %v1698, 3
        %v1755 = vrot.slane %v1699, 3
        %v1756 = vsel %vm1609, %v1754, %v1755
        %v1757 = vrot.slane %v1700, 3
        %v1758 = vsel %vm1609, %v1755, %v1757
        %v1759 = vrot.slane %v1701, 3
        %v1760 = vrot.slane %v1702, 3
        %v1761 = vsel %vm1609, %v1759, %v1760
        %v1762 = vrot.slane %v1703, 3
        %v1763 = vsel %vm1609, %v1760, %v1762
        %v1764 = vrot.slane %v1704, 3
        %v1765 = vrot.slane %v1705, 3
        %v1766 = vsel %vm1609, %v1764, %v1765
        %v1767 = vrot.slane %v1706, 3
        %v1768 = vsel %vm1609, %v1765, %v1767
        %v1769 = vrot.slane %v1707, 3
        %v1770 = vrot.slane %v1708, 3
        %v1771 = vsel %vm1609, %v1769, %v1770
        %v1772 = vrot.slane %v1709, 3
        %v1773 = vsel %vm1609, %v1770, %v1772
        %v1798 = vadd.f32 %v1533, %v1736
        %v1799 = vadd.f32 %v1534, %v1738
        %v1800 = vadd.f32 %v1535, %v1737
        %v1801 = vadd.f32 %v1536, %v1741
        %v1802 = vadd.f32 %v1537, %v1743
        %v1803 = vadd.f32 %v1538, %v1742
        %v1804 = vadd.f32 %v1539, %v1746
        %v1805 = vadd.f32 %v1540, %v1748
        %v1806 = vadd.f32 %v1541, %v1747
        %v1807 = vadd.f32 %v1542, %v1751
        %v1808 = vadd.f32 %v1543, %v1753
        %v1809 = vadd.f32 %v1544, %v1752
        %v1810 = vadd.f32 %v1545, %v1756
        %v1811 = vadd.f32 %v1546, %v1758
        %v1812 = vadd.f32 %v1547, %v1757
        %v1813 = vadd.f32 %v1548, %v1761
        %v1814 = vadd.f32 %v1549, %v1763
        %v1815 = vadd.f32 %v1550, %v1762
        %v1816 = vadd.f32 %v1551, %v1766
        %v1817 = vadd.f32 %v1552, %v1768
        %v1818 = vadd.f32 %v1553, %v1767
        %v1819 = vadd.f32 %v1554, %v1771
        %v1820 = vadd.f32 %v1555, %v1773
        %v1821 = vadd.f32 %v1556, %v1772
        %v1822 = vlaneseq
        %v1823 = vshrl.u32 %v1822, 7
        %v1824 = vsub.s32 4, %v1823
        %v1825 = vrot.slane %v328, %v1824
        %v1826 = vmul.f32 %v416, %v1825
        %v1827 = vmul.f32 %v417, %v1825
        %v1828 = vmul.f32 %v418, %v1825
        %v1829 = vmul.f32 %v419, %v1825
        %v1830 = vmul.f32 %v420, %v1825
        %v1831 = vmul.f32 %v421, %v1825
        %v1832 = vmul.f32 %v422, %v1825
        %v1833 = vmul.f32 %v423, %v1825
        %v1834 = vmul.f32 %v424, %v1825
        %v1835 = vmul.f32 %v425, %v1825
        %v1836 = vmul.f32 %v426, %v1825
        %v1837 = vmul.f32 %v427, %v1825
        %v1838 = vmul.f32 %v428, %v1825
        %v1839 = vmul.f32 %v429, %v1825
        %v1840 = vmul.f32 %v430, %v1825
        %v1841 = vmul.f32 %v431, %v1825
        %v1842 = vmul.f32 %v432, %v1825
        %v1843 = vmul.f32 %v433, %v1825
        %v1844 = vmul.f32 %v434, %v1825
        %v1845 = vmul.f32 %v435, %v1825
        %v1846 = vmul.f32 %v436, %v1825
        %v1847 = vmul.f32 %v1180, %v1825
        %v1848 = vmul.f32 %v1181, %v1825
        %v1849 = vmul.f32 %v1182, %v1825
        %vm1874 = vcmask 1042432
        %v1875 = vrot.slane %v1826, 5
        %v1876 = vrot.slane %v1827, 5
        %v1877 = vsel %vm1874, %v1875, %v1876
        %v1878 = vrot.slane %v1828, 5
        %v1879 = vsel %vm1874, %v1876, %v1878
        %v1880 = vrot.slane %v1829, 5
        %v1881 = vrot.slane %v1830, 5
        %v1882 = vsel %vm1874, %v1880, %v1881
        %v1883 = vrot.slane %v1831, 5
        %v1884 = vsel %vm1874, %v1881, %v1883
        %v1885 = vrot.slane %v1832, 5
        %v1886 = vrot.slane %v1833, 5
        %v1887 = vsel %vm1874, %v1885, %v1886
        %v1888 = vrot.slane %v1834, 5
        %v1889 = vsel %vm1874, %v1886, %v1888
        %v1890 = vrot.slane %v1835, 5
        %v1891 = vrot.slane %v1836, 5
        %v1892 = vsel %vm1874, %v1890, %v1891
        %v1893 = vrot.slane %v1837, 5
        %v1894 = vsel %vm1874, %v1891, %v1893
        %v1895 = vrot.slane %v1838, 5
        %v1896 = vrot.slane %v1839, 5
        %v1897 = vsel %vm1874, %v1895, %v1896
        %v1898 = vrot.slane %v1840, 5
        %v1899 = vsel %vm1874, %v1896, %v1898
        %v1900 = vrot.slane %v1841, 5
        %v1901 = vrot.slane %v1842, 5
        %v1902 = vsel %vm1874, %v1900, %v1901
        %v1903 = vrot.slane %v1843, 5
        %v1904 = vsel %vm1874, %v1901, %v1903
        %v1905 = vrot.slane %v1844, 5
        %v1906 = vrot.slane %v1845, 5
        %v1907 = vsel %vm1874, %v1905, %v1906
        %v1908 = vrot.slane %v1846, 5
        %v1909 = vsel %vm1874, %v1906, %v1908
        %v1910 = vrot.slane %v1847, 5
        %v1911 = vrot.slane %v1848, 5
        %v1912 = vsel %vm1874, %v1910, %v1911
        %v1913 = vrot.slane %v1849, 5
        %v1914 = vsel %vm1874, %v1911, %v1913
        %v1931 = vadd.f32 %v1666, %v1877
        %v1932 = vadd.f32 %v1667, %v1879
        %v1933 = vadd.f32 %v1668, %v1882
        %v1934 = vadd.f32 %v1669, %v1884
        %v1935 = vadd.f32 %v1670, %v1887
        %v1936 = vadd.f32 %v1671, %v1889
        %v1937 = vadd.f32 %v1672, %v1892
        %v1938 = vadd.f32 %v1673, %v1894
        %v1939 = vadd.f32 %v1674, %v1897
        %v1940 = vadd.f32 %v1675, %v1899
        %v1941 = vadd.f32 %v1676, %v1902
        %v1942 = vadd.f32 %v1677, %v1904
        %v1943 = vadd.f32 %v1678, %v1907
        %v1944 = vadd.f32 %v1679, %v1909
        %v1945 = vadd.f32 %v1680, %v1912
        %v1946 = vadd.f32 %v1681, %v1914
        %v1947 = vlaneseq
        %v1948 = vshrl.u32 %v1947, 7
        %v1949 = vsub.s32 5, %v1948
        %v1950 = vrot.slane %v328, %v1949
        %v1951 = vmul.f32 %v416, %v1950
        %v1952 = vmul.f32 %v417, %v1950
        %v1953 = vmul.f32 %v418, %v1950
        %v1954 = vmul.f32 %v419, %v1950
        %v1955 = vmul.f32 %v420, %v1950
        %v1956 = vmul.f32 %v421, %v1950
        %v1957 = vmul.f32 %v422, %v1950
        %v1958 = vmul.f32 %v423, %v1950
        %v1959 = vmul.f32 %v424, %v1950
        %v1960 = vmul.f32 %v425, %v1950
        %v1961 = vmul.f32 %v426, %v1950
        %v1962 = vmul.f32 %v427, %v1950
        %v1963 = vmul.f32 %v428, %v1950
        %v1964 = vmul.f32 %v429, %v1950
        %v1965 = vmul.f32 %v430, %v1950
        %v1966 = vmul.f32 %v431, %v1950
        %v1967 = vmul.f32 %v432, %v1950
        %v1968 = vmul.f32 %v433, %v1950
        %v1969 = vmul.f32 %v434, %v1950
        %v1970 = vmul.f32 %v435, %v1950
        %v1971 = vmul.f32 %v436, %v1950
        %v1972 = vmul.f32 %v1180, %v1950
        %v1973 = vmul.f32 %v1181, %v1950
        %v1974 = vmul.f32 %v1182, %v1950
        %v1999 = vrot.slane %v1951, 5
        %v2000 = vrot.slane %v1952, 5
        %v2001 = vsel %vm1874, %v1999, %v2000
        %v2002 = vrot.slane %v1953, 5
        %v2003 = vsel %vm1874, %v2000, %v2002
        %v2004 = vrot.slane %v1954, 5
        %v2005 = vrot.slane %v1955, 5
        %v2006 = vsel %vm1874, %v2004, %v2005
        %v2007 = vrot.slane %v1956, 5
        %v2008 = vsel %vm1874, %v2005, %v2007
        %v2009 = vrot.slane %v1957, 5
        %v2010 = vrot.slane %v1958, 5
        %v2011 = vsel %vm1874, %v2009, %v2010
        %v2012 = vrot.slane %v1959, 5
        %v2013 = vsel %vm1874, %v2010, %v2012
        %v2014 = vrot.slane %v1960, 5
        %v2015 = vrot.slane %v1961, 5
        %v2016 = vsel %vm1874, %v2014, %v2015
        %v2017 = vrot.slane %v1962, 5
        %v2018 = vsel %vm1874, %v2015, %v2017
        %v2019 = vrot.slane %v1963, 5
        %v2020 = vrot.slane %v1964, 5
        %v2021 = vsel %vm1874, %v2019, %v2020
        %v2022 = vrot.slane %v1965, 5
        %v2023 = vsel %vm1874, %v2020, %v2022
        %v2024 = vrot.slane %v1966, 5
        %v2025 = vrot.slane %v1967, 5
        %v2026 = vsel %vm1874, %v2024, %v2025
        %v2027 = vrot.slane %v1968, 5
        %v2028 = vsel %vm1874, %v2025, %v2027
        %v2029 = vrot.slane %v1969, 5
        %v2030 = vrot.slane %v1970, 5
        %v2031 = vsel %vm1874, %v2029, %v2030
        %v2032 = vrot.slane %v1971, 5
        %v2033 = vsel %vm1874, %v2030, %v2032
        %v2034 = vrot.slane %v1972, 5
        %v2035 = vrot.slane %v1973, 5
        %v2036 = vsel %vm1874, %v2034, %v2035
        %v2037 = vrot.slane %v1974, 5
        %v2038 = vsel %vm1874, %v2035, %v2037
        %v2063 = vadd.f32 %v1798, %v2001
        %v2064 = vadd.f32 %v1799, %v2003
        %v2065 = vadd.f32 %v1800, %v2002
        %v2066 = vadd.f32 %v1801, %v2006
        %v2067 = vadd.f32 %v1802, %v2008
        %v2068 = vadd.f32 %v1803, %v2007
        %v2069 = vadd.f32 %v1804, %v2011
        %v2070 = vadd.f32 %v1805, %v2013
        %v2071 = vadd.f32 %v1806, %v2012
        %v2072 = vadd.f32 %v1807, %v2016
        %v2073 = vadd.f32 %v1808, %v2018
        %v2074 = vadd.f32 %v1809, %v2017
        %v2075 = vadd.f32 %v1810, %v2021
        %v2076 = vadd.f32 %v1811, %v2023
        %v2077 = vadd.f32 %v1812, %v2022
        %v2078 = vadd.f32 %v1813, %v2026
        %v2079 = vadd.f32 %v1814, %v2028
        %v2080 = vadd.f32 %v1815, %v2027
        %v2081 = vadd.f32 %v1816, %v2031
        %v2082 = vadd.f32 %v1817, %v2033
        %v2083 = vadd.f32 %v1818, %v2032
        %v2084 = vadd.f32 %v1819, %v2036
        %v2085 = vadd.f32 %v1820, %v2038
        %v2086 = vadd.f32 %v1821, %v2037
        %v2087 = vunpack.c.l.bf16 %v398
        %v2088 = vunpack.c.l.bf16 %v399
        %v2089 = vunpack.c.l.bf16 %v400
        %v2090 = vlaneseq
        %v2091 = vshrl.u32 %v2090, 7
        %v2092 = vsub.s32 6, %v2091
        %v2093 = vrot.slane %v328, %v2092
        %v2094 = vmul.f32 %v419, %v2093
        %v2095 = vmul.f32 %v420, %v2093
        %v2096 = vmul.f32 %v422, %v2093
        %v2097 = vmul.f32 %v423, %v2093
        %v2098 = vmul.f32 %v425, %v2093
        %v2099 = vmul.f32 %v426, %v2093
        %v2100 = vmul.f32 %v428, %v2093
        %v2101 = vmul.f32 %v429, %v2093
        %v2102 = vmul.f32 %v431, %v2093
        %v2103 = vmul.f32 %v432, %v2093
        %v2104 = vmul.f32 %v434, %v2093
        %v2105 = vmul.f32 %v435, %v2093
        %v2106 = vmul.f32 %v1180, %v2093
        %v2107 = vmul.f32 %v1181, %v2093
        %v2108 = vmul.f32 %v2087, %v2093
        %v2109 = vmul.f32 %v2088, %v2093
        %v2110 = vadd.f32 %v1931, %v2094
        %v2111 = vadd.f32 %v1932, %v2095
        %v2112 = vadd.f32 %v1933, %v2096
        %v2113 = vadd.f32 %v1934, %v2097
        %v2114 = vadd.f32 %v1935, %v2098
        %v2115 = vadd.f32 %v1936, %v2099
        %v2116 = vadd.f32 %v1937, %v2100
        %v2117 = vadd.f32 %v1938, %v2101
        %v2118 = vadd.f32 %v1939, %v2102
        %v2119 = vadd.f32 %v1940, %v2103
        %v2120 = vadd.f32 %v1941, %v2104
        %v2121 = vadd.f32 %v1942, %v2105
        %v2122 = vadd.f32 %v1943, %v2106
        %v2123 = vadd.f32 %v1944, %v2107
        %v2124 = vadd.f32 %v1945, %v2108
        %v2125 = vadd.f32 %v1946, %v2109
        %v2126 = vlaneseq
        %v2127 = vshrl.u32 %v2126, 7
        %v2128 = vsub.s32 7, %v2127
        %v2129 = vrot.slane %v328, %v2128
        %v2130 = vmul.f32 %v419, %v2129
        %v2131 = vmul.f32 %v420, %v2129
        %v2132 = vmul.f32 %v421, %v2129
        %v2133 = vmul.f32 %v422, %v2129
        %v2134 = vmul.f32 %v423, %v2129
        %v2135 = vmul.f32 %v424, %v2129
        %v2136 = vmul.f32 %v425, %v2129
        %v2137 = vmul.f32 %v426, %v2129
        %v2138 = vmul.f32 %v427, %v2129
        %v2139 = vmul.f32 %v428, %v2129
        %v2140 = vmul.f32 %v429, %v2129
        %v2141 = vmul.f32 %v430, %v2129
        %v2142 = vmul.f32 %v431, %v2129
        %v2143 = vmul.f32 %v432, %v2129
        %v2144 = vmul.f32 %v433, %v2129
        %v2145 = vmul.f32 %v434, %v2129
        %v2146 = vmul.f32 %v435, %v2129
        %v2147 = vmul.f32 %v436, %v2129
        %v2148 = vmul.f32 %v1180, %v2129
        %v2149 = vmul.f32 %v1181, %v2129
        %v2150 = vmul.f32 %v1182, %v2129
        %v2151 = vmul.f32 %v2087, %v2129
        %v2152 = vmul.f32 %v2088, %v2129
        %v2153 = vmul.f32 %v2089, %v2129
        %v2154 = vadd.f32 %v2063, %v2130
        %v2155 = vadd.f32 %v2064, %v2131
        %v2156 = vadd.f32 %v2065, %v2132
        %v2157 = vadd.f32 %v2066, %v2133
        %v2158 = vadd.f32 %v2067, %v2134
        %v2159 = vadd.f32 %v2068, %v2135
        %v2160 = vadd.f32 %v2069, %v2136
        %v2161 = vadd.f32 %v2070, %v2137
        %v2162 = vadd.f32 %v2071, %v2138
        %v2163 = vadd.f32 %v2072, %v2139
        %v2164 = vadd.f32 %v2073, %v2140
        %v2165 = vadd.f32 %v2074, %v2141
        %v2166 = vadd.f32 %v2075, %v2142
        %v2167 = vadd.f32 %v2076, %v2143
        %v2168 = vadd.f32 %v2077, %v2144
        %v2169 = vadd.f32 %v2078, %v2145
        %v2170 = vadd.f32 %v2079, %v2146
        %v2171 = vadd.f32 %v2080, %v2147
        %v2172 = vadd.f32 %v2081, %v2148
        %v2173 = vadd.f32 %v2082, %v2149
        %v2174 = vadd.f32 %v2083, %v2150
        %v2175 = vadd.f32 %v2084, %v2151
        %v2176 = vadd.f32 %v2085, %v2152
        %v2177 = vadd.f32 %v2086, %v2153
        %v2178 = vlaneseq
        %v2179 = vshrl.u32 %v2178, 7
        %v2180 = vsub.s32 0, %v2179
        %v2181 = vrot.slane %v329, %v2180
        %v2182 = vmul.f32 %v419, %v2181
        %v2183 = vmul.f32 %v420, %v2181
        %v2184 = vmul.f32 %v421, %v2181
        %v2185 = vmul.f32 %v422, %v2181
        %v2186 = vmul.f32 %v423, %v2181
        %v2187 = vmul.f32 %v424, %v2181
        %v2188 = vmul.f32 %v425, %v2181
        %v2189 = vmul.f32 %v426, %v2181
        %v2190 = vmul.f32 %v427, %v2181
        %v2191 = vmul.f32 %v428, %v2181
        %v2192 = vmul.f32 %v429, %v2181
        %v2193 = vmul.f32 %v430, %v2181
        %v2194 = vmul.f32 %v431, %v2181
        %v2195 = vmul.f32 %v432, %v2181
        %v2196 = vmul.f32 %v433, %v2181
        %v2197 = vmul.f32 %v434, %v2181
        %v2198 = vmul.f32 %v435, %v2181
        %v2199 = vmul.f32 %v436, %v2181
        %v2200 = vmul.f32 %v1180, %v2181
        %v2201 = vmul.f32 %v1181, %v2181
        %v2202 = vmul.f32 %v1182, %v2181
        %v2203 = vmul.f32 %v2087, %v2181
        %v2204 = vmul.f32 %v2088, %v2181
        %v2205 = vmul.f32 %v2089, %v2181
        %v2230 = vrot.slane %v2182, 2
        %v2231 = vrot.slane %v2183, 2
        %v2232 = vsel %vm577, %v2230, %v2231
        %v2233 = vrot.slane %v2184, 2
        %v2234 = vsel %vm577, %v2231, %v2233
        %v2235 = vrot.slane %v2185, 2
        %v2236 = vrot.slane %v2186, 2
        %v2237 = vsel %vm577, %v2235, %v2236
        %v2238 = vrot.slane %v2187, 2
        %v2239 = vsel %vm577, %v2236, %v2238
        %v2240 = vrot.slane %v2188, 2
        %v2241 = vrot.slane %v2189, 2
        %v2242 = vsel %vm577, %v2240, %v2241
        %v2243 = vrot.slane %v2190, 2
        %v2244 = vsel %vm577, %v2241, %v2243
        %v2245 = vrot.slane %v2191, 2
        %v2246 = vrot.slane %v2192, 2
        %v2247 = vsel %vm577, %v2245, %v2246
        %v2248 = vrot.slane %v2193, 2
        %v2249 = vsel %vm577, %v2246, %v2248
        %v2250 = vrot.slane %v2194, 2
        %v2251 = vrot.slane %v2195, 2
        %v2252 = vsel %vm577, %v2250, %v2251
        %v2253 = vrot.slane %v2196, 2
        %v2254 = vsel %vm577, %v2251, %v2253
        %v2255 = vrot.slane %v2197, 2
        %v2256 = vrot.slane %v2198, 2
        %v2257 = vsel %vm577, %v2255, %v2256
        %v2258 = vrot.slane %v2199, 2
        %v2259 = vsel %vm577, %v2256, %v2258
        %v2260 = vrot.slane %v2200, 2
        %v2261 = vrot.slane %v2201, 2
        %v2262 = vsel %vm577, %v2260, %v2261
        %v2263 = vrot.slane %v2202, 2
        %v2264 = vsel %vm577, %v2261, %v2263
        %v2265 = vrot.slane %v2203, 2
        %v2266 = vrot.slane %v2204, 2
        %v2267 = vsel %vm577, %v2265, %v2266
        %v2268 = vrot.slane %v2205, 2
        %v2269 = vsel %vm577, %v2266, %v2268
        %v2286 = vadd.f32 %v2110, %v2232
        %v2287 = vadd.f32 %v2111, %v2234
        %v2288 = vadd.f32 %v2112, %v2237
        %v2289 = vadd.f32 %v2113, %v2239
        %v2290 = vadd.f32 %v2114, %v2242
        %v2291 = vadd.f32 %v2115, %v2244
        %v2292 = vadd.f32 %v2116, %v2247
        %v2293 = vadd.f32 %v2117, %v2249
        %v2294 = vadd.f32 %v2118, %v2252
        %v2295 = vadd.f32 %v2119, %v2254
        %v2296 = vadd.f32 %v2120, %v2257
        %v2297 = vadd.f32 %v2121, %v2259
        %v2298 = vadd.f32 %v2122, %v2262
        %v2299 = vadd.f32 %v2123, %v2264
        %v2300 = vadd.f32 %v2124, %v2267
        %v2301 = vadd.f32 %v2125, %v2269
        %v2302 = vlaneseq
        %v2303 = vshrl.u32 %v2302, 7
        %v2304 = vsub.s32 1, %v2303
        %v2305 = vrot.slane %v329, %v2304
        %v2306 = vmul.f32 %v419, %v2305
        %v2307 = vmul.f32 %v420, %v2305
        %v2308 = vmul.f32 %v421, %v2305
        %v2309 = vmul.f32 %v422, %v2305
        %v2310 = vmul.f32 %v423, %v2305
        %v2311 = vmul.f32 %v424, %v2305
        %v2312 = vmul.f32 %v425, %v2305
        %v2313 = vmul.f32 %v426, %v2305
        %v2314 = vmul.f32 %v427, %v2305
        %v2315 = vmul.f32 %v428, %v2305
        %v2316 = vmul.f32 %v429, %v2305
        %v2317 = vmul.f32 %v430, %v2305
        %v2318 = vmul.f32 %v431, %v2305
        %v2319 = vmul.f32 %v432, %v2305
        %v2320 = vmul.f32 %v433, %v2305
        %v2321 = vmul.f32 %v434, %v2305
        %v2322 = vmul.f32 %v435, %v2305
        %v2323 = vmul.f32 %v436, %v2305
        %v2324 = vmul.f32 %v1180, %v2305
        %v2325 = vmul.f32 %v1181, %v2305
        %v2326 = vmul.f32 %v1182, %v2305
        %v2327 = vmul.f32 %v2087, %v2305
        %v2328 = vmul.f32 %v2088, %v2305
        %v2329 = vmul.f32 %v2089, %v2305
        %v2354 = vrot.slane %v2306, 2
        %v2355 = vrot.slane %v2307, 2
        %v2356 = vsel %vm577, %v2354, %v2355
        %v2357 = vrot.slane %v2308, 2
        %v2358 = vsel %vm577, %v2355, %v2357
        %v2359 = vrot.slane %v2309, 2
        %v2360 = vrot.slane %v2310, 2
        %v2361 = vsel %vm577, %v2359, %v2360
        %v2362 = vrot.slane %v2311, 2
        %v2363 = vsel %vm577, %v2360, %v2362
        %v2364 = vrot.slane %v2312, 2
        %v2365 = vrot.slane %v2313, 2
        %v2366 = vsel %vm577, %v2364, %v2365
        %v2367 = vrot.slane %v2314, 2
        %v2368 = vsel %vm577, %v2365, %v2367
        %v2369 = vrot.slane %v2315, 2
        %v2370 = vrot.slane %v2316, 2
        %v2371 = vsel %vm577, %v2369, %v2370
        %v2372 = vrot.slane %v2317, 2
        %v2373 = vsel %vm577, %v2370, %v2372
        %v2374 = vrot.slane %v2318, 2
        %v2375 = vrot.slane %v2319, 2
        %v2376 = vsel %vm577, %v2374, %v2375
        %v2377 = vrot.slane %v2320, 2
        %v2378 = vsel %vm577, %v2375, %v2377
        %v2379 = vrot.slane %v2321, 2
        %v2380 = vrot.slane %v2322, 2
        %v2381 = vsel %vm577, %v2379, %v2380
        %v2382 = vrot.slane %v2323, 2
        %v2383 = vsel %vm577, %v2380, %v2382
        %v2384 = vrot.slane %v2324, 2
        %v2385 = vrot.slane %v2325, 2
        %v2386 = vsel %vm577, %v2384, %v2385
        %v2387 = vrot.slane %v2326, 2
        %v2388 = vsel %vm577, %v2385, %v2387
        %v2389 = vrot.slane %v2327, 2
        %v2390 = vrot.slane %v2328, 2
        %v2391 = vsel %vm577, %v2389, %v2390
        %v2392 = vrot.slane %v2329, 2
        %v2393 = vsel %vm577, %v2390, %v2392
        %v2418 = vadd.f32 %v2154, %v2356
        %v2419 = vadd.f32 %v2155, %v2358
        %v2420 = vadd.f32 %v2156, %v2357
        %v2421 = vadd.f32 %v2157, %v2361
        %v2422 = vadd.f32 %v2158, %v2363
        %v2423 = vadd.f32 %v2159, %v2362
        %v2424 = vadd.f32 %v2160, %v2366
        %v2425 = vadd.f32 %v2161, %v2368
        %v2426 = vadd.f32 %v2162, %v2367
        %v2427 = vadd.f32 %v2163, %v2371
        %v2428 = vadd.f32 %v2164, %v2373
        %v2429 = vadd.f32 %v2165, %v2372
        %v2430 = vadd.f32 %v2166, %v2376
        %v2431 = vadd.f32 %v2167, %v2378
        %v2432 = vadd.f32 %v2168, %v2377
        %v2433 = vadd.f32 %v2169, %v2381
        %v2434 = vadd.f32 %v2170, %v2383
        %v2435 = vadd.f32 %v2171, %v2382
        %v2436 = vadd.f32 %v2172, %v2386
        %v2437 = vadd.f32 %v2173, %v2388
        %v2438 = vadd.f32 %v2174, %v2387
        %v2439 = vadd.f32 %v2175, %v2391
        %v2440 = vadd.f32 %v2176, %v2393
        %v2441 = vadd.f32 %v2177, %v2392
        %v2442 = vlaneseq
        %v2443 = vshrl.u32 %v2442, 7
        %v2444 = vsub.s32 2, %v2443
        %v2445 = vrot.slane %v329, %v2444
        %v2446 = vmul.f32 %v419, %v2445
        %v2447 = vmul.f32 %v420, %v2445
        %v2448 = vmul.f32 %v421, %v2445
        %v2449 = vmul.f32 %v422, %v2445
        %v2450 = vmul.f32 %v423, %v2445
        %v2451 = vmul.f32 %v424, %v2445
        %v2452 = vmul.f32 %v425, %v2445
        %v2453 = vmul.f32 %v426, %v2445
        %v2454 = vmul.f32 %v427, %v2445
        %v2455 = vmul.f32 %v428, %v2445
        %v2456 = vmul.f32 %v429, %v2445
        %v2457 = vmul.f32 %v430, %v2445
        %v2458 = vmul.f32 %v431, %v2445
        %v2459 = vmul.f32 %v432, %v2445
        %v2460 = vmul.f32 %v433, %v2445
        %v2461 = vmul.f32 %v434, %v2445
        %v2462 = vmul.f32 %v435, %v2445
        %v2463 = vmul.f32 %v436, %v2445
        %v2464 = vmul.f32 %v1180, %v2445
        %v2465 = vmul.f32 %v1181, %v2445
        %v2466 = vmul.f32 %v1182, %v2445
        %v2467 = vmul.f32 %v2087, %v2445
        %v2468 = vmul.f32 %v2088, %v2445
        %v2469 = vmul.f32 %v2089, %v2445
        %v2494 = vrot.slane %v2446, 4
        %v2495 = vrot.slane %v2447, 4
        %v2496 = vsel %vm842, %v2494, %v2495
        %v2497 = vrot.slane %v2448, 4
        %v2498 = vsel %vm842, %v2495, %v2497
        %v2499 = vrot.slane %v2449, 4
        %v2500 = vrot.slane %v2450, 4
        %v2501 = vsel %vm842, %v2499, %v2500
        %v2502 = vrot.slane %v2451, 4
        %v2503 = vsel %vm842, %v2500, %v2502
        %v2504 = vrot.slane %v2452, 4
        %v2505 = vrot.slane %v2453, 4
        %v2506 = vsel %vm842, %v2504, %v2505
        %v2507 = vrot.slane %v2454, 4
        %v2508 = vsel %vm842, %v2505, %v2507
        %v2509 = vrot.slane %v2455, 4
        %v2510 = vrot.slane %v2456, 4
        %v2511 = vsel %vm842, %v2509, %v2510
        %v2512 = vrot.slane %v2457, 4
        %v2513 = vsel %vm842, %v2510, %v2512
        %v2514 = vrot.slane %v2458, 4
        %v2515 = vrot.slane %v2459, 4
        %v2516 = vsel %vm842, %v2514, %v2515
        %v2517 = vrot.slane %v2460, 4
        %v2518 = vsel %vm842, %v2515, %v2517
        %v2519 = vrot.slane %v2461, 4
        %v2520 = vrot.slane %v2462, 4
        %v2521 = vsel %vm842, %v2519, %v2520
        %v2522 = vrot.slane %v2463, 4
        %v2523 = vsel %vm842, %v2520, %v2522
        %v2524 = vrot.slane %v2464, 4
        %v2525 = vrot.slane %v2465, 4
        %v2526 = vsel %vm842, %v2524, %v2525
        %v2527 = vrot.slane %v2466, 4
        %v2528 = vsel %vm842, %v2525, %v2527
        %v2529 = vrot.slane %v2467, 4
        %v2530 = vrot.slane %v2468, 4
        %v2531 = vsel %vm842, %v2529, %v2530
        %v2532 = vrot.slane %v2469, 4
        %v2533 = vsel %vm842, %v2530, %v2532
        %v2550 = vadd.f32 %v2286, %v2496
        %v2551 = vadd.f32 %v2287, %v2498
        %v2552 = vadd.f32 %v2288, %v2501
        %v2553 = vadd.f32 %v2289, %v2503
        %v2554 = vadd.f32 %v2290, %v2506
        %v2555 = vadd.f32 %v2291, %v2508
        %v2556 = vadd.f32 %v2292, %v2511
        %v2557 = vadd.f32 %v2293, %v2513
        %v2558 = vadd.f32 %v2294, %v2516
        %v2559 = vadd.f32 %v2295, %v2518
        %v2560 = vadd.f32 %v2296, %v2521
        %v2561 = vadd.f32 %v2297, %v2523
        %v2562 = vadd.f32 %v2298, %v2526
        %v2563 = vadd.f32 %v2299, %v2528
        %v2564 = vadd.f32 %v2300, %v2531
        %v2565 = vadd.f32 %v2301, %v2533
        %v2566 = vlaneseq
        %v2567 = vshrl.u32 %v2566, 7
        %v2568 = vsub.s32 3, %v2567
        %v2569 = vrot.slane %v329, %v2568
        %v2570 = vmul.f32 %v419, %v2569
        %v2571 = vmul.f32 %v420, %v2569
        %v2572 = vmul.f32 %v421, %v2569
        %v2573 = vmul.f32 %v422, %v2569
        %v2574 = vmul.f32 %v423, %v2569
        %v2575 = vmul.f32 %v424, %v2569
        %v2576 = vmul.f32 %v425, %v2569
        %v2577 = vmul.f32 %v426, %v2569
        %v2578 = vmul.f32 %v427, %v2569
        %v2579 = vmul.f32 %v428, %v2569
        %v2580 = vmul.f32 %v429, %v2569
        %v2581 = vmul.f32 %v430, %v2569
        %v2582 = vmul.f32 %v431, %v2569
        %v2583 = vmul.f32 %v432, %v2569
        %v2584 = vmul.f32 %v433, %v2569
        %v2585 = vmul.f32 %v434, %v2569
        %v2586 = vmul.f32 %v435, %v2569
        %v2587 = vmul.f32 %v436, %v2569
        %v2588 = vmul.f32 %v1180, %v2569
        %v2589 = vmul.f32 %v1181, %v2569
        %v2590 = vmul.f32 %v1182, %v2569
        %v2591 = vmul.f32 %v2087, %v2569
        %v2592 = vmul.f32 %v2088, %v2569
        %v2593 = vmul.f32 %v2089, %v2569
        %v2618 = vrot.slane %v2570, 4
        %v2619 = vrot.slane %v2571, 4
        %v2620 = vsel %vm842, %v2618, %v2619
        %v2621 = vrot.slane %v2572, 4
        %v2622 = vsel %vm842, %v2619, %v2621
        %v2623 = vrot.slane %v2573, 4
        %v2624 = vrot.slane %v2574, 4
        %v2625 = vsel %vm842, %v2623, %v2624
        %v2626 = vrot.slane %v2575, 4
        %v2627 = vsel %vm842, %v2624, %v2626
        %v2628 = vrot.slane %v2576, 4
        %v2629 = vrot.slane %v2577, 4
        %v2630 = vsel %vm842, %v2628, %v2629
        %v2631 = vrot.slane %v2578, 4
        %v2632 = vsel %vm842, %v2629, %v2631
        %v2633 = vrot.slane %v2579, 4
        %v2634 = vrot.slane %v2580, 4
        %v2635 = vsel %vm842, %v2633, %v2634
        %v2636 = vrot.slane %v2581, 4
        %v2637 = vsel %vm842, %v2634, %v2636
        %v2638 = vrot.slane %v2582, 4
        %v2639 = vrot.slane %v2583, 4
        %v2640 = vsel %vm842, %v2638, %v2639
        %v2641 = vrot.slane %v2584, 4
        %v2642 = vsel %vm842, %v2639, %v2641
        %v2643 = vrot.slane %v2585, 4
        %v2644 = vrot.slane %v2586, 4
        %v2645 = vsel %vm842, %v2643, %v2644
        %v2646 = vrot.slane %v2587, 4
        %v2647 = vsel %vm842, %v2644, %v2646
        %v2648 = vrot.slane %v2588, 4
        %v2649 = vrot.slane %v2589, 4
        %v2650 = vsel %vm842, %v2648, %v2649
        %v2651 = vrot.slane %v2590, 4
        %v2652 = vsel %vm842, %v2649, %v2651
        %v2653 = vrot.slane %v2591, 4
        %v2654 = vrot.slane %v2592, 4
        %v2655 = vsel %vm842, %v2653, %v2654
        %v2656 = vrot.slane %v2593, 4
        %v2657 = vsel %vm842, %v2654, %v2656
        %v2682 = vadd.f32 %v2418, %v2620
        %v2683 = vadd.f32 %v2419, %v2622
        %v2684 = vadd.f32 %v2420, %v2621
        %v2685 = vadd.f32 %v2421, %v2625
        %v2686 = vadd.f32 %v2422, %v2627
        %v2687 = vadd.f32 %v2423, %v2626
        %v2688 = vadd.f32 %v2424, %v2630
        %v2689 = vadd.f32 %v2425, %v2632
        %v2690 = vadd.f32 %v2426, %v2631
        %v2691 = vadd.f32 %v2427, %v2635
        %v2692 = vadd.f32 %v2428, %v2637
        %v2693 = vadd.f32 %v2429, %v2636
        %v2694 = vadd.f32 %v2430, %v2640
        %v2695 = vadd.f32 %v2431, %v2642
        %v2696 = vadd.f32 %v2432, %v2641
        %v2697 = vadd.f32 %v2433, %v2645
        %v2698 = vadd.f32 %v2434, %v2647
        %v2699 = vadd.f32 %v2435, %v2646
        %v2700 = vadd.f32 %v2436, %v2650
        %v2701 = vadd.f32 %v2437, %v2652
        %v2702 = vadd.f32 %v2438, %v2651
        %v2703 = vadd.f32 %v2439, %v2655
        %v2704 = vadd.f32 %v2440, %v2657
        %v2705 = vadd.f32 %v2441, %v2656
        %v2706 = vlaneseq
        %v2707 = vshrl.u32 %v2706, 7
        %v2708 = vsub.s32 4, %v2707
        %v2709 = vrot.slane %v329, %v2708
        %v2710 = vmul.f32 %v419, %v2709
        %v2711 = vmul.f32 %v420, %v2709
        %v2712 = vmul.f32 %v421, %v2709
        %v2713 = vmul.f32 %v422, %v2709
        %v2714 = vmul.f32 %v423, %v2709
        %v2715 = vmul.f32 %v424, %v2709
        %v2716 = vmul.f32 %v425, %v2709
        %v2717 = vmul.f32 %v426, %v2709
        %v2718 = vmul.f32 %v427, %v2709
        %v2719 = vmul.f32 %v428, %v2709
        %v2720 = vmul.f32 %v429, %v2709
        %v2721 = vmul.f32 %v430, %v2709
        %v2722 = vmul.f32 %v431, %v2709
        %v2723 = vmul.f32 %v432, %v2709
        %v2724 = vmul.f32 %v433, %v2709
        %v2725 = vmul.f32 %v434, %v2709
        %v2726 = vmul.f32 %v435, %v2709
        %v2727 = vmul.f32 %v436, %v2709
        %v2728 = vmul.f32 %v1180, %v2709
        %v2729 = vmul.f32 %v1181, %v2709
        %v2730 = vmul.f32 %v1182, %v2709
        %v2731 = vmul.f32 %v2087, %v2709
        %v2732 = vmul.f32 %v2088, %v2709
        %v2733 = vmul.f32 %v2089, %v2709
        %v2758 = vrot.slane %v2710, 6
        %v2759 = vrot.slane %v2711, 6
        %v2760 = vsel %vm1107, %v2758, %v2759
        %v2761 = vrot.slane %v2712, 6
        %v2762 = vsel %vm1107, %v2759, %v2761
        %v2763 = vrot.slane %v2713, 6
        %v2764 = vrot.slane %v2714, 6
        %v2765 = vsel %vm1107, %v2763, %v2764
        %v2766 = vrot.slane %v2715, 6
        %v2767 = vsel %vm1107, %v2764, %v2766
        %v2768 = vrot.slane %v2716, 6
        %v2769 = vrot.slane %v2717, 6
        %v2770 = vsel %vm1107, %v2768, %v2769
        %v2771 = vrot.slane %v2718, 6
        %v2772 = vsel %vm1107, %v2769, %v2771
        %v2773 = vrot.slane %v2719, 6
        %v2774 = vrot.slane %v2720, 6
        %v2775 = vsel %vm1107, %v2773, %v2774
        %v2776 = vrot.slane %v2721, 6
        %v2777 = vsel %vm1107, %v2774, %v2776
        %v2778 = vrot.slane %v2722, 6
        %v2779 = vrot.slane %v2723, 6
        %v2780 = vsel %vm1107, %v2778, %v2779
        %v2781 = vrot.slane %v2724, 6
        %v2782 = vsel %vm1107, %v2779, %v2781
        %v2783 = vrot.slane %v2725, 6
        %v2784 = vrot.slane %v2726, 6
        %v2785 = vsel %vm1107, %v2783, %v2784
        %v2786 = vrot.slane %v2727, 6
        %v2787 = vsel %vm1107, %v2784, %v2786
        %v2788 = vrot.slane %v2728, 6
        %v2789 = vrot.slane %v2729, 6
        %v2790 = vsel %vm1107, %v2788, %v2789
        %v2791 = vrot.slane %v2730, 6
        %v2792 = vsel %vm1107, %v2789, %v2791
        %v2793 = vrot.slane %v2731, 6
        %v2794 = vrot.slane %v2732, 6
        %v2795 = vsel %vm1107, %v2793, %v2794
        %v2796 = vrot.slane %v2733, 6
        %v2797 = vsel %vm1107, %v2794, %v2796
        %v2814 = vadd.f32 %v2550, %v2760
        %v2815 = vadd.f32 %v2551, %v2762
        %v2816 = vadd.f32 %v2552, %v2765
        %v2817 = vadd.f32 %v2553, %v2767
        %v2818 = vadd.f32 %v2554, %v2770
        %v2819 = vadd.f32 %v2555, %v2772
        %v2820 = vadd.f32 %v2556, %v2775
        %v2821 = vadd.f32 %v2557, %v2777
        %v2822 = vadd.f32 %v2558, %v2780
        %v2823 = vadd.f32 %v2559, %v2782
        %v2824 = vadd.f32 %v2560, %v2785
        %v2825 = vadd.f32 %v2561, %v2787
        %v2826 = vadd.f32 %v2562, %v2790
        %v2827 = vadd.f32 %v2563, %v2792
        %v2828 = vadd.f32 %v2564, %v2795
        %v2829 = vadd.f32 %v2565, %v2797
        %v2830 = vunpack.c.l.bf16 %v401
        %v2831 = vunpack.c.l.bf16 %v402
        %v2832 = vunpack.c.l.bf16 %v403
        %v2833 = vlaneseq
        %v2834 = vshrl.u32 %v2833, 7
        %v2835 = vsub.s32 5, %v2834
        %v2836 = vrot.slane %v329, %v2835
        %v2837 = vmul.f32 %v422, %v2836
        %v2838 = vmul.f32 %v423, %v2836
        %v2839 = vmul.f32 %v425, %v2836
        %v2840 = vmul.f32 %v426, %v2836
        %v2841 = vmul.f32 %v428, %v2836
        %v2842 = vmul.f32 %v429, %v2836
        %v2843 = vmul.f32 %v431, %v2836
        %v2844 = vmul.f32 %v432, %v2836
        %v2845 = vmul.f32 %v434, %v2836
        %v2846 = vmul.f32 %v435, %v2836
        %v2847 = vmul.f32 %v1180, %v2836
        %v2848 = vmul.f32 %v1181, %v2836
        %v2849 = vmul.f32 %v2087, %v2836
        %v2850 = vmul.f32 %v2088, %v2836
        %v2851 = vmul.f32 %v2830, %v2836
        %v2852 = vmul.f32 %v2831, %v2836
        %v2869 = vrot.slane %v2837, 7
        %v2870 = vrot.slane %v2838, 7
        %v2871 = vsel %vm1219, %v2869, %v2870
        %v2872 = vrot.slane %v2839, 7
        %v2873 = vrot.slane %v2840, 7
        %v2874 = vsel %vm1219, %v2872, %v2873
        %v2875 = vrot.slane %v2841, 7
        %v2876 = vrot.slane %v2842, 7
        %v2877 = vsel %vm1219, %v2875, %v2876
        %v2878 = vrot.slane %v2843, 7
        %v2879 = vrot.slane %v2844, 7
        %v2880 = vsel %vm1219, %v2878, %v2879
        %v2881 = vrot.slane %v2845, 7
        %v2882 = vrot.slane %v2846, 7
        %v2883 = vsel %vm1219, %v2881, %v2882
        %v2884 = vrot.slane %v2847, 7
        %v2885 = vrot.slane %v2848, 7
        %v2886 = vsel %vm1219, %v2884, %v2885
        %v2887 = vrot.slane %v2849, 7
        %v2888 = vrot.slane %v2850, 7
        %v2889 = vsel %vm1219, %v2887, %v2888
        %v2890 = vrot.slane %v2851, 7
        %v2891 = vrot.slane %v2852, 7
        %v2892 = vsel %vm1219, %v2890, %v2891
        %v2917 = vadd.f32 %v2682, %v2869
        %v2918 = vadd.f32 %v2683, %v2871
        %v2919 = vadd.f32 %v2684, %v2870
        %v2920 = vadd.f32 %v2685, %v2872
        %v2921 = vadd.f32 %v2686, %v2874
        %v2922 = vadd.f32 %v2687, %v2873
        %v2923 = vadd.f32 %v2688, %v2875
        %v2924 = vadd.f32 %v2689, %v2877
        %v2925 = vadd.f32 %v2690, %v2876
        %v2926 = vadd.f32 %v2691, %v2878
        %v2927 = vadd.f32 %v2692, %v2880
        %v2928 = vadd.f32 %v2693, %v2879
        %v2929 = vadd.f32 %v2694, %v2881
        %v2930 = vadd.f32 %v2695, %v2883
        %v2931 = vadd.f32 %v2696, %v2882
        %v2932 = vadd.f32 %v2697, %v2884
        %v2933 = vadd.f32 %v2698, %v2886
        %v2934 = vadd.f32 %v2699, %v2885
        %v2935 = vadd.f32 %v2700, %v2887
        %v2936 = vadd.f32 %v2701, %v2889
        %v2937 = vadd.f32 %v2702, %v2888
        %v2938 = vadd.f32 %v2703, %v2890
        %v2939 = vadd.f32 %v2704, %v2892
        %v2940 = vadd.f32 %v2705, %v2891
        %v2941 = vlaneseq
        %v2942 = vshrl.u32 %v2941, 7
        %v2943 = vsub.s32 6, %v2942
        %v2944 = vrot.slane %v329, %v2943
        %v2945 = vmul.f32 %v422, %v2944
        %v2946 = vmul.f32 %v423, %v2944
        %v2947 = vmul.f32 %v424, %v2944
        %v2948 = vmul.f32 %v425, %v2944
        %v2949 = vmul.f32 %v426, %v2944
        %v2950 = vmul.f32 %v427, %v2944
        %v2951 = vmul.f32 %v428, %v2944
        %v2952 = vmul.f32 %v429, %v2944
        %v2953 = vmul.f32 %v430, %v2944
        %v2954 = vmul.f32 %v431, %v2944
        %v2955 = vmul.f32 %v432, %v2944
        %v2956 = vmul.f32 %v433, %v2944
        %v2957 = vmul.f32 %v434, %v2944
        %v2958 = vmul.f32 %v435, %v2944
        %v2959 = vmul.f32 %v436, %v2944
        %v2960 = vmul.f32 %v1180, %v2944
        %v2961 = vmul.f32 %v1181, %v2944
        %v2962 = vmul.f32 %v1182, %v2944
        %v2963 = vmul.f32 %v2087, %v2944
        %v2964 = vmul.f32 %v2088, %v2944
        %v2965 = vmul.f32 %v2089, %v2944
        %v2966 = vmul.f32 %v2830, %v2944
        %v2967 = vmul.f32 %v2831, %v2944
        %v2968 = vmul.f32 %v2832, %v2944
        %v2993 = vrot.slane %v2945, 1
        %v2994 = vrot.slane %v2946, 1
        %v2995 = vsel %vm1344, %v2993, %v2994
        %v2996 = vrot.slane %v2947, 1
        %v2997 = vsel %vm1344, %v2994, %v2996
        %v2998 = vrot.slane %v2948, 1
        %v2999 = vrot.slane %v2949, 1
        %v3000 = vsel %vm1344, %v2998, %v2999
        %v3001 = vrot.slane %v2950, 1
        %v3002 = vsel %vm1344, %v2999, %v3001
        %v3003 = vrot.slane %v2951, 1
        %v3004 = vrot.slane %v2952, 1
        %v3005 = vsel %vm1344, %v3003, %v3004
        %v3006 = vrot.slane %v2953, 1
        %v3007 = vsel %vm1344, %v3004, %v3006
        %v3008 = vrot.slane %v2954, 1
        %v3009 = vrot.slane %v2955, 1
        %v3010 = vsel %vm1344, %v3008, %v3009
        %v3011 = vrot.slane %v2956, 1
        %v3012 = vsel %vm1344, %v3009, %v3011
        %v3013 = vrot.slane %v2957, 1
        %v3014 = vrot.slane %v2958, 1
        %v3015 = vsel %vm1344, %v3013, %v3014
        %v3016 = vrot.slane %v2959, 1
        %v3017 = vsel %vm1344, %v3014, %v3016
        %v3018 = vrot.slane %v2960, 1
        %v3019 = vrot.slane %v2961, 1
        %v3020 = vsel %vm1344, %v3018, %v3019
        %v3021 = vrot.slane %v2962, 1
        %v3022 = vsel %vm1344, %v3019, %v3021
        %v3023 = vrot.slane %v2963, 1
        %v3024 = vrot.slane %v2964, 1
        %v3025 = vsel %vm1344, %v3023, %v3024
        %v3026 = vrot.slane %v2965, 1
        %v3027 = vsel %vm1344, %v3024, %v3026
        %v3028 = vrot.slane %v2966, 1
        %v3029 = vrot.slane %v2967, 1
        %v3030 = vsel %vm1344, %v3028, %v3029
        %v3031 = vrot.slane %v2968, 1
        %v3032 = vsel %vm1344, %v3029, %v3031
        %v3049 = vadd.f32 %v2814, %v2995
        %v3050 = vadd.f32 %v2815, %v2997
        %v3051 = vadd.f32 %v2816, %v3000
        %v3052 = vadd.f32 %v2817, %v3002
        %v3053 = vadd.f32 %v2818, %v3005
        %v3054 = vadd.f32 %v2819, %v3007
        %v3055 = vadd.f32 %v2820, %v3010
        %v3056 = vadd.f32 %v2821, %v3012
        %v3057 = vadd.f32 %v2822, %v3015
        %v3058 = vadd.f32 %v2823, %v3017
        %v3059 = vadd.f32 %v2824, %v3020
        %v3060 = vadd.f32 %v2825, %v3022
        %v3061 = vadd.f32 %v2826, %v3025
        %v3062 = vadd.f32 %v2827, %v3027
        %v3063 = vadd.f32 %v2828, %v3030
        %v3064 = vadd.f32 %v2829, %v3032
        %v3065 = vlaneseq
        %v3066 = vshrl.u32 %v3065, 7
        %v3067 = vsub.s32 7, %v3066
        %v3068 = vrot.slane %v329, %v3067
        %v3069 = vmul.f32 %v422, %v3068
        %v3070 = vmul.f32 %v423, %v3068
        %v3071 = vmul.f32 %v424, %v3068
        %v3072 = vmul.f32 %v425, %v3068
        %v3073 = vmul.f32 %v426, %v3068
        %v3074 = vmul.f32 %v427, %v3068
        %v3075 = vmul.f32 %v428, %v3068
        %v3076 = vmul.f32 %v429, %v3068
        %v3077 = vmul.f32 %v430, %v3068
        %v3078 = vmul.f32 %v431, %v3068
        %v3079 = vmul.f32 %v432, %v3068
        %v3080 = vmul.f32 %v433, %v3068
        %v3081 = vmul.f32 %v434, %v3068
        %v3082 = vmul.f32 %v435, %v3068
        %v3083 = vmul.f32 %v436, %v3068
        %v3084 = vmul.f32 %v1180, %v3068
        %v3085 = vmul.f32 %v1181, %v3068
        %v3086 = vmul.f32 %v1182, %v3068
        %v3087 = vmul.f32 %v2087, %v3068
        %v3088 = vmul.f32 %v2088, %v3068
        %v3089 = vmul.f32 %v2089, %v3068
        %v3090 = vmul.f32 %v2830, %v3068
        %v3091 = vmul.f32 %v2831, %v3068
        %v3092 = vmul.f32 %v2832, %v3068
        %v3117 = vrot.slane %v3069, 1
        %v3118 = vrot.slane %v3070, 1
        %v3119 = vsel %vm1344, %v3117, %v3118
        %v3120 = vrot.slane %v3071, 1
        %v3121 = vsel %vm1344, %v3118, %v3120
        %v3122 = vrot.slane %v3072, 1
        %v3123 = vrot.slane %v3073, 1
        %v3124 = vsel %vm1344, %v3122, %v3123
        %v3125 = vrot.slane %v3074, 1
        %v3126 = vsel %vm1344, %v3123, %v3125
        %v3127 = vrot.slane %v3075, 1
        %v3128 = vrot.slane %v3076, 1
        %v3129 = vsel %vm1344, %v3127, %v3128
        %v3130 = vrot.slane %v3077, 1
        %v3131 = vsel %vm1344, %v3128, %v3130
        %v3132 = vrot.slane %v3078, 1
        %v3133 = vrot.slane %v3079, 1
        %v3134 = vsel %vm1344, %v3132, %v3133
        %v3135 = vrot.slane %v3080, 1
        %v3136 = vsel %vm1344, %v3133, %v3135
        %v3137 = vrot.slane %v3081, 1
        %v3138 = vrot.slane %v3082, 1
        %v3139 = vsel %vm1344, %v3137, %v3138
        %v3140 = vrot.slane %v3083, 1
        %v3141 = vsel %vm1344, %v3138, %v3140
        %v3142 = vrot.slane %v3084, 1
        %v3143 = vrot.slane %v3085, 1
        %v3144 = vsel %vm1344, %v3142, %v3143
        %v3145 = vrot.slane %v3086, 1
        %v3146 = vsel %vm1344, %v3143, %v3145
        %v3147 = vrot.slane %v3087, 1
        %v3148 = vrot.slane %v3088, 1
        %v3149 = vsel %vm1344, %v3147, %v3148
        %v3150 = vrot.slane %v3089, 1
        %v3151 = vsel %vm1344, %v3148, %v3150
        %v3152 = vrot.slane %v3090, 1
        %v3153 = vrot.slane %v3091, 1
        %v3154 = vsel %vm1344, %v3152, %v3153
        %v3155 = vrot.slane %v3092, 1
        %v3156 = vsel %vm1344, %v3153, %v3155
        %v3181 = vadd.f32 %v2917, %v3119
        %v3182 = vadd.f32 %v2918, %v3121
        %v3183 = vadd.f32 %v2919, %v3120
        %v3184 = vadd.f32 %v2920, %v3124
        %v3185 = vadd.f32 %v2921, %v3126
        %v3186 = vadd.f32 %v2922, %v3125
        %v3187 = vadd.f32 %v2923, %v3129
        %v3188 = vadd.f32 %v2924, %v3131
        %v3189 = vadd.f32 %v2925, %v3130
        %v3190 = vadd.f32 %v2926, %v3134
        %v3191 = vadd.f32 %v2927, %v3136
        %v3192 = vadd.f32 %v2928, %v3135
        %v3193 = vadd.f32 %v2929, %v3139
        %v3194 = vadd.f32 %v2930, %v3141
        %v3195 = vadd.f32 %v2931, %v3140
        %v3196 = vadd.f32 %v2932, %v3144
        %v3197 = vadd.f32 %v2933, %v3146
        %v3198 = vadd.f32 %v2934, %v3145
        %v3199 = vadd.f32 %v2935, %v3149
        %v3200 = vadd.f32 %v2936, %v3151
        %v3201 = vadd.f32 %v2937, %v3150
        %v3202 = vadd.f32 %v2938, %v3154
        %v3203 = vadd.f32 %v2939, %v3156
        %v3204 = vadd.f32 %v2940, %v3155
        %v3205 = vlaneseq
        %v3206 = vshrl.u32 %v3205, 7
        %v3207 = vsub.s32 0, %v3206
        %v3208 = vrot.slane %v330, %v3207
        %v3209 = vmul.f32 %v422, %v3208
        %v3210 = vmul.f32 %v423, %v3208
        %v3211 = vmul.f32 %v424, %v3208
        %v3212 = vmul.f32 %v425, %v3208
        %v3213 = vmul.f32 %v426, %v3208
        %v3214 = vmul.f32 %v427, %v3208
        %v3215 = vmul.f32 %v428, %v3208
        %v3216 = vmul.f32 %v429, %v3208
        %v3217 = vmul.f32 %v430, %v3208
        %v3218 = vmul.f32 %v431, %v3208
        %v3219 = vmul.f32 %v432, %v3208
        %v3220 = vmul.f32 %v433, %v3208
        %v3221 = vmul.f32 %v434, %v3208
        %v3222 = vmul.f32 %v435, %v3208
        %v3223 = vmul.f32 %v436, %v3208
        %v3224 = vmul.f32 %v1180, %v3208
        %v3225 = vmul.f32 %v1181, %v3208
        %v3226 = vmul.f32 %v1182, %v3208
        %v3227 = vmul.f32 %v2087, %v3208
        %v3228 = vmul.f32 %v2088, %v3208
        %v3229 = vmul.f32 %v2089, %v3208
        %v3230 = vmul.f32 %v2830, %v3208
        %v3231 = vmul.f32 %v2831, %v3208
        %v3232 = vmul.f32 %v2832, %v3208
        %v3257 = vrot.slane %v3209, 3
        %v3258 = vrot.slane %v3210, 3
        %v3259 = vsel %vm1609, %v3257, %v3258
        %v3260 = vrot.slane %v3211, 3
        %v3261 = vsel %vm1609, %v3258, %v3260
        %v3262 = vrot.slane %v3212, 3
        %v3263 = vrot.slane %v3213, 3
        %v3264 = vsel %vm1609, %v3262, %v3263
        %v3265 = vrot.slane %v3214, 3
        %v3266 = vsel %vm1609, %v3263, %v3265
        %v3267 = vrot.slane %v3215, 3
        %v3268 = vrot.slane %v3216, 3
        %v3269 = vsel %vm1609, %v3267, %v3268
        %v3270 = vrot.slane %v3217, 3
        %v3271 = vsel %vm1609, %v3268, %v3270
        %v3272 = vrot.slane %v3218, 3
        %v3273 = vrot.slane %v3219, 3
        %v3274 = vsel %vm1609, %v3272, %v3273
        %v3275 = vrot.slane %v3220, 3
        %v3276 = vsel %vm1609, %v3273, %v3275
        %v3277 = vrot.slane %v3221, 3
        %v3278 = vrot.slane %v3222, 3
        %v3279 = vsel %vm1609, %v3277, %v3278
        %v3280 = vrot.slane %v3223, 3
        %v3281 = vsel %vm1609, %v3278, %v3280
        %v3282 = vrot.slane %v3224, 3
        %v3283 = vrot.slane %v3225, 3
        %v3284 = vsel %vm1609, %v3282, %v3283
        %v3285 = vrot.slane %v3226, 3
        %v3286 = vsel %vm1609, %v3283, %v3285
        %v3287 = vrot.slane %v3227, 3
        %v3288 = vrot.slane %v3228, 3
        %v3289 = vsel %vm1609, %v3287, %v3288
        %v3290 = vrot.slane %v3229, 3
        %v3291 = vsel %vm1609, %v3288, %v3290
        %v3292 = vrot.slane %v3230, 3
        %v3293 = vrot.slane %v3231, 3
        %v3294 = vsel %vm1609, %v3292, %v3293
        %v3295 = vrot.slane %v3232, 3
        %v3296 = vsel %vm1609, %v3293, %v3295
        %v3313 = vadd.f32 %v3049, %v3259
        %v3314 = vadd.f32 %v3050, %v3261
        %v3315 = vadd.f32 %v3051, %v3264
        %v3316 = vadd.f32 %v3052, %v3266
        %v3317 = vadd.f32 %v3053, %v3269
        %v3318 = vadd.f32 %v3054, %v3271
        %v3319 = vadd.f32 %v3055, %v3274
        %v3320 = vadd.f32 %v3056, %v3276
        %v3321 = vadd.f32 %v3057, %v3279
        %v3322 = vadd.f32 %v3058, %v3281
        %v3323 = vadd.f32 %v3059, %v3284
        %v3324 = vadd.f32 %v3060, %v3286
        %v3325 = vadd.f32 %v3061, %v3289
        %v3326 = vadd.f32 %v3062, %v3291
        %v3327 = vadd.f32 %v3063, %v3294
        %v3328 = vadd.f32 %v3064, %v3296
        %v3329 = vlaneseq
        %v3330 = vshrl.u32 %v3329, 7
        %v3331 = vsub.s32 1, %v3330
        %v3332 = vrot.slane %v330, %v3331
        %v3333 = vmul.f32 %v422, %v3332
        %v3334 = vmul.f32 %v423, %v3332
        %v3335 = vmul.f32 %v424, %v3332
        %v3336 = vmul.f32 %v425, %v3332
        %v3337 = vmul.f32 %v426, %v3332
        %v3338 = vmul.f32 %v427, %v3332
        %v3339 = vmul.f32 %v428, %v3332
        %v3340 = vmul.f32 %v429, %v3332
        %v3341 = vmul.f32 %v430, %v3332
        %v3342 = vmul.f32 %v431, %v3332
        %v3343 = vmul.f32 %v432, %v3332
        %v3344 = vmul.f32 %v433, %v3332
        %v3345 = vmul.f32 %v434, %v3332
        %v3346 = vmul.f32 %v435, %v3332
        %v3347 = vmul.f32 %v436, %v3332
        %v3348 = vmul.f32 %v1180, %v3332
        %v3349 = vmul.f32 %v1181, %v3332
        %v3350 = vmul.f32 %v1182, %v3332
        %v3351 = vmul.f32 %v2087, %v3332
        %v3352 = vmul.f32 %v2088, %v3332
        %v3353 = vmul.f32 %v2089, %v3332
        %v3354 = vmul.f32 %v2830, %v3332
        %v3355 = vmul.f32 %v2831, %v3332
        %v3356 = vmul.f32 %v2832, %v3332
        %v3381 = vrot.slane %v3333, 3
        %v3382 = vrot.slane %v3334, 3
        %v3383 = vsel %vm1609, %v3381, %v3382
        %v3384 = vrot.slane %v3335, 3
        %v3385 = vsel %vm1609, %v3382, %v3384
        %v3386 = vrot.slane %v3336, 3
        %v3387 = vrot.slane %v3337, 3
        %v3388 = vsel %vm1609, %v3386, %v3387
        %v3389 = vrot.slane %v3338, 3
        %v3390 = vsel %vm1609, %v3387, %v3389
        %v3391 = vrot.slane %v3339, 3
        %v3392 = vrot.slane %v3340, 3
        %v3393 = vsel %vm1609, %v3391, %v3392
        %v3394 = vrot.slane %v3341, 3
        %v3395 = vsel %vm1609, %v3392, %v3394
        %v3396 = vrot.slane %v3342, 3
        %v3397 = vrot.slane %v3343, 3
        %v3398 = vsel %vm1609, %v3396, %v3397
        %v3399 = vrot.slane %v3344, 3
        %v3400 = vsel %vm1609, %v3397, %v3399
        %v3401 = vrot.slane %v3345, 3
        %v3402 = vrot.slane %v3346, 3
        %v3403 = vsel %vm1609, %v3401, %v3402
        %v3404 = vrot.slane %v3347, 3
        %v3405 = vsel %vm1609, %v3402, %v3404
        %v3406 = vrot.slane %v3348, 3
        %v3407 = vrot.slane %v3349, 3
        %v3408 = vsel %vm1609, %v3406, %v3407
        %v3409 = vrot.slane %v3350, 3
        %v3410 = vsel %vm1609, %v3407, %v3409
        %v3411 = vrot.slane %v3351, 3
        %v3412 = vrot.slane %v3352, 3
        %v3413 = vsel %vm1609, %v3411, %v3412
        %v3414 = vrot.slane %v3353, 3
        %v3415 = vsel %vm1609, %v3412, %v3414
        %v3416 = vrot.slane %v3354, 3
        %v3417 = vrot.slane %v3355, 3
        %v3418 = vsel %vm1609, %v3416, %v3417
        %v3419 = vrot.slane %v3356, 3
        %v3420 = vsel %vm1609, %v3417, %v3419
        %v3445 = vadd.f32 %v3181, %v3383
        %v3446 = vadd.f32 %v3182, %v3385
        %v3447 = vadd.f32 %v3183, %v3384
        %v3448 = vadd.f32 %v3184, %v3388
        %v3449 = vadd.f32 %v3185, %v3390
        %v3450 = vadd.f32 %v3186, %v3389
        %v3451 = vadd.f32 %v3187, %v3393
        %v3452 = vadd.f32 %v3188, %v3395
        %v3453 = vadd.f32 %v3189, %v3394
        %v3454 = vadd.f32 %v3190, %v3398
        %v3455 = vadd.f32 %v3191, %v3400
        %v3456 = vadd.f32 %v3192, %v3399
        %v3457 = vadd.f32 %v3193, %v3403
        %v3458 = vadd.f32 %v3194, %v3405
        %v3459 = vadd.f32 %v3195, %v3404
        %v3460 = vadd.f32 %v3196, %v3408
        %v3461 = vadd.f32 %v3197, %v3410
        %v3462 = vadd.f32 %v3198, %v3409
        %v3463 = vadd.f32 %v3199, %v3413
        %v3464 = vadd.f32 %v3200, %v3415
        %v3465 = vadd.f32 %v3201, %v3414
        %v3466 = vadd.f32 %v3202, %v3418
        %v3467 = vadd.f32 %v3203, %v3420
        %v3468 = vadd.f32 %v3204, %v3419
        %v3469 = vlaneseq
        %v3470 = vshrl.u32 %v3469, 7
        %v3471 = vsub.s32 2, %v3470
        %v3472 = vrot.slane %v330, %v3471
        %v3473 = vmul.f32 %v422, %v3472
        %v3474 = vmul.f32 %v423, %v3472
        %v3475 = vmul.f32 %v424, %v3472
        %v3476 = vmul.f32 %v425, %v3472
        %v3477 = vmul.f32 %v426, %v3472
        %v3478 = vmul.f32 %v427, %v3472
        %v3479 = vmul.f32 %v428, %v3472
        %v3480 = vmul.f32 %v429, %v3472
        %v3481 = vmul.f32 %v430, %v3472
        %v3482 = vmul.f32 %v431, %v3472
        %v3483 = vmul.f32 %v432, %v3472
        %v3484 = vmul.f32 %v433, %v3472
        %v3485 = vmul.f32 %v434, %v3472
        %v3486 = vmul.f32 %v435, %v3472
        %v3487 = vmul.f32 %v436, %v3472
        %v3488 = vmul.f32 %v1180, %v3472
        %v3489 = vmul.f32 %v1181, %v3472
        %v3490 = vmul.f32 %v1182, %v3472
        %v3491 = vmul.f32 %v2087, %v3472
        %v3492 = vmul.f32 %v2088, %v3472
        %v3493 = vmul.f32 %v2089, %v3472
        %v3494 = vmul.f32 %v2830, %v3472
        %v3495 = vmul.f32 %v2831, %v3472
        %v3496 = vmul.f32 %v2832, %v3472
        %v3521 = vrot.slane %v3473, 5
        %v3522 = vrot.slane %v3474, 5
        %v3523 = vsel %vm1874, %v3521, %v3522
        %v3524 = vrot.slane %v3475, 5
        %v3525 = vsel %vm1874, %v3522, %v3524
        %v3526 = vrot.slane %v3476, 5
        %v3527 = vrot.slane %v3477, 5
        %v3528 = vsel %vm1874, %v3526, %v3527
        %v3529 = vrot.slane %v3478, 5
        %v3530 = vsel %vm1874, %v3527, %v3529
        %v3531 = vrot.slane %v3479, 5
        %v3532 = vrot.slane %v3480, 5
        %v3533 = vsel %vm1874, %v3531, %v3532
        %v3534 = vrot.slane %v3481, 5
        %v3535 = vsel %vm1874, %v3532, %v3534
        %v3536 = vrot.slane %v3482, 5
        %v3537 = vrot.slane %v3483, 5
        %v3538 = vsel %vm1874, %v3536, %v3537
        %v3539 = vrot.slane %v3484, 5
        %v3540 = vsel %vm1874, %v3537, %v3539
        %v3541 = vrot.slane %v3485, 5
        %v3542 = vrot.slane %v3486, 5
        %v3543 = vsel %vm1874, %v3541, %v3542
        %v3544 = vrot.slane %v3487, 5
        %v3545 = vsel %vm1874, %v3542, %v3544
        %v3546 = vrot.slane %v3488, 5
        %v3547 = vrot.slane %v3489, 5
        %v3548 = vsel %vm1874, %v3546, %v3547
        %v3549 = vrot.slane %v3490, 5
        %v3550 = vsel %vm1874, %v3547, %v3549
        %v3551 = vrot.slane %v3491, 5
        %v3552 = vrot.slane %v3492, 5
        %v3553 = vsel %vm1874, %v3551, %v3552
        %v3554 = vrot.slane %v3493, 5
        %v3555 = vsel %vm1874, %v3552, %v3554
        %v3556 = vrot.slane %v3494, 5
        %v3557 = vrot.slane %v3495, 5
        %v3558 = vsel %vm1874, %v3556, %v3557
        %v3559 = vrot.slane %v3496, 5
        %v3560 = vsel %vm1874, %v3557, %v3559
        %v3577 = vadd.f32 %v3313, %v3523
        %v3578 = vadd.f32 %v3314, %v3525
        %v3579 = vadd.f32 %v3315, %v3528
        %v3580 = vadd.f32 %v3316, %v3530
        %v3581 = vadd.f32 %v3317, %v3533
        %v3582 = vadd.f32 %v3318, %v3535
        %v3583 = vadd.f32 %v3319, %v3538
        %v3584 = vadd.f32 %v3320, %v3540
        %v3585 = vadd.f32 %v3321, %v3543
        %v3586 = vadd.f32 %v3322, %v3545
        %v3587 = vadd.f32 %v3323, %v3548
        %v3588 = vadd.f32 %v3324, %v3550
        %v3589 = vadd.f32 %v3325, %v3553
        %v3590 = vadd.f32 %v3326, %v3555
        %v3591 = vadd.f32 %v3327, %v3558
        %v3592 = vadd.f32 %v3328, %v3560
        %v3593 = vlaneseq
        %v3594 = vshrl.u32 %v3593, 7
        %v3595 = vsub.s32 3, %v3594
        %v3596 = vrot.slane %v330, %v3595
        %v3597 = vmul.f32 %v422, %v3596
        %v3598 = vmul.f32 %v423, %v3596
        %v3599 = vmul.f32 %v424, %v3596
        %v3600 = vmul.f32 %v425, %v3596
        %v3601 = vmul.f32 %v426, %v3596
        %v3602 = vmul.f32 %v427, %v3596
        %v3603 = vmul.f32 %v428, %v3596
        %v3604 = vmul.f32 %v429, %v3596
        %v3605 = vmul.f32 %v430, %v3596
        %v3606 = vmul.f32 %v431, %v3596
        %v3607 = vmul.f32 %v432, %v3596
        %v3608 = vmul.f32 %v433, %v3596
        %v3609 = vmul.f32 %v434, %v3596
        %v3610 = vmul.f32 %v435, %v3596
        %v3611 = vmul.f32 %v436, %v3596
        %v3612 = vmul.f32 %v1180, %v3596
        %v3613 = vmul.f32 %v1181, %v3596
        %v3614 = vmul.f32 %v1182, %v3596
        %v3615 = vmul.f32 %v2087, %v3596
        %v3616 = vmul.f32 %v2088, %v3596
        %v3617 = vmul.f32 %v2089, %v3596
        %v3618 = vmul.f32 %v2830, %v3596
        %v3619 = vmul.f32 %v2831, %v3596
        %v3620 = vmul.f32 %v2832, %v3596
        %v3645 = vrot.slane %v3597, 5
        %v3646 = vrot.slane %v3598, 5
        %v3647 = vsel %vm1874, %v3645, %v3646
        %v3648 = vrot.slane %v3599, 5
        %v3649 = vsel %vm1874, %v3646, %v3648
        %v3650 = vrot.slane %v3600, 5
        %v3651 = vrot.slane %v3601, 5
        %v3652 = vsel %vm1874, %v3650, %v3651
        %v3653 = vrot.slane %v3602, 5
        %v3654 = vsel %vm1874, %v3651, %v3653
        %v3655 = vrot.slane %v3603, 5
        %v3656 = vrot.slane %v3604, 5
        %v3657 = vsel %vm1874, %v3655, %v3656
        %v3658 = vrot.slane %v3605, 5
        %v3659 = vsel %vm1874, %v3656, %v3658
        %v3660 = vrot.slane %v3606, 5
        %v3661 = vrot.slane %v3607, 5
        %v3662 = vsel %vm1874, %v3660, %v3661
        %v3663 = vrot.slane %v3608, 5
        %v3664 = vsel %vm1874, %v3661, %v3663
        %v3665 = vrot.slane %v3609, 5
        %v3666 = vrot.slane %v3610, 5
        %v3667 = vsel %vm1874, %v3665, %v3666
        %v3668 = vrot.slane %v3611, 5
        %v3669 = vsel %vm1874, %v3666, %v3668
        %v3670 = vrot.slane %v3612, 5
        %v3671 = vrot.slane %v3613, 5
        %v3672 = vsel %vm1874, %v3670, %v3671
        %v3673 = vrot.slane %v3614, 5
        %v3674 = vsel %vm1874, %v3671, %v3673
        %v3675 = vrot.slane %v3615, 5
        %v3676 = vrot.slane %v3616, 5
        %v3677 = vsel %vm1874, %v3675, %v3676
        %v3678 = vrot.slane %v3617, 5
        %v3679 = vsel %vm1874, %v3676, %v3678
        %v3680 = vrot.slane %v3618, 5
        %v3681 = vrot.slane %v3619, 5
        %v3682 = vsel %vm1874, %v3680, %v3681
        %v3683 = vrot.slane %v3620, 5
        %v3684 = vsel %vm1874, %v3681, %v3683
        %v3709 = vadd.f32 %v3445, %v3647
        %v3710 = vadd.f32 %v3446, %v3649
        %v3711 = vadd.f32 %v3447, %v3648
        %v3712 = vadd.f32 %v3448, %v3652
        %v3713 = vadd.f32 %v3449, %v3654
        %v3714 = vadd.f32 %v3450, %v3653
        %v3715 = vadd.f32 %v3451, %v3657
        %v3716 = vadd.f32 %v3452, %v3659
        %v3717 = vadd.f32 %v3453, %v3658
        %v3718 = vadd.f32 %v3454, %v3662
        %v3719 = vadd.f32 %v3455, %v3664
        %v3720 = vadd.f32 %v3456, %v3663
        %v3721 = vadd.f32 %v3457, %v3667
        %v3722 = vadd.f32 %v3458, %v3669
        %v3723 = vadd.f32 %v3459, %v3668
        %v3724 = vadd.f32 %v3460, %v3672
        %v3725 = vadd.f32 %v3461, %v3674
        %v3726 = vadd.f32 %v3462, %v3673
        %v3727 = vadd.f32 %v3463, %v3677
        %v3728 = vadd.f32 %v3464, %v3679
        %v3729 = vadd.f32 %v3465, %v3678
        %v3730 = vadd.f32 %v3466, %v3682
        %v3731 = vadd.f32 %v3467, %v3684
        %v3732 = vadd.f32 %v3468, %v3683
        %v3733 = vunpack.c.l.bf16 %v404
        %v3734 = vunpack.c.l.bf16 %v405
        %v3735 = vunpack.c.l.bf16 %v406
        %v3736 = vlaneseq
        %v3737 = vshrl.u32 %v3736, 7
        %v3738 = vsub.s32 4, %v3737
        %v3739 = vrot.slane %v330, %v3738
        %v3740 = vmul.f32 %v425, %v3739
        %v3741 = vmul.f32 %v426, %v3739
        %v3742 = vmul.f32 %v428, %v3739
        %v3743 = vmul.f32 %v429, %v3739
        %v3744 = vmul.f32 %v431, %v3739
        %v3745 = vmul.f32 %v432, %v3739
        %v3746 = vmul.f32 %v434, %v3739
        %v3747 = vmul.f32 %v435, %v3739
        %v3748 = vmul.f32 %v1180, %v3739
        %v3749 = vmul.f32 %v1181, %v3739
        %v3750 = vmul.f32 %v2087, %v3739
        %v3751 = vmul.f32 %v2088, %v3739
        %v3752 = vmul.f32 %v2830, %v3739
        %v3753 = vmul.f32 %v2831, %v3739
        %v3754 = vmul.f32 %v3733, %v3739
        %v3755 = vmul.f32 %v3734, %v3739
        %v3756 = vadd.f32 %v3577, %v3740
        %v3757 = vadd.f32 %v3578, %v3741
        %v3758 = vadd.f32 %v3579, %v3742
        %v3759 = vadd.f32 %v3580, %v3743
        %v3760 = vadd.f32 %v3581, %v3744
        %v3761 = vadd.f32 %v3582, %v3745
        %v3762 = vadd.f32 %v3583, %v3746
        %v3763 = vadd.f32 %v3584, %v3747
        %v3764 = vadd.f32 %v3585, %v3748
        %v3765 = vadd.f32 %v3586, %v3749
        %v3766 = vadd.f32 %v3587, %v3750
        %v3767 = vadd.f32 %v3588, %v3751
        %v3768 = vadd.f32 %v3589, %v3752
        %v3769 = vadd.f32 %v3590, %v3753
        %v3770 = vadd.f32 %v3591, %v3754
        %v3771 = vadd.f32 %v3592, %v3755
        %v3772 = vlaneseq
        %v3773 = vshrl.u32 %v3772, 7
        %v3774 = vsub.s32 5, %v3773
        %v3775 = vrot.slane %v330, %v3774
        %v3776 = vmul.f32 %v425, %v3775
        %v3777 = vmul.f32 %v426, %v3775
        %v3778 = vmul.f32 %v427, %v3775
        %v3779 = vmul.f32 %v428, %v3775
        %v3780 = vmul.f32 %v429, %v3775
        %v3781 = vmul.f32 %v430, %v3775
        %v3782 = vmul.f32 %v431, %v3775
        %v3783 = vmul.f32 %v432, %v3775
        %v3784 = vmul.f32 %v433, %v3775
        %v3785 = vmul.f32 %v434, %v3775
        %v3786 = vmul.f32 %v435, %v3775
        %v3787 = vmul.f32 %v436, %v3775
        %v3788 = vmul.f32 %v1180, %v3775
        %v3789 = vmul.f32 %v1181, %v3775
        %v3790 = vmul.f32 %v1182, %v3775
        %v3791 = vmul.f32 %v2087, %v3775
        %v3792 = vmul.f32 %v2088, %v3775
        %v3793 = vmul.f32 %v2089, %v3775
        %v3794 = vmul.f32 %v2830, %v3775
        %v3795 = vmul.f32 %v2831, %v3775
        %v3796 = vmul.f32 %v2832, %v3775
        %v3797 = vmul.f32 %v3733, %v3775
        %v3798 = vmul.f32 %v3734, %v3775
        %v3799 = vmul.f32 %v3735, %v3775
        %v3800 = vadd.f32 %v3709, %v3776
        %v3801 = vadd.f32 %v3710, %v3777
        %v3802 = vadd.f32 %v3711, %v3778
        %v3803 = vadd.f32 %v3712, %v3779
        %v3804 = vadd.f32 %v3713, %v3780
        %v3805 = vadd.f32 %v3714, %v3781
        %v3806 = vadd.f32 %v3715, %v3782
        %v3807 = vadd.f32 %v3716, %v3783
        %v3808 = vadd.f32 %v3717, %v3784
        %v3809 = vadd.f32 %v3718, %v3785
        %v3810 = vadd.f32 %v3719, %v3786
        %v3811 = vadd.f32 %v3720, %v3787
        %v3812 = vadd.f32 %v3721, %v3788
        %v3813 = vadd.f32 %v3722, %v3789
        %v3814 = vadd.f32 %v3723, %v3790
        %v3815 = vadd.f32 %v3724, %v3791
        %v3816 = vadd.f32 %v3725, %v3792
        %v3817 = vadd.f32 %v3726, %v3793
        %v3818 = vadd.f32 %v3727, %v3794
        %v3819 = vadd.f32 %v3728, %v3795
        %v3820 = vadd.f32 %v3729, %v3796
        %v3821 = vadd.f32 %v3730, %v3797
        %v3822 = vadd.f32 %v3731, %v3798
        %v3823 = vadd.f32 %v3732, %v3799
        %v3824 = vlaneseq
        %v3825 = vshrl.u32 %v3824, 7
        %v3826 = vsub.s32 6, %v3825
        %v3827 = vrot.slane %v330, %v3826
        %v3828 = vmul.f32 %v425, %v3827
        %v3829 = vmul.f32 %v426, %v3827
        %v3830 = vmul.f32 %v427, %v3827
        %v3831 = vmul.f32 %v428, %v3827
        %v3832 = vmul.f32 %v429, %v3827
        %v3833 = vmul.f32 %v430, %v3827
        %v3834 = vmul.f32 %v431, %v3827
        %v3835 = vmul.f32 %v432, %v3827
        %v3836 = vmul.f32 %v433, %v3827
        %v3837 = vmul.f32 %v434, %v3827
        %v3838 = vmul.f32 %v435, %v3827
        %v3839 = vmul.f32 %v436, %v3827
        %v3840 = vmul.f32 %v1180, %v3827
        %v3841 = vmul.f32 %v1181, %v3827
        %v3842 = vmul.f32 %v1182, %v3827
        %v3843 = vmul.f32 %v2087, %v3827
        %v3844 = vmul.f32 %v2088, %v3827
        %v3845 = vmul.f32 %v2089, %v3827
        %v3846 = vmul.f32 %v2830, %v3827
        %v3847 = vmul.f32 %v2831, %v3827
        %v3848 = vmul.f32 %v2832, %v3827
        %v3849 = vmul.f32 %v3733, %v3827
        %v3850 = vmul.f32 %v3734, %v3827
        %v3851 = vmul.f32 %v3735, %v3827
        %v3876 = vrot.slane %v3828, 2
        %v3877 = vrot.slane %v3829, 2
        %v3878 = vsel %vm577, %v3876, %v3877
        %v3879 = vrot.slane %v3830, 2
        %v3880 = vsel %vm577, %v3877, %v3879
        %v3881 = vrot.slane %v3831, 2
        %v3882 = vrot.slane %v3832, 2
        %v3883 = vsel %vm577, %v3881, %v3882
        %v3884 = vrot.slane %v3833, 2
        %v3885 = vsel %vm577, %v3882, %v3884
        %v3886 = vrot.slane %v3834, 2
        %v3887 = vrot.slane %v3835, 2
        %v3888 = vsel %vm577, %v3886, %v3887
        %v3889 = vrot.slane %v3836, 2
        %v3890 = vsel %vm577, %v3887, %v3889
        %v3891 = vrot.slane %v3837, 2
        %v3892 = vrot.slane %v3838, 2
        %v3893 = vsel %vm577, %v3891, %v3892
        %v3894 = vrot.slane %v3839, 2
        %v3895 = vsel %vm577, %v3892, %v3894
        %v3896 = vrot.slane %v3840, 2
        %v3897 = vrot.slane %v3841, 2
        %v3898 = vsel %vm577, %v3896, %v3897
        %v3899 = vrot.slane %v3842, 2
        %v3900 = vsel %vm577, %v3897, %v3899
        %v3901 = vrot.slane %v3843, 2
        %v3902 = vrot.slane %v3844, 2
        %v3903 = vsel %vm577, %v3901, %v3902
        %v3904 = vrot.slane %v3845, 2
        %v3905 = vsel %vm577, %v3902, %v3904
        %v3906 = vrot.slane %v3846, 2
        %v3907 = vrot.slane %v3847, 2
        %v3908 = vsel %vm577, %v3906, %v3907
        %v3909 = vrot.slane %v3848, 2
        %v3910 = vsel %vm577, %v3907, %v3909
        %v3911 = vrot.slane %v3849, 2
        %v3912 = vrot.slane %v3850, 2
        %v3913 = vsel %vm577, %v3911, %v3912
        %v3914 = vrot.slane %v3851, 2
        %v3915 = vsel %vm577, %v3912, %v3914
        %v3932 = vadd.f32 %v3756, %v3878
        %v3933 = vadd.f32 %v3757, %v3880
        %v3934 = vadd.f32 %v3758, %v3883
        %v3935 = vadd.f32 %v3759, %v3885
        %v3936 = vadd.f32 %v3760, %v3888
        %v3937 = vadd.f32 %v3761, %v3890
        %v3938 = vadd.f32 %v3762, %v3893
        %v3939 = vadd.f32 %v3763, %v3895
        %v3940 = vadd.f32 %v3764, %v3898
        %v3941 = vadd.f32 %v3765, %v3900
        %v3942 = vadd.f32 %v3766, %v3903
        %v3943 = vadd.f32 %v3767, %v3905
        %v3944 = vadd.f32 %v3768, %v3908
        %v3945 = vadd.f32 %v3769, %v3910
        %v3946 = vadd.f32 %v3770, %v3913
        %v3947 = vadd.f32 %v3771, %v3915
        %v3948 = vlaneseq
        %v3949 = vshrl.u32 %v3948, 7
        %v3950 = vsub.s32 7, %v3949
        %v3951 = vrot.slane %v330, %v3950
        %v3952 = vmul.f32 %v425, %v3951
        %v3953 = vmul.f32 %v426, %v3951
        %v3954 = vmul.f32 %v427, %v3951
        %v3955 = vmul.f32 %v428, %v3951
        %v3956 = vmul.f32 %v429, %v3951
        %v3957 = vmul.f32 %v430, %v3951
        %v3958 = vmul.f32 %v431, %v3951
        %v3959 = vmul.f32 %v432, %v3951
        %v3960 = vmul.f32 %v433, %v3951
        %v3961 = vmul.f32 %v434, %v3951
        %v3962 = vmul.f32 %v435, %v3951
        %v3963 = vmul.f32 %v436, %v3951
        %v3964 = vmul.f32 %v1180, %v3951
        %v3965 = vmul.f32 %v1181, %v3951
        %v3966 = vmul.f32 %v1182, %v3951
        %v3967 = vmul.f32 %v2087, %v3951
        %v3968 = vmul.f32 %v2088, %v3951
        %v3969 = vmul.f32 %v2089, %v3951
        %v3970 = vmul.f32 %v2830, %v3951
        %v3971 = vmul.f32 %v2831, %v3951
        %v3972 = vmul.f32 %v2832, %v3951
        %v3973 = vmul.f32 %v3733, %v3951
        %v3974 = vmul.f32 %v3734, %v3951
        %v3975 = vmul.f32 %v3735, %v3951
        %v4000 = vrot.slane %v3952, 2
        %v4001 = vrot.slane %v3953, 2
        %v4002 = vsel %vm577, %v4000, %v4001
        %v4003 = vrot.slane %v3954, 2
        %v4004 = vsel %vm577, %v4001, %v4003
        %v4005 = vrot.slane %v3955, 2
        %v4006 = vrot.slane %v3956, 2
        %v4007 = vsel %vm577, %v4005, %v4006
        %v4008 = vrot.slane %v3957, 2
        %v4009 = vsel %vm577, %v4006, %v4008
        %v4010 = vrot.slane %v3958, 2
        %v4011 = vrot.slane %v3959, 2
        %v4012 = vsel %vm577, %v4010, %v4011
        %v4013 = vrot.slane %v3960, 2
        %v4014 = vsel %vm577, %v4011, %v4013
        %v4015 = vrot.slane %v3961, 2
        %v4016 = vrot.slane %v3962, 2
        %v4017 = vsel %vm577, %v4015, %v4016
        %v4018 = vrot.slane %v3963, 2
        %v4019 = vsel %vm577, %v4016, %v4018
        %v4020 = vrot.slane %v3964, 2
        %v4021 = vrot.slane %v3965, 2
        %v4022 = vsel %vm577, %v4020, %v4021
        %v4023 = vrot.slane %v3966, 2
        %v4024 = vsel %vm577, %v4021, %v4023
        %v4025 = vrot.slane %v3967, 2
        %v4026 = vrot.slane %v3968, 2
        %v4027 = vsel %vm577, %v4025, %v4026
        %v4028 = vrot.slane %v3969, 2
        %v4029 = vsel %vm577, %v4026, %v4028
        %v4030 = vrot.slane %v3970, 2
        %v4031 = vrot.slane %v3971, 2
        %v4032 = vsel %vm577, %v4030, %v4031
        %v4033 = vrot.slane %v3972, 2
        %v4034 = vsel %vm577, %v4031, %v4033
        %v4035 = vrot.slane %v3973, 2
        %v4036 = vrot.slane %v3974, 2
        %v4037 = vsel %vm577, %v4035, %v4036
        %v4038 = vrot.slane %v3975, 2
        %v4039 = vsel %vm577, %v4036, %v4038
        %v4064 = vadd.f32 %v3800, %v4002
        %v4065 = vadd.f32 %v3801, %v4004
        %v4066 = vadd.f32 %v3802, %v4003
        %v4067 = vadd.f32 %v3803, %v4007
        %v4068 = vadd.f32 %v3804, %v4009
        %v4069 = vadd.f32 %v3805, %v4008
        %v4070 = vadd.f32 %v3806, %v4012
        %v4071 = vadd.f32 %v3807, %v4014
        %v4072 = vadd.f32 %v3808, %v4013
        %v4073 = vadd.f32 %v3809, %v4017
        %v4074 = vadd.f32 %v3810, %v4019
        %v4075 = vadd.f32 %v3811, %v4018
        %v4076 = vadd.f32 %v3812, %v4022
        %v4077 = vadd.f32 %v3813, %v4024
        %v4078 = vadd.f32 %v3814, %v4023
        %v4079 = vadd.f32 %v3815, %v4027
        %v4080 = vadd.f32 %v3816, %v4029
        %v4081 = vadd.f32 %v3817, %v4028
        %v4082 = vadd.f32 %v3818, %v4032
        %v4083 = vadd.f32 %v3819, %v4034
        %v4084 = vadd.f32 %v3820, %v4033
        %v4085 = vadd.f32 %v3821, %v4037
        %v4086 = vadd.f32 %v3822, %v4039
        %v4087 = vadd.f32 %v3823, %v4038
        %v4088 = vlaneseq
        %v4089 = vshrl.u32 %v4088, 7
        %v4090 = vsub.s32 0, %v4089
        %v4091 = vrot.slane %v331, %v4090
        %v4092 = vmul.f32 %v425, %v4091
        %v4093 = vmul.f32 %v426, %v4091
        %v4094 = vmul.f32 %v427, %v4091
        %v4095 = vmul.f32 %v428, %v4091
        %v4096 = vmul.f32 %v429, %v4091
        %v4097 = vmul.f32 %v430, %v4091
        %v4098 = vmul.f32 %v431, %v4091
        %v4099 = vmul.f32 %v432, %v4091
        %v4100 = vmul.f32 %v433, %v4091
        %v4101 = vmul.f32 %v434, %v4091
        %v4102 = vmul.f32 %v435, %v4091
        %v4103 = vmul.f32 %v436, %v4091
        %v4104 = vmul.f32 %v1180, %v4091
        %v4105 = vmul.f32 %v1181, %v4091
        %v4106 = vmul.f32 %v1182, %v4091
        %v4107 = vmul.f32 %v2087, %v4091
        %v4108 = vmul.f32 %v2088, %v4091
        %v4109 = vmul.f32 %v2089, %v4091
        %v4110 = vmul.f32 %v2830, %v4091
        %v4111 = vmul.f32 %v2831, %v4091
        %v4112 = vmul.f32 %v2832, %v4091
        %v4113 = vmul.f32 %v3733, %v4091
        %v4114 = vmul.f32 %v3734, %v4091
        %v4115 = vmul.f32 %v3735, %v4091
        %v4140 = vrot.slane %v4092, 4
        %v4141 = vrot.slane %v4093, 4
        %v4142 = vsel %vm842, %v4140, %v4141
        %v4143 = vrot.slane %v4094, 4
        %v4144 = vsel %vm842, %v4141, %v4143
        %v4145 = vrot.slane %v4095, 4
        %v4146 = vrot.slane %v4096, 4
        %v4147 = vsel %vm842, %v4145, %v4146
        %v4148 = vrot.slane %v4097, 4
        %v4149 = vsel %vm842, %v4146, %v4148
        %v4150 = vrot.slane %v4098, 4
        %v4151 = vrot.slane %v4099, 4
        %v4152 = vsel %vm842, %v4150, %v4151
        %v4153 = vrot.slane %v4100, 4
        %v4154 = vsel %vm842, %v4151, %v4153
        %v4155 = vrot.slane %v4101, 4
        %v4156 = vrot.slane %v4102, 4
        %v4157 = vsel %vm842, %v4155, %v4156
        %v4158 = vrot.slane %v4103, 4
        %v4159 = vsel %vm842, %v4156, %v4158
        %v4160 = vrot.slane %v4104, 4
        %v4161 = vrot.slane %v4105, 4
        %v4162 = vsel %vm842, %v4160, %v4161
        %v4163 = vrot.slane %v4106, 4
        %v4164 = vsel %vm842, %v4161, %v4163
        %v4165 = vrot.slane %v4107, 4
        %v4166 = vrot.slane %v4108, 4
        %v4167 = vsel %vm842, %v4165, %v4166
        %v4168 = vrot.slane %v4109, 4
        %v4169 = vsel %vm842, %v4166, %v4168
        %v4170 = vrot.slane %v4110, 4
        %v4171 = vrot.slane %v4111, 4
        %v4172 = vsel %vm842, %v4170, %v4171
        %v4173 = vrot.slane %v4112, 4
        %v4174 = vsel %vm842, %v4171, %v4173
        %v4175 = vrot.slane %v4113, 4
        %v4176 = vrot.slane %v4114, 4
        %v4177 = vsel %vm842, %v4175, %v4176
        %v4178 = vrot.slane %v4115, 4
        %v4179 = vsel %vm842, %v4176, %v4178
        %v4196 = vadd.f32 %v3932, %v4142
        %v4197 = vadd.f32 %v3933, %v4144
        %v4198 = vadd.f32 %v3934, %v4147
        %v4199 = vadd.f32 %v3935, %v4149
        %v4200 = vadd.f32 %v3936, %v4152
        %v4201 = vadd.f32 %v3937, %v4154
        %v4202 = vadd.f32 %v3938, %v4157
        %v4203 = vadd.f32 %v3939, %v4159
        %v4204 = vadd.f32 %v3940, %v4162
        %v4205 = vadd.f32 %v3941, %v4164
        %v4206 = vadd.f32 %v3942, %v4167
        %v4207 = vadd.f32 %v3943, %v4169
        %v4208 = vadd.f32 %v3944, %v4172
        %v4209 = vadd.f32 %v3945, %v4174
        %v4210 = vadd.f32 %v3946, %v4177
        %v4211 = vadd.f32 %v3947, %v4179
        %v4212 = vlaneseq
        %v4213 = vshrl.u32 %v4212, 7
        %v4214 = vsub.s32 1, %v4213
        %v4215 = vrot.slane %v331, %v4214
        %v4216 = vmul.f32 %v425, %v4215
        %v4217 = vmul.f32 %v426, %v4215
        %v4218 = vmul.f32 %v427, %v4215
        %v4219 = vmul.f32 %v428, %v4215
        %v4220 = vmul.f32 %v429, %v4215
        %v4221 = vmul.f32 %v430, %v4215
        %v4222 = vmul.f32 %v431, %v4215
        %v4223 = vmul.f32 %v432, %v4215
        %v4224 = vmul.f32 %v433, %v4215
        %v4225 = vmul.f32 %v434, %v4215
        %v4226 = vmul.f32 %v435, %v4215
        %v4227 = vmul.f32 %v436, %v4215
        %v4228 = vmul.f32 %v1180, %v4215
        %v4229 = vmul.f32 %v1181, %v4215
        %v4230 = vmul.f32 %v1182, %v4215
        %v4231 = vmul.f32 %v2087, %v4215
        %v4232 = vmul.f32 %v2088, %v4215
        %v4233 = vmul.f32 %v2089, %v4215
        %v4234 = vmul.f32 %v2830, %v4215
        %v4235 = vmul.f32 %v2831, %v4215
        %v4236 = vmul.f32 %v2832, %v4215
        %v4237 = vmul.f32 %v3733, %v4215
        %v4238 = vmul.f32 %v3734, %v4215
        %v4239 = vmul.f32 %v3735, %v4215
        %v4264 = vrot.slane %v4216, 4
        %v4265 = vrot.slane %v4217, 4
        %v4266 = vsel %vm842, %v4264, %v4265
        %v4267 = vrot.slane %v4218, 4
        %v4268 = vsel %vm842, %v4265, %v4267
        %v4269 = vrot.slane %v4219, 4
        %v4270 = vrot.slane %v4220, 4
        %v4271 = vsel %vm842, %v4269, %v4270
        %v4272 = vrot.slane %v4221, 4
        %v4273 = vsel %vm842, %v4270, %v4272
        %v4274 = vrot.slane %v4222, 4
        %v4275 = vrot.slane %v4223, 4
        %v4276 = vsel %vm842, %v4274, %v4275
        %v4277 = vrot.slane %v4224, 4
        %v4278 = vsel %vm842, %v4275, %v4277
        %v4279 = vrot.slane %v4225, 4
        %v4280 = vrot.slane %v4226, 4
        %v4281 = vsel %vm842, %v4279, %v4280
        %v4282 = vrot.slane %v4227, 4
        %v4283 = vsel %vm842, %v4280, %v4282
        %v4284 = vrot.slane %v4228, 4
        %v4285 = vrot.slane %v4229, 4
        %v4286 = vsel %vm842, %v4284, %v4285
        %v4287 = vrot.slane %v4230, 4
        %v4288 = vsel %vm842, %v4285, %v4287
        %v4289 = vrot.slane %v4231, 4
        %v4290 = vrot.slane %v4232, 4
        %v4291 = vsel %vm842, %v4289, %v4290
        %v4292 = vrot.slane %v4233, 4
        %v4293 = vsel %vm842, %v4290, %v4292
        %v4294 = vrot.slane %v4234, 4
        %v4295 = vrot.slane %v4235, 4
        %v4296 = vsel %vm842, %v4294, %v4295
        %v4297 = vrot.slane %v4236, 4
        %v4298 = vsel %vm842, %v4295, %v4297
        %v4299 = vrot.slane %v4237, 4
        %v4300 = vrot.slane %v4238, 4
        %v4301 = vsel %vm842, %v4299, %v4300
        %v4302 = vrot.slane %v4239, 4
        %v4303 = vsel %vm842, %v4300, %v4302
        %v4328 = vadd.f32 %v4064, %v4266
        %v4329 = vadd.f32 %v4065, %v4268
        %v4330 = vadd.f32 %v4066, %v4267
        %v4331 = vadd.f32 %v4067, %v4271
        %v4332 = vadd.f32 %v4068, %v4273
        %v4333 = vadd.f32 %v4069, %v4272
        %v4334 = vadd.f32 %v4070, %v4276
        %v4335 = vadd.f32 %v4071, %v4278
        %v4336 = vadd.f32 %v4072, %v4277
        %v4337 = vadd.f32 %v4073, %v4281
        %v4338 = vadd.f32 %v4074, %v4283
        %v4339 = vadd.f32 %v4075, %v4282
        %v4340 = vadd.f32 %v4076, %v4286
        %v4341 = vadd.f32 %v4077, %v4288
        %v4342 = vadd.f32 %v4078, %v4287
        %v4343 = vadd.f32 %v4079, %v4291
        %v4344 = vadd.f32 %v4080, %v4293
        %v4345 = vadd.f32 %v4081, %v4292
        %v4346 = vadd.f32 %v4082, %v4296
        %v4347 = vadd.f32 %v4083, %v4298
        %v4348 = vadd.f32 %v4084, %v4297
        %v4349 = vadd.f32 %v4085, %v4301
        %v4350 = vadd.f32 %v4086, %v4303
        %v4351 = vadd.f32 %v4087, %v4302
        %v4352 = vlaneseq
        %v4353 = vshrl.u32 %v4352, 7
        %v4354 = vsub.s32 2, %v4353
        %v4355 = vrot.slane %v331, %v4354
        %v4356 = vmul.f32 %v425, %v4355
        %v4357 = vmul.f32 %v426, %v4355
        %v4358 = vmul.f32 %v427, %v4355
        %v4359 = vmul.f32 %v428, %v4355
        %v4360 = vmul.f32 %v429, %v4355
        %v4361 = vmul.f32 %v430, %v4355
        %v4362 = vmul.f32 %v431, %v4355
        %v4363 = vmul.f32 %v432, %v4355
        %v4364 = vmul.f32 %v433, %v4355
        %v4365 = vmul.f32 %v434, %v4355
        %v4366 = vmul.f32 %v435, %v4355
        %v4367 = vmul.f32 %v436, %v4355
        %v4368 = vmul.f32 %v1180, %v4355
        %v4369 = vmul.f32 %v1181, %v4355
        %v4370 = vmul.f32 %v1182, %v4355
        %v4371 = vmul.f32 %v2087, %v4355
        %v4372 = vmul.f32 %v2088, %v4355
        %v4373 = vmul.f32 %v2089, %v4355
        %v4374 = vmul.f32 %v2830, %v4355
        %v4375 = vmul.f32 %v2831, %v4355
        %v4376 = vmul.f32 %v2832, %v4355
        %v4377 = vmul.f32 %v3733, %v4355
        %v4378 = vmul.f32 %v3734, %v4355
        %v4379 = vmul.f32 %v3735, %v4355
        %v4404 = vrot.slane %v4356, 6
        %v4405 = vrot.slane %v4357, 6
        %v4406 = vsel %vm1107, %v4404, %v4405
        %v4407 = vrot.slane %v4358, 6
        %v4408 = vsel %vm1107, %v4405, %v4407
        %v4409 = vrot.slane %v4359, 6
        %v4410 = vrot.slane %v4360, 6
        %v4411 = vsel %vm1107, %v4409, %v4410
        %v4412 = vrot.slane %v4361, 6
        %v4413 = vsel %vm1107, %v4410, %v4412
        %v4414 = vrot.slane %v4362, 6
        %v4415 = vrot.slane %v4363, 6
        %v4416 = vsel %vm1107, %v4414, %v4415
        %v4417 = vrot.slane %v4364, 6
        %v4418 = vsel %vm1107, %v4415, %v4417
        %v4419 = vrot.slane %v4365, 6
        %v4420 = vrot.slane %v4366, 6
        %v4421 = vsel %vm1107, %v4419, %v4420
        %v4422 = vrot.slane %v4367, 6
        %v4423 = vsel %vm1107, %v4420, %v4422
        %v4424 = vrot.slane %v4368, 6
        %v4425 = vrot.slane %v4369, 6
        %v4426 = vsel %vm1107, %v4424, %v4425
        %v4427 = vrot.slane %v4370, 6
        %v4428 = vsel %vm1107, %v4425, %v4427
        %v4429 = vrot.slane %v4371, 6
        %v4430 = vrot.slane %v4372, 6
        %v4431 = vsel %vm1107, %v4429, %v4430
        %v4432 = vrot.slane %v4373, 6
        %v4433 = vsel %vm1107, %v4430, %v4432
        %v4434 = vrot.slane %v4374, 6
        %v4435 = vrot.slane %v4375, 6
        %v4436 = vsel %vm1107, %v4434, %v4435
        %v4437 = vrot.slane %v4376, 6
        %v4438 = vsel %vm1107, %v4435, %v4437
        %v4439 = vrot.slane %v4377, 6
        %v4440 = vrot.slane %v4378, 6
        %v4441 = vsel %vm1107, %v4439, %v4440
        %v4442 = vrot.slane %v4379, 6
        %v4443 = vsel %vm1107, %v4440, %v4442
        %v4460 = vadd.f32 %v4196, %v4406
        %v4461 = vadd.f32 %v4197, %v4408
        %v4462 = vadd.f32 %v4198, %v4411
        %v4463 = vadd.f32 %v4199, %v4413
        %v4464 = vadd.f32 %v4200, %v4416
        %v4465 = vadd.f32 %v4201, %v4418
        %v4466 = vadd.f32 %v4202, %v4421
        %v4467 = vadd.f32 %v4203, %v4423
        %v4468 = vadd.f32 %v4204, %v4426
        %v4469 = vadd.f32 %v4205, %v4428
        %v4470 = vadd.f32 %v4206, %v4431
        %v4471 = vadd.f32 %v4207, %v4433
        %v4472 = vadd.f32 %v4208, %v4436
        %v4473 = vadd.f32 %v4209, %v4438
        %v4474 = vadd.f32 %v4210, %v4441
        %v4475 = vadd.f32 %v4211, %v4443
        %v4476 = vunpack.c.l.bf16 %v407
        %v4477 = vunpack.c.l.bf16 %v408
        %v4478 = vunpack.c.l.bf16 %v409
        %v4479 = vlaneseq
        %v4480 = vshrl.u32 %v4479, 7
        %v4481 = vsub.s32 3, %v4480
        %v4482 = vrot.slane %v331, %v4481
        %v4483 = vmul.f32 %v428, %v4482
        %v4484 = vmul.f32 %v429, %v4482
        %v4485 = vmul.f32 %v431, %v4482
        %v4486 = vmul.f32 %v432, %v4482
        %v4487 = vmul.f32 %v434, %v4482
        %v4488 = vmul.f32 %v435, %v4482
        %v4489 = vmul.f32 %v1180, %v4482
        %v4490 = vmul.f32 %v1181, %v4482
        %v4491 = vmul.f32 %v2087, %v4482
        %v4492 = vmul.f32 %v2088, %v4482
        %v4493 = vmul.f32 %v2830, %v4482
        %v4494 = vmul.f32 %v2831, %v4482
        %v4495 = vmul.f32 %v3733, %v4482
        %v4496 = vmul.f32 %v3734, %v4482
        %v4497 = vmul.f32 %v4476, %v4482
        %v4498 = vmul.f32 %v4477, %v4482
        %v4515 = vrot.slane %v4483, 7
        %v4516 = vrot.slane %v4484, 7
        %v4517 = vsel %vm1219, %v4515, %v4516
        %v4518 = vrot.slane %v4485, 7
        %v4519 = vrot.slane %v4486, 7
        %v4520 = vsel %vm1219, %v4518, %v4519
        %v4521 = vrot.slane %v4487, 7
        %v4522 = vrot.slane %v4488, 7
        %v4523 = vsel %vm1219, %v4521, %v4522
        %v4524 = vrot.slane %v4489, 7
        %v4525 = vrot.slane %v4490, 7
        %v4526 = vsel %vm1219, %v4524, %v4525
        %v4527 = vrot.slane %v4491, 7
        %v4528 = vrot.slane %v4492, 7
        %v4529 = vsel %vm1219, %v4527, %v4528
        %v4530 = vrot.slane %v4493, 7
        %v4531 = vrot.slane %v4494, 7
        %v4532 = vsel %vm1219, %v4530, %v4531
        %v4533 = vrot.slane %v4495, 7
        %v4534 = vrot.slane %v4496, 7
        %v4535 = vsel %vm1219, %v4533, %v4534
        %v4536 = vrot.slane %v4497, 7
        %v4537 = vrot.slane %v4498, 7
        %v4538 = vsel %vm1219, %v4536, %v4537
        %v4563 = vadd.f32 %v4328, %v4515
        %v4564 = vadd.f32 %v4329, %v4517
        %v4565 = vadd.f32 %v4330, %v4516
        %v4566 = vadd.f32 %v4331, %v4518
        %v4567 = vadd.f32 %v4332, %v4520
        %v4568 = vadd.f32 %v4333, %v4519
        %v4569 = vadd.f32 %v4334, %v4521
        %v4570 = vadd.f32 %v4335, %v4523
        %v4571 = vadd.f32 %v4336, %v4522
        %v4572 = vadd.f32 %v4337, %v4524
        %v4573 = vadd.f32 %v4338, %v4526
        %v4574 = vadd.f32 %v4339, %v4525
        %v4575 = vadd.f32 %v4340, %v4527
        %v4576 = vadd.f32 %v4341, %v4529
        %v4577 = vadd.f32 %v4342, %v4528
        %v4578 = vadd.f32 %v4343, %v4530
        %v4579 = vadd.f32 %v4344, %v4532
        %v4580 = vadd.f32 %v4345, %v4531
        %v4581 = vadd.f32 %v4346, %v4533
        %v4582 = vadd.f32 %v4347, %v4535
        %v4583 = vadd.f32 %v4348, %v4534
        %v4584 = vadd.f32 %v4349, %v4536
        %v4585 = vadd.f32 %v4350, %v4538
        %v4586 = vadd.f32 %v4351, %v4537
        %v4587 = vlaneseq
        %v4588 = vshrl.u32 %v4587, 7
        %v4589 = vsub.s32 4, %v4588
        %v4590 = vrot.slane %v331, %v4589
        %v4591 = vmul.f32 %v428, %v4590
        %v4592 = vmul.f32 %v429, %v4590
        %v4593 = vmul.f32 %v430, %v4590
        %v4594 = vmul.f32 %v431, %v4590
        %v4595 = vmul.f32 %v432, %v4590
        %v4596 = vmul.f32 %v433, %v4590
        %v4597 = vmul.f32 %v434, %v4590
        %v4598 = vmul.f32 %v435, %v4590
        %v4599 = vmul.f32 %v436, %v4590
        %v4600 = vmul.f32 %v1180, %v4590
        %v4601 = vmul.f32 %v1181, %v4590
        %v4602 = vmul.f32 %v1182, %v4590
        %v4603 = vmul.f32 %v2087, %v4590
        %v4604 = vmul.f32 %v2088, %v4590
        %v4605 = vmul.f32 %v2089, %v4590
        %v4606 = vmul.f32 %v2830, %v4590
        %v4607 = vmul.f32 %v2831, %v4590
        %v4608 = vmul.f32 %v2832, %v4590
        %v4609 = vmul.f32 %v3733, %v4590
        %v4610 = vmul.f32 %v3734, %v4590
        %v4611 = vmul.f32 %v3735, %v4590
        %v4612 = vmul.f32 %v4476, %v4590
        %v4613 = vmul.f32 %v4477, %v4590
        %v4614 = vmul.f32 %v4478, %v4590
        %v4639 = vrot.slane %v4591, 1
        %v4640 = vrot.slane %v4592, 1
        %v4641 = vsel %vm1344, %v4639, %v4640
        %v4642 = vrot.slane %v4593, 1
        %v4643 = vsel %vm1344, %v4640, %v4642
        %v4644 = vrot.slane %v4594, 1
        %v4645 = vrot.slane %v4595, 1
        %v4646 = vsel %vm1344, %v4644, %v4645
        %v4647 = vrot.slane %v4596, 1
        %v4648 = vsel %vm1344, %v4645, %v4647
        %v4649 = vrot.slane %v4597, 1
        %v4650 = vrot.slane %v4598, 1
        %v4651 = vsel %vm1344, %v4649, %v4650
        %v4652 = vrot.slane %v4599, 1
        %v4653 = vsel %vm1344, %v4650, %v4652
        %v4654 = vrot.slane %v4600, 1
        %v4655 = vrot.slane %v4601, 1
        %v4656 = vsel %vm1344, %v4654, %v4655
        %v4657 = vrot.slane %v4602, 1
        %v4658 = vsel %vm1344, %v4655, %v4657
        %v4659 = vrot.slane %v4603, 1
        %v4660 = vrot.slane %v4604, 1
        %v4661 = vsel %vm1344, %v4659, %v4660
        %v4662 = vrot.slane %v4605, 1
        %v4663 = vsel %vm1344, %v4660, %v4662
        %v4664 = vrot.slane %v4606, 1
        %v4665 = vrot.slane %v4607, 1
        %v4666 = vsel %vm1344, %v4664, %v4665
        %v4667 = vrot.slane %v4608, 1
        %v4668 = vsel %vm1344, %v4665, %v4667
        %v4669 = vrot.slane %v4609, 1
        %v4670 = vrot.slane %v4610, 1
        %v4671 = vsel %vm1344, %v4669, %v4670
        %v4672 = vrot.slane %v4611, 1
        %v4673 = vsel %vm1344, %v4670, %v4672
        %v4674 = vrot.slane %v4612, 1
        %v4675 = vrot.slane %v4613, 1
        %v4676 = vsel %vm1344, %v4674, %v4675
        %v4677 = vrot.slane %v4614, 1
        %v4678 = vsel %vm1344, %v4675, %v4677
        %v4695 = vadd.f32 %v4460, %v4641
        %v4696 = vadd.f32 %v4461, %v4643
        %v4697 = vadd.f32 %v4462, %v4646
        %v4698 = vadd.f32 %v4463, %v4648
        %v4699 = vadd.f32 %v4464, %v4651
        %v4700 = vadd.f32 %v4465, %v4653
        %v4701 = vadd.f32 %v4466, %v4656
        %v4702 = vadd.f32 %v4467, %v4658
        %v4703 = vadd.f32 %v4468, %v4661
        %v4704 = vadd.f32 %v4469, %v4663
        %v4705 = vadd.f32 %v4470, %v4666
        %v4706 = vadd.f32 %v4471, %v4668
        %v4707 = vadd.f32 %v4472, %v4671
        %v4708 = vadd.f32 %v4473, %v4673
        %v4709 = vadd.f32 %v4474, %v4676
        %v4710 = vadd.f32 %v4475, %v4678
        %v4711 = vlaneseq
        %v4712 = vshrl.u32 %v4711, 7
        %v4713 = vsub.s32 5, %v4712
        %v4714 = vrot.slane %v331, %v4713
        %v4715 = vmul.f32 %v428, %v4714
        %v4716 = vmul.f32 %v429, %v4714
        %v4717 = vmul.f32 %v430, %v4714
        %v4718 = vmul.f32 %v431, %v4714
        %v4719 = vmul.f32 %v432, %v4714
        %v4720 = vmul.f32 %v433, %v4714
        %v4721 = vmul.f32 %v434, %v4714
        %v4722 = vmul.f32 %v435, %v4714
        %v4723 = vmul.f32 %v436, %v4714
        %v4724 = vmul.f32 %v1180, %v4714
        %v4725 = vmul.f32 %v1181, %v4714
        %v4726 = vmul.f32 %v1182, %v4714
        %v4727 = vmul.f32 %v2087, %v4714
        %v4728 = vmul.f32 %v2088, %v4714
        %v4729 = vmul.f32 %v2089, %v4714
        %v4730 = vmul.f32 %v2830, %v4714
        %v4731 = vmul.f32 %v2831, %v4714
        %v4732 = vmul.f32 %v2832, %v4714
        %v4733 = vmul.f32 %v3733, %v4714
        %v4734 = vmul.f32 %v3734, %v4714
        %v4735 = vmul.f32 %v3735, %v4714
        %v4736 = vmul.f32 %v4476, %v4714
        %v4737 = vmul.f32 %v4477, %v4714
        %v4738 = vmul.f32 %v4478, %v4714
        %v4763 = vrot.slane %v4715, 1
        %v4764 = vrot.slane %v4716, 1
        %v4765 = vsel %vm1344, %v4763, %v4764
        %v4766 = vrot.slane %v4717, 1
        %v4767 = vsel %vm1344, %v4764, %v4766
        %v4768 = vrot.slane %v4718, 1
        %v4769 = vrot.slane %v4719, 1
        %v4770 = vsel %vm1344, %v4768, %v4769
        %v4771 = vrot.slane %v4720, 1
        %v4772 = vsel %vm1344, %v4769, %v4771
        %v4773 = vrot.slane %v4721, 1
        %v4774 = vrot.slane %v4722, 1
        %v4775 = vsel %vm1344, %v4773, %v4774
        %v4776 = vrot.slane %v4723, 1
        %v4777 = vsel %vm1344, %v4774, %v4776
        %v4778 = vrot.slane %v4724, 1
        %v4779 = vrot.slane %v4725, 1
        %v4780 = vsel %vm1344, %v4778, %v4779
        %v4781 = vrot.slane %v4726, 1
        %v4782 = vsel %vm1344, %v4779, %v4781
        %v4783 = vrot.slane %v4727, 1
        %v4784 = vrot.slane %v4728, 1
        %v4785 = vsel %vm1344, %v4783, %v4784
        %v4786 = vrot.slane %v4729, 1
        %v4787 = vsel %vm1344, %v4784, %v4786
        %v4788 = vrot.slane %v4730, 1
        %v4789 = vrot.slane %v4731, 1
        %v4790 = vsel %vm1344, %v4788, %v4789
        %v4791 = vrot.slane %v4732, 1
        %v4792 = vsel %vm1344, %v4789, %v4791
        %v4793 = vrot.slane %v4733, 1
        %v4794 = vrot.slane %v4734, 1
        %v4795 = vsel %vm1344, %v4793, %v4794
        %v4796 = vrot.slane %v4735, 1
        %v4797 = vsel %vm1344, %v4794, %v4796
        %v4798 = vrot.slane %v4736, 1
        %v4799 = vrot.slane %v4737, 1
        %v4800 = vsel %vm1344, %v4798, %v4799
        %v4801 = vrot.slane %v4738, 1
        %v4802 = vsel %vm1344, %v4799, %v4801
        %v4827 = vadd.f32 %v4563, %v4765
        %v4828 = vadd.f32 %v4564, %v4767
        %v4829 = vadd.f32 %v4565, %v4766
        %v4830 = vadd.f32 %v4566, %v4770
        %v4831 = vadd.f32 %v4567, %v4772
        %v4832 = vadd.f32 %v4568, %v4771
        %v4833 = vadd.f32 %v4569, %v4775
        %v4834 = vadd.f32 %v4570, %v4777
        %v4835 = vadd.f32 %v4571, %v4776
        %v4836 = vadd.f32 %v4572, %v4780
        %v4837 = vadd.f32 %v4573, %v4782
        %v4838 = vadd.f32 %v4574, %v4781
        %v4839 = vadd.f32 %v4575, %v4785
        %v4840 = vadd.f32 %v4576, %v4787
        %v4841 = vadd.f32 %v4577, %v4786
        %v4842 = vadd.f32 %v4578, %v4790
        %v4843 = vadd.f32 %v4579, %v4792
        %v4844 = vadd.f32 %v4580, %v4791
        %v4845 = vadd.f32 %v4581, %v4795
        %v4846 = vadd.f32 %v4582, %v4797
        %v4847 = vadd.f32 %v4583, %v4796
        %v4848 = vadd.f32 %v4584, %v4800
        %v4849 = vadd.f32 %v4585, %v4802
        %v4850 = vadd.f32 %v4586, %v4801
        %v4851 = vlaneseq
        %v4852 = vshrl.u32 %v4851, 7
        %v4853 = vsub.s32 6, %v4852
        %v4854 = vrot.slane %v331, %v4853
        %v4855 = vmul.f32 %v428, %v4854
        %v4856 = vmul.f32 %v429, %v4854
        %v4857 = vmul.f32 %v430, %v4854
        %v4858 = vmul.f32 %v431, %v4854
        %v4859 = vmul.f32 %v432, %v4854
        %v4860 = vmul.f32 %v433, %v4854
        %v4861 = vmul.f32 %v434, %v4854
        %v4862 = vmul.f32 %v435, %v4854
        %v4863 = vmul.f32 %v436, %v4854
        %v4864 = vmul.f32 %v1180, %v4854
        %v4865 = vmul.f32 %v1181, %v4854
        %v4866 = vmul.f32 %v1182, %v4854
        %v4867 = vmul.f32 %v2087, %v4854
        %v4868 = vmul.f32 %v2088, %v4854
        %v4869 = vmul.f32 %v2089, %v4854
        %v4870 = vmul.f32 %v2830, %v4854
        %v4871 = vmul.f32 %v2831, %v4854
        %v4872 = vmul.f32 %v2832, %v4854
        %v4873 = vmul.f32 %v3733, %v4854
        %v4874 = vmul.f32 %v3734, %v4854
        %v4875 = vmul.f32 %v3735, %v4854
        %v4876 = vmul.f32 %v4476, %v4854
        %v4877 = vmul.f32 %v4477, %v4854
        %v4878 = vmul.f32 %v4478, %v4854
        %v4903 = vrot.slane %v4855, 3
        %v4904 = vrot.slane %v4856, 3
        %v4905 = vsel %vm1609, %v4903, %v4904
        %v4906 = vrot.slane %v4857, 3
        %v4907 = vsel %vm1609, %v4904, %v4906
        %v4908 = vrot.slane %v4858, 3
        %v4909 = vrot.slane %v4859, 3
        %v4910 = vsel %vm1609, %v4908, %v4909
        %v4911 = vrot.slane %v4860, 3
        %v4912 = vsel %vm1609, %v4909, %v4911
        %v4913 = vrot.slane %v4861, 3
        %v4914 = vrot.slane %v4862, 3
        %v4915 = vsel %vm1609, %v4913, %v4914
        %v4916 = vrot.slane %v4863, 3
        %v4917 = vsel %vm1609, %v4914, %v4916
        %v4918 = vrot.slane %v4864, 3
        %v4919 = vrot.slane %v4865, 3
        %v4920 = vsel %vm1609, %v4918, %v4919
        %v4921 = vrot.slane %v4866, 3
        %v4922 = vsel %vm1609, %v4919, %v4921
        %v4923 = vrot.slane %v4867, 3
        %v4924 = vrot.slane %v4868, 3
        %v4925 = vsel %vm1609, %v4923, %v4924
        %v4926 = vrot.slane %v4869, 3
        %v4927 = vsel %vm1609, %v4924, %v4926
        %v4928 = vrot.slane %v4870, 3
        %v4929 = vrot.slane %v4871, 3
        %v4930 = vsel %vm1609, %v4928, %v4929
        %v4931 = vrot.slane %v4872, 3
        %v4932 = vsel %vm1609, %v4929, %v4931
        %v4933 = vrot.slane %v4873, 3
        %v4934 = vrot.slane %v4874, 3
        %v4935 = vsel %vm1609, %v4933, %v4934
        %v4936 = vrot.slane %v4875, 3
        %v4937 = vsel %vm1609, %v4934, %v4936
        %v4938 = vrot.slane %v4876, 3
        %v4939 = vrot.slane %v4877, 3
        %v4940 = vsel %vm1609, %v4938, %v4939
        %v4941 = vrot.slane %v4878, 3
        %v4942 = vsel %vm1609, %v4939, %v4941
        %v4959 = vadd.f32 %v4695, %v4905
        %v4960 = vadd.f32 %v4696, %v4907
        %v4961 = vadd.f32 %v4697, %v4910
        %v4962 = vadd.f32 %v4698, %v4912
        %v4963 = vadd.f32 %v4699, %v4915
        %v4964 = vadd.f32 %v4700, %v4917
        %v4965 = vadd.f32 %v4701, %v4920
        %v4966 = vadd.f32 %v4702, %v4922
        %v4967 = vadd.f32 %v4703, %v4925
        %v4968 = vadd.f32 %v4704, %v4927
        %v4969 = vadd.f32 %v4705, %v4930
        %v4970 = vadd.f32 %v4706, %v4932
        %v4971 = vadd.f32 %v4707, %v4935
        %v4972 = vadd.f32 %v4708, %v4937
        %v4973 = vadd.f32 %v4709, %v4940
        %v4974 = vadd.f32 %v4710, %v4942
        %v4975 = vlaneseq
        %v4976 = vshrl.u32 %v4975, 7
        %v4977 = vsub.s32 7, %v4976
        %v4978 = vrot.slane %v331, %v4977
        %v4979 = vmul.f32 %v428, %v4978
        %v4980 = vmul.f32 %v429, %v4978
        %v4981 = vmul.f32 %v430, %v4978
        %v4982 = vmul.f32 %v431, %v4978
        %v4983 = vmul.f32 %v432, %v4978
        %v4984 = vmul.f32 %v433, %v4978
        %v4985 = vmul.f32 %v434, %v4978
        %v4986 = vmul.f32 %v435, %v4978
        %v4987 = vmul.f32 %v436, %v4978
        %v4988 = vmul.f32 %v1180, %v4978
        %v4989 = vmul.f32 %v1181, %v4978
        %v4990 = vmul.f32 %v1182, %v4978
        %v4991 = vmul.f32 %v2087, %v4978
        %v4992 = vmul.f32 %v2088, %v4978
        %v4993 = vmul.f32 %v2089, %v4978
        %v4994 = vmul.f32 %v2830, %v4978
        %v4995 = vmul.f32 %v2831, %v4978
        %v4996 = vmul.f32 %v2832, %v4978
        %v4997 = vmul.f32 %v3733, %v4978
        %v4998 = vmul.f32 %v3734, %v4978
        %v4999 = vmul.f32 %v3735, %v4978
        %v5000 = vmul.f32 %v4476, %v4978
        %v5001 = vmul.f32 %v4477, %v4978
        %v5002 = vmul.f32 %v4478, %v4978
        %v5027 = vrot.slane %v4979, 3
        %v5028 = vrot.slane %v4980, 3
        %v5029 = vsel %vm1609, %v5027, %v5028
        %v5030 = vrot.slane %v4981, 3
        %v5031 = vsel %vm1609, %v5028, %v5030
        %v5032 = vrot.slane %v4982, 3
        %v5033 = vrot.slane %v4983, 3
        %v5034 = vsel %vm1609, %v5032, %v5033
        %v5035 = vrot.slane %v4984, 3
        %v5036 = vsel %vm1609, %v5033, %v5035
        %v5037 = vrot.slane %v4985, 3
        %v5038 = vrot.slane %v4986, 3
        %v5039 = vsel %vm1609, %v5037, %v5038
        %v5040 = vrot.slane %v4987, 3
        %v5041 = vsel %vm1609, %v5038, %v5040
        %v5042 = vrot.slane %v4988, 3
        %v5043 = vrot.slane %v4989, 3
        %v5044 = vsel %vm1609, %v5042, %v5043
        %v5045 = vrot.slane %v4990, 3
        %v5046 = vsel %vm1609, %v5043, %v5045
        %v5047 = vrot.slane %v4991, 3
        %v5048 = vrot.slane %v4992, 3
        %v5049 = vsel %vm1609, %v5047, %v5048
        %v5050 = vrot.slane %v4993, 3
        %v5051 = vsel %vm1609, %v5048, %v5050
        %v5052 = vrot.slane %v4994, 3
        %v5053 = vrot.slane %v4995, 3
        %v5054 = vsel %vm1609, %v5052, %v5053
        %v5055 = vrot.slane %v4996, 3
        %v5056 = vsel %vm1609, %v5053, %v5055
        %v5057 = vrot.slane %v4997, 3
        %v5058 = vrot.slane %v4998, 3
        %v5059 = vsel %vm1609, %v5057, %v5058
        %v5060 = vrot.slane %v4999, 3
        %v5061 = vsel %vm1609, %v5058, %v5060
        %v5062 = vrot.slane %v5000, 3
        %v5063 = vrot.slane %v5001, 3
        %v5064 = vsel %vm1609, %v5062, %v5063
        %v5065 = vrot.slane %v5002, 3
        %v5066 = vsel %vm1609, %v5063, %v5065
        %v5091 = vadd.f32 %v4827, %v5029
        %v5092 = vadd.f32 %v4828, %v5031
        %v5093 = vadd.f32 %v4829, %v5030
        %v5094 = vadd.f32 %v4830, %v5034
        %v5095 = vadd.f32 %v4831, %v5036
        %v5096 = vadd.f32 %v4832, %v5035
        %v5097 = vadd.f32 %v4833, %v5039
        %v5098 = vadd.f32 %v4834, %v5041
        %v5099 = vadd.f32 %v4835, %v5040
        %v5100 = vadd.f32 %v4836, %v5044
        %v5101 = vadd.f32 %v4837, %v5046
        %v5102 = vadd.f32 %v4838, %v5045
        %v5103 = vadd.f32 %v4839, %v5049
        %v5104 = vadd.f32 %v4840, %v5051
        %v5105 = vadd.f32 %v4841, %v5050
        %v5106 = vadd.f32 %v4842, %v5054
        %v5107 = vadd.f32 %v4843, %v5056
        %v5108 = vadd.f32 %v4844, %v5055
        %v5109 = vadd.f32 %v4845, %v5059
        %v5110 = vadd.f32 %v4846, %v5061
        %v5111 = vadd.f32 %v4847, %v5060
        %v5112 = vadd.f32 %v4848, %v5064
        %v5113 = vadd.f32 %v4849, %v5066
        %v5114 = vadd.f32 %v4850, %v5065
        %v5115 = vlaneseq
        %v5116 = vshrl.u32 %v5115, 7
        %v5117 = vsub.s32 0, %v5116
        %v5118 = vrot.slane %v332, %v5117
        %v5119 = vmul.f32 %v428, %v5118
        %v5120 = vmul.f32 %v429, %v5118
        %v5121 = vmul.f32 %v430, %v5118
        %v5122 = vmul.f32 %v431, %v5118
        %v5123 = vmul.f32 %v432, %v5118
        %v5124 = vmul.f32 %v433, %v5118
        %v5125 = vmul.f32 %v434, %v5118
        %v5126 = vmul.f32 %v435, %v5118
        %v5127 = vmul.f32 %v436, %v5118
        %v5128 = vmul.f32 %v1180, %v5118
        %v5129 = vmul.f32 %v1181, %v5118
        %v5130 = vmul.f32 %v1182, %v5118
        %v5131 = vmul.f32 %v2087, %v5118
        %v5132 = vmul.f32 %v2088, %v5118
        %v5133 = vmul.f32 %v2089, %v5118
        %v5134 = vmul.f32 %v2830, %v5118
        %v5135 = vmul.f32 %v2831, %v5118
        %v5136 = vmul.f32 %v2832, %v5118
        %v5137 = vmul.f32 %v3733, %v5118
        %v5138 = vmul.f32 %v3734, %v5118
        %v5139 = vmul.f32 %v3735, %v5118
        %v5140 = vmul.f32 %v4476, %v5118
        %v5141 = vmul.f32 %v4477, %v5118
        %v5142 = vmul.f32 %v4478, %v5118
        %v5167 = vrot.slane %v5119, 5
        %v5168 = vrot.slane %v5120, 5
        %v5169 = vsel %vm1874, %v5167, %v5168
        %v5170 = vrot.slane %v5121, 5
        %v5171 = vsel %vm1874, %v5168, %v5170
        %v5172 = vrot.slane %v5122, 5
        %v5173 = vrot.slane %v5123, 5
        %v5174 = vsel %vm1874, %v5172, %v5173
        %v5175 = vrot.slane %v5124, 5
        %v5176 = vsel %vm1874, %v5173, %v5175
        %v5177 = vrot.slane %v5125, 5
        %v5178 = vrot.slane %v5126, 5
        %v5179 = vsel %vm1874, %v5177, %v5178
        %v5180 = vrot.slane %v5127, 5
        %v5181 = vsel %vm1874, %v5178, %v5180
        %v5182 = vrot.slane %v5128, 5
        %v5183 = vrot.slane %v5129, 5
        %v5184 = vsel %vm1874, %v5182, %v5183
        %v5185 = vrot.slane %v5130, 5
        %v5186 = vsel %vm1874, %v5183, %v5185
        %v5187 = vrot.slane %v5131, 5
        %v5188 = vrot.slane %v5132, 5
        %v5189 = vsel %vm1874, %v5187, %v5188
        %v5190 = vrot.slane %v5133, 5
        %v5191 = vsel %vm1874, %v5188, %v5190
        %v5192 = vrot.slane %v5134, 5
        %v5193 = vrot.slane %v5135, 5
        %v5194 = vsel %vm1874, %v5192, %v5193
        %v5195 = vrot.slane %v5136, 5
        %v5196 = vsel %vm1874, %v5193, %v5195
        %v5197 = vrot.slane %v5137, 5
        %v5198 = vrot.slane %v5138, 5
        %v5199 = vsel %vm1874, %v5197, %v5198
        %v5200 = vrot.slane %v5139, 5
        %v5201 = vsel %vm1874, %v5198, %v5200
        %v5202 = vrot.slane %v5140, 5
        %v5203 = vrot.slane %v5141, 5
        %v5204 = vsel %vm1874, %v5202, %v5203
        %v5205 = vrot.slane %v5142, 5
        %v5206 = vsel %vm1874, %v5203, %v5205
        %v5223 = vadd.f32 %v4959, %v5169
        %v5224 = vadd.f32 %v4960, %v5171
        %v5225 = vadd.f32 %v4961, %v5174
        %v5226 = vadd.f32 %v4962, %v5176
        %v5227 = vadd.f32 %v4963, %v5179
        %v5228 = vadd.f32 %v4964, %v5181
        %v5229 = vadd.f32 %v4965, %v5184
        %v5230 = vadd.f32 %v4966, %v5186
        %v5231 = vadd.f32 %v4967, %v5189
        %v5232 = vadd.f32 %v4968, %v5191
        %v5233 = vadd.f32 %v4969, %v5194
        %v5234 = vadd.f32 %v4970, %v5196
        %v5235 = vadd.f32 %v4971, %v5199
        %v5236 = vadd.f32 %v4972, %v5201
        %v5237 = vadd.f32 %v4973, %v5204
        %v5238 = vadd.f32 %v4974, %v5206
        %v5239 = vlaneseq
        %v5240 = vshrl.u32 %v5239, 7
        %v5241 = vsub.s32 1, %v5240
        %v5242 = vrot.slane %v332, %v5241
        %v5243 = vmul.f32 %v428, %v5242
        %v5244 = vmul.f32 %v429, %v5242
        %v5245 = vmul.f32 %v430, %v5242
        %v5246 = vmul.f32 %v431, %v5242
        %v5247 = vmul.f32 %v432, %v5242
        %v5248 = vmul.f32 %v433, %v5242
        %v5249 = vmul.f32 %v434, %v5242
        %v5250 = vmul.f32 %v435, %v5242
        %v5251 = vmul.f32 %v436, %v5242
        %v5252 = vmul.f32 %v1180, %v5242
        %v5253 = vmul.f32 %v1181, %v5242
        %v5254 = vmul.f32 %v1182, %v5242
        %v5255 = vmul.f32 %v2087, %v5242
        %v5256 = vmul.f32 %v2088, %v5242
        %v5257 = vmul.f32 %v2089, %v5242
        %v5258 = vmul.f32 %v2830, %v5242
        %v5259 = vmul.f32 %v2831, %v5242
        %v5260 = vmul.f32 %v2832, %v5242
        %v5261 = vmul.f32 %v3733, %v5242
        %v5262 = vmul.f32 %v3734, %v5242
        %v5263 = vmul.f32 %v3735, %v5242
        %v5264 = vmul.f32 %v4476, %v5242
        %v5265 = vmul.f32 %v4477, %v5242
        %v5266 = vmul.f32 %v4478, %v5242
        %v5291 = vrot.slane %v5243, 5
        %v5292 = vrot.slane %v5244, 5
        %v5293 = vsel %vm1874, %v5291, %v5292
        %v5294 = vrot.slane %v5245, 5
        %v5295 = vsel %vm1874, %v5292, %v5294
        %v5296 = vrot.slane %v5246, 5
        %v5297 = vrot.slane %v5247, 5
        %v5298 = vsel %vm1874, %v5296, %v5297
        %v5299 = vrot.slane %v5248, 5
        %v5300 = vsel %vm1874, %v5297, %v5299
        %v5301 = vrot.slane %v5249, 5
        %v5302 = vrot.slane %v5250, 5
        %v5303 = vsel %vm1874, %v5301, %v5302
        %v5304 = vrot.slane %v5251, 5
        %v5305 = vsel %vm1874, %v5302, %v5304
        %v5306 = vrot.slane %v5252, 5
        %v5307 = vrot.slane %v5253, 5
        %v5308 = vsel %vm1874, %v5306, %v5307
        %v5309 = vrot.slane %v5254, 5
        %v5310 = vsel %vm1874, %v5307, %v5309
        %v5311 = vrot.slane %v5255, 5
        %v5312 = vrot.slane %v5256, 5
        %v5313 = vsel %vm1874, %v5311, %v5312
        %v5314 = vrot.slane %v5257, 5
        %v5315 = vsel %vm1874, %v5312, %v5314
        %v5316 = vrot.slane %v5258, 5
        %v5317 = vrot.slane %v5259, 5
        %v5318 = vsel %vm1874, %v5316, %v5317
        %v5319 = vrot.slane %v5260, 5
        %v5320 = vsel %vm1874, %v5317, %v5319
        %v5321 = vrot.slane %v5261, 5
        %v5322 = vrot.slane %v5262, 5
        %v5323 = vsel %vm1874, %v5321, %v5322
        %v5324 = vrot.slane %v5263, 5
        %v5325 = vsel %vm1874, %v5322, %v5324
        %v5326 = vrot.slane %v5264, 5
        %v5327 = vrot.slane %v5265, 5
        %v5328 = vsel %vm1874, %v5326, %v5327
        %v5329 = vrot.slane %v5266, 5
        %v5330 = vsel %vm1874, %v5327, %v5329
        %v5355 = vadd.f32 %v5091, %v5293
        %v5356 = vadd.f32 %v5092, %v5295
        %v5357 = vadd.f32 %v5093, %v5294
        %v5358 = vadd.f32 %v5094, %v5298
        %v5359 = vadd.f32 %v5095, %v5300
        %v5360 = vadd.f32 %v5096, %v5299
        %v5361 = vadd.f32 %v5097, %v5303
        %v5362 = vadd.f32 %v5098, %v5305
        %v5363 = vadd.f32 %v5099, %v5304
        %v5364 = vadd.f32 %v5100, %v5308
        %v5365 = vadd.f32 %v5101, %v5310
        %v5366 = vadd.f32 %v5102, %v5309
        %v5367 = vadd.f32 %v5103, %v5313
        %v5368 = vadd.f32 %v5104, %v5315
        %v5369 = vadd.f32 %v5105, %v5314
        %v5370 = vadd.f32 %v5106, %v5318
        %v5371 = vadd.f32 %v5107, %v5320
        %v5372 = vadd.f32 %v5108, %v5319
        %v5373 = vadd.f32 %v5109, %v5323
        %v5374 = vadd.f32 %v5110, %v5325
        %v5375 = vadd.f32 %v5111, %v5324
        %v5376 = vadd.f32 %v5112, %v5328
        %v5377 = vadd.f32 %v5113, %v5330
        %v5378 = vadd.f32 %v5114, %v5329
        %v5379 = vunpack.c.l.bf16 %v410
        %v5380 = vunpack.c.l.bf16 %v411
        %v5381 = vunpack.c.l.bf16 %v412
        %v5382 = vlaneseq
        %v5383 = vshrl.u32 %v5382, 7
        %v5384 = vsub.s32 2, %v5383
        %v5385 = vrot.slane %v332, %v5384
        %v5386 = vmul.f32 %v431, %v5385
        %v5387 = vmul.f32 %v432, %v5385
        %v5388 = vmul.f32 %v434, %v5385
        %v5389 = vmul.f32 %v435, %v5385
        %v5390 = vmul.f32 %v1180, %v5385
        %v5391 = vmul.f32 %v1181, %v5385
        %v5392 = vmul.f32 %v2087, %v5385
        %v5393 = vmul.f32 %v2088, %v5385
        %v5394 = vmul.f32 %v2830, %v5385
        %v5395 = vmul.f32 %v2831, %v5385
        %v5396 = vmul.f32 %v3733, %v5385
        %v5397 = vmul.f32 %v3734, %v5385
        %v5398 = vmul.f32 %v4476, %v5385
        %v5399 = vmul.f32 %v4477, %v5385
        %v5400 = vmul.f32 %v5379, %v5385
        %v5401 = vmul.f32 %v5380, %v5385
        %v5402 = vadd.f32 %v5223, %v5386
        %v5403 = vadd.f32 %v5224, %v5387
        %v5404 = vadd.f32 %v5225, %v5388
        %v5405 = vadd.f32 %v5226, %v5389
        %v5406 = vadd.f32 %v5227, %v5390
        %v5407 = vadd.f32 %v5228, %v5391
        %v5408 = vadd.f32 %v5229, %v5392
        %v5409 = vadd.f32 %v5230, %v5393
        %v5410 = vadd.f32 %v5231, %v5394
        %v5411 = vadd.f32 %v5232, %v5395
        %v5412 = vadd.f32 %v5233, %v5396
        %v5413 = vadd.f32 %v5234, %v5397
        %v5414 = vadd.f32 %v5235, %v5398
        %v5415 = vadd.f32 %v5236, %v5399
        %v5416 = vadd.f32 %v5237, %v5400
        %v5417 = vadd.f32 %v5238, %v5401
        %v5418 = vlaneseq
        %v5419 = vshrl.u32 %v5418, 7
        %v5420 = vsub.s32 3, %v5419
        %v5421 = vrot.slane %v332, %v5420
        %v5422 = vmul.f32 %v431, %v5421
        %v5423 = vmul.f32 %v432, %v5421
        %v5424 = vmul.f32 %v433, %v5421
        %v5425 = vmul.f32 %v434, %v5421
        %v5426 = vmul.f32 %v435, %v5421
        %v5427 = vmul.f32 %v436, %v5421
        %v5428 = vmul.f32 %v1180, %v5421
        %v5429 = vmul.f32 %v1181, %v5421
        %v5430 = vmul.f32 %v1182, %v5421
        %v5431 = vmul.f32 %v2087, %v5421
        %v5432 = vmul.f32 %v2088, %v5421
        %v5433 = vmul.f32 %v2089, %v5421
        %v5434 = vmul.f32 %v2830, %v5421
        %v5435 = vmul.f32 %v2831, %v5421
        %v5436 = vmul.f32 %v2832, %v5421
        %v5437 = vmul.f32 %v3733, %v5421
        %v5438 = vmul.f32 %v3734, %v5421
        %v5439 = vmul.f32 %v3735, %v5421
        %v5440 = vmul.f32 %v4476, %v5421
        %v5441 = vmul.f32 %v4477, %v5421
        %v5442 = vmul.f32 %v4478, %v5421
        %v5443 = vmul.f32 %v5379, %v5421
        %v5444 = vmul.f32 %v5380, %v5421
        %v5445 = vmul.f32 %v5381, %v5421
        %v5446 = vadd.f32 %v5355, %v5422
        %v5447 = vadd.f32 %v5356, %v5423
        %v5448 = vadd.f32 %v5357, %v5424
        %v5449 = vadd.f32 %v5358, %v5425
        %v5450 = vadd.f32 %v5359, %v5426
        %v5451 = vadd.f32 %v5360, %v5427
        %v5452 = vadd.f32 %v5361, %v5428
        %v5453 = vadd.f32 %v5362, %v5429
        %v5454 = vadd.f32 %v5363, %v5430
        %v5455 = vadd.f32 %v5364, %v5431
        %v5456 = vadd.f32 %v5365, %v5432
        %v5457 = vadd.f32 %v5366, %v5433
        %v5458 = vadd.f32 %v5367, %v5434
        %v5459 = vadd.f32 %v5368, %v5435
        %v5460 = vadd.f32 %v5369, %v5436
        %v5461 = vadd.f32 %v5370, %v5437
        %v5462 = vadd.f32 %v5371, %v5438
        %v5463 = vadd.f32 %v5372, %v5439
        %v5464 = vadd.f32 %v5373, %v5440
        %v5465 = vadd.f32 %v5374, %v5441
        %v5466 = vadd.f32 %v5375, %v5442
        %v5467 = vadd.f32 %v5376, %v5443
        %v5468 = vadd.f32 %v5377, %v5444
        %v5469 = vadd.f32 %v5378, %v5445
        %v5470 = vlaneseq
        %v5471 = vshrl.u32 %v5470, 7
        %v5472 = vsub.s32 4, %v5471
        %v5473 = vrot.slane %v332, %v5472
        %v5474 = vmul.f32 %v431, %v5473
        %v5475 = vmul.f32 %v432, %v5473
        %v5476 = vmul.f32 %v433, %v5473
        %v5477 = vmul.f32 %v434, %v5473
        %v5478 = vmul.f32 %v435, %v5473
        %v5479 = vmul.f32 %v436, %v5473
        %v5480 = vmul.f32 %v1180, %v5473
        %v5481 = vmul.f32 %v1181, %v5473
        %v5482 = vmul.f32 %v1182, %v5473
        %v5483 = vmul.f32 %v2087, %v5473
        %v5484 = vmul.f32 %v2088, %v5473
        %v5485 = vmul.f32 %v2089, %v5473
        %v5486 = vmul.f32 %v2830, %v5473
        %v5487 = vmul.f32 %v2831, %v5473
        %v5488 = vmul.f32 %v2832, %v5473
        %v5489 = vmul.f32 %v3733, %v5473
        %v5490 = vmul.f32 %v3734, %v5473
        %v5491 = vmul.f32 %v3735, %v5473
        %v5492 = vmul.f32 %v4476, %v5473
        %v5493 = vmul.f32 %v4477, %v5473
        %v5494 = vmul.f32 %v4478, %v5473
        %v5495 = vmul.f32 %v5379, %v5473
        %v5496 = vmul.f32 %v5380, %v5473
        %v5497 = vmul.f32 %v5381, %v5473
        %v5522 = vrot.slane %v5474, 2
        %v5523 = vrot.slane %v5475, 2
        %v5524 = vsel %vm577, %v5522, %v5523
        %v5525 = vrot.slane %v5476, 2
        %v5526 = vsel %vm577, %v5523, %v5525
        %v5527 = vrot.slane %v5477, 2
        %v5528 = vrot.slane %v5478, 2
        %v5529 = vsel %vm577, %v5527, %v5528
        %v5530 = vrot.slane %v5479, 2
        %v5531 = vsel %vm577, %v5528, %v5530
        %v5532 = vrot.slane %v5480, 2
        %v5533 = vrot.slane %v5481, 2
        %v5534 = vsel %vm577, %v5532, %v5533
        %v5535 = vrot.slane %v5482, 2
        %v5536 = vsel %vm577, %v5533, %v5535
        %v5537 = vrot.slane %v5483, 2
        %v5538 = vrot.slane %v5484, 2
        %v5539 = vsel %vm577, %v5537, %v5538
        %v5540 = vrot.slane %v5485, 2
        %v5541 = vsel %vm577, %v5538, %v5540
        %v5542 = vrot.slane %v5486, 2
        %v5543 = vrot.slane %v5487, 2
        %v5544 = vsel %vm577, %v5542, %v5543
        %v5545 = vrot.slane %v5488, 2
        %v5546 = vsel %vm577, %v5543, %v5545
        %v5547 = vrot.slane %v5489, 2
        %v5548 = vrot.slane %v5490, 2
        %v5549 = vsel %vm577, %v5547, %v5548
        %v5550 = vrot.slane %v5491, 2
        %v5551 = vsel %vm577, %v5548, %v5550
        %v5552 = vrot.slane %v5492, 2
        %v5553 = vrot.slane %v5493, 2
        %v5554 = vsel %vm577, %v5552, %v5553
        %v5555 = vrot.slane %v5494, 2
        %v5556 = vsel %vm577, %v5553, %v5555
        %v5557 = vrot.slane %v5495, 2
        %v5558 = vrot.slane %v5496, 2
        %v5559 = vsel %vm577, %v5557, %v5558
        %v5560 = vrot.slane %v5497, 2
        %v5561 = vsel %vm577, %v5558, %v5560
        %v5578 = vadd.f32 %v5402, %v5524
        %v5579 = vadd.f32 %v5403, %v5526
        %v5580 = vadd.f32 %v5404, %v5529
        %v5581 = vadd.f32 %v5405, %v5531
        %v5582 = vadd.f32 %v5406, %v5534
        %v5583 = vadd.f32 %v5407, %v5536
        %v5584 = vadd.f32 %v5408, %v5539
        %v5585 = vadd.f32 %v5409, %v5541
        %v5586 = vadd.f32 %v5410, %v5544
        %v5587 = vadd.f32 %v5411, %v5546
        %v5588 = vadd.f32 %v5412, %v5549
        %v5589 = vadd.f32 %v5413, %v5551
        %v5590 = vadd.f32 %v5414, %v5554
        %v5591 = vadd.f32 %v5415, %v5556
        %v5592 = vadd.f32 %v5416, %v5559
        %v5593 = vadd.f32 %v5417, %v5561
        %v5594 = vlaneseq
        %v5595 = vshrl.u32 %v5594, 7
        %v5596 = vsub.s32 5, %v5595
        %v5597 = vrot.slane %v332, %v5596
        %v5598 = vmul.f32 %v431, %v5597
        %v5599 = vmul.f32 %v432, %v5597
        %v5600 = vmul.f32 %v433, %v5597
        %v5601 = vmul.f32 %v434, %v5597
        %v5602 = vmul.f32 %v435, %v5597
        %v5603 = vmul.f32 %v436, %v5597
        %v5604 = vmul.f32 %v1180, %v5597
        %v5605 = vmul.f32 %v1181, %v5597
        %v5606 = vmul.f32 %v1182, %v5597
        %v5607 = vmul.f32 %v2087, %v5597
        %v5608 = vmul.f32 %v2088, %v5597
        %v5609 = vmul.f32 %v2089, %v5597
        %v5610 = vmul.f32 %v2830, %v5597
        %v5611 = vmul.f32 %v2831, %v5597
        %v5612 = vmul.f32 %v2832, %v5597
        %v5613 = vmul.f32 %v3733, %v5597
        %v5614 = vmul.f32 %v3734, %v5597
        %v5615 = vmul.f32 %v3735, %v5597
        %v5616 = vmul.f32 %v4476, %v5597
        %v5617 = vmul.f32 %v4477, %v5597
        %v5618 = vmul.f32 %v4478, %v5597
        %v5619 = vmul.f32 %v5379, %v5597
        %v5620 = vmul.f32 %v5380, %v5597
        %v5621 = vmul.f32 %v5381, %v5597
        %v5646 = vrot.slane %v5598, 2
        %v5647 = vrot.slane %v5599, 2
        %v5648 = vsel %vm577, %v5646, %v5647
        %v5649 = vrot.slane %v5600, 2
        %v5650 = vsel %vm577, %v5647, %v5649
        %v5651 = vrot.slane %v5601, 2
        %v5652 = vrot.slane %v5602, 2
        %v5653 = vsel %vm577, %v5651, %v5652
        %v5654 = vrot.slane %v5603, 2
        %v5655 = vsel %vm577, %v5652, %v5654
        %v5656 = vrot.slane %v5604, 2
        %v5657 = vrot.slane %v5605, 2
        %v5658 = vsel %vm577, %v5656, %v5657
        %v5659 = vrot.slane %v5606, 2
        %v5660 = vsel %vm577, %v5657, %v5659
        %v5661 = vrot.slane %v5607, 2
        %v5662 = vrot.slane %v5608, 2
        %v5663 = vsel %vm577, %v5661, %v5662
        %v5664 = vrot.slane %v5609, 2
        %v5665 = vsel %vm577, %v5662, %v5664
        %v5666 = vrot.slane %v5610, 2
        %v5667 = vrot.slane %v5611, 2
        %v5668 = vsel %vm577, %v5666, %v5667
        %v5669 = vrot.slane %v5612, 2
        %v5670 = vsel %vm577, %v5667, %v5669
        %v5671 = vrot.slane %v5613, 2
        %v5672 = vrot.slane %v5614, 2
        %v5673 = vsel %vm577, %v5671, %v5672
        %v5674 = vrot.slane %v5615, 2
        %v5675 = vsel %vm577, %v5672, %v5674
        %v5676 = vrot.slane %v5616, 2
        %v5677 = vrot.slane %v5617, 2
        %v5678 = vsel %vm577, %v5676, %v5677
        %v5679 = vrot.slane %v5618, 2
        %v5680 = vsel %vm577, %v5677, %v5679
        %v5681 = vrot.slane %v5619, 2
        %v5682 = vrot.slane %v5620, 2
        %v5683 = vsel %vm577, %v5681, %v5682
        %v5684 = vrot.slane %v5621, 2
        %v5685 = vsel %vm577, %v5682, %v5684
        %v5710 = vadd.f32 %v5446, %v5648
        %v5711 = vadd.f32 %v5447, %v5650
        %v5712 = vadd.f32 %v5448, %v5649
        %v5713 = vadd.f32 %v5449, %v5653
        %v5714 = vadd.f32 %v5450, %v5655
        %v5715 = vadd.f32 %v5451, %v5654
        %v5716 = vadd.f32 %v5452, %v5658
        %v5717 = vadd.f32 %v5453, %v5660
        %v5718 = vadd.f32 %v5454, %v5659
        %v5719 = vadd.f32 %v5455, %v5663
        %v5720 = vadd.f32 %v5456, %v5665
        %v5721 = vadd.f32 %v5457, %v5664
        %v5722 = vadd.f32 %v5458, %v5668
        %v5723 = vadd.f32 %v5459, %v5670
        %v5724 = vadd.f32 %v5460, %v5669
        %v5725 = vadd.f32 %v5461, %v5673
        %v5726 = vadd.f32 %v5462, %v5675
        %v5727 = vadd.f32 %v5463, %v5674
        %v5728 = vadd.f32 %v5464, %v5678
        %v5729 = vadd.f32 %v5465, %v5680
        %v5730 = vadd.f32 %v5466, %v5679
        %v5731 = vadd.f32 %v5467, %v5683
        %v5732 = vadd.f32 %v5468, %v5685
        %v5733 = vadd.f32 %v5469, %v5684
        %v5734 = vlaneseq
        %v5735 = vshrl.u32 %v5734, 7
        %v5736 = vsub.s32 6, %v5735
        %v5737 = vrot.slane %v332, %v5736
        %v5738 = vmul.f32 %v431, %v5737
        %v5739 = vmul.f32 %v432, %v5737
        %v5740 = vmul.f32 %v433, %v5737
        %v5741 = vmul.f32 %v434, %v5737
        %v5742 = vmul.f32 %v435, %v5737
        %v5743 = vmul.f32 %v436, %v5737
        %v5744 = vmul.f32 %v1180, %v5737
        %v5745 = vmul.f32 %v1181, %v5737
        %v5746 = vmul.f32 %v1182, %v5737
        %v5747 = vmul.f32 %v2087, %v5737
        %v5748 = vmul.f32 %v2088, %v5737
        %v5749 = vmul.f32 %v2089, %v5737
        %v5750 = vmul.f32 %v2830, %v5737
        %v5751 = vmul.f32 %v2831, %v5737
        %v5752 = vmul.f32 %v2832, %v5737
        %v5753 = vmul.f32 %v3733, %v5737
        %v5754 = vmul.f32 %v3734, %v5737
        %v5755 = vmul.f32 %v3735, %v5737
        %v5756 = vmul.f32 %v4476, %v5737
        %v5757 = vmul.f32 %v4477, %v5737
        %v5758 = vmul.f32 %v4478, %v5737
        %v5759 = vmul.f32 %v5379, %v5737
        %v5760 = vmul.f32 %v5380, %v5737
        %v5761 = vmul.f32 %v5381, %v5737
        %v5786 = vrot.slane %v5738, 4
        %v5787 = vrot.slane %v5739, 4
        %v5788 = vsel %vm842, %v5786, %v5787
        %v5789 = vrot.slane %v5740, 4
        %v5790 = vsel %vm842, %v5787, %v5789
        %v5791 = vrot.slane %v5741, 4
        %v5792 = vrot.slane %v5742, 4
        %v5793 = vsel %vm842, %v5791, %v5792
        %v5794 = vrot.slane %v5743, 4
        %v5795 = vsel %vm842, %v5792, %v5794
        %v5796 = vrot.slane %v5744, 4
        %v5797 = vrot.slane %v5745, 4
        %v5798 = vsel %vm842, %v5796, %v5797
        %v5799 = vrot.slane %v5746, 4
        %v5800 = vsel %vm842, %v5797, %v5799
        %v5801 = vrot.slane %v5747, 4
        %v5802 = vrot.slane %v5748, 4
        %v5803 = vsel %vm842, %v5801, %v5802
        %v5804 = vrot.slane %v5749, 4
        %v5805 = vsel %vm842, %v5802, %v5804
        %v5806 = vrot.slane %v5750, 4
        %v5807 = vrot.slane %v5751, 4
        %v5808 = vsel %vm842, %v5806, %v5807
        %v5809 = vrot.slane %v5752, 4
        %v5810 = vsel %vm842, %v5807, %v5809
        %v5811 = vrot.slane %v5753, 4
        %v5812 = vrot.slane %v5754, 4
        %v5813 = vsel %vm842, %v5811, %v5812
        %v5814 = vrot.slane %v5755, 4
        %v5815 = vsel %vm842, %v5812, %v5814
        %v5816 = vrot.slane %v5756, 4
        %v5817 = vrot.slane %v5757, 4
        %v5818 = vsel %vm842, %v5816, %v5817
        %v5819 = vrot.slane %v5758, 4
        %v5820 = vsel %vm842, %v5817, %v5819
        %v5821 = vrot.slane %v5759, 4
        %v5822 = vrot.slane %v5760, 4
        %v5823 = vsel %vm842, %v5821, %v5822
        %v5824 = vrot.slane %v5761, 4
        %v5825 = vsel %vm842, %v5822, %v5824
        %v5842 = vadd.f32 %v5578, %v5788
        %v5843 = vadd.f32 %v5579, %v5790
        %v5844 = vadd.f32 %v5580, %v5793
        %v5845 = vadd.f32 %v5581, %v5795
        %v5846 = vadd.f32 %v5582, %v5798
        %v5847 = vadd.f32 %v5583, %v5800
        %v5848 = vadd.f32 %v5584, %v5803
        %v5849 = vadd.f32 %v5585, %v5805
        %v5850 = vadd.f32 %v5586, %v5808
        %v5851 = vadd.f32 %v5587, %v5810
        %v5852 = vadd.f32 %v5588, %v5813
        %v5853 = vadd.f32 %v5589, %v5815
        %v5854 = vadd.f32 %v5590, %v5818
        %v5855 = vadd.f32 %v5591, %v5820
        %v5856 = vadd.f32 %v5592, %v5823
        %v5857 = vadd.f32 %v5593, %v5825
        %v5858 = vlaneseq
        %v5859 = vshrl.u32 %v5858, 7
        %v5860 = vsub.s32 7, %v5859
        %v5861 = vrot.slane %v332, %v5860
        %v5862 = vmul.f32 %v431, %v5861
        %v5863 = vmul.f32 %v432, %v5861
        %v5864 = vmul.f32 %v433, %v5861
        %v5865 = vmul.f32 %v434, %v5861
        %v5866 = vmul.f32 %v435, %v5861
        %v5867 = vmul.f32 %v436, %v5861
        %v5868 = vmul.f32 %v1180, %v5861
        %v5869 = vmul.f32 %v1181, %v5861
        %v5870 = vmul.f32 %v1182, %v5861
        %v5871 = vmul.f32 %v2087, %v5861
        %v5872 = vmul.f32 %v2088, %v5861
        %v5873 = vmul.f32 %v2089, %v5861
        %v5874 = vmul.f32 %v2830, %v5861
        %v5875 = vmul.f32 %v2831, %v5861
        %v5876 = vmul.f32 %v2832, %v5861
        %v5877 = vmul.f32 %v3733, %v5861
        %v5878 = vmul.f32 %v3734, %v5861
        %v5879 = vmul.f32 %v3735, %v5861
        %v5880 = vmul.f32 %v4476, %v5861
        %v5881 = vmul.f32 %v4477, %v5861
        %v5882 = vmul.f32 %v4478, %v5861
        %v5883 = vmul.f32 %v5379, %v5861
        %v5884 = vmul.f32 %v5380, %v5861
        %v5885 = vmul.f32 %v5381, %v5861
        %v5910 = vrot.slane %v5862, 4
        %v5911 = vrot.slane %v5863, 4
        %v5912 = vsel %vm842, %v5910, %v5911
        %v5913 = vrot.slane %v5864, 4
        %v5914 = vsel %vm842, %v5911, %v5913
        %v5915 = vrot.slane %v5865, 4
        %v5916 = vrot.slane %v5866, 4
        %v5917 = vsel %vm842, %v5915, %v5916
        %v5918 = vrot.slane %v5867, 4
        %v5919 = vsel %vm842, %v5916, %v5918
        %v5920 = vrot.slane %v5868, 4
        %v5921 = vrot.slane %v5869, 4
        %v5922 = vsel %vm842, %v5920, %v5921
        %v5923 = vrot.slane %v5870, 4
        %v5924 = vsel %vm842, %v5921, %v5923
        %v5925 = vrot.slane %v5871, 4
        %v5926 = vrot.slane %v5872, 4
        %v5927 = vsel %vm842, %v5925, %v5926
        %v5928 = vrot.slane %v5873, 4
        %v5929 = vsel %vm842, %v5926, %v5928
        %v5930 = vrot.slane %v5874, 4
        %v5931 = vrot.slane %v5875, 4
        %v5932 = vsel %vm842, %v5930, %v5931
        %v5933 = vrot.slane %v5876, 4
        %v5934 = vsel %vm842, %v5931, %v5933
        %v5935 = vrot.slane %v5877, 4
        %v5936 = vrot.slane %v5878, 4
        %v5937 = vsel %vm842, %v5935, %v5936
        %v5938 = vrot.slane %v5879, 4
        %v5939 = vsel %vm842, %v5936, %v5938
        %v5940 = vrot.slane %v5880, 4
        %v5941 = vrot.slane %v5881, 4
        %v5942 = vsel %vm842, %v5940, %v5941
        %v5943 = vrot.slane %v5882, 4
        %v5944 = vsel %vm842, %v5941, %v5943
        %v5945 = vrot.slane %v5883, 4
        %v5946 = vrot.slane %v5884, 4
        %v5947 = vsel %vm842, %v5945, %v5946
        %v5948 = vrot.slane %v5885, 4
        %v5949 = vsel %vm842, %v5946, %v5948
        %v5974 = vadd.f32 %v5710, %v5912
        %v5975 = vadd.f32 %v5711, %v5914
        %v5976 = vadd.f32 %v5712, %v5913
        %v5977 = vadd.f32 %v5713, %v5917
        %v5978 = vadd.f32 %v5714, %v5919
        %v5979 = vadd.f32 %v5715, %v5918
        %v5980 = vadd.f32 %v5716, %v5922
        %v5981 = vadd.f32 %v5717, %v5924
        %v5982 = vadd.f32 %v5718, %v5923
        %v5983 = vadd.f32 %v5719, %v5927
        %v5984 = vadd.f32 %v5720, %v5929
        %v5985 = vadd.f32 %v5721, %v5928
        %v5986 = vadd.f32 %v5722, %v5932
        %v5987 = vadd.f32 %v5723, %v5934
        %v5988 = vadd.f32 %v5724, %v5933
        %v5989 = vadd.f32 %v5725, %v5937
        %v5990 = vadd.f32 %v5726, %v5939
        %v5991 = vadd.f32 %v5727, %v5938
        %v5992 = vadd.f32 %v5728, %v5942
        %v5993 = vadd.f32 %v5729, %v5944
        %v5994 = vadd.f32 %v5730, %v5943
        %v5995 = vadd.f32 %v5731, %v5947
        %v5996 = vadd.f32 %v5732, %v5949
        %v5997 = vadd.f32 %v5733, %v5948
        %v5998 = vlaneseq
        %v5999 = vshrl.u32 %v5998, 7
        %v6000 = vsub.s32 0, %v5999
        %v6001 = vrot.slane %v333, %v6000
        %v6002 = vmul.f32 %v431, %v6001
        %v6003 = vmul.f32 %v432, %v6001
        %v6004 = vmul.f32 %v433, %v6001
        %v6005 = vmul.f32 %v434, %v6001
        %v6006 = vmul.f32 %v435, %v6001
        %v6007 = vmul.f32 %v436, %v6001
        %v6008 = vmul.f32 %v1180, %v6001
        %v6009 = vmul.f32 %v1181, %v6001
        %v6010 = vmul.f32 %v1182, %v6001
        %v6011 = vmul.f32 %v2087, %v6001
        %v6012 = vmul.f32 %v2088, %v6001
        %v6013 = vmul.f32 %v2089, %v6001
        %v6014 = vmul.f32 %v2830, %v6001
        %v6015 = vmul.f32 %v2831, %v6001
        %v6016 = vmul.f32 %v2832, %v6001
        %v6017 = vmul.f32 %v3733, %v6001
        %v6018 = vmul.f32 %v3734, %v6001
        %v6019 = vmul.f32 %v3735, %v6001
        %v6020 = vmul.f32 %v4476, %v6001
        %v6021 = vmul.f32 %v4477, %v6001
        %v6022 = vmul.f32 %v4478, %v6001
        %v6023 = vmul.f32 %v5379, %v6001
        %v6024 = vmul.f32 %v5380, %v6001
        %v6025 = vmul.f32 %v5381, %v6001
        %v6050 = vrot.slane %v6002, 6
        %v6051 = vrot.slane %v6003, 6
        %v6052 = vsel %vm1107, %v6050, %v6051
        %v6053 = vrot.slane %v6004, 6
        %v6054 = vsel %vm1107, %v6051, %v6053
        %v6055 = vrot.slane %v6005, 6
        %v6056 = vrot.slane %v6006, 6
        %v6057 = vsel %vm1107, %v6055, %v6056
        %v6058 = vrot.slane %v6007, 6
        %v6059 = vsel %vm1107, %v6056, %v6058
        %v6060 = vrot.slane %v6008, 6
        %v6061 = vrot.slane %v6009, 6
        %v6062 = vsel %vm1107, %v6060, %v6061
        %v6063 = vrot.slane %v6010, 6
        %v6064 = vsel %vm1107, %v6061, %v6063
        %v6065 = vrot.slane %v6011, 6
        %v6066 = vrot.slane %v6012, 6
        %v6067 = vsel %vm1107, %v6065, %v6066
        %v6068 = vrot.slane %v6013, 6
        %v6069 = vsel %vm1107, %v6066, %v6068
        %v6070 = vrot.slane %v6014, 6
        %v6071 = vrot.slane %v6015, 6
        %v6072 = vsel %vm1107, %v6070, %v6071
        %v6073 = vrot.slane %v6016, 6
        %v6074 = vsel %vm1107, %v6071, %v6073
        %v6075 = vrot.slane %v6017, 6
        %v6076 = vrot.slane %v6018, 6
        %v6077 = vsel %vm1107, %v6075, %v6076
        %v6078 = vrot.slane %v6019, 6
        %v6079 = vsel %vm1107, %v6076, %v6078
        %v6080 = vrot.slane %v6020, 6
        %v6081 = vrot.slane %v6021, 6
        %v6082 = vsel %vm1107, %v6080, %v6081
        %v6083 = vrot.slane %v6022, 6
        %v6084 = vsel %vm1107, %v6081, %v6083
        %v6085 = vrot.slane %v6023, 6
        %v6086 = vrot.slane %v6024, 6
        %v6087 = vsel %vm1107, %v6085, %v6086
        %v6088 = vrot.slane %v6025, 6
        %v6089 = vsel %vm1107, %v6086, %v6088
        %v6106 = vadd.f32 %v5842, %v6052
        %v6107 = vadd.f32 %v5843, %v6054
        %v6108 = vadd.f32 %v5844, %v6057
        %v6109 = vadd.f32 %v5845, %v6059
        %v6110 = vadd.f32 %v5846, %v6062
        %v6111 = vadd.f32 %v5847, %v6064
        %v6112 = vadd.f32 %v5848, %v6067
        %v6113 = vadd.f32 %v5849, %v6069
        %v6114 = vadd.f32 %v5850, %v6072
        %v6115 = vadd.f32 %v5851, %v6074
        %v6116 = vadd.f32 %v5852, %v6077
        %v6117 = vadd.f32 %v5853, %v6079
        %v6118 = vadd.f32 %v5854, %v6082
        %v6119 = vadd.f32 %v5855, %v6084
        %v6120 = vadd.f32 %v5856, %v6087
        %v6121 = vadd.f32 %v5857, %v6089
        %v6146 = vrot.slane %v5974, 1
        %v6147 = vrot.slane %v5975, 1
        %v6148 = vsel %vm1344, %v6146, %v6147
        %v6149 = vrot.slane %v5976, 1
        %v6150 = vsel %vm1344, %v6147, %v6149
        %v6151 = vrot.slane %v5977, 1
        %v6152 = vrot.slane %v5978, 1
        %v6153 = vsel %vm1344, %v6151, %v6152
        %v6154 = vrot.slane %v5979, 1
        %v6155 = vsel %vm1344, %v6152, %v6154
        %v6156 = vrot.slane %v5980, 1
        %v6157 = vrot.slane %v5981, 1
        %v6158 = vsel %vm1344, %v6156, %v6157
        %v6159 = vrot.slane %v5982, 1
        %v6160 = vsel %vm1344, %v6157, %v6159
        %v6161 = vrot.slane %v5983, 1
        %v6162 = vrot.slane %v5984, 1
        %v6163 = vsel %vm1344, %v6161, %v6162
        %v6164 = vrot.slane %v5985, 1
        %v6165 = vsel %vm1344, %v6162, %v6164
        %v6166 = vrot.slane %v5986, 1
        %v6167 = vrot.slane %v5987, 1
        %v6168 = vsel %vm1344, %v6166, %v6167
        %v6169 = vrot.slane %v5988, 1
        %v6170 = vsel %vm1344, %v6167, %v6169
        %v6171 = vrot.slane %v5989, 1
        %v6172 = vrot.slane %v5990, 1
        %v6173 = vsel %vm1344, %v6171, %v6172
        %v6174 = vrot.slane %v5991, 1
        %v6175 = vsel %vm1344, %v6172, %v6174
        %v6176 = vrot.slane %v5992, 1
        %v6177 = vrot.slane %v5993, 1
        %v6178 = vsel %vm1344, %v6176, %v6177
        %v6179 = vrot.slane %v5994, 1
        %v6180 = vsel %vm1344, %v6177, %v6179
        %v6181 = vrot.slane %v5995, 1
        %v6182 = vrot.slane %v5996, 1
        %v6183 = vsel %vm1344, %v6181, %v6182
        %v6184 = vrot.slane %v5997, 1
        %v6185 = vsel %vm1344, %v6182, %v6184
        %v6202 = vadd.f32 %v6106, %v6148
        %v6203 = vadd.f32 %v6107, %v6150
        %v6204 = vadd.f32 %v6108, %v6153
        %v6205 = vadd.f32 %v6109, %v6155
        %v6206 = vadd.f32 %v6110, %v6158
        %v6207 = vadd.f32 %v6111, %v6160
        %v6208 = vadd.f32 %v6112, %v6163
        %v6209 = vadd.f32 %v6113, %v6165
        %v6210 = vadd.f32 %v6114, %v6168
        %v6211 = vadd.f32 %v6115, %v6170
        %v6212 = vadd.f32 %v6116, %v6173
        %v6213 = vadd.f32 %v6117, %v6175
        %v6214 = vadd.f32 %v6118, %v6178
        %v6215 = vadd.f32 %v6119, %v6180
        %v6216 = vadd.f32 %v6120, %v6183
        %v6217 = vadd.f32 %v6121, %v6185
        %v6218 = vpack.c.bf16 %v6203, %v6202
        %v6219 = vpack.c.bf16 %v6205, %v6204
        %v6220 = vpack.c.bf16 %v6207, %v6206
        %v6221 = vpack.c.bf16 %v6209, %v6208
        %v6222 = vpack.c.bf16 %v6211, %v6210
        %v6223 = vpack.c.bf16 %v6213, %v6212
        %v6224 = vpack.c.bf16 %v6215, %v6214
        %v6225 = vpack.c.bf16 %v6217, %v6216
        %v6227 = vlaneseq
        %v6228 = vshrl.u32 %v6227, 7
        %v6229 = vsub.s32 0, %v6228
        %v6230 = vrot.slane %v350, %v6229
        %v6248 = vunpack.c.l.b16 %v334
        %v6249 = vunpack.c.l.b16 %v335
        %v6250 = vunpack.c.l.b16 %v336
        %v6251 = vunpack.c.l.b16 %v337
        %v6252 = vunpack.c.l.b16 %v338
        %v6253 = vunpack.c.l.b16 %v339
        %v6254 = vunpack.c.l.b16 %v340
        %v6255 = vunpack.c.l.b16 %v341
        %v6256 = vunpack.c.l.b16 %v342
        %v6257 = vunpack.c.l.b16 %v343
        %v6258 = vunpack.c.l.b16 %v344
        %v6259 = vunpack.c.l.b16 %v345
        %v6260 = vunpack.c.l.b16 %v346
        %v6261 = vunpack.c.l.b16 %v347
        %v6262 = vunpack.c.l.b16 %v348
        %v6263 = vunpack.c.l.b16 %v349
        %v6264 = vpack.c.b16 %v6249, %v6248
        %v6265 = vpack.c.b16 %v6251, %v6250
        %v6266 = vpack.c.b16 %v6253, %v6252
        %v6267 = vpack.c.b16 %v6255, %v6254
        %v6268 = vpack.c.b16 %v6257, %v6256
        %v6269 = vpack.c.b16 %v6259, %v6258
        %v6270 = vpack.c.b16 %v6261, %v6260
        %v6271 = vpack.c.b16 %v6263, %v6262
        %6280 = vmatprep.subr.bf16.mxu0 0
        %6281 = vmatpush1.bf16.msra.mxu0 %v6271
        %6282 = vmatprep.subr.bf16.mxu0 0
        %6283 = vmatpush1.bf16.msra.mxu0 %v6270
        %6284 = vmatprep.subr.bf16.mxu0 0
        %6285 = vmatpush1.bf16.msra.mxu0 %v6269
        %6286 = vmatprep.subr.bf16.mxu0 0
        %6287 = vmatpush1.bf16.msra.mxu0 %v6268
        %6288 = vmatprep.subr.bf16.mxu0 0
        %6289 = vmatpush1.bf16.msra.mxu0 %v6267
        %6290 = vmatprep.subr.bf16.mxu0 0
        %6291 = vmatpush1.bf16.msra.mxu0 %v6266
        %6292 = vmatprep.subr.bf16.mxu0 0
        %6293 = vmatpush1.bf16.msra.mxu0 %v6265
        %6294 = vmatprep.subr.bf16.mxu0 0
        %6295 = vmatpush1.bf16.msra.mxu0 %v6264
        %6296 = vmatprep.subr.bf16.mxu0 0
        %6297 = vmatpush2.bf16.msra.mxu0 0
        %6298 = vmatprep.subr.bf16.mxu0 0
        %6299 = vmatpush2.bf16.msra.mxu0 0
        %6300 = vmatprep.subr.bf16.mxu0 0
        %6301 = vmatpush2.bf16.msra.mxu0 0
        %6302 = vmatprep.subr.bf16.mxu0 0
        %6303 = vmatpush2.bf16.msra.mxu0 0
        %6304 = vmatprep.subr.bf16.mxu0 0
        %6305 = vmatpush2.bf16.msra.mxu0 0
        %6306 = vmatprep.subr.bf16.mxu0 0
        %6307 = vmatpush2.bf16.msra.mxu0 0
        %6308 = vmatprep.subr.bf16.mxu0 0
        %6309 = vmatpush2.bf16.msra.mxu0 0
        %6310 = vmatprep.subr.bf16.mxu0 0
        %6311 = vmatpush2.bf16.msra.mxu0 0
        %6312 = vmatprep.mubr.bf16.mxu0 0
        %6313 = vmatmul.mubr.bf16.gmra.mxu0 %v6218
        %v6314 = vpop.f32.mrf.mxu0
        %v6315 = vadd.f32 %v6230, %v6314
        %v6316 = vpop.f32.mrf.mxu0
        %v6317 = vpop.f32.mrf.mxu0
        %v6318 = vadd.f32 %v6230, %v6317
        %v6319 = vpop.f32.mrf.mxu0
        %6320 = vmatprep.mubr.bf16.mxu0 0
        %6321 = vmatmul.mubr.bf16.gmra.mxu0 %v6219
        %v6322 = vpop.f32.mrf.mxu0
        %v6323 = vadd.f32 %v6230, %v6322
        %v6324 = vpop.f32.mrf.mxu0
        %v6325 = vpop.f32.mrf.mxu0
        %v6326 = vadd.f32 %v6230, %v6325
        %v6327 = vpop.f32.mrf.mxu0
        %6328 = vmatprep.mubr.bf16.mxu0 0
        %6329 = vmatmul.mubr.bf16.gmra.mxu0 %v6220
        %v6330 = vpop.f32.mrf.mxu0
        %v6331 = vadd.f32 %v6230, %v6330
        %v6332 = vpop.f32.mrf.mxu0
        %v6333 = vpop.f32.mrf.mxu0
        %v6334 = vadd.f32 %v6230, %v6333
        %v6335 = vpop.f32.mrf.mxu0
        %6336 = vmatprep.mubr.bf16.mxu0 0
        %6337 = vmatmul.mubr.bf16.gmra.mxu0 %v6221
        %v6338 = vpop.f32.mrf.mxu0
        %v6339 = vadd.f32 %v6230, %v6338
        %v6340 = vpop.f32.mrf.mxu0
        %v6341 = vpop.f32.mrf.mxu0
        %v6342 = vadd.f32 %v6230, %v6341
        %v6343 = vpop.f32.mrf.mxu0
        %6344 = vmatprep.mubr.bf16.mxu0 0
        %6345 = vmatmul.mubr.bf16.gmra.mxu0 %v6222
        %v6346 = vpop.f32.mrf.mxu0
        %v6347 = vadd.f32 %v6230, %v6346
        %v6348 = vpop.f32.mrf.mxu0
        %v6349 = vpop.f32.mrf.mxu0
        %v6350 = vadd.f32 %v6230, %v6349
        %v6351 = vpop.f32.mrf.mxu0
        %6352 = vmatprep.mubr.bf16.mxu0 0
        %6353 = vmatmul.mubr.bf16.gmra.mxu0 %v6223
        %v6354 = vpop.f32.mrf.mxu0
        %v6355 = vadd.f32 %v6230, %v6354
        %v6356 = vpop.f32.mrf.mxu0
        %v6357 = vpop.f32.mrf.mxu0
        %v6358 = vadd.f32 %v6230, %v6357
        %v6359 = vpop.f32.mrf.mxu0
        %6360 = vmatprep.mubr.bf16.mxu0 0
        %6361 = vmatmul.mubr.bf16.gmra.mxu0 %v6224
        %v6362 = vpop.f32.mrf.mxu0
        %v6363 = vadd.f32 %v6230, %v6362
        %v6364 = vpop.f32.mrf.mxu0
        %v6365 = vpop.f32.mrf.mxu0
        %v6366 = vadd.f32 %v6230, %v6365
        %v6367 = vpop.f32.mrf.mxu0
        %6368 = vmatprep.mubr.bf16.mxu0 0
        %6369 = vmatmul.mubr.bf16.gmra.mxu0 %v6225
        %v6370 = vpop.f32.mrf.mxu0
        %v6371 = vadd.f32 %v6230, %v6370
        %v6372 = vpop.f32.mrf.mxu0
        %v6373 = vpop.f32.mrf.mxu0
        %v6374 = vadd.f32 %v6230, %v6373
        %v6375 = vpop.f32.mrf.mxu0
        %6376 = vdwg.mxu0
        %v6377 = vmul.f32 %v6315, 0.5
        %v6378 = vmul.f32 %v6318, 0.5
        %v6379 = vmul.f32 %v6323, 0.5
        %v6380 = vmul.f32 %v6326, 0.5
        %v6381 = vmul.f32 %v6331, 0.5
        %v6382 = vmul.f32 %v6334, 0.5
        %v6383 = vmul.f32 %v6339, 0.5
        %v6384 = vmul.f32 %v6342, 0.5
        %v6385 = vmul.f32 %v6347, 0.5
        %v6386 = vmul.f32 %v6350, 0.5
        %v6387 = vmul.f32 %v6355, 0.5
        %v6388 = vmul.f32 %v6358, 0.5
        %v6389 = vmul.f32 %v6363, 0.5
        %v6390 = vmul.f32 %v6366, 0.5
        %v6391 = vmul.f32 %v6371, 0.5
        %v6392 = vmul.f32 %v6374, 0.5
        %v6393 = vmul.f32 %v6315, 0.70710677
        %v6394 = vmul.f32 %v6318, 0.70710677
        %v6395 = vmul.f32 %v6323, 0.70710677
        %v6396 = vmul.f32 %v6326, 0.70710677
        %v6397 = vmul.f32 %v6331, 0.70710677
        %v6398 = vmul.f32 %v6334, 0.70710677
        %v6399 = vmul.f32 %v6339, 0.70710677
        %v6400 = vmul.f32 %v6342, 0.70710677
        %v6401 = vmul.f32 %v6347, 0.70710677
        %v6402 = vmul.f32 %v6350, 0.70710677
        %v6403 = vmul.f32 %v6355, 0.70710677
        %v6404 = vmul.f32 %v6358, 0.70710677
        %v6405 = vmul.f32 %v6363, 0.70710677
        %v6406 = vmul.f32 %v6366, 0.70710677
        %v6407 = vmul.f32 %v6371, 0.70710677
        %v6408 = vmul.f32 %v6374, 0.70710677
        %v6409 = verf.f32.pop %v6393
        %v6410 = verf.f32.pop %v6394
        %v6411 = verf.f32.pop %v6395
        %v6412 = verf.f32.pop %v6396
        %v6413 = verf.f32.pop %v6397
        %v6414 = verf.f32.pop %v6398
        %v6415 = verf.f32.pop %v6399
        %v6416 = verf.f32.pop %v6400
        %v6417 = verf.f32.pop %v6401
        %v6418 = verf.f32.pop %v6402
        %v6419 = verf.f32.pop %v6403
        %v6420 = verf.f32.pop %v6404
        %v6421 = verf.f32.pop %v6405
        %v6422 = verf.f32.pop %v6406
        %v6423 = verf.f32.pop %v6407
        %v6424 = verf.f32.pop %v6408
        %v6425 = vadd.f32 %v6409, 1.0
        %v6426 = vadd.f32 %v6410, 1.0
        %v6427 = vadd.f32 %v6411, 1.0
        %v6428 = vadd.f32 %v6412, 1.0
        %v6429 = vadd.f32 %v6413, 1.0
        %v6430 = vadd.f32 %v6414, 1.0
        %v6431 = vadd.f32 %v6415, 1.0
        %v6432 = vadd.f32 %v6416, 1.0
        %v6433 = vadd.f32 %v6417, 1.0
        %v6434 = vadd.f32 %v6418, 1.0
        %v6435 = vadd.f32 %v6419, 1.0
        %v6436 = vadd.f32 %v6420, 1.0
        %v6437 = vadd.f32 %v6421, 1.0
        %v6438 = vadd.f32 %v6422, 1.0
        %v6439 = vadd.f32 %v6423, 1.0
        %v6440 = vadd.f32 %v6424, 1.0
        %v6441 = vmul.f32 %v6377, %v6425
        %v6442 = vmul.f32 %v6378, %v6426
        %v6443 = vmul.f32 %v6379, %v6427
        %v6444 = vmul.f32 %v6380, %v6428
        %v6445 = vmul.f32 %v6381, %v6429
        %v6446 = vmul.f32 %v6382, %v6430
        %v6447 = vmul.f32 %v6383, %v6431
        %v6448 = vmul.f32 %v6384, %v6432
        %v6449 = vmul.f32 %v6385, %v6433
        %v6450 = vmul.f32 %v6386, %v6434
        %v6451 = vmul.f32 %v6387, %v6435
        %v6452 = vmul.f32 %v6388, %v6436
        %v6453 = vmul.f32 %v6389, %v6437
        %v6454 = vmul.f32 %v6390, %v6438
        %v6455 = vmul.f32 %v6391, %v6439
        %v6456 = vmul.f32 %v6392, %v6440
        %v6457 = vpack.c.bf16 %v6442, %v6441
        %v6458 = vpack.c.bf16 %v6444, %v6443
        %v6459 = vpack.c.bf16 %v6446, %v6445
        %v6460 = vpack.c.bf16 %v6448, %v6447
        %v6461 = vpack.c.bf16 %v6450, %v6449
        %v6462 = vpack.c.bf16 %v6452, %v6451
        %v6463 = vpack.c.bf16 %v6454, %v6453
        %v6464 = vpack.c.bf16 %v6456, %v6455
        %v6466 = vlaneseq
        %v6467 = vshrl.u32 %v6466, 7
        %v6468 = vsub.s32 0, %v6467
        %v6469 = vrot.slane %v367, %v6468
        %v6487 = vunpack.c.l.b16 %v351
        %v6488 = vunpack.c.l.b16 %v352
        %v6489 = vunpack.c.l.b16 %v353
        %v6490 = vunpack.c.l.b16 %v354
        %v6491 = vunpack.c.l.b16 %v355
        %v6492 = vunpack.c.l.b16 %v356
        %v6493 = vunpack.c.l.b16 %v357
        %v6494 = vunpack.c.l.b16 %v358
        %v6495 = vunpack.c.l.b16 %v359
        %v6496 = vunpack.c.l.b16 %v360
        %v6497 = vunpack.c.l.b16 %v361
        %v6498 = vunpack.c.l.b16 %v362
        %v6499 = vunpack.c.l.b16 %v363
        %v6500 = vunpack.c.l.b16 %v364
        %v6501 = vunpack.c.l.b16 %v365
        %v6502 = vunpack.c.l.b16 %v366
        %v6503 = vpack.c.b16 %v6488, %v6487
        %v6504 = vpack.c.b16 %v6490, %v6489
        %v6505 = vpack.c.b16 %v6492, %v6491
        %v6506 = vpack.c.b16 %v6494, %v6493
        %v6507 = vpack.c.b16 %v6496, %v6495
        %v6508 = vpack.c.b16 %v6498, %v6497
        %v6509 = vpack.c.b16 %v6500, %v6499
        %v6510 = vpack.c.b16 %v6502, %v6501
        %6519 = vmatprep.subr.bf16.mxu0 0
        %6520 = vmatpush1.bf16.msra.mxu0 %v6510
        %6521 = vmatprep.subr.bf16.mxu0 0
        %6522 = vmatpush1.bf16.msra.mxu0 %v6509
        %6523 = vmatprep.subr.bf16.mxu0 0
        %6524 = vmatpush1.bf16.msra.mxu0 %v6508
        %6525 = vmatprep.subr.bf16.mxu0 0
        %6526 = vmatpush1.bf16.msra.mxu0 %v6507
        %6527 = vmatprep.subr.bf16.mxu0 0
        %6528 = vmatpush1.bf16.msra.mxu0 %v6506
        %6529 = vmatprep.subr.bf16.mxu0 0
        %6530 = vmatpush1.bf16.msra.mxu0 %v6505
        %6531 = vmatprep.subr.bf16.mxu0 0
        %6532 = vmatpush1.bf16.msra.mxu0 %v6504
        %6533 = vmatprep.subr.bf16.mxu0 0
        %6534 = vmatpush1.bf16.msra.mxu0 %v6503
        %6535 = vmatprep.subr.bf16.mxu0 0
        %6536 = vmatpush2.bf16.msra.mxu0 0
        %6537 = vmatprep.subr.bf16.mxu0 0
        %6538 = vmatpush2.bf16.msra.mxu0 0
        %6539 = vmatprep.subr.bf16.mxu0 0
        %6540 = vmatpush2.bf16.msra.mxu0 0
        %6541 = vmatprep.subr.bf16.mxu0 0
        %6542 = vmatpush2.bf16.msra.mxu0 0
        %6543 = vmatprep.subr.bf16.mxu0 0
        %6544 = vmatpush2.bf16.msra.mxu0 0
        %6545 = vmatprep.subr.bf16.mxu0 0
        %6546 = vmatpush2.bf16.msra.mxu0 0
        %6547 = vmatprep.subr.bf16.mxu0 0
        %6548 = vmatpush2.bf16.msra.mxu0 0
        %6549 = vmatprep.subr.bf16.mxu0 0
        %6550 = vmatpush2.bf16.msra.mxu0 0
        %6551 = vmatprep.mubr.bf16.mxu0 0
        %6552 = vmatmul.mubr.bf16.gmra.mxu0 %v6457
        %v6553 = vpop.f32.mrf.mxu0
        %v6554 = vadd.f32 %v6469, %v6553
        %v6555 = vpop.f32.mrf.mxu0
        %v6556 = vpop.f32.mrf.mxu0
        %v6557 = vadd.f32 %v6469, %v6556
        %v6558 = vpop.f32.mrf.mxu0
        %6559 = vmatprep.mubr.bf16.mxu0 0
        %6560 = vmatmul.mubr.bf16.gmra.mxu0 %v6458
        %v6561 = vpop.f32.mrf.mxu0
        %v6562 = vadd.f32 %v6469, %v6561
        %v6563 = vpop.f32.mrf.mxu0
        %v6564 = vpop.f32.mrf.mxu0
        %v6565 = vadd.f32 %v6469, %v6564
        %v6566 = vpop.f32.mrf.mxu0
        %6567 = vmatprep.mubr.bf16.mxu0 0
        %6568 = vmatmul.mubr.bf16.gmra.mxu0 %v6459
        %v6569 = vpop.f32.mrf.mxu0
        %v6570 = vadd.f32 %v6469, %v6569
        %v6571 = vpop.f32.mrf.mxu0
        %v6572 = vpop.f32.mrf.mxu0
        %v6573 = vadd.f32 %v6469, %v6572
        %v6574 = vpop.f32.mrf.mxu0
        %6575 = vmatprep.mubr.bf16.mxu0 0
        %6576 = vmatmul.mubr.bf16.gmra.mxu0 %v6460
        %v6577 = vpop.f32.mrf.mxu0
        %v6578 = vadd.f32 %v6469, %v6577
        %v6579 = vpop.f32.mrf.mxu0
        %v6580 = vpop.f32.mrf.mxu0
        %v6581 = vadd.f32 %v6469, %v6580
        %v6582 = vpop.f32.mrf.mxu0
        %6583 = vmatprep.mubr.bf16.mxu0 0
        %6584 = vmatmul.mubr.bf16.gmra.mxu0 %v6461
        %v6585 = vpop.f32.mrf.mxu0
        %v6586 = vadd.f32 %v6469, %v6585
        %v6587 = vpop.f32.mrf.mxu0
        %v6588 = vpop.f32.mrf.mxu0
        %v6589 = vadd.f32 %v6469, %v6588
        %v6590 = vpop.f32.mrf.mxu0
        %6591 = vmatprep.mubr.bf16.mxu0 0
        %6592 = vmatmul.mubr.bf16.gmra.mxu0 %v6462
        %v6593 = vpop.f32.mrf.mxu0
        %v6594 = vadd.f32 %v6469, %v6593
        %v6595 = vpop.f32.mrf.mxu0
        %v6596 = vpop.f32.mrf.mxu0
        %v6597 = vadd.f32 %v6469, %v6596
        %v6598 = vpop.f32.mrf.mxu0
        %6599 = vmatprep.mubr.bf16.mxu0 0
        %6600 = vmatmul.mubr.bf16.gmra.mxu0 %v6463
        %v6601 = vpop.f32.mrf.mxu0
        %v6602 = vadd.f32 %v6469, %v6601
        %v6603 = vpop.f32.mrf.mxu0
        %v6604 = vpop.f32.mrf.mxu0
        %v6605 = vadd.f32 %v6469, %v6604
        %v6606 = vpop.f32.mrf.mxu0
        %6607 = vmatprep.mubr.bf16.mxu0 0
        %6608 = vmatmul.mubr.bf16.gmra.mxu0 %v6464
        %v6609 = vpop.f32.mrf.mxu0
        %v6610 = vadd.f32 %v6469, %v6609
        %v6611 = vpop.f32.mrf.mxu0
        %v6612 = vpop.f32.mrf.mxu0
        %v6613 = vadd.f32 %v6469, %v6612
        %v6614 = vpop.f32.mrf.mxu0
        %6615 = vdwg.mxu0
        %v6632 = vrot.slane %v6554, 5
        %v6633 = vrot.slane %v6557, 5
        %v6634 = vsel %vm1874, %v6632, %v6633
        %v6635 = vrot.slane %v6562, 5
        %v6636 = vrot.slane %v6565, 5
        %v6637 = vsel %vm1874, %v6635, %v6636
        %v6638 = vrot.slane %v6570, 5
        %v6639 = vrot.slane %v6573, 5
        %v6640 = vsel %vm1874, %v6638, %v6639
        %v6641 = vrot.slane %v6578, 5
        %v6642 = vrot.slane %v6581, 5
        %v6643 = vsel %vm1874, %v6641, %v6642
        %v6644 = vrot.slane %v6586, 5
        %v6645 = vrot.slane %v6589, 5
        %v6646 = vsel %vm1874, %v6644, %v6645
        %v6647 = vrot.slane %v6594, 5
        %v6648 = vrot.slane %v6597, 5
        %v6649 = vsel %vm1874, %v6647, %v6648
        %v6650 = vrot.slane %v6602, 5
        %v6651 = vrot.slane %v6605, 5
        %v6652 = vsel %vm1874, %v6650, %v6651
        %v6653 = vrot.slane %v6610, 5
        %v6654 = vrot.slane %v6613, 5
        %v6655 = vsel %vm1874, %v6653, %v6654
        %v6680 = vadd.f32 %v422, %v6632
        %v6681 = vadd.f32 %v423, %v6634
        %v6682 = vadd.f32 %v424, %v6633
        %v6683 = vadd.f32 %v425, %v6635
        %v6684 = vadd.f32 %v426, %v6637
        %v6685 = vadd.f32 %v427, %v6636
        %v6686 = vadd.f32 %v428, %v6638
        %v6687 = vadd.f32 %v429, %v6640
        %v6688 = vadd.f32 %v430, %v6639
        %v6689 = vadd.f32 %v431, %v6641
        %v6690 = vadd.f32 %v432, %v6643
        %v6691 = vadd.f32 %v433, %v6642
        %v6692 = vadd.f32 %v434, %v6644
        %v6693 = vadd.f32 %v435, %v6646
        %v6694 = vadd.f32 %v436, %v6645
        %v6695 = vadd.f32 %v1180, %v6647
        %v6696 = vadd.f32 %v1181, %v6649
        %v6697 = vadd.f32 %v1182, %v6648
        %v6698 = vadd.f32 %v2087, %v6650
        %v6699 = vadd.f32 %v2088, %v6652
        %v6700 = vadd.f32 %v2089, %v6651
        %v6701 = vadd.f32 %v2830, %v6653
        %v6702 = vadd.f32 %v2831, %v6655
        %v6703 = vadd.f32 %v2832, %v6654
        %6704 = vst [vmem:[%s261 - $0x3] sm:$0xf8] %v6680
        %6705 = vst [vmem:[%s261 + $0x5] sm:$0xff] %v6681
        %6706 = vst [vmem:[%s261 + $0xd] sm:$0x7] %v6682
        %6707 = vst [vmem:[%s261 + $0xd] sm:$0xf8] %v6683
        %6708 = vst [vmem:[%s261 + $0x15] sm:$0xff] %v6684
        %6709 = vst [vmem:[%s261 + $0x1d] sm:$0x7] %v6685
        %6710 = vst [vmem:[%s261 + $0x1d] sm:$0xf8] %v6686
        %6711 = vst [vmem:[%s261 + $0x25] sm:$0xff] %v6687
        %6712 = vst [vmem:[%s261 + $0x2d] sm:$0x7] %v6688
        %6713 = vst [vmem:[%s261 + $0x2d] sm:$0xf8] %v6689
        %6714 = vst [vmem:[%s261 + $0x35] sm:$0xff] %v6690
        %6715 = vst [vmem:[%s261 + $0x3d] sm:$0x7] %v6691
        %6716 = vst [vmem:[%s261 + $0x3d] sm:$0xf8] %v6692
        %6717 = vst [vmem:[%s261 + $0x45] sm:$0xff] %v6693
        %6718 = vst [vmem:[%s261 + $0x4d] sm:$0x7] %v6694
        %6719 = vst [vmem:[%s261 + $0x4d] sm:$0xf8] %v6695
        %6720 = vst [vmem:[%s261 + $0x55] sm:$0xff] %v6696
        %6721 = vst [vmem:[%s261 + $0x5d] sm:$0x7] %v6697
        %6722 = vst [vmem:[%s261 + $0x5d] sm:$0xf8] %v6698
        %6723 = vst [vmem:[%s261 + $0x65] sm:$0xff] %v6699
        %6724 = vst [vmem:[%s261 + $0x6d] sm:$0x7] %v6700
        %6725 = vst [vmem:[%s261 + $0x6d] sm:$0xf8] %v6701
        %6726 = vst [vmem:[%s261 + $0x75] sm:$0xff] %v6702
        %6727 = vst [vmem:[%s261 + $0x7d] sm:$0x7] %v6703
        %s6728 = sadd.s32 24, %s368
        %s6729 = smul.addr %s6728, 4
        %s6730 = scalar_lea.vmem [#allocation2], %s6729
        %v6731 = vld [vmem:[%s6730] sm:$0xf]
        %v6732 = vld [vmem:[%s6730 + $0x4] sm:$0xf]
        %v6733 = vld [vmem:[%s6730 + $0x8] sm:$0xf]
        %v6734 = vld [vmem:[%s6730 + $0xc] sm:$0xf]
        %v6735 = vld [vmem:[%s6730 + $0x10] sm:$0xf]
        %v6736 = vld [vmem:[%s6730 + $0x14] sm:$0xf]
        %v6737 = vld [vmem:[%s6730 + $0x18] sm:$0xf]
        %v6738 = vld [vmem:[%s6730 + $0x1c] sm:$0xf]
        %v6739 = vld [vmem:[%s6730 + $0x20] sm:$0xf]
        %v6740 = vld [vmem:[%s6730 + $0x24] sm:$0xf]
        %v6741 = vld [vmem:[%s6730 + $0x28] sm:$0xf]
        %v6742 = vld [vmem:[%s6730 + $0x2c] sm:$0xf]
        %v6743 = vld [vmem:[%s6730 + $0x30] sm:$0xf]
        %v6744 = vld [vmem:[%s6730 + $0x34] sm:$0xf]
        %v6745 = vld [vmem:[%s6730 + $0x38] sm:$0xf]
        %v6746 = vld [vmem:[%s6730 + $0x3c] sm:$0xf]
        %v6747 = vld [vmem:[%s6730 + $0x40] sm:$0xf]
        %v6748 = vld [vmem:[%s6730 + $0x44] sm:$0xf]
        %v6749 = vld [vmem:[%s6730 + $0x48] sm:$0xf]
        %v6750 = vld [vmem:[%s6730 + $0x4c] sm:$0xf]
        %v6751 = vld [vmem:[%s6730 + $0x50] sm:$0xf]
        %v6752 = vld [vmem:[%s6730 + $0x54] sm:$0xf]
        %v6753 = vld [vmem:[%s6730 + $0x58] sm:$0xf]
        %v6754 = vld [vmem:[%s6730 + $0x5c] sm:$0xf]
        %v6755 = vld [vmem:[%s6730 + $0x60] sm:$0xf]
        %v6756 = vld [vmem:[%s6730 + $0x64] sm:$0xf]
        %v6757 = vld [vmem:[%s6730 + $0x68] sm:$0xf]
        %v6758 = vld [vmem:[%s6730 + $0x6c] sm:$0xf]
        %v6759 = vld [vmem:[%s6730 + $0x70] sm:$0xf]
        %v6760 = vld [vmem:[%s6730 + $0x74] sm:$0xf]
        %v6761 = vld [vmem:[%s6730 + $0x78] sm:$0xf]
        %v6762 = vld [vmem:[%s6730 + $0x7c] sm:$0xf]
        %v6763 = vld [vmem:[%s6730 + $0x80] sm:$0xf]
        %v6764 = vld [vmem:[%s6730 + $0x84] sm:$0xf]
        %v6765 = vld [vmem:[%s6730 + $0x88] sm:$0xf]
        %v6766 = vld [vmem:[%s6730 + $0x8c] sm:$0xf]
        %v6767 = vld [vmem:[%s6730 + $0x90] sm:$0xf]
        %v6768 = vld [vmem:[%s6730 + $0x94] sm:$0xf]
        %v6769 = vld [vmem:[%s6730 + $0x98] sm:$0xf]
        %v6770 = vld [vmem:[%s6730 + $0x9c] sm:$0xf]
        %v6771 = vld [vmem:[%s6730 + $0xa0] sm:$0xf]
        %v6772 = vld [vmem:[%s6730 + $0xa4] sm:$0xf]
        %v6773 = vunpack.c.l.bf16 %v6731
        %v6774 = vunpack.c.l.bf16 %v6732
        %v6775 = vunpack.c.l.bf16 %v6733
        %v6776 = vunpack.c.l.bf16 %v6734
        %v6777 = vunpack.c.l.bf16 %v6735
        %v6778 = vunpack.c.l.bf16 %v6736
        %v6779 = vunpack.c.l.bf16 %v6737
        %v6780 = vunpack.c.l.bf16 %v6738
        %v6781 = vunpack.c.l.bf16 %v6739
        %v6782 = vunpack.c.l.bf16 %v6740
        %v6783 = vunpack.c.l.bf16 %v6741
        %v6784 = vunpack.c.l.bf16 %v6742
        %v6785 = vunpack.c.l.bf16 %v6743
        %v6786 = vunpack.c.l.bf16 %v6744
        %v6787 = vunpack.c.l.bf16 %v6745
        %v6788 = vunpack.c.l.bf16 %v6746
        %v6789 = vunpack.c.l.bf16 %v6747
        %v6790 = vunpack.c.l.bf16 %v6748
        %v6791 = vunpack.c.l.bf16 %v6749
        %v6792 = vunpack.c.l.bf16 %v6750
        %v6793 = vunpack.c.l.bf16 %v6751
        %v6794 = vunpack.c.l.bf16 %v6752
        %v6795 = vunpack.c.l.bf16 %v6753
        %v6796 = vunpack.c.l.bf16 %v6754
        %v6797 = vmul.f32 %v6773, %v440
        %v6798 = vmul.f32 %v6774, %v440
        %v6799 = vmul.f32 %v6776, %v440
        %v6800 = vmul.f32 %v6777, %v440
        %v6801 = vmul.f32 %v6779, %v440
        %v6802 = vmul.f32 %v6780, %v440
        %v6803 = vmul.f32 %v6782, %v440
        %v6804 = vmul.f32 %v6783, %v440
        %v6805 = vmul.f32 %v6785, %v440
        %v6806 = vmul.f32 %v6786, %v440
        %v6807 = vmul.f32 %v6788, %v440
        %v6808 = vmul.f32 %v6789, %v440
        %v6809 = vmul.f32 %v6791, %v440
        %v6810 = vmul.f32 %v6792, %v440
        %v6811 = vmul.f32 %v6794, %v440
        %v6812 = vmul.f32 %v6795, %v440
        %v6813 = vadd.f32 %v6797, 0.0
        %v6814 = vadd.f32 %v6798, 0.0
        %v6815 = vadd.f32 %v6799, 0.0
        %v6816 = vadd.f32 %v6800, 0.0
        %v6817 = vadd.f32 %v6801, 0.0
        %v6818 = vadd.f32 %v6802, 0.0
        %v6819 = vadd.f32 %v6803, 0.0
        %v6820 = vadd.f32 %v6804, 0.0
        %v6821 = vadd.f32 %v6805, 0.0
        %v6822 = vadd.f32 %v6806, 0.0
        %v6823 = vadd.f32 %v6807, 0.0
        %v6824 = vadd.f32 %v6808, 0.0
        %v6825 = vadd.f32 %v6809, 0.0
        %v6826 = vadd.f32 %v6810, 0.0
        %v6827 = vadd.f32 %v6811, 0.0
        %v6828 = vadd.f32 %v6812, 0.0
        %v6829 = vmul.f32 %v6773, %v476
        %v6830 = vmul.f32 %v6774, %v476
        %v6831 = vmul.f32 %v6775, %v476
        %v6832 = vmul.f32 %v6776, %v476
        %v6833 = vmul.f32 %v6777, %v476
        %v6834 = vmul.f32 %v6778, %v476
        %v6835 = vmul.f32 %v6779, %v476
        %v6836 = vmul.f32 %v6780, %v476
        %v6837 = vmul.f32 %v6781, %v476
        %v6838 = vmul.f32 %v6782, %v476
        %v6839 = vmul.f32 %v6783, %v476
        %v6840 = vmul.f32 %v6784, %v476
        %v6841 = vmul.f32 %v6785, %v476
        %v6842 = vmul.f32 %v6786, %v476
        %v6843 = vmul.f32 %v6787, %v476
        %v6844 = vmul.f32 %v6788, %v476
        %v6845 = vmul.f32 %v6789, %v476
        %v6846 = vmul.f32 %v6790, %v476
        %v6847 = vmul.f32 %v6791, %v476
        %v6848 = vmul.f32 %v6792, %v476
        %v6849 = vmul.f32 %v6793, %v476
        %v6850 = vmul.f32 %v6794, %v476
        %v6851 = vmul.f32 %v6795, %v476
        %v6852 = vmul.f32 %v6796, %v476
        %v6853 = vadd.f32 %v6829, 0.0
        %v6854 = vadd.f32 %v6830, 0.0
        %v6855 = vadd.f32 %v6831, 0.0
        %v6856 = vadd.f32 %v6832, 0.0
        %v6857 = vadd.f32 %v6833, 0.0
        %v6858 = vadd.f32 %v6834, 0.0
        %v6859 = vadd.f32 %v6835, 0.0
        %v6860 = vadd.f32 %v6836, 0.0
        %v6861 = vadd.f32 %v6837, 0.0
        %v6862 = vadd.f32 %v6838, 0.0
        %v6863 = vadd.f32 %v6839, 0.0
        %v6864 = vadd.f32 %v6840, 0.0
        %v6865 = vadd.f32 %v6841, 0.0
        %v6866 = vadd.f32 %v6842, 0.0
        %v6867 = vadd.f32 %v6843, 0.0
        %v6868 = vadd.f32 %v6844, 0.0
        %v6869 = vadd.f32 %v6845, 0.0
        %v6870 = vadd.f32 %v6846, 0.0
        %v6871 = vadd.f32 %v6847, 0.0
        %v6872 = vadd.f32 %v6848, 0.0
        %v6873 = vadd.f32 %v6849, 0.0
        %v6874 = vadd.f32 %v6850, 0.0
        %v6875 = vadd.f32 %v6851, 0.0
        %v6876 = vadd.f32 %v6852, 0.0
        %v6877 = vmul.f32 %v6773, %v528
        %v6878 = vmul.f32 %v6774, %v528
        %v6879 = vmul.f32 %v6775, %v528
        %v6880 = vmul.f32 %v6776, %v528
        %v6881 = vmul.f32 %v6777, %v528
        %v6882 = vmul.f32 %v6778, %v528
        %v6883 = vmul.f32 %v6779, %v528
        %v6884 = vmul.f32 %v6780, %v528
        %v6885 = vmul.f32 %v6781, %v528
        %v6886 = vmul.f32 %v6782, %v528
        %v6887 = vmul.f32 %v6783, %v528
        %v6888 = vmul.f32 %v6784, %v528
        %v6889 = vmul.f32 %v6785, %v528
        %v6890 = vmul.f32 %v6786, %v528
        %v6891 = vmul.f32 %v6787, %v528
        %v6892 = vmul.f32 %v6788, %v528
        %v6893 = vmul.f32 %v6789, %v528
        %v6894 = vmul.f32 %v6790, %v528
        %v6895 = vmul.f32 %v6791, %v528
        %v6896 = vmul.f32 %v6792, %v528
        %v6897 = vmul.f32 %v6793, %v528
        %v6898 = vmul.f32 %v6794, %v528
        %v6899 = vmul.f32 %v6795, %v528
        %v6900 = vmul.f32 %v6796, %v528
        %v6925 = vrot.slane %v6877, 2
        %v6926 = vrot.slane %v6878, 2
        %v6927 = vsel %vm577, %v6925, %v6926
        %v6928 = vrot.slane %v6879, 2
        %v6929 = vsel %vm577, %v6926, %v6928
        %v6930 = vrot.slane %v6880, 2
        %v6931 = vrot.slane %v6881, 2
        %v6932 = vsel %vm577, %v6930, %v6931
        %v6933 = vrot.slane %v6882, 2
        %v6934 = vsel %vm577, %v6931, %v6933
        %v6935 = vrot.slane %v6883, 2
        %v6936 = vrot.slane %v6884, 2
        %v6937 = vsel %vm577, %v6935, %v6936
        %v6938 = vrot.slane %v6885, 2
        %v6939 = vsel %vm577, %v6936, %v6938
        %v6940 = vrot.slane %v6886, 2
        %v6941 = vrot.slane %v6887, 2
        %v6942 = vsel %vm577, %v6940, %v6941
        %v6943 = vrot.slane %v6888, 2
        %v6944 = vsel %vm577, %v6941, %v6943
        %v6945 = vrot.slane %v6889, 2
        %v6946 = vrot.slane %v6890, 2
        %v6947 = vsel %vm577, %v6945, %v6946
        %v6948 = vrot.slane %v6891, 2
        %v6949 = vsel %vm577, %v6946, %v6948
        %v6950 = vrot.slane %v6892, 2
        %v6951 = vrot.slane %v6893, 2
        %v6952 = vsel %vm577, %v6950, %v6951
        %v6953 = vrot.slane %v6894, 2
        %v6954 = vsel %vm577, %v6951, %v6953
        %v6955 = vrot.slane %v6895, 2
        %v6956 = vrot.slane %v6896, 2
        %v6957 = vsel %vm577, %v6955, %v6956
        %v6958 = vrot.slane %v6897, 2
        %v6959 = vsel %vm577, %v6956, %v6958
        %v6960 = vrot.slane %v6898, 2
        %v6961 = vrot.slane %v6899, 2
        %v6962 = vsel %vm577, %v6960, %v6961
        %v6963 = vrot.slane %v6900, 2
        %v6964 = vsel %vm577, %v6961, %v6963
        %v6981 = vadd.f32 %v6813, %v6927
        %v6982 = vadd.f32 %v6814, %v6929
        %v6983 = vadd.f32 %v6815, %v6932
        %v6984 = vadd.f32 %v6816, %v6934
        %v6985 = vadd.f32 %v6817, %v6937
        %v6986 = vadd.f32 %v6818, %v6939
        %v6987 = vadd.f32 %v6819, %v6942
        %v6988 = vadd.f32 %v6820, %v6944
        %v6989 = vadd.f32 %v6821, %v6947
        %v6990 = vadd.f32 %v6822, %v6949
        %v6991 = vadd.f32 %v6823, %v6952
        %v6992 = vadd.f32 %v6824, %v6954
        %v6993 = vadd.f32 %v6825, %v6957
        %v6994 = vadd.f32 %v6826, %v6959
        %v6995 = vadd.f32 %v6827, %v6962
        %v6996 = vadd.f32 %v6828, %v6964
        %v6997 = vmul.f32 %v6773, %v653
        %v6998 = vmul.f32 %v6774, %v653
        %v6999 = vmul.f32 %v6775, %v653
        %v7000 = vmul.f32 %v6776, %v653
        %v7001 = vmul.f32 %v6777, %v653
        %v7002 = vmul.f32 %v6778, %v653
        %v7003 = vmul.f32 %v6779, %v653
        %v7004 = vmul.f32 %v6780, %v653
        %v7005 = vmul.f32 %v6781, %v653
        %v7006 = vmul.f32 %v6782, %v653
        %v7007 = vmul.f32 %v6783, %v653
        %v7008 = vmul.f32 %v6784, %v653
        %v7009 = vmul.f32 %v6785, %v653
        %v7010 = vmul.f32 %v6786, %v653
        %v7011 = vmul.f32 %v6787, %v653
        %v7012 = vmul.f32 %v6788, %v653
        %v7013 = vmul.f32 %v6789, %v653
        %v7014 = vmul.f32 %v6790, %v653
        %v7015 = vmul.f32 %v6791, %v653
        %v7016 = vmul.f32 %v6792, %v653
        %v7017 = vmul.f32 %v6793, %v653
        %v7018 = vmul.f32 %v6794, %v653
        %v7019 = vmul.f32 %v6795, %v653
        %v7020 = vmul.f32 %v6796, %v653
        %v7045 = vrot.slane %v6997, 2
        %v7046 = vrot.slane %v6998, 2
        %v7047 = vsel %vm577, %v7045, %v7046
        %v7048 = vrot.slane %v6999, 2
        %v7049 = vsel %vm577, %v7046, %v7048
        %v7050 = vrot.slane %v7000, 2
        %v7051 = vrot.slane %v7001, 2
        %v7052 = vsel %vm577, %v7050, %v7051
        %v7053 = vrot.slane %v7002, 2
        %v7054 = vsel %vm577, %v7051, %v7053
        %v7055 = vrot.slane %v7003, 2
        %v7056 = vrot.slane %v7004, 2
        %v7057 = vsel %vm577, %v7055, %v7056
        %v7058 = vrot.slane %v7005, 2
        %v7059 = vsel %vm577, %v7056, %v7058
        %v7060 = vrot.slane %v7006, 2
        %v7061 = vrot.slane %v7007, 2
        %v7062 = vsel %vm577, %v7060, %v7061
        %v7063 = vrot.slane %v7008, 2
        %v7064 = vsel %vm577, %v7061, %v7063
        %v7065 = vrot.slane %v7009, 2
        %v7066 = vrot.slane %v7010, 2
        %v7067 = vsel %vm577, %v7065, %v7066
        %v7068 = vrot.slane %v7011, 2
        %v7069 = vsel %vm577, %v7066, %v7068
        %v7070 = vrot.slane %v7012, 2
        %v7071 = vrot.slane %v7013, 2
        %v7072 = vsel %vm577, %v7070, %v7071
        %v7073 = vrot.slane %v7014, 2
        %v7074 = vsel %vm577, %v7071, %v7073
        %v7075 = vrot.slane %v7015, 2
        %v7076 = vrot.slane %v7016, 2
        %v7077 = vsel %vm577, %v7075, %v7076
        %v7078 = vrot.slane %v7017, 2
        %v7079 = vsel %vm577, %v7076, %v7078
        %v7080 = vrot.slane %v7018, 2
        %v7081 = vrot.slane %v7019, 2
        %v7082 = vsel %vm577, %v7080, %v7081
        %v7083 = vrot.slane %v7020, 2
        %v7084 = vsel %vm577, %v7081, %v7083
        %v7109 = vadd.f32 %v6853, %v7047
        %v7110 = vadd.f32 %v6854, %v7049
        %v7111 = vadd.f32 %v6855, %v7048
        %v7112 = vadd.f32 %v6856, %v7052
        %v7113 = vadd.f32 %v6857, %v7054
        %v7114 = vadd.f32 %v6858, %v7053
        %v7115 = vadd.f32 %v6859, %v7057
        %v7116 = vadd.f32 %v6860, %v7059
        %v7117 = vadd.f32 %v6861, %v7058
        %v7118 = vadd.f32 %v6862, %v7062
        %v7119 = vadd.f32 %v6863, %v7064
        %v7120 = vadd.f32 %v6864, %v7063
        %v7121 = vadd.f32 %v6865, %v7067
        %v7122 = vadd.f32 %v6866, %v7069
        %v7123 = vadd.f32 %v6867, %v7068
        %v7124 = vadd.f32 %v6868, %v7072
        %v7125 = vadd.f32 %v6869, %v7074
        %v7126 = vadd.f32 %v6870, %v7073
        %v7127 = vadd.f32 %v6871, %v7077
        %v7128 = vadd.f32 %v6872, %v7079
        %v7129 = vadd.f32 %v6873, %v7078
        %v7130 = vadd.f32 %v6874, %v7082
        %v7131 = vadd.f32 %v6875, %v7084
        %v7132 = vadd.f32 %v6876, %v7083
        %v7133 = vmul.f32 %v6773, %v793
        %v7134 = vmul.f32 %v6774, %v793
        %v7135 = vmul.f32 %v6775, %v793
        %v7136 = vmul.f32 %v6776, %v793
        %v7137 = vmul.f32 %v6777, %v793
        %v7138 = vmul.f32 %v6778, %v793
        %v7139 = vmul.f32 %v6779, %v793
        %v7140 = vmul.f32 %v6780, %v793
        %v7141 = vmul.f32 %v6781, %v793
        %v7142 = vmul.f32 %v6782, %v793
        %v7143 = vmul.f32 %v6783, %v793
        %v7144 = vmul.f32 %v6784, %v793
        %v7145 = vmul.f32 %v6785, %v793
        %v7146 = vmul.f32 %v6786, %v793
        %v7147 = vmul.f32 %v6787, %v793
        %v7148 = vmul.f32 %v6788, %v793
        %v7149 = vmul.f32 %v6789, %v793
        %v7150 = vmul.f32 %v6790, %v793
        %v7151 = vmul.f32 %v6791, %v793
        %v7152 = vmul.f32 %v6792, %v793
        %v7153 = vmul.f32 %v6793, %v793
        %v7154 = vmul.f32 %v6794, %v793
        %v7155 = vmul.f32 %v6795, %v793
        %v7156 = vmul.f32 %v6796, %v793
        %v7181 = vrot.slane %v7133, 4
        %v7182 = vrot.slane %v7134, 4
        %v7183 = vsel %vm842, %v7181, %v7182
        %v7184 = vrot.slane %v7135, 4
        %v7185 = vsel %vm842, %v7182, %v7184
        %v7186 = vrot.slane %v7136, 4
        %v7187 = vrot.slane %v7137, 4
        %v7188 = vsel %vm842, %v7186, %v7187
        %v7189 = vrot.slane %v7138, 4
        %v7190 = vsel %vm842, %v7187, %v7189
        %v7191 = vrot.slane %v7139, 4
        %v7192 = vrot.slane %v7140, 4
        %v7193 = vsel %vm842, %v7191, %v7192
        %v7194 = vrot.slane %v7141, 4
        %v7195 = vsel %vm842, %v7192, %v7194
        %v7196 = vrot.slane %v7142, 4
        %v7197 = vrot.slane %v7143, 4
        %v7198 = vsel %vm842, %v7196, %v7197
        %v7199 = vrot.slane %v7144, 4
        %v7200 = vsel %vm842, %v7197, %v7199
        %v7201 = vrot.slane %v7145, 4
        %v7202 = vrot.slane %v7146, 4
        %v7203 = vsel %vm842, %v7201, %v7202
        %v7204 = vrot.slane %v7147, 4
        %v7205 = vsel %vm842, %v7202, %v7204
        %v7206 = vrot.slane %v7148, 4
        %v7207 = vrot.slane %v7149, 4
        %v7208 = vsel %vm842, %v7206, %v7207
        %v7209 = vrot.slane %v7150, 4
        %v7210 = vsel %vm842, %v7207, %v7209
        %v7211 = vrot.slane %v7151, 4
        %v7212 = vrot.slane %v7152, 4
        %v7213 = vsel %vm842, %v7211, %v7212
        %v7214 = vrot.slane %v7153, 4
        %v7215 = vsel %vm842, %v7212, %v7214
        %v7216 = vrot.slane %v7154, 4
        %v7217 = vrot.slane %v7155, 4
        %v7218 = vsel %vm842, %v7216, %v7217
        %v7219 = vrot.slane %v7156, 4
        %v7220 = vsel %vm842, %v7217, %v7219
        %v7237 = vadd.f32 %v6981, %v7183
        %v7238 = vadd.f32 %v6982, %v7185
        %v7239 = vadd.f32 %v6983, %v7188
        %v7240 = vadd.f32 %v6984, %v7190
        %v7241 = vadd.f32 %v6985, %v7193
        %v7242 = vadd.f32 %v6986, %v7195
        %v7243 = vadd.f32 %v6987, %v7198
        %v7244 = vadd.f32 %v6988, %v7200
        %v7245 = vadd.f32 %v6989, %v7203
        %v7246 = vadd.f32 %v6990, %v7205
        %v7247 = vadd.f32 %v6991, %v7208
        %v7248 = vadd.f32 %v6992, %v7210
        %v7249 = vadd.f32 %v6993, %v7213
        %v7250 = vadd.f32 %v6994, %v7215
        %v7251 = vadd.f32 %v6995, %v7218
        %v7252 = vadd.f32 %v6996, %v7220
        %v7253 = vmul.f32 %v6773, %v918
        %v7254 = vmul.f32 %v6774, %v918
        %v7255 = vmul.f32 %v6775, %v918
        %v7256 = vmul.f32 %v6776, %v918
        %v7257 = vmul.f32 %v6777, %v918
        %v7258 = vmul.f32 %v6778, %v918
        %v7259 = vmul.f32 %v6779, %v918
        %v7260 = vmul.f32 %v6780, %v918
        %v7261 = vmul.f32 %v6781, %v918
        %v7262 = vmul.f32 %v6782, %v918
        %v7263 = vmul.f32 %v6783, %v918
        %v7264 = vmul.f32 %v6784, %v918
        %v7265 = vmul.f32 %v6785, %v918
        %v7266 = vmul.f32 %v6786, %v918
        %v7267 = vmul.f32 %v6787, %v918
        %v7268 = vmul.f32 %v6788, %v918
        %v7269 = vmul.f32 %v6789, %v918
        %v7270 = vmul.f32 %v6790, %v918
        %v7271 = vmul.f32 %v6791, %v918
        %v7272 = vmul.f32 %v6792, %v918
        %v7273 = vmul.f32 %v6793, %v918
        %v7274 = vmul.f32 %v6794, %v918
        %v7275 = vmul.f32 %v6795, %v918
        %v7276 = vmul.f32 %v6796, %v918
        %v7301 = vrot.slane %v7253, 4
        %v7302 = vrot.slane %v7254, 4
        %v7303 = vsel %vm842, %v7301, %v7302
        %v7304 = vrot.slane %v7255, 4
        %v7305 = vsel %vm842, %v7302, %v7304
        %v7306 = vrot.slane %v7256, 4
        %v7307 = vrot.slane %v7257, 4
        %v7308 = vsel %vm842, %v7306, %v7307
        %v7309 = vrot.slane %v7258, 4
        %v7310 = vsel %vm842, %v7307, %v7309
        %v7311 = vrot.slane %v7259, 4
        %v7312 = vrot.slane %v7260, 4
        %v7313 = vsel %vm842, %v7311, %v7312
        %v7314 = vrot.slane %v7261, 4
        %v7315 = vsel %vm842, %v7312, %v7314
        %v7316 = vrot.slane %v7262, 4
        %v7317 = vrot.slane %v7263, 4
        %v7318 = vsel %vm842, %v7316, %v7317
        %v7319 = vrot.slane %v7264, 4
        %v7320 = vsel %vm842, %v7317, %v7319
        %v7321 = vrot.slane %v7265, 4
        %v7322 = vrot.slane %v7266, 4
        %v7323 = vsel %vm842, %v7321, %v7322
        %v7324 = vrot.slane %v7267, 4
        %v7325 = vsel %vm842, %v7322, %v7324
        %v7326 = vrot.slane %v7268, 4
        %v7327 = vrot.slane %v7269, 4
        %v7328 = vsel %vm842, %v7326, %v7327
        %v7329 = vrot.slane %v7270, 4
        %v7330 = vsel %vm842, %v7327, %v7329
        %v7331 = vrot.slane %v7271, 4
        %v7332 = vrot.slane %v7272, 4
        %v7333 = vsel %vm842, %v7331, %v7332
        %v7334 = vrot.slane %v7273, 4
        %v7335 = vsel %vm842, %v7332, %v7334
        %v7336 = vrot.slane %v7274, 4
        %v7337 = vrot.slane %v7275, 4
        %v7338 = vsel %vm842, %v7336, %v7337
        %v7339 = vrot.slane %v7276, 4
        %v7340 = vsel %vm842, %v7337, %v7339
        %v7365 = vadd.f32 %v7109, %v7303
        %v7366 = vadd.f32 %v7110, %v7305
        %v7367 = vadd.f32 %v7111, %v7304
        %v7368 = vadd.f32 %v7112, %v7308
        %v7369 = vadd.f32 %v7113, %v7310
        %v7370 = vadd.f32 %v7114, %v7309
        %v7371 = vadd.f32 %v7115, %v7313
        %v7372 = vadd.f32 %v7116, %v7315
        %v7373 = vadd.f32 %v7117, %v7314
        %v7374 = vadd.f32 %v7118, %v7318
        %v7375 = vadd.f32 %v7119, %v7320
        %v7376 = vadd.f32 %v7120, %v7319
        %v7377 = vadd.f32 %v7121, %v7323
        %v7378 = vadd.f32 %v7122, %v7325
        %v7379 = vadd.f32 %v7123, %v7324
        %v7380 = vadd.f32 %v7124, %v7328
        %v7381 = vadd.f32 %v7125, %v7330
        %v7382 = vadd.f32 %v7126, %v7329
        %v7383 = vadd.f32 %v7127, %v7333
        %v7384 = vadd.f32 %v7128, %v7335
        %v7385 = vadd.f32 %v7129, %v7334
        %v7386 = vadd.f32 %v7130, %v7338
        %v7387 = vadd.f32 %v7131, %v7340
        %v7388 = vadd.f32 %v7132, %v7339
        %v7389 = vmul.f32 %v6773, %v1058
        %v7390 = vmul.f32 %v6774, %v1058
        %v7391 = vmul.f32 %v6775, %v1058
        %v7392 = vmul.f32 %v6776, %v1058
        %v7393 = vmul.f32 %v6777, %v1058
        %v7394 = vmul.f32 %v6778, %v1058
        %v7395 = vmul.f32 %v6779, %v1058
        %v7396 = vmul.f32 %v6780, %v1058
        %v7397 = vmul.f32 %v6781, %v1058
        %v7398 = vmul.f32 %v6782, %v1058
        %v7399 = vmul.f32 %v6783, %v1058
        %v7400 = vmul.f32 %v6784, %v1058
        %v7401 = vmul.f32 %v6785, %v1058
        %v7402 = vmul.f32 %v6786, %v1058
        %v7403 = vmul.f32 %v6787, %v1058
        %v7404 = vmul.f32 %v6788, %v1058
        %v7405 = vmul.f32 %v6789, %v1058
        %v7406 = vmul.f32 %v6790, %v1058
        %v7407 = vmul.f32 %v6791, %v1058
        %v7408 = vmul.f32 %v6792, %v1058
        %v7409 = vmul.f32 %v6793, %v1058
        %v7410 = vmul.f32 %v6794, %v1058
        %v7411 = vmul.f32 %v6795, %v1058
        %v7412 = vmul.f32 %v6796, %v1058
        %v7437 = vrot.slane %v7389, 6
        %v7438 = vrot.slane %v7390, 6
        %v7439 = vsel %vm1107, %v7437, %v7438
        %v7440 = vrot.slane %v7391, 6
        %v7441 = vsel %vm1107, %v7438, %v7440
        %v7442 = vrot.slane %v7392, 6
        %v7443 = vrot.slane %v7393, 6
        %v7444 = vsel %vm1107, %v7442, %v7443
        %v7445 = vrot.slane %v7394, 6
        %v7446 = vsel %vm1107, %v7443, %v7445
        %v7447 = vrot.slane %v7395, 6
        %v7448 = vrot.slane %v7396, 6
        %v7449 = vsel %vm1107, %v7447, %v7448
        %v7450 = vrot.slane %v7397, 6
        %v7451 = vsel %vm1107, %v7448, %v7450
        %v7452 = vrot.slane %v7398, 6
        %v7453 = vrot.slane %v7399, 6
        %v7454 = vsel %vm1107, %v7452, %v7453
        %v7455 = vrot.slane %v7400, 6
        %v7456 = vsel %vm1107, %v7453, %v7455
        %v7457 = vrot.slane %v7401, 6
        %v7458 = vrot.slane %v7402, 6
        %v7459 = vsel %vm1107, %v7457, %v7458
        %v7460 = vrot.slane %v7403, 6
        %v7461 = vsel %vm1107, %v7458, %v7460
        %v7462 = vrot.slane %v7404, 6
        %v7463 = vrot.slane %v7405, 6
        %v7464 = vsel %vm1107, %v7462, %v7463
        %v7465 = vrot.slane %v7406, 6
        %v7466 = vsel %vm1107, %v7463, %v7465
        %v7467 = vrot.slane %v7407, 6
        %v7468 = vrot.slane %v7408, 6
        %v7469 = vsel %vm1107, %v7467, %v7468
        %v7470 = vrot.slane %v7409, 6
        %v7471 = vsel %vm1107, %v7468, %v7470
        %v7472 = vrot.slane %v7410, 6
        %v7473 = vrot.slane %v7411, 6
        %v7474 = vsel %vm1107, %v7472, %v7473
        %v7475 = vrot.slane %v7412, 6
        %v7476 = vsel %vm1107, %v7473, %v7475
        %v7493 = vadd.f32 %v7237, %v7439
        %v7494 = vadd.f32 %v7238, %v7441
        %v7495 = vadd.f32 %v7239, %v7444
        %v7496 = vadd.f32 %v7240, %v7446
        %v7497 = vadd.f32 %v7241, %v7449
        %v7498 = vadd.f32 %v7242, %v7451
        %v7499 = vadd.f32 %v7243, %v7454
        %v7500 = vadd.f32 %v7244, %v7456
        %v7501 = vadd.f32 %v7245, %v7459
        %v7502 = vadd.f32 %v7246, %v7461
        %v7503 = vadd.f32 %v7247, %v7464
        %v7504 = vadd.f32 %v7248, %v7466
        %v7505 = vadd.f32 %v7249, %v7469
        %v7506 = vadd.f32 %v7250, %v7471
        %v7507 = vadd.f32 %v7251, %v7474
        %v7508 = vadd.f32 %v7252, %v7476
        %v7509 = vunpack.c.l.bf16 %v6755
        %v7510 = vunpack.c.l.bf16 %v6756
        %v7511 = vunpack.c.l.bf16 %v6757
        %v7512 = vmul.f32 %v6776, %v1186
        %v7513 = vmul.f32 %v6777, %v1186
        %v7514 = vmul.f32 %v6779, %v1186
        %v7515 = vmul.f32 %v6780, %v1186
        %v7516 = vmul.f32 %v6782, %v1186
        %v7517 = vmul.f32 %v6783, %v1186
        %v7518 = vmul.f32 %v6785, %v1186
        %v7519 = vmul.f32 %v6786, %v1186
        %v7520 = vmul.f32 %v6788, %v1186
        %v7521 = vmul.f32 %v6789, %v1186
        %v7522 = vmul.f32 %v6791, %v1186
        %v7523 = vmul.f32 %v6792, %v1186
        %v7524 = vmul.f32 %v6794, %v1186
        %v7525 = vmul.f32 %v6795, %v1186
        %v7526 = vmul.f32 %v7509, %v1186
        %v7527 = vmul.f32 %v7510, %v1186
        %v7544 = vrot.slane %v7512, 7
        %v7545 = vrot.slane %v7513, 7
        %v7546 = vsel %vm1219, %v7544, %v7545
        %v7547 = vrot.slane %v7514, 7
        %v7548 = vrot.slane %v7515, 7
        %v7549 = vsel %vm1219, %v7547, %v7548
        %v7550 = vrot.slane %v7516, 7
        %v7551 = vrot.slane %v7517, 7
        %v7552 = vsel %vm1219, %v7550, %v7551
        %v7553 = vrot.slane %v7518, 7
        %v7554 = vrot.slane %v7519, 7
        %v7555 = vsel %vm1219, %v7553, %v7554
        %v7556 = vrot.slane %v7520, 7
        %v7557 = vrot.slane %v7521, 7
        %v7558 = vsel %vm1219, %v7556, %v7557
        %v7559 = vrot.slane %v7522, 7
        %v7560 = vrot.slane %v7523, 7
        %v7561 = vsel %vm1219, %v7559, %v7560
        %v7562 = vrot.slane %v7524, 7
        %v7563 = vrot.slane %v7525, 7
        %v7564 = vsel %vm1219, %v7562, %v7563
        %v7565 = vrot.slane %v7526, 7
        %v7566 = vrot.slane %v7527, 7
        %v7567 = vsel %vm1219, %v7565, %v7566
        %v7592 = vadd.f32 %v7365, %v7544
        %v7593 = vadd.f32 %v7366, %v7546
        %v7594 = vadd.f32 %v7367, %v7545
        %v7595 = vadd.f32 %v7368, %v7547
        %v7596 = vadd.f32 %v7369, %v7549
        %v7597 = vadd.f32 %v7370, %v7548
        %v7598 = vadd.f32 %v7371, %v7550
        %v7599 = vadd.f32 %v7372, %v7552
        %v7600 = vadd.f32 %v7373, %v7551
        %v7601 = vadd.f32 %v7374, %v7553
        %v7602 = vadd.f32 %v7375, %v7555
        %v7603 = vadd.f32 %v7376, %v7554
        %v7604 = vadd.f32 %v7377, %v7556
        %v7605 = vadd.f32 %v7378, %v7558
        %v7606 = vadd.f32 %v7379, %v7557
        %v7607 = vadd.f32 %v7380, %v7559
        %v7608 = vadd.f32 %v7381, %v7561
        %v7609 = vadd.f32 %v7382, %v7560
        %v7610 = vadd.f32 %v7383, %v7562
        %v7611 = vadd.f32 %v7384, %v7564
        %v7612 = vadd.f32 %v7385, %v7563
        %v7613 = vadd.f32 %v7386, %v7565
        %v7614 = vadd.f32 %v7387, %v7567
        %v7615 = vadd.f32 %v7388, %v7566
        %v7616 = vmul.f32 %v6776, %v1295
        %v7617 = vmul.f32 %v6777, %v1295
        %v7618 = vmul.f32 %v6778, %v1295
        %v7619 = vmul.f32 %v6779, %v1295
        %v7620 = vmul.f32 %v6780, %v1295
        %v7621 = vmul.f32 %v6781, %v1295
        %v7622 = vmul.f32 %v6782, %v1295
        %v7623 = vmul.f32 %v6783, %v1295
        %v7624 = vmul.f32 %v6784, %v1295
        %v7625 = vmul.f32 %v6785, %v1295
        %v7626 = vmul.f32 %v6786, %v1295
        %v7627 = vmul.f32 %v6787, %v1295
        %v7628 = vmul.f32 %v6788, %v1295
        %v7629 = vmul.f32 %v6789, %v1295
        %v7630 = vmul.f32 %v6790, %v1295
        %v7631 = vmul.f32 %v6791, %v1295
        %v7632 = vmul.f32 %v6792, %v1295
        %v7633 = vmul.f32 %v6793, %v1295
        %v7634 = vmul.f32 %v6794, %v1295
        %v7635 = vmul.f32 %v6795, %v1295
        %v7636 = vmul.f32 %v6796, %v1295
        %v7637 = vmul.f32 %v7509, %v1295
        %v7638 = vmul.f32 %v7510, %v1295
        %v7639 = vmul.f32 %v7511, %v1295
        %v7664 = vrot.slane %v7616, 1
        %v7665 = vrot.slane %v7617, 1
        %v7666 = vsel %vm1344, %v7664, %v7665
        %v7667 = vrot.slane %v7618, 1
        %v7668 = vsel %vm1344, %v7665, %v7667
        %v7669 = vrot.slane %v7619, 1
        %v7670 = vrot.slane %v7620, 1
        %v7671 = vsel %vm1344, %v7669, %v7670
        %v7672 = vrot.slane %v7621, 1
        %v7673 = vsel %vm1344, %v7670, %v7672
        %v7674 = vrot.slane %v7622, 1
        %v7675 = vrot.slane %v7623, 1
        %v7676 = vsel %vm1344, %v7674, %v7675
        %v7677 = vrot.slane %v7624, 1
        %v7678 = vsel %vm1344, %v7675, %v7677
        %v7679 = vrot.slane %v7625, 1
        %v7680 = vrot.slane %v7626, 1
        %v7681 = vsel %vm1344, %v7679, %v7680
        %v7682 = vrot.slane %v7627, 1
        %v7683 = vsel %vm1344, %v7680, %v7682
        %v7684 = vrot.slane %v7628, 1
        %v7685 = vrot.slane %v7629, 1
        %v7686 = vsel %vm1344, %v7684, %v7685
        %v7687 = vrot.slane %v7630, 1
        %v7688 = vsel %vm1344, %v7685, %v7687
        %v7689 = vrot.slane %v7631, 1
        %v7690 = vrot.slane %v7632, 1
        %v7691 = vsel %vm1344, %v7689, %v7690
        %v7692 = vrot.slane %v7633, 1
        %v7693 = vsel %vm1344, %v7690, %v7692
        %v7694 = vrot.slane %v7634, 1
        %v7695 = vrot.slane %v7635, 1
        %v7696 = vsel %vm1344, %v7694, %v7695
        %v7697 = vrot.slane %v7636, 1
        %v7698 = vsel %vm1344, %v7695, %v7697
        %v7699 = vrot.slane %v7637, 1
        %v7700 = vrot.slane %v7638, 1
        %v7701 = vsel %vm1344, %v7699, %v7700
        %v7702 = vrot.slane %v7639, 1
        %v7703 = vsel %vm1344, %v7700, %v7702
        %v7720 = vadd.f32 %v7493, %v7666
        %v7721 = vadd.f32 %v7494, %v7668
        %v7722 = vadd.f32 %v7495, %v7671
        %v7723 = vadd.f32 %v7496, %v7673
        %v7724 = vadd.f32 %v7497, %v7676
        %v7725 = vadd.f32 %v7498, %v7678
        %v7726 = vadd.f32 %v7499, %v7681
        %v7727 = vadd.f32 %v7500, %v7683
        %v7728 = vadd.f32 %v7501, %v7686
        %v7729 = vadd.f32 %v7502, %v7688
        %v7730 = vadd.f32 %v7503, %v7691
        %v7731 = vadd.f32 %v7504, %v7693
        %v7732 = vadd.f32 %v7505, %v7696
        %v7733 = vadd.f32 %v7506, %v7698
        %v7734 = vadd.f32 %v7507, %v7701
        %v7735 = vadd.f32 %v7508, %v7703
        %v7736 = vmul.f32 %v6776, %v1420
        %v7737 = vmul.f32 %v6777, %v1420
        %v7738 = vmul.f32 %v6778, %v1420
        %v7739 = vmul.f32 %v6779, %v1420
        %v7740 = vmul.f32 %v6780, %v1420
        %v7741 = vmul.f32 %v6781, %v1420
        %v7742 = vmul.f32 %v6782, %v1420
        %v7743 = vmul.f32 %v6783, %v1420
        %v7744 = vmul.f32 %v6784, %v1420
        %v7745 = vmul.f32 %v6785, %v1420
        %v7746 = vmul.f32 %v6786, %v1420
        %v7747 = vmul.f32 %v6787, %v1420
        %v7748 = vmul.f32 %v6788, %v1420
        %v7749 = vmul.f32 %v6789, %v1420
        %v7750 = vmul.f32 %v6790, %v1420
        %v7751 = vmul.f32 %v6791, %v1420
        %v7752 = vmul.f32 %v6792, %v1420
        %v7753 = vmul.f32 %v6793, %v1420
        %v7754 = vmul.f32 %v6794, %v1420
        %v7755 = vmul.f32 %v6795, %v1420
        %v7756 = vmul.f32 %v6796, %v1420
        %v7757 = vmul.f32 %v7509, %v1420
        %v7758 = vmul.f32 %v7510, %v1420
        %v7759 = vmul.f32 %v7511, %v1420
        %v7784 = vrot.slane %v7736, 1
        %v7785 = vrot.slane %v7737, 1
        %v7786 = vsel %vm1344, %v7784, %v7785
        %v7787 = vrot.slane %v7738, 1
        %v7788 = vsel %vm1344, %v7785, %v7787
        %v7789 = vrot.slane %v7739, 1
        %v7790 = vrot.slane %v7740, 1
        %v7791 = vsel %vm1344, %v7789, %v7790
        %v7792 = vrot.slane %v7741, 1
        %v7793 = vsel %vm1344, %v7790, %v7792
        %v7794 = vrot.slane %v7742, 1
        %v7795 = vrot.slane %v7743, 1
        %v7796 = vsel %vm1344, %v7794, %v7795
        %v7797 = vrot.slane %v7744, 1
        %v7798 = vsel %vm1344, %v7795, %v7797
        %v7799 = vrot.slane %v7745, 1
        %v7800 = vrot.slane %v7746, 1
        %v7801 = vsel %vm1344, %v7799, %v7800
        %v7802 = vrot.slane %v7747, 1
        %v7803 = vsel %vm1344, %v7800, %v7802
        %v7804 = vrot.slane %v7748, 1
        %v7805 = vrot.slane %v7749, 1
        %v7806 = vsel %vm1344, %v7804, %v7805
        %v7807 = vrot.slane %v7750, 1
        %v7808 = vsel %vm1344, %v7805, %v7807
        %v7809 = vrot.slane %v7751, 1
        %v7810 = vrot.slane %v7752, 1
        %v7811 = vsel %vm1344, %v7809, %v7810
        %v7812 = vrot.slane %v7753, 1
        %v7813 = vsel %vm1344, %v7810, %v7812
        %v7814 = vrot.slane %v7754, 1
        %v7815 = vrot.slane %v7755, 1
        %v7816 = vsel %vm1344, %v7814, %v7815
        %v7817 = vrot.slane %v7756, 1
        %v7818 = vsel %vm1344, %v7815, %v7817
        %v7819 = vrot.slane %v7757, 1
        %v7820 = vrot.slane %v7758, 1
        %v7821 = vsel %vm1344, %v7819, %v7820
        %v7822 = vrot.slane %v7759, 1
        %v7823 = vsel %vm1344, %v7820, %v7822
        %v7848 = vadd.f32 %v7592, %v7786
        %v7849 = vadd.f32 %v7593, %v7788
        %v7850 = vadd.f32 %v7594, %v7787
        %v7851 = vadd.f32 %v7595, %v7791
        %v7852 = vadd.f32 %v7596, %v7793
        %v7853 = vadd.f32 %v7597, %v7792
        %v7854 = vadd.f32 %v7598, %v7796
        %v7855 = vadd.f32 %v7599, %v7798
        %v7856 = vadd.f32 %v7600, %v7797
        %v7857 = vadd.f32 %v7601, %v7801
        %v7858 = vadd.f32 %v7602, %v7803
        %v7859 = vadd.f32 %v7603, %v7802
        %v7860 = vadd.f32 %v7604, %v7806
        %v7861 = vadd.f32 %v7605, %v7808
        %v7862 = vadd.f32 %v7606, %v7807
        %v7863 = vadd.f32 %v7607, %v7811
        %v7864 = vadd.f32 %v7608, %v7813
        %v7865 = vadd.f32 %v7609, %v7812
        %v7866 = vadd.f32 %v7610, %v7816
        %v7867 = vadd.f32 %v7611, %v7818
        %v7868 = vadd.f32 %v7612, %v7817
        %v7869 = vadd.f32 %v7613, %v7821
        %v7870 = vadd.f32 %v7614, %v7823
        %v7871 = vadd.f32 %v7615, %v7822
        %v7872 = vmul.f32 %v6776, %v1560
        %v7873 = vmul.f32 %v6777, %v1560
        %v7874 = vmul.f32 %v6778, %v1560
        %v7875 = vmul.f32 %v6779, %v1560
        %v7876 = vmul.f32 %v6780, %v1560
        %v7877 = vmul.f32 %v6781, %v1560
        %v7878 = vmul.f32 %v6782, %v1560
        %v7879 = vmul.f32 %v6783, %v1560
        %v7880 = vmul.f32 %v6784, %v1560
        %v7881 = vmul.f32 %v6785, %v1560
        %v7882 = vmul.f32 %v6786, %v1560
        %v7883 = vmul.f32 %v6787, %v1560
        %v7884 = vmul.f32 %v6788, %v1560
        %v7885 = vmul.f32 %v6789, %v1560
        %v7886 = vmul.f32 %v6790, %v1560
        %v7887 = vmul.f32 %v6791, %v1560
        %v7888 = vmul.f32 %v6792, %v1560
        %v7889 = vmul.f32 %v6793, %v1560
        %v7890 = vmul.f32 %v6794, %v1560
        %v7891 = vmul.f32 %v6795, %v1560
        %v7892 = vmul.f32 %v6796, %v1560
        %v7893 = vmul.f32 %v7509, %v1560
        %v7894 = vmul.f32 %v7510, %v1560
        %v7895 = vmul.f32 %v7511, %v1560
        %v7920 = vrot.slane %v7872, 3
        %v7921 = vrot.slane %v7873, 3
        %v7922 = vsel %vm1609, %v7920, %v7921
        %v7923 = vrot.slane %v7874, 3
        %v7924 = vsel %vm1609, %v7921, %v7923
        %v7925 = vrot.slane %v7875, 3
        %v7926 = vrot.slane %v7876, 3
        %v7927 = vsel %vm1609, %v7925, %v7926
        %v7928 = vrot.slane %v7877, 3
        %v7929 = vsel %vm1609, %v7926, %v7928
        %v7930 = vrot.slane %v7878, 3
        %v7931 = vrot.slane %v7879, 3
        %v7932 = vsel %vm1609, %v7930, %v7931
        %v7933 = vrot.slane %v7880, 3
        %v7934 = vsel %vm1609, %v7931, %v7933
        %v7935 = vrot.slane %v7881, 3
        %v7936 = vrot.slane %v7882, 3
        %v7937 = vsel %vm1609, %v7935, %v7936
        %v7938 = vrot.slane %v7883, 3
        %v7939 = vsel %vm1609, %v7936, %v7938
        %v7940 = vrot.slane %v7884, 3
        %v7941 = vrot.slane %v7885, 3
        %v7942 = vsel %vm1609, %v7940, %v7941
        %v7943 = vrot.slane %v7886, 3
        %v7944 = vsel %vm1609, %v7941, %v7943
        %v7945 = vrot.slane %v7887, 3
        %v7946 = vrot.slane %v7888, 3
        %v7947 = vsel %vm1609, %v7945, %v7946
        %v7948 = vrot.slane %v7889, 3
        %v7949 = vsel %vm1609, %v7946, %v7948
        %v7950 = vrot.slane %v7890, 3
        %v7951 = vrot.slane %v7891, 3
        %v7952 = vsel %vm1609, %v7950, %v7951
        %v7953 = vrot.slane %v7892, 3
        %v7954 = vsel %vm1609, %v7951, %v7953
        %v7955 = vrot.slane %v7893, 3
        %v7956 = vrot.slane %v7894, 3
        %v7957 = vsel %vm1609, %v7955, %v7956
        %v7958 = vrot.slane %v7895, 3
        %v7959 = vsel %vm1609, %v7956, %v7958
        %v7976 = vadd.f32 %v7720, %v7922
        %v7977 = vadd.f32 %v7721, %v7924
        %v7978 = vadd.f32 %v7722, %v7927
        %v7979 = vadd.f32 %v7723, %v7929
        %v7980 = vadd.f32 %v7724, %v7932
        %v7981 = vadd.f32 %v7725, %v7934
        %v7982 = vadd.f32 %v7726, %v7937
        %v7983 = vadd.f32 %v7727, %v7939
        %v7984 = vadd.f32 %v7728, %v7942
        %v7985 = vadd.f32 %v7729, %v7944
        %v7986 = vadd.f32 %v7730, %v7947
        %v7987 = vadd.f32 %v7731, %v7949
        %v7988 = vadd.f32 %v7732, %v7952
        %v7989 = vadd.f32 %v7733, %v7954
        %v7990 = vadd.f32 %v7734, %v7957
        %v7991 = vadd.f32 %v7735, %v7959
        %v7992 = vmul.f32 %v6776, %v1685
        %v7993 = vmul.f32 %v6777, %v1685
        %v7994 = vmul.f32 %v6778, %v1685
        %v7995 = vmul.f32 %v6779, %v1685
        %v7996 = vmul.f32 %v6780, %v1685
        %v7997 = vmul.f32 %v6781, %v1685
        %v7998 = vmul.f32 %v6782, %v1685
        %v7999 = vmul.f32 %v6783, %v1685
        %v8000 = vmul.f32 %v6784, %v1685
        %v8001 = vmul.f32 %v6785, %v1685
        %v8002 = vmul.f32 %v6786, %v1685
        %v8003 = vmul.f32 %v6787, %v1685
        %v8004 = vmul.f32 %v6788, %v1685
        %v8005 = vmul.f32 %v6789, %v1685
        %v8006 = vmul.f32 %v6790, %v1685
        %v8007 = vmul.f32 %v6791, %v1685
        %v8008 = vmul.f32 %v6792, %v1685
        %v8009 = vmul.f32 %v6793, %v1685
        %v8010 = vmul.f32 %v6794, %v1685
        %v8011 = vmul.f32 %v6795, %v1685
        %v8012 = vmul.f32 %v6796, %v1685
        %v8013 = vmul.f32 %v7509, %v1685
        %v8014 = vmul.f32 %v7510, %v1685
        %v8015 = vmul.f32 %v7511, %v1685
        %v8040 = vrot.slane %v7992, 3
        %v8041 = vrot.slane %v7993, 3
        %v8042 = vsel %vm1609, %v8040, %v8041
        %v8043 = vrot.slane %v7994, 3
        %v8044 = vsel %vm1609, %v8041, %v8043
        %v8045 = vrot.slane %v7995, 3
        %v8046 = vrot.slane %v7996, 3
        %v8047 = vsel %vm1609, %v8045, %v8046
        %v8048 = vrot.slane %v7997, 3
        %v8049 = vsel %vm1609, %v8046, %v8048
        %v8050 = vrot.slane %v7998, 3
        %v8051 = vrot.slane %v7999, 3
        %v8052 = vsel %vm1609, %v8050, %v8051
        %v8053 = vrot.slane %v8000, 3
        %v8054 = vsel %vm1609, %v8051, %v8053
        %v8055 = vrot.slane %v8001, 3
        %v8056 = vrot.slane %v8002, 3
        %v8057 = vsel %vm1609, %v8055, %v8056
        %v8058 = vrot.slane %v8003, 3
        %v8059 = vsel %vm1609, %v8056, %v8058
        %v8060 = vrot.slane %v8004, 3
        %v8061 = vrot.slane %v8005, 3
        %v8062 = vsel %vm1609, %v8060, %v8061
        %v8063 = vrot.slane %v8006, 3
        %v8064 = vsel %vm1609, %v8061, %v8063
        %v8065 = vrot.slane %v8007, 3
        %v8066 = vrot.slane %v8008, 3
        %v8067 = vsel %vm1609, %v8065, %v8066
        %v8068 = vrot.slane %v8009, 3
        %v8069 = vsel %vm1609, %v8066, %v8068
        %v8070 = vrot.slane %v8010, 3
        %v8071 = vrot.slane %v8011, 3
        %v8072 = vsel %vm1609, %v8070, %v8071
        %v8073 = vrot.slane %v8012, 3
        %v8074 = vsel %vm1609, %v8071, %v8073
        %v8075 = vrot.slane %v8013, 3
        %v8076 = vrot.slane %v8014, 3
        %v8077 = vsel %vm1609, %v8075, %v8076
        %v8078 = vrot.slane %v8015, 3
        %v8079 = vsel %vm1609, %v8076, %v8078
        %v8104 = vadd.f32 %v7848, %v8042
        %v8105 = vadd.f32 %v7849, %v8044
        %v8106 = vadd.f32 %v7850, %v8043
        %v8107 = vadd.f32 %v7851, %v8047
        %v8108 = vadd.f32 %v7852, %v8049
        %v8109 = vadd.f32 %v7853, %v8048
        %v8110 = vadd.f32 %v7854, %v8052
        %v8111 = vadd.f32 %v7855, %v8054
        %v8112 = vadd.f32 %v7856, %v8053
        %v8113 = vadd.f32 %v7857, %v8057
        %v8114 = vadd.f32 %v7858, %v8059
        %v8115 = vadd.f32 %v7859, %v8058
        %v8116 = vadd.f32 %v7860, %v8062
        %v8117 = vadd.f32 %v7861, %v8064
        %v8118 = vadd.f32 %v7862, %v8063
        %v8119 = vadd.f32 %v7863, %v8067
        %v8120 = vadd.f32 %v7864, %v8069
        %v8121 = vadd.f32 %v7865, %v8068
        %v8122 = vadd.f32 %v7866, %v8072
        %v8123 = vadd.f32 %v7867, %v8074
        %v8124 = vadd.f32 %v7868, %v8073
        %v8125 = vadd.f32 %v7869, %v8077
        %v8126 = vadd.f32 %v7870, %v8079
        %v8127 = vadd.f32 %v7871, %v8078
        %v8128 = vmul.f32 %v6776, %v1825
        %v8129 = vmul.f32 %v6777, %v1825
        %v8130 = vmul.f32 %v6778, %v1825
        %v8131 = vmul.f32 %v6779, %v1825
        %v8132 = vmul.f32 %v6780, %v1825
        %v8133 = vmul.f32 %v6781, %v1825
        %v8134 = vmul.f32 %v6782, %v1825
        %v8135 = vmul.f32 %v6783, %v1825
        %v8136 = vmul.f32 %v6784, %v1825
        %v8137 = vmul.f32 %v6785, %v1825
        %v8138 = vmul.f32 %v6786, %v1825
        %v8139 = vmul.f32 %v6787, %v1825
        %v8140 = vmul.f32 %v6788, %v1825
        %v8141 = vmul.f32 %v6789, %v1825
        %v8142 = vmul.f32 %v6790, %v1825
        %v8143 = vmul.f32 %v6791, %v1825
        %v8144 = vmul.f32 %v6792, %v1825
        %v8145 = vmul.f32 %v6793, %v1825
        %v8146 = vmul.f32 %v6794, %v1825
        %v8147 = vmul.f32 %v6795, %v1825
        %v8148 = vmul.f32 %v6796, %v1825
        %v8149 = vmul.f32 %v7509, %v1825
        %v8150 = vmul.f32 %v7510, %v1825
        %v8151 = vmul.f32 %v7511, %v1825
        %v8176 = vrot.slane %v8128, 5
        %v8177 = vrot.slane %v8129, 5
        %v8178 = vsel %vm1874, %v8176, %v8177
        %v8179 = vrot.slane %v8130, 5
        %v8180 = vsel %vm1874, %v8177, %v8179
        %v8181 = vrot.slane %v8131, 5
        %v8182 = vrot.slane %v8132, 5
        %v8183 = vsel %vm1874, %v8181, %v8182
        %v8184 = vrot.slane %v8133, 5
        %v8185 = vsel %vm1874, %v8182, %v8184
        %v8186 = vrot.slane %v8134, 5
        %v8187 = vrot.slane %v8135, 5
        %v8188 = vsel %vm1874, %v8186, %v8187
        %v8189 = vrot.slane %v8136, 5
        %v8190 = vsel %vm1874, %v8187, %v8189
        %v8191 = vrot.slane %v8137, 5
        %v8192 = vrot.slane %v8138, 5
        %v8193 = vsel %vm1874, %v8191, %v8192
        %v8194 = vrot.slane %v8139, 5
        %v8195 = vsel %vm1874, %v8192, %v8194
        %v8196 = vrot.slane %v8140, 5
        %v8197 = vrot.slane %v8141, 5
        %v8198 = vsel %vm1874, %v8196, %v8197
        %v8199 = vrot.slane %v8142, 5
        %v8200 = vsel %vm1874, %v8197, %v8199
        %v8201 = vrot.slane %v8143, 5
        %v8202 = vrot.slane %v8144, 5
        %v8203 = vsel %vm1874, %v8201, %v8202
        %v8204 = vrot.slane %v8145, 5
        %v8205 = vsel %vm1874, %v8202, %v8204
        %v8206 = vrot.slane %v8146, 5
        %v8207 = vrot.slane %v8147, 5
        %v8208 = vsel %vm1874, %v8206, %v8207
        %v8209 = vrot.slane %v8148, 5
        %v8210 = vsel %vm1874, %v8207, %v8209
        %v8211 = vrot.slane %v8149, 5
        %v8212 = vrot.slane %v8150, 5
        %v8213 = vsel %vm1874, %v8211, %v8212
        %v8214 = vrot.slane %v8151, 5
        %v8215 = vsel %vm1874, %v8212, %v8214
        %v8232 = vadd.f32 %v7976, %v8178
        %v8233 = vadd.f32 %v7977, %v8180
        %v8234 = vadd.f32 %v7978, %v8183
        %v8235 = vadd.f32 %v7979, %v8185
        %v8236 = vadd.f32 %v7980, %v8188
        %v8237 = vadd.f32 %v7981, %v8190
        %v8238 = vadd.f32 %v7982, %v8193
        %v8239 = vadd.f32 %v7983, %v8195
        %v8240 = vadd.f32 %v7984, %v8198
        %v8241 = vadd.f32 %v7985, %v8200
        %v8242 = vadd.f32 %v7986, %v8203
        %v8243 = vadd.f32 %v7987, %v8205
        %v8244 = vadd.f32 %v7988, %v8208
        %v8245 = vadd.f32 %v7989, %v8210
        %v8246 = vadd.f32 %v7990, %v8213
        %v8247 = vadd.f32 %v7991, %v8215
        %v8248 = vmul.f32 %v6776, %v1950
        %v8249 = vmul.f32 %v6777, %v1950
        %v8250 = vmul.f32 %v6778, %v1950
        %v8251 = vmul.f32 %v6779, %v1950
        %v8252 = vmul.f32 %v6780, %v1950
        %v8253 = vmul.f32 %v6781, %v1950
        %v8254 = vmul.f32 %v6782, %v1950
        %v8255 = vmul.f32 %v6783, %v1950
        %v8256 = vmul.f32 %v6784, %v1950
        %v8257 = vmul.f32 %v6785, %v1950
        %v8258 = vmul.f32 %v6786, %v1950
        %v8259 = vmul.f32 %v6787, %v1950
        %v8260 = vmul.f32 %v6788, %v1950
        %v8261 = vmul.f32 %v6789, %v1950
        %v8262 = vmul.f32 %v6790, %v1950
        %v8263 = vmul.f32 %v6791, %v1950
        %v8264 = vmul.f32 %v6792, %v1950
        %v8265 = vmul.f32 %v6793, %v1950
        %v8266 = vmul.f32 %v6794, %v1950
        %v8267 = vmul.f32 %v6795, %v1950
        %v8268 = vmul.f32 %v6796, %v1950
        %v8269 = vmul.f32 %v7509, %v1950
        %v8270 = vmul.f32 %v7510, %v1950
        %v8271 = vmul.f32 %v7511, %v1950
        %v8296 = vrot.slane %v8248, 5
        %v8297 = vrot.slane %v8249, 5
        %v8298 = vsel %vm1874, %v8296, %v8297
        %v8299 = vrot.slane %v8250, 5
        %v8300 = vsel %vm1874, %v8297, %v8299
        %v8301 = vrot.slane %v8251, 5
        %v8302 = vrot.slane %v8252, 5
        %v8303 = vsel %vm1874, %v8301, %v8302
        %v8304 = vrot.slane %v8253, 5
        %v8305 = vsel %vm1874, %v8302, %v8304
        %v8306 = vrot.slane %v8254, 5
        %v8307 = vrot.slane %v8255, 5
        %v8308 = vsel %vm1874, %v8306, %v8307
        %v8309 = vrot.slane %v8256, 5
        %v8310 = vsel %vm1874, %v8307, %v8309
        %v8311 = vrot.slane %v8257, 5
        %v8312 = vrot.slane %v8258, 5
        %v8313 = vsel %vm1874, %v8311, %v8312
        %v8314 = vrot.slane %v8259, 5
        %v8315 = vsel %vm1874, %v8312, %v8314
        %v8316 = vrot.slane %v8260, 5
        %v8317 = vrot.slane %v8261, 5
        %v8318 = vsel %vm1874, %v8316, %v8317
        %v8319 = vrot.slane %v8262, 5
        %v8320 = vsel %vm1874, %v8317, %v8319
        %v8321 = vrot.slane %v8263, 5
        %v8322 = vrot.slane %v8264, 5
        %v8323 = vsel %vm1874, %v8321, %v8322
        %v8324 = vrot.slane %v8265, 5
        %v8325 = vsel %vm1874, %v8322, %v8324
        %v8326 = vrot.slane %v8266, 5
        %v8327 = vrot.slane %v8267, 5
        %v8328 = vsel %vm1874, %v8326, %v8327
        %v8329 = vrot.slane %v8268, 5
        %v8330 = vsel %vm1874, %v8327, %v8329
        %v8331 = vrot.slane %v8269, 5
        %v8332 = vrot.slane %v8270, 5
        %v8333 = vsel %vm1874, %v8331, %v8332
        %v8334 = vrot.slane %v8271, 5
        %v8335 = vsel %vm1874, %v8332, %v8334
        %v8360 = vadd.f32 %v8104, %v8298
        %v8361 = vadd.f32 %v8105, %v8300
        %v8362 = vadd.f32 %v8106, %v8299
        %v8363 = vadd.f32 %v8107, %v8303
        %v8364 = vadd.f32 %v8108, %v8305
        %v8365 = vadd.f32 %v8109, %v8304
        %v8366 = vadd.f32 %v8110, %v8308
        %v8367 = vadd.f32 %v8111, %v8310
        %v8368 = vadd.f32 %v8112, %v8309
        %v8369 = vadd.f32 %v8113, %v8313
        %v8370 = vadd.f32 %v8114, %v8315
        %v8371 = vadd.f32 %v8115, %v8314
        %v8372 = vadd.f32 %v8116, %v8318
        %v8373 = vadd.f32 %v8117, %v8320
        %v8374 = vadd.f32 %v8118, %v8319
        %v8375 = vadd.f32 %v8119, %v8323
        %v8376 = vadd.f32 %v8120, %v8325
        %v8377 = vadd.f32 %v8121, %v8324
        %v8378 = vadd.f32 %v8122, %v8328
        %v8379 = vadd.f32 %v8123, %v8330
        %v8380 = vadd.f32 %v8124, %v8329
        %v8381 = vadd.f32 %v8125, %v8333
        %v8382 = vadd.f32 %v8126, %v8335
        %v8383 = vadd.f32 %v8127, %v8334
        %v8384 = vunpack.c.l.bf16 %v6758
        %v8385 = vunpack.c.l.bf16 %v6759
        %v8386 = vunpack.c.l.bf16 %v6760
        %v8387 = vmul.f32 %v6779, %v2093
        %v8388 = vmul.f32 %v6780, %v2093
        %v8389 = vmul.f32 %v6782, %v2093
        %v8390 = vmul.f32 %v6783, %v2093
        %v8391 = vmul.f32 %v6785, %v2093
        %v8392 = vmul.f32 %v6786, %v2093
        %v8393 = vmul.f32 %v6788, %v2093
        %v8394 = vmul.f32 %v6789, %v2093
        %v8395 = vmul.f32 %v6791, %v2093
        %v8396 = vmul.f32 %v6792, %v2093
        %v8397 = vmul.f32 %v6794, %v2093
        %v8398 = vmul.f32 %v6795, %v2093
        %v8399 = vmul.f32 %v7509, %v2093
        %v8400 = vmul.f32 %v7510, %v2093
        %v8401 = vmul.f32 %v8384, %v2093
        %v8402 = vmul.f32 %v8385, %v2093
        %v8403 = vadd.f32 %v8232, %v8387
        %v8404 = vadd.f32 %v8233, %v8388
        %v8405 = vadd.f32 %v8234, %v8389
        %v8406 = vadd.f32 %v8235, %v8390
        %v8407 = vadd.f32 %v8236, %v8391
        %v8408 = vadd.f32 %v8237, %v8392
        %v8409 = vadd.f32 %v8238, %v8393
        %v8410 = vadd.f32 %v8239, %v8394
        %v8411 = vadd.f32 %v8240, %v8395
        %v8412 = vadd.f32 %v8241, %v8396
        %v8413 = vadd.f32 %v8242, %v8397
        %v8414 = vadd.f32 %v8243, %v8398
        %v8415 = vadd.f32 %v8244, %v8399
        %v8416 = vadd.f32 %v8245, %v8400
        %v8417 = vadd.f32 %v8246, %v8401
        %v8418 = vadd.f32 %v8247, %v8402
        %v8419 = vmul.f32 %v6779, %v2129
        %v8420 = vmul.f32 %v6780, %v2129
        %v8421 = vmul.f32 %v6781, %v2129
        %v8422 = vmul.f32 %v6782, %v2129
        %v8423 = vmul.f32 %v6783, %v2129
        %v8424 = vmul.f32 %v6784, %v2129
        %v8425 = vmul.f32 %v6785, %v2129
        %v8426 = vmul.f32 %v6786, %v2129
        %v8427 = vmul.f32 %v6787, %v2129
        %v8428 = vmul.f32 %v6788, %v2129
        %v8429 = vmul.f32 %v6789, %v2129
        %v8430 = vmul.f32 %v6790, %v2129
        %v8431 = vmul.f32 %v6791, %v2129
        %v8432 = vmul.f32 %v6792, %v2129
        %v8433 = vmul.f32 %v6793, %v2129
        %v8434 = vmul.f32 %v6794, %v2129
        %v8435 = vmul.f32 %v6795, %v2129
        %v8436 = vmul.f32 %v6796, %v2129
        %v8437 = vmul.f32 %v7509, %v2129
        %v8438 = vmul.f32 %v7510, %v2129
        %v8439 = vmul.f32 %v7511, %v2129
        %v8440 = vmul.f32 %v8384, %v2129
        %v8441 = vmul.f32 %v8385, %v2129
        %v8442 = vmul.f32 %v8386, %v2129
        %v8443 = vadd.f32 %v8360, %v8419
        %v8444 = vadd.f32 %v8361, %v8420
        %v8445 = vadd.f32 %v8362, %v8421
        %v8446 = vadd.f32 %v8363, %v8422
        %v8447 = vadd.f32 %v8364, %v8423
        %v8448 = vadd.f32 %v8365, %v8424
        %v8449 = vadd.f32 %v8366, %v8425
        %v8450 = vadd.f32 %v8367, %v8426
        %v8451 = vadd.f32 %v8368, %v8427
        %v8452 = vadd.f32 %v8369, %v8428
        %v8453 = vadd.f32 %v8370, %v8429
        %v8454 = vadd.f32 %v8371, %v8430
        %v8455 = vadd.f32 %v8372, %v8431
        %v8456 = vadd.f32 %v8373, %v8432
        %v8457 = vadd.f32 %v8374, %v8433
        %v8458 = vadd.f32 %v8375, %v8434
        %v8459 = vadd.f32 %v8376, %v8435
        %v8460 = vadd.f32 %v8377, %v8436
        %v8461 = vadd.f32 %v8378, %v8437
        %v8462 = vadd.f32 %v8379, %v8438
        %v8463 = vadd.f32 %v8380, %v8439
        %v8464 = vadd.f32 %v8381, %v8440
        %v8465 = vadd.f32 %v8382, %v8441
        %v8466 = vadd.f32 %v8383, %v8442
        %v8467 = vmul.f32 %v6779, %v2181
        %v8468 = vmul.f32 %v6780, %v2181
        %v8469 = vmul.f32 %v6781, %v2181
        %v8470 = vmul.f32 %v6782, %v2181
        %v8471 = vmul.f32 %v6783, %v2181
        %v8472 = vmul.f32 %v6784, %v2181
        %v8473 = vmul.f32 %v6785, %v2181
        %v8474 = vmul.f32 %v6786, %v2181
        %v8475 = vmul.f32 %v6787, %v2181
        %v8476 = vmul.f32 %v6788, %v2181
        %v8477 = vmul.f32 %v6789, %v2181
        %v8478 = vmul.f32 %v6790, %v2181
        %v8479 = vmul.f32 %v6791, %v2181
        %v8480 = vmul.f32 %v6792, %v2181
        %v8481 = vmul.f32 %v6793, %v2181
        %v8482 = vmul.f32 %v6794, %v2181
        %v8483 = vmul.f32 %v6795, %v2181
        %v8484 = vmul.f32 %v6796, %v2181
        %v8485 = vmul.f32 %v7509, %v2181
        %v8486 = vmul.f32 %v7510, %v2181
        %v8487 = vmul.f32 %v7511, %v2181
        %v8488 = vmul.f32 %v8384, %v2181
        %v8489 = vmul.f32 %v8385, %v2181
        %v8490 = vmul.f32 %v8386, %v2181
        %v8515 = vrot.slane %v8467, 2
        %v8516 = vrot.slane %v8468, 2
        %v8517 = vsel %vm577, %v8515, %v8516
        %v8518 = vrot.slane %v8469, 2
        %v8519 = vsel %vm577, %v8516, %v8518
        %v8520 = vrot.slane %v8470, 2
        %v8521 = vrot.slane %v8471, 2
        %v8522 = vsel %vm577, %v8520, %v8521
        %v8523 = vrot.slane %v8472, 2
        %v8524 = vsel %vm577, %v8521, %v8523
        %v8525 = vrot.slane %v8473, 2
        %v8526 = vrot.slane %v8474, 2
        %v8527 = vsel %vm577, %v8525, %v8526
        %v8528 = vrot.slane %v8475, 2
        %v8529 = vsel %vm577, %v8526, %v8528
        %v8530 = vrot.slane %v8476, 2
        %v8531 = vrot.slane %v8477, 2
        %v8532 = vsel %vm577, %v8530, %v8531
        %v8533 = vrot.slane %v8478, 2
        %v8534 = vsel %vm577, %v8531, %v8533
        %v8535 = vrot.slane %v8479, 2
        %v8536 = vrot.slane %v8480, 2
        %v8537 = vsel %vm577, %v8535, %v8536
        %v8538 = vrot.slane %v8481, 2
        %v8539 = vsel %vm577, %v8536, %v8538
        %v8540 = vrot.slane %v8482, 2
        %v8541 = vrot.slane %v8483, 2
        %v8542 = vsel %vm577, %v8540, %v8541
        %v8543 = vrot.slane %v8484, 2
        %v8544 = vsel %vm577, %v8541, %v8543
        %v8545 = vrot.slane %v8485, 2
        %v8546 = vrot.slane %v8486, 2
        %v8547 = vsel %vm577, %v8545, %v8546
        %v8548 = vrot.slane %v8487, 2
        %v8549 = vsel %vm577, %v8546, %v8548
        %v8550 = vrot.slane %v8488, 2
        %v8551 = vrot.slane %v8489, 2
        %v8552 = vsel %vm577, %v8550, %v8551
        %v8553 = vrot.slane %v8490, 2
        %v8554 = vsel %vm577, %v8551, %v8553
        %v8571 = vadd.f32 %v8403, %v8517
        %v8572 = vadd.f32 %v8404, %v8519
        %v8573 = vadd.f32 %v8405, %v8522
        %v8574 = vadd.f32 %v8406, %v8524
        %v8575 = vadd.f32 %v8407, %v8527
        %v8576 = vadd.f32 %v8408, %v8529
        %v8577 = vadd.f32 %v8409, %v8532
        %v8578 = vadd.f32 %v8410, %v8534
        %v8579 = vadd.f32 %v8411, %v8537
        %v8580 = vadd.f32 %v8412, %v8539
        %v8581 = vadd.f32 %v8413, %v8542
        %v8582 = vadd.f32 %v8414, %v8544
        %v8583 = vadd.f32 %v8415, %v8547
        %v8584 = vadd.f32 %v8416, %v8549
        %v8585 = vadd.f32 %v8417, %v8552
        %v8586 = vadd.f32 %v8418, %v8554
        %v8587 = vmul.f32 %v6779, %v2305
        %v8588 = vmul.f32 %v6780, %v2305
        %v8589 = vmul.f32 %v6781, %v2305
        %v8590 = vmul.f32 %v6782, %v2305
        %v8591 = vmul.f32 %v6783, %v2305
        %v8592 = vmul.f32 %v6784, %v2305
        %v8593 = vmul.f32 %v6785, %v2305
        %v8594 = vmul.f32 %v6786, %v2305
        %v8595 = vmul.f32 %v6787, %v2305
        %v8596 = vmul.f32 %v6788, %v2305
        %v8597 = vmul.f32 %v6789, %v2305
        %v8598 = vmul.f32 %v6790, %v2305
        %v8599 = vmul.f32 %v6791, %v2305
        %v8600 = vmul.f32 %v6792, %v2305
        %v8601 = vmul.f32 %v6793, %v2305
        %v8602 = vmul.f32 %v6794, %v2305
        %v8603 = vmul.f32 %v6795, %v2305
        %v8604 = vmul.f32 %v6796, %v2305
        %v8605 = vmul.f32 %v7509, %v2305
        %v8606 = vmul.f32 %v7510, %v2305
        %v8607 = vmul.f32 %v7511, %v2305
        %v8608 = vmul.f32 %v8384, %v2305
        %v8609 = vmul.f32 %v8385, %v2305
        %v8610 = vmul.f32 %v8386, %v2305
        %v8635 = vrot.slane %v8587, 2
        %v8636 = vrot.slane %v8588, 2
        %v8637 = vsel %vm577, %v8635, %v8636
        %v8638 = vrot.slane %v8589, 2
        %v8639 = vsel %vm577, %v8636, %v8638
        %v8640 = vrot.slane %v8590, 2
        %v8641 = vrot.slane %v8591, 2
        %v8642 = vsel %vm577, %v8640, %v8641
        %v8643 = vrot.slane %v8592, 2
        %v8644 = vsel %vm577, %v8641, %v8643
        %v8645 = vrot.slane %v8593, 2
        %v8646 = vrot.slane %v8594, 2
        %v8647 = vsel %vm577, %v8645, %v8646
        %v8648 = vrot.slane %v8595, 2
        %v8649 = vsel %vm577, %v8646, %v8648
        %v8650 = vrot.slane %v8596, 2
        %v8651 = vrot.slane %v8597, 2
        %v8652 = vsel %vm577, %v8650, %v8651
        %v8653 = vrot.slane %v8598, 2
        %v8654 = vsel %vm577, %v8651, %v8653
        %v8655 = vrot.slane %v8599, 2
        %v8656 = vrot.slane %v8600, 2
        %v8657 = vsel %vm577, %v8655, %v8656
        %v8658 = vrot.slane %v8601, 2
        %v8659 = vsel %vm577, %v8656, %v8658
        %v8660 = vrot.slane %v8602, 2
        %v8661 = vrot.slane %v8603, 2
        %v8662 = vsel %vm577, %v8660, %v8661
        %v8663 = vrot.slane %v8604, 2
        %v8664 = vsel %vm577, %v8661, %v8663
        %v8665 = vrot.slane %v8605, 2
        %v8666 = vrot.slane %v8606, 2
        %v8667 = vsel %vm577, %v8665, %v8666
        %v8668 = vrot.slane %v8607, 2
        %v8669 = vsel %vm577, %v8666, %v8668
        %v8670 = vrot.slane %v8608, 2
        %v8671 = vrot.slane %v8609, 2
        %v8672 = vsel %vm577, %v8670, %v8671
        %v8673 = vrot.slane %v8610, 2
        %v8674 = vsel %vm577, %v8671, %v8673
        %v8699 = vadd.f32 %v8443, %v8637
        %v8700 = vadd.f32 %v8444, %v8639
        %v8701 = vadd.f32 %v8445, %v8638
        %v8702 = vadd.f32 %v8446, %v8642
        %v8703 = vadd.f32 %v8447, %v8644
        %v8704 = vadd.f32 %v8448, %v8643
        %v8705 = vadd.f32 %v8449, %v8647
        %v8706 = vadd.f32 %v8450, %v8649
        %v8707 = vadd.f32 %v8451, %v8648
        %v8708 = vadd.f32 %v8452, %v8652
        %v8709 = vadd.f32 %v8453, %v8654
        %v8710 = vadd.f32 %v8454, %v8653
        %v8711 = vadd.f32 %v8455, %v8657
        %v8712 = vadd.f32 %v8456, %v8659
        %v8713 = vadd.f32 %v8457, %v8658
        %v8714 = vadd.f32 %v8458, %v8662
        %v8715 = vadd.f32 %v8459, %v8664
        %v8716 = vadd.f32 %v8460, %v8663
        %v8717 = vadd.f32 %v8461, %v8667
        %v8718 = vadd.f32 %v8462, %v8669
        %v8719 = vadd.f32 %v8463, %v8668
        %v8720 = vadd.f32 %v8464, %v8672
        %v8721 = vadd.f32 %v8465, %v8674
        %v8722 = vadd.f32 %v8466, %v8673
        %v8723 = vmul.f32 %v6779, %v2445
        %v8724 = vmul.f32 %v6780, %v2445
        %v8725 = vmul.f32 %v6781, %v2445
        %v8726 = vmul.f32 %v6782, %v2445
        %v8727 = vmul.f32 %v6783, %v2445
        %v8728 = vmul.f32 %v6784, %v2445
        %v8729 = vmul.f32 %v6785, %v2445
        %v8730 = vmul.f32 %v6786, %v2445
        %v8731 = vmul.f32 %v6787, %v2445
        %v8732 = vmul.f32 %v6788, %v2445
        %v8733 = vmul.f32 %v6789, %v2445
        %v8734 = vmul.f32 %v6790, %v2445
        %v8735 = vmul.f32 %v6791, %v2445
        %v8736 = vmul.f32 %v6792, %v2445
        %v8737 = vmul.f32 %v6793, %v2445
        %v8738 = vmul.f32 %v6794, %v2445
        %v8739 = vmul.f32 %v6795, %v2445
        %v8740 = vmul.f32 %v6796, %v2445
        %v8741 = vmul.f32 %v7509, %v2445
        %v8742 = vmul.f32 %v7510, %v2445
        %v8743 = vmul.f32 %v7511, %v2445
        %v8744 = vmul.f32 %v8384, %v2445
        %v8745 = vmul.f32 %v8385, %v2445
        %v8746 = vmul.f32 %v8386, %v2445
        %v8771 = vrot.slane %v8723, 4
        %v8772 = vrot.slane %v8724, 4
        %v8773 = vsel %vm842, %v8771, %v8772
        %v8774 = vrot.slane %v8725, 4
        %v8775 = vsel %vm842, %v8772, %v8774
        %v8776 = vrot.slane %v8726, 4
        %v8777 = vrot.slane %v8727, 4
        %v8778 = vsel %vm842, %v8776, %v8777
        %v8779 = vrot.slane %v8728, 4
        %v8780 = vsel %vm842, %v8777, %v8779
        %v8781 = vrot.slane %v8729, 4
        %v8782 = vrot.slane %v8730, 4
        %v8783 = vsel %vm842, %v8781, %v8782
        %v8784 = vrot.slane %v8731, 4
        %v8785 = vsel %vm842, %v8782, %v8784
        %v8786 = vrot.slane %v8732, 4
        %v8787 = vrot.slane %v8733, 4
        %v8788 = vsel %vm842, %v8786, %v8787
        %v8789 = vrot.slane %v8734, 4
        %v8790 = vsel %vm842, %v8787, %v8789
        %v8791 = vrot.slane %v8735, 4
        %v8792 = vrot.slane %v8736, 4
        %v8793 = vsel %vm842, %v8791, %v8792
        %v8794 = vrot.slane %v8737, 4
        %v8795 = vsel %vm842, %v8792, %v8794
        %v8796 = vrot.slane %v8738, 4
        %v8797 = vrot.slane %v8739, 4
        %v8798 = vsel %vm842, %v8796, %v8797
        %v8799 = vrot.slane %v8740, 4
        %v8800 = vsel %vm842, %v8797, %v8799
        %v8801 = vrot.slane %v8741, 4
        %v8802 = vrot.slane %v8742, 4
        %v8803 = vsel %vm842, %v8801, %v8802
        %v8804 = vrot.slane %v8743, 4
        %v8805 = vsel %vm842, %v8802, %v8804
        %v8806 = vrot.slane %v8744, 4
        %v8807 = vrot.slane %v8745, 4
        %v8808 = vsel %vm842, %v8806, %v8807
        %v8809 = vrot.slane %v8746, 4
        %v8810 = vsel %vm842, %v8807, %v8809
        %v8827 = vadd.f32 %v8571, %v8773
        %v8828 = vadd.f32 %v8572, %v8775
        %v8829 = vadd.f32 %v8573, %v8778
        %v8830 = vadd.f32 %v8574, %v8780
        %v8831 = vadd.f32 %v8575, %v8783
        %v8832 = vadd.f32 %v8576, %v8785
        %v8833 = vadd.f32 %v8577, %v8788
        %v8834 = vadd.f32 %v8578, %v8790
        %v8835 = vadd.f32 %v8579, %v8793
        %v8836 = vadd.f32 %v8580, %v8795
        %v8837 = vadd.f32 %v8581, %v8798
        %v8838 = vadd.f32 %v8582, %v8800
        %v8839 = vadd.f32 %v8583, %v8803
        %v8840 = vadd.f32 %v8584, %v8805
        %v8841 = vadd.f32 %v8585, %v8808
        %v8842 = vadd.f32 %v8586, %v8810
        %v8843 = vmul.f32 %v6779, %v2569
        %v8844 = vmul.f32 %v6780, %v2569
        %v8845 = vmul.f32 %v6781, %v2569
        %v8846 = vmul.f32 %v6782, %v2569
        %v8847 = vmul.f32 %v6783, %v2569
        %v8848 = vmul.f32 %v6784, %v2569
        %v8849 = vmul.f32 %v6785, %v2569
        %v8850 = vmul.f32 %v6786, %v2569
        %v8851 = vmul.f32 %v6787, %v2569
        %v8852 = vmul.f32 %v6788, %v2569
        %v8853 = vmul.f32 %v6789, %v2569
        %v8854 = vmul.f32 %v6790, %v2569
        %v8855 = vmul.f32 %v6791, %v2569
        %v8856 = vmul.f32 %v6792, %v2569
        %v8857 = vmul.f32 %v6793, %v2569
        %v8858 = vmul.f32 %v6794, %v2569
        %v8859 = vmul.f32 %v6795, %v2569
        %v8860 = vmul.f32 %v6796, %v2569
        %v8861 = vmul.f32 %v7509, %v2569
        %v8862 = vmul.f32 %v7510, %v2569
        %v8863 = vmul.f32 %v7511, %v2569
        %v8864 = vmul.f32 %v8384, %v2569
        %v8865 = vmul.f32 %v8385, %v2569
        %v8866 = vmul.f32 %v8386, %v2569
        %v8891 = vrot.slane %v8843, 4
        %v8892 = vrot.slane %v8844, 4
        %v8893 = vsel %vm842, %v8891, %v8892
        %v8894 = vrot.slane %v8845, 4
        %v8895 = vsel %vm842, %v8892, %v8894
        %v8896 = vrot.slane %v8846, 4
        %v8897 = vrot.slane %v8847, 4
        %v8898 = vsel %vm842, %v8896, %v8897
        %v8899 = vrot.slane %v8848, 4
        %v8900 = vsel %vm842, %v8897, %v8899
        %v8901 = vrot.slane %v8849, 4
        %v8902 = vrot.slane %v8850, 4
        %v8903 = vsel %vm842, %v8901, %v8902
        %v8904 = vrot.slane %v8851, 4
        %v8905 = vsel %vm842, %v8902, %v8904
        %v8906 = vrot.slane %v8852, 4
        %v8907 = vrot.slane %v8853, 4
        %v8908 = vsel %vm842, %v8906, %v8907
        %v8909 = vrot.slane %v8854, 4
        %v8910 = vsel %vm842, %v8907, %v8909
        %v8911 = vrot.slane %v8855, 4
        %v8912 = vrot.slane %v8856, 4
        %v8913 = vsel %vm842, %v8911, %v8912
        %v8914 = vrot.slane %v8857, 4
        %v8915 = vsel %vm842, %v8912, %v8914
        %v8916 = vrot.slane %v8858, 4
        %v8917 = vrot.slane %v8859, 4
        %v8918 = vsel %vm842, %v8916, %v8917
        %v8919 = vrot.slane %v8860, 4
        %v8920 = vsel %vm842, %v8917, %v8919
        %v8921 = vrot.slane %v8861, 4
        %v8922 = vrot.slane %v8862, 4
        %v8923 = vsel %vm842, %v8921, %v8922
        %v8924 = vrot.slane %v8863, 4
        %v8925 = vsel %vm842, %v8922, %v8924
        %v8926 = vrot.slane %v8864, 4
        %v8927 = vrot.slane %v8865, 4
        %v8928 = vsel %vm842, %v8926, %v8927
        %v8929 = vrot.slane %v8866, 4
        %v8930 = vsel %vm842, %v8927, %v8929
        %v8955 = vadd.f32 %v8699, %v8893
        %v8956 = vadd.f32 %v8700, %v8895
        %v8957 = vadd.f32 %v8701, %v8894
        %v8958 = vadd.f32 %v8702, %v8898
        %v8959 = vadd.f32 %v8703, %v8900
        %v8960 = vadd.f32 %v8704, %v8899
        %v8961 = vadd.f32 %v8705, %v8903
        %v8962 = vadd.f32 %v8706, %v8905
        %v8963 = vadd.f32 %v8707, %v8904
        %v8964 = vadd.f32 %v8708, %v8908
        %v8965 = vadd.f32 %v8709, %v8910
        %v8966 = vadd.f32 %v8710, %v8909
        %v8967 = vadd.f32 %v8711, %v8913
        %v8968 = vadd.f32 %v8712, %v8915
        %v8969 = vadd.f32 %v8713, %v8914
        %v8970 = vadd.f32 %v8714, %v8918
        %v8971 = vadd.f32 %v8715, %v8920
        %v8972 = vadd.f32 %v8716, %v8919
        %v8973 = vadd.f32 %v8717, %v8923
        %v8974 = vadd.f32 %v8718, %v8925
        %v8975 = vadd.f32 %v8719, %v8924
        %v8976 = vadd.f32 %v8720, %v8928
        %v8977 = vadd.f32 %v8721, %v8930
        %v8978 = vadd.f32 %v8722, %v8929
        %v8979 = vmul.f32 %v6779, %v2709
        %v8980 = vmul.f32 %v6780, %v2709
        %v8981 = vmul.f32 %v6781, %v2709
        %v8982 = vmul.f32 %v6782, %v2709
        %v8983 = vmul.f32 %v6783, %v2709
        %v8984 = vmul.f32 %v6784, %v2709
        %v8985 = vmul.f32 %v6785, %v2709
        %v8986 = vmul.f32 %v6786, %v2709
        %v8987 = vmul.f32 %v6787, %v2709
        %v8988 = vmul.f32 %v6788, %v2709
        %v8989 = vmul.f32 %v6789, %v2709
        %v8990 = vmul.f32 %v6790, %v2709
        %v8991 = vmul.f32 %v6791, %v2709
        %v8992 = vmul.f32 %v6792, %v2709
        %v8993 = vmul.f32 %v6793, %v2709
        %v8994 = vmul.f32 %v6794, %v2709
        %v8995 = vmul.f32 %v6795, %v2709
        %v8996 = vmul.f32 %v6796, %v2709
        %v8997 = vmul.f32 %v7509, %v2709
        %v8998 = vmul.f32 %v7510, %v2709
        %v8999 = vmul.f32 %v7511, %v2709
        %v9000 = vmul.f32 %v8384, %v2709
        %v9001 = vmul.f32 %v8385, %v2709
        %v9002 = vmul.f32 %v8386, %v2709
        %v9027 = vrot.slane %v8979, 6
        %v9028 = vrot.slane %v8980, 6
        %v9029 = vsel %vm1107, %v9027, %v9028
        %v9030 = vrot.slane %v8981, 6
        %v9031 = vsel %vm1107, %v9028, %v9030
        %v9032 = vrot.slane %v8982, 6
        %v9033 = vrot.slane %v8983, 6
        %v9034 = vsel %vm1107, %v9032, %v9033
        %v9035 = vrot.slane %v8984, 6
        %v9036 = vsel %vm1107, %v9033, %v9035
        %v9037 = vrot.slane %v8985, 6
        %v9038 = vrot.slane %v8986, 6
        %v9039 = vsel %vm1107, %v9037, %v9038
        %v9040 = vrot.slane %v8987, 6
        %v9041 = vsel %vm1107, %v9038, %v9040
        %v9042 = vrot.slane %v8988, 6
        %v9043 = vrot.slane %v8989, 6
        %v9044 = vsel %vm1107, %v9042, %v9043
        %v9045 = vrot.slane %v8990, 6
        %v9046 = vsel %vm1107, %v9043, %v9045
        %v9047 = vrot.slane %v8991, 6
        %v9048 = vrot.slane %v8992, 6
        %v9049 = vsel %vm1107, %v9047, %v9048
        %v9050 = vrot.slane %v8993, 6
        %v9051 = vsel %vm1107, %v9048, %v9050
        %v9052 = vrot.slane %v8994, 6
        %v9053 = vrot.slane %v8995, 6
        %v9054 = vsel %vm1107, %v9052, %v9053
        %v9055 = vrot.slane %v8996, 6
        %v9056 = vsel %vm1107, %v9053, %v9055
        %v9057 = vrot.slane %v8997, 6
        %v9058 = vrot.slane %v8998, 6
        %v9059 = vsel %vm1107, %v9057, %v9058
        %v9060 = vrot.slane %v8999, 6
        %v9061 = vsel %vm1107, %v9058, %v9060
        %v9062 = vrot.slane %v9000, 6
        %v9063 = vrot.slane %v9001, 6
        %v9064 = vsel %vm1107, %v9062, %v9063
        %v9065 = vrot.slane %v9002, 6
        %v9066 = vsel %vm1107, %v9063, %v9065
        %v9083 = vadd.f32 %v8827, %v9029
        %v9084 = vadd.f32 %v8828, %v9031
        %v9085 = vadd.f32 %v8829, %v9034
        %v9086 = vadd.f32 %v8830, %v9036
        %v9087 = vadd.f32 %v8831, %v9039
        %v9088 = vadd.f32 %v8832, %v9041
        %v9089 = vadd.f32 %v8833, %v9044
        %v9090 = vadd.f32 %v8834, %v9046
        %v9091 = vadd.f32 %v8835, %v9049
        %v9092 = vadd.f32 %v8836, %v9051
        %v9093 = vadd.f32 %v8837, %v9054
        %v9094 = vadd.f32 %v8838, %v9056
        %v9095 = vadd.f32 %v8839, %v9059
        %v9096 = vadd.f32 %v8840, %v9061
        %v9097 = vadd.f32 %v8841, %v9064
        %v9098 = vadd.f32 %v8842, %v9066
        %v9099 = vunpack.c.l.bf16 %v6761
        %v9100 = vunpack.c.l.bf16 %v6762
        %v9101 = vunpack.c.l.bf16 %v6763
        %v9102 = vmul.f32 %v6782, %v2836
        %v9103 = vmul.f32 %v6783, %v2836
        %v9104 = vmul.f32 %v6785, %v2836
        %v9105 = vmul.f32 %v6786, %v2836
        %v9106 = vmul.f32 %v6788, %v2836
        %v9107 = vmul.f32 %v6789, %v2836
        %v9108 = vmul.f32 %v6791, %v2836
        %v9109 = vmul.f32 %v6792, %v2836
        %v9110 = vmul.f32 %v6794, %v2836
        %v9111 = vmul.f32 %v6795, %v2836
        %v9112 = vmul.f32 %v7509, %v2836
        %v9113 = vmul.f32 %v7510, %v2836
        %v9114 = vmul.f32 %v8384, %v2836
        %v9115 = vmul.f32 %v8385, %v2836
        %v9116 = vmul.f32 %v9099, %v2836
        %v9117 = vmul.f32 %v9100, %v2836
        %v9134 = vrot.slane %v9102, 7
        %v9135 = vrot.slane %v9103, 7
        %v9136 = vsel %vm1219, %v9134, %v9135
        %v9137 = vrot.slane %v9104, 7
        %v9138 = vrot.slane %v9105, 7
        %v9139 = vsel %vm1219, %v9137, %v9138
        %v9140 = vrot.slane %v9106, 7
        %v9141 = vrot.slane %v9107, 7
        %v9142 = vsel %vm1219, %v9140, %v9141
        %v9143 = vrot.slane %v9108, 7
        %v9144 = vrot.slane %v9109, 7
        %v9145 = vsel %vm1219, %v9143, %v9144
        %v9146 = vrot.slane %v9110, 7
        %v9147 = vrot.slane %v9111, 7
        %v9148 = vsel %vm1219, %v9146, %v9147
        %v9149 = vrot.slane %v9112, 7
        %v9150 = vrot.slane %v9113, 7
        %v9151 = vsel %vm1219, %v9149, %v9150
        %v9152 = vrot.slane %v9114, 7
        %v9153 = vrot.slane %v9115, 7
        %v9154 = vsel %vm1219, %v9152, %v9153
        %v9155 = vrot.slane %v9116, 7
        %v9156 = vrot.slane %v9117, 7
        %v9157 = vsel %vm1219, %v9155, %v9156
        %v9182 = vadd.f32 %v8955, %v9134
        %v9183 = vadd.f32 %v8956, %v9136
        %v9184 = vadd.f32 %v8957, %v9135
        %v9185 = vadd.f32 %v8958, %v9137
        %v9186 = vadd.f32 %v8959, %v9139
        %v9187 = vadd.f32 %v8960, %v9138
        %v9188 = vadd.f32 %v8961, %v9140
        %v9189 = vadd.f32 %v8962, %v9142
        %v9190 = vadd.f32 %v8963, %v9141
        %v9191 = vadd.f32 %v8964, %v9143
        %v9192 = vadd.f32 %v8965, %v9145
        %v9193 = vadd.f32 %v8966, %v9144
        %v9194 = vadd.f32 %v8967, %v9146
        %v9195 = vadd.f32 %v8968, %v9148
        %v9196 = vadd.f32 %v8969, %v9147
        %v9197 = vadd.f32 %v8970, %v9149
        %v9198 = vadd.f32 %v8971, %v9151
        %v9199 = vadd.f32 %v8972, %v9150
        %v9200 = vadd.f32 %v8973, %v9152
        %v9201 = vadd.f32 %v8974, %v9154
        %v9202 = vadd.f32 %v8975, %v9153
        %v9203 = vadd.f32 %v8976, %v9155
        %v9204 = vadd.f32 %v8977, %v9157
        %v9205 = vadd.f32 %v8978, %v9156
        %v9206 = vmul.f32 %v6782, %v2944
        %v9207 = vmul.f32 %v6783, %v2944
        %v9208 = vmul.f32 %v6784, %v2944
        %v9209 = vmul.f32 %v6785, %v2944
        %v9210 = vmul.f32 %v6786, %v2944
        %v9211 = vmul.f32 %v6787, %v2944
        %v9212 = vmul.f32 %v6788, %v2944
        %v9213 = vmul.f32 %v6789, %v2944
        %v9214 = vmul.f32 %v6790, %v2944
        %v9215 = vmul.f32 %v6791, %v2944
        %v9216 = vmul.f32 %v6792, %v2944
        %v9217 = vmul.f32 %v6793, %v2944
        %v9218 = vmul.f32 %v6794, %v2944
        %v9219 = vmul.f32 %v6795, %v2944
        %v9220 = vmul.f32 %v6796, %v2944
        %v9221 = vmul.f32 %v7509, %v2944
        %v9222 = vmul.f32 %v7510, %v2944
        %v9223 = vmul.f32 %v7511, %v2944
        %v9224 = vmul.f32 %v8384, %v2944
        %v9225 = vmul.f32 %v8385, %v2944
        %v9226 = vmul.f32 %v8386, %v2944
        %v9227 = vmul.f32 %v9099, %v2944
        %v9228 = vmul.f32 %v9100, %v2944
        %v9229 = vmul.f32 %v9101, %v2944
        %v9254 = vrot.slane %v9206, 1
        %v9255 = vrot.slane %v9207, 1
        %v9256 = vsel %vm1344, %v9254, %v9255
        %v9257 = vrot.slane %v9208, 1
        %v9258 = vsel %vm1344, %v9255, %v9257
        %v9259 = vrot.slane %v9209, 1
        %v9260 = vrot.slane %v9210, 1
        %v9261 = vsel %vm1344, %v9259, %v9260
        %v9262 = vrot.slane %v9211, 1
        %v9263 = vsel %vm1344, %v9260, %v9262
        %v9264 = vrot.slane %v9212, 1
        %v9265 = vrot.slane %v9213, 1
        %v9266 = vsel %vm1344, %v9264, %v9265
        %v9267 = vrot.slane %v9214, 1
        %v9268 = vsel %vm1344, %v9265, %v9267
        %v9269 = vrot.slane %v9215, 1
        %v9270 = vrot.slane %v9216, 1
        %v9271 = vsel %vm1344, %v9269, %v9270
        %v9272 = vrot.slane %v9217, 1
        %v9273 = vsel %vm1344, %v9270, %v9272
        %v9274 = vrot.slane %v9218, 1
        %v9275 = vrot.slane %v9219, 1
        %v9276 = vsel %vm1344, %v9274, %v9275
        %v9277 = vrot.slane %v9220, 1
        %v9278 = vsel %vm1344, %v9275, %v9277
        %v9279 = vrot.slane %v9221, 1
        %v9280 = vrot.slane %v9222, 1
        %v9281 = vsel %vm1344, %v9279, %v9280
        %v9282 = vrot.slane %v9223, 1
        %v9283 = vsel %vm1344, %v9280, %v9282
        %v9284 = vrot.slane %v9224, 1
        %v9285 = vrot.slane %v9225, 1
        %v9286 = vsel %vm1344, %v9284, %v9285
        %v9287 = vrot.slane %v9226, 1
        %v9288 = vsel %vm1344, %v9285, %v9287
        %v9289 = vrot.slane %v9227, 1
        %v9290 = vrot.slane %v9228, 1
        %v9291 = vsel %vm1344, %v9289, %v9290
        %v9292 = vrot.slane %v9229, 1
        %v9293 = vsel %vm1344, %v9290, %v9292
        %v9310 = vadd.f32 %v9083, %v9256
        %v9311 = vadd.f32 %v9084, %v9258
        %v9312 = vadd.f32 %v9085, %v9261
        %v9313 = vadd.f32 %v9086, %v9263
        %v9314 = vadd.f32 %v9087, %v9266
        %v9315 = vadd.f32 %v9088, %v9268
        %v9316 = vadd.f32 %v9089, %v9271
        %v9317 = vadd.f32 %v9090, %v9273
        %v9318 = vadd.f32 %v9091, %v9276
        %v9319 = vadd.f32 %v9092, %v9278
        %v9320 = vadd.f32 %v9093, %v9281
        %v9321 = vadd.f32 %v9094, %v9283
        %v9322 = vadd.f32 %v9095, %v9286
        %v9323 = vadd.f32 %v9096, %v9288
        %v9324 = vadd.f32 %v9097, %v9291
        %v9325 = vadd.f32 %v9098, %v9293
        %v9326 = vmul.f32 %v6782, %v3068
        %v9327 = vmul.f32 %v6783, %v3068
        %v9328 = vmul.f32 %v6784, %v3068
        %v9329 = vmul.f32 %v6785, %v3068
        %v9330 = vmul.f32 %v6786, %v3068
        %v9331 = vmul.f32 %v6787, %v3068
        %v9332 = vmul.f32 %v6788, %v3068
        %v9333 = vmul.f32 %v6789, %v3068
        %v9334 = vmul.f32 %v6790, %v3068
        %v9335 = vmul.f32 %v6791, %v3068
        %v9336 = vmul.f32 %v6792, %v3068
        %v9337 = vmul.f32 %v6793, %v3068
        %v9338 = vmul.f32 %v6794, %v3068
        %v9339 = vmul.f32 %v6795, %v3068
        %v9340 = vmul.f32 %v6796, %v3068
        %v9341 = vmul.f32 %v7509, %v3068
        %v9342 = vmul.f32 %v7510, %v3068
        %v9343 = vmul.f32 %v7511, %v3068
        %v9344 = vmul.f32 %v8384, %v3068
        %v9345 = vmul.f32 %v8385, %v3068
        %v9346 = vmul.f32 %v8386, %v3068
        %v9347 = vmul.f32 %v9099, %v3068
        %v9348 = vmul.f32 %v9100, %v3068
        %v9349 = vmul.f32 %v9101, %v3068
        %v9374 = vrot.slane %v9326, 1
        %v9375 = vrot.slane %v9327, 1
        %v9376 = vsel %vm1344, %v9374, %v9375
        %v9377 = vrot.slane %v9328, 1
        %v9378 = vsel %vm1344, %v9375, %v9377
        %v9379 = vrot.slane %v9329, 1
        %v9380 = vrot.slane %v9330, 1
        %v9381 = vsel %vm1344, %v9379, %v9380
        %v9382 = vrot.slane %v9331, 1
        %v9383 = vsel %vm1344, %v9380, %v9382
        %v9384 = vrot.slane %v9332, 1
        %v9385 = vrot.slane %v9333, 1
        %v9386 = vsel %vm1344, %v9384, %v9385
        %v9387 = vrot.slane %v9334, 1
        %v9388 = vsel %vm1344, %v9385, %v9387
        %v9389 = vrot.slane %v9335, 1
        %v9390 = vrot.slane %v9336, 1
        %v9391 = vsel %vm1344, %v9389, %v9390
        %v9392 = vrot.slane %v9337, 1
        %v9393 = vsel %vm1344, %v9390, %v9392
        %v9394 = vrot.slane %v9338, 1
        %v9395 = vrot.slane %v9339, 1
        %v9396 = vsel %vm1344, %v9394, %v9395
        %v9397 = vrot.slane %v9340, 1
        %v9398 = vsel %vm1344, %v9395, %v9397
        %v9399 = vrot.slane %v9341, 1
        %v9400 = vrot.slane %v9342, 1
        %v9401 = vsel %vm1344, %v9399, %v9400
        %v9402 = vrot.slane %v9343, 1
        %v9403 = vsel %vm1344, %v9400, %v9402
        %v9404 = vrot.slane %v9344, 1
        %v9405 = vrot.slane %v9345, 1
        %v9406 = vsel %vm1344, %v9404, %v9405
        %v9407 = vrot.slane %v9346, 1
        %v9408 = vsel %vm1344, %v9405, %v9407
        %v9409 = vrot.slane %v9347, 1
        %v9410 = vrot.slane %v9348, 1
        %v9411 = vsel %vm1344, %v9409, %v9410
        %v9412 = vrot.slane %v9349, 1
        %v9413 = vsel %vm1344, %v9410, %v9412
        %v9438 = vadd.f32 %v9182, %v9376
        %v9439 = vadd.f32 %v9183, %v9378
        %v9440 = vadd.f32 %v9184, %v9377
        %v9441 = vadd.f32 %v9185, %v9381
        %v9442 = vadd.f32 %v9186, %v9383
        %v9443 = vadd.f32 %v9187, %v9382
        %v9444 = vadd.f32 %v9188, %v9386
        %v9445 = vadd.f32 %v9189, %v9388
        %v9446 = vadd.f32 %v9190, %v9387
        %v9447 = vadd.f32 %v9191, %v9391
        %v9448 = vadd.f32 %v9192, %v9393
        %v9449 = vadd.f32 %v9193, %v9392
        %v9450 = vadd.f32 %v9194, %v9396
        %v9451 = vadd.f32 %v9195, %v9398
        %v9452 = vadd.f32 %v9196, %v9397
        %v9453 = vadd.f32 %v9197, %v9401
        %v9454 = vadd.f32 %v9198, %v9403
        %v9455 = vadd.f32 %v9199, %v9402
        %v9456 = vadd.f32 %v9200, %v9406
        %v9457 = vadd.f32 %v9201, %v9408
        %v9458 = vadd.f32 %v9202, %v9407
        %v9459 = vadd.f32 %v9203, %v9411
        %v9460 = vadd.f32 %v9204, %v9413
        %v9461 = vadd.f32 %v9205, %v9412
        %v9462 = vmul.f32 %v6782, %v3208
        %v9463 = vmul.f32 %v6783, %v3208
        %v9464 = vmul.f32 %v6784, %v3208
        %v9465 = vmul.f32 %v6785, %v3208
        %v9466 = vmul.f32 %v6786, %v3208
        %v9467 = vmul.f32 %v6787, %v3208
        %v9468 = vmul.f32 %v6788, %v3208
        %v9469 = vmul.f32 %v6789, %v3208
        %v9470 = vmul.f32 %v6790, %v3208
        %v9471 = vmul.f32 %v6791, %v3208
        %v9472 = vmul.f32 %v6792, %v3208
        %v9473 = vmul.f32 %v6793, %v3208
        %v9474 = vmul.f32 %v6794, %v3208
        %v9475 = vmul.f32 %v6795, %v3208
        %v9476 = vmul.f32 %v6796, %v3208
        %v9477 = vmul.f32 %v7509, %v3208
        %v9478 = vmul.f32 %v7510, %v3208
        %v9479 = vmul.f32 %v7511, %v3208
        %v9480 = vmul.f32 %v8384, %v3208
        %v9481 = vmul.f32 %v8385, %v3208
        %v9482 = vmul.f32 %v8386, %v3208
        %v9483 = vmul.f32 %v9099, %v3208
        %v9484 = vmul.f32 %v9100, %v3208
        %v9485 = vmul.f32 %v9101, %v3208
        %v9510 = vrot.slane %v9462, 3
        %v9511 = vrot.slane %v9463, 3
        %v9512 = vsel %vm1609, %v9510, %v9511
        %v9513 = vrot.slane %v9464, 3
        %v9514 = vsel %vm1609, %v9511, %v9513
        %v9515 = vrot.slane %v9465, 3
        %v9516 = vrot.slane %v9466, 3
        %v9517 = vsel %vm1609, %v9515, %v9516
        %v9518 = vrot.slane %v9467, 3
        %v9519 = vsel %vm1609, %v9516, %v9518
        %v9520 = vrot.slane %v9468, 3
        %v9521 = vrot.slane %v9469, 3
        %v9522 = vsel %vm1609, %v9520, %v9521
        %v9523 = vrot.slane %v9470, 3
        %v9524 = vsel %vm1609, %v9521, %v9523
        %v9525 = vrot.slane %v9471, 3
        %v9526 = vrot.slane %v9472, 3
        %v9527 = vsel %vm1609, %v9525, %v9526
        %v9528 = vrot.slane %v9473, 3
        %v9529 = vsel %vm1609, %v9526, %v9528
        %v9530 = vrot.slane %v9474, 3
        %v9531 = vrot.slane %v9475, 3
        %v9532 = vsel %vm1609, %v9530, %v9531
        %v9533 = vrot.slane %v9476, 3
        %v9534 = vsel %vm1609, %v9531, %v9533
        %v9535 = vrot.slane %v9477, 3
        %v9536 = vrot.slane %v9478, 3
        %v9537 = vsel %vm1609, %v9535, %v9536
        %v9538 = vrot.slane %v9479, 3
        %v9539 = vsel %vm1609, %v9536, %v9538
        %v9540 = vrot.slane %v9480, 3
        %v9541 = vrot.slane %v9481, 3
        %v9542 = vsel %vm1609, %v9540, %v9541
        %v9543 = vrot.slane %v9482, 3
        %v9544 = vsel %vm1609, %v9541, %v9543
        %v9545 = vrot.slane %v9483, 3
        %v9546 = vrot.slane %v9484, 3
        %v9547 = vsel %vm1609, %v9545, %v9546
        %v9548 = vrot.slane %v9485, 3
        %v9549 = vsel %vm1609, %v9546, %v9548
        %v9566 = vadd.f32 %v9310, %v9512
        %v9567 = vadd.f32 %v9311, %v9514
        %v9568 = vadd.f32 %v9312, %v9517
        %v9569 = vadd.f32 %v9313, %v9519
        %v9570 = vadd.f32 %v9314, %v9522
        %v9571 = vadd.f32 %v9315, %v9524
        %v9572 = vadd.f32 %v9316, %v9527
        %v9573 = vadd.f32 %v9317, %v9529
        %v9574 = vadd.f32 %v9318, %v9532
        %v9575 = vadd.f32 %v9319, %v9534
        %v9576 = vadd.f32 %v9320, %v9537
        %v9577 = vadd.f32 %v9321, %v9539
        %v9578 = vadd.f32 %v9322, %v9542
        %v9579 = vadd.f32 %v9323, %v9544
        %v9580 = vadd.f32 %v9324, %v9547
        %v9581 = vadd.f32 %v9325, %v9549
        %v9582 = vmul.f32 %v6782, %v3332
        %v9583 = vmul.f32 %v6783, %v3332
        %v9584 = vmul.f32 %v6784, %v3332
        %v9585 = vmul.f32 %v6785, %v3332
        %v9586 = vmul.f32 %v6786, %v3332
        %v9587 = vmul.f32 %v6787, %v3332
        %v9588 = vmul.f32 %v6788, %v3332
        %v9589 = vmul.f32 %v6789, %v3332
        %v9590 = vmul.f32 %v6790, %v3332
        %v9591 = vmul.f32 %v6791, %v3332
        %v9592 = vmul.f32 %v6792, %v3332
        %v9593 = vmul.f32 %v6793, %v3332
        %v9594 = vmul.f32 %v6794, %v3332
        %v9595 = vmul.f32 %v6795, %v3332
        %v9596 = vmul.f32 %v6796, %v3332
        %v9597 = vmul.f32 %v7509, %v3332
        %v9598 = vmul.f32 %v7510, %v3332
        %v9599 = vmul.f32 %v7511, %v3332
        %v9600 = vmul.f32 %v8384, %v3332
        %v9601 = vmul.f32 %v8385, %v3332
        %v9602 = vmul.f32 %v8386, %v3332
        %v9603 = vmul.f32 %v9099, %v3332
        %v9604 = vmul.f32 %v9100, %v3332
        %v9605 = vmul.f32 %v9101, %v3332
        %v9630 = vrot.slane %v9582, 3
        %v9631 = vrot.slane %v9583, 3
        %v9632 = vsel %vm1609, %v9630, %v9631
        %v9633 = vrot.slane %v9584, 3
        %v9634 = vsel %vm1609, %v9631, %v9633
        %v9635 = vrot.slane %v9585, 3
        %v9636 = vrot.slane %v9586, 3
        %v9637 = vsel %vm1609, %v9635, %v9636
        %v9638 = vrot.slane %v9587, 3
        %v9639 = vsel %vm1609, %v9636, %v9638
        %v9640 = vrot.slane %v9588, 3
        %v9641 = vrot.slane %v9589, 3
        %v9642 = vsel %vm1609, %v9640, %v9641
        %v9643 = vrot.slane %v9590, 3
        %v9644 = vsel %vm1609, %v9641, %v9643
        %v9645 = vrot.slane %v9591, 3
        %v9646 = vrot.slane %v9592, 3
        %v9647 = vsel %vm1609, %v9645, %v9646
        %v9648 = vrot.slane %v9593, 3
        %v9649 = vsel %vm1609, %v9646, %v9648
        %v9650 = vrot.slane %v9594, 3
        %v9651 = vrot.slane %v9595, 3
        %v9652 = vsel %vm1609, %v9650, %v9651
        %v9653 = vrot.slane %v9596, 3
        %v9654 = vsel %vm1609, %v9651, %v9653
        %v9655 = vrot.slane %v9597, 3
        %v9656 = vrot.slane %v9598, 3
        %v9657 = vsel %vm1609, %v9655, %v9656
        %v9658 = vrot.slane %v9599, 3
        %v9659 = vsel %vm1609, %v9656, %v9658
        %v9660 = vrot.slane %v9600, 3
        %v9661 = vrot.slane %v9601, 3
        %v9662 = vsel %vm1609, %v9660, %v9661
        %v9663 = vrot.slane %v9602, 3
        %v9664 = vsel %vm1609, %v9661, %v9663
        %v9665 = vrot.slane %v9603, 3
        %v9666 = vrot.slane %v9604, 3
        %v9667 = vsel %vm1609, %v9665, %v9666
        %v9668 = vrot.slane %v9605, 3
        %v9669 = vsel %vm1609, %v9666, %v9668
        %v9694 = vadd.f32 %v9438, %v9632
        %v9695 = vadd.f32 %v9439, %v9634
        %v9696 = vadd.f32 %v9440, %v9633
        %v9697 = vadd.f32 %v9441, %v9637
        %v9698 = vadd.f32 %v9442, %v9639
        %v9699 = vadd.f32 %v9443, %v9638
        %v9700 = vadd.f32 %v9444, %v9642
        %v9701 = vadd.f32 %v9445, %v9644
        %v9702 = vadd.f32 %v9446, %v9643
        %v9703 = vadd.f32 %v9447, %v9647
        %v9704 = vadd.f32 %v9448, %v9649
        %v9705 = vadd.f32 %v9449, %v9648
        %v9706 = vadd.f32 %v9450, %v9652
        %v9707 = vadd.f32 %v9451, %v9654
        %v9708 = vadd.f32 %v9452, %v9653
        %v9709 = vadd.f32 %v9453, %v9657
        %v9710 = vadd.f32 %v9454, %v9659
        %v9711 = vadd.f32 %v9455, %v9658
        %v9712 = vadd.f32 %v9456, %v9662
        %v9713 = vadd.f32 %v9457, %v9664
        %v9714 = vadd.f32 %v9458, %v9663
        %v9715 = vadd.f32 %v9459, %v9667
        %v9716 = vadd.f32 %v9460, %v9669
        %v9717 = vadd.f32 %v9461, %v9668
        %v9718 = vmul.f32 %v6782, %v3472
        %v9719 = vmul.f32 %v6783, %v3472
        %v9720 = vmul.f32 %v6784, %v3472
        %v9721 = vmul.f32 %v6785, %v3472
        %v9722 = vmul.f32 %v6786, %v3472
        %v9723 = vmul.f32 %v6787, %v3472
        %v9724 = vmul.f32 %v6788, %v3472
        %v9725 = vmul.f32 %v6789, %v3472
        %v9726 = vmul.f32 %v6790, %v3472
        %v9727 = vmul.f32 %v6791, %v3472
        %v9728 = vmul.f32 %v6792, %v3472
        %v9729 = vmul.f32 %v6793, %v3472
        %v9730 = vmul.f32 %v6794, %v3472
        %v9731 = vmul.f32 %v6795, %v3472
        %v9732 = vmul.f32 %v6796, %v3472
        %v9733 = vmul.f32 %v7509, %v3472
        %v9734 = vmul.f32 %v7510, %v3472
        %v9735 = vmul.f32 %v7511, %v3472
        %v9736 = vmul.f32 %v8384, %v3472
        %v9737 = vmul.f32 %v8385, %v3472
        %v9738 = vmul.f32 %v8386, %v3472
        %v9739 = vmul.f32 %v9099, %v3472
        %v9740 = vmul.f32 %v9100, %v3472
        %v9741 = vmul.f32 %v9101, %v3472
        %v9766 = vrot.slane %v9718, 5
        %v9767 = vrot.slane %v9719, 5
        %v9768 = vsel %vm1874, %v9766, %v9767
        %v9769 = vrot.slane %v9720, 5
        %v9770 = vsel %vm1874, %v9767, %v9769
        %v9771 = vrot.slane %v9721, 5
        %v9772 = vrot.slane %v9722, 5
        %v9773 = vsel %vm1874, %v9771, %v9772
        %v9774 = vrot.slane %v9723, 5
        %v9775 = vsel %vm1874, %v9772, %v9774
        %v9776 = vrot.slane %v9724, 5
        %v9777 = vrot.slane %v9725, 5
        %v9778 = vsel %vm1874, %v9776, %v9777
        %v9779 = vrot.slane %v9726, 5
        %v9780 = vsel %vm1874, %v9777, %v9779
        %v9781 = vrot.slane %v9727, 5
        %v9782 = vrot.slane %v9728, 5
        %v9783 = vsel %vm1874, %v9781, %v9782
        %v9784 = vrot.slane %v9729, 5
        %v9785 = vsel %vm1874, %v9782, %v9784
        %v9786 = vrot.slane %v9730, 5
        %v9787 = vrot.slane %v9731, 5
        %v9788 = vsel %vm1874, %v9786, %v9787
        %v9789 = vrot.slane %v9732, 5
        %v9790 = vsel %vm1874, %v9787, %v9789
        %v9791 = vrot.slane %v9733, 5
        %v9792 = vrot.slane %v9734, 5
        %v9793 = vsel %vm1874, %v9791, %v9792
        %v9794 = vrot.slane %v9735, 5
        %v9795 = vsel %vm1874, %v9792, %v9794
        %v9796 = vrot.slane %v9736, 5
        %v9797 = vrot.slane %v9737, 5
        %v9798 = vsel %vm1874, %v9796, %v9797
        %v9799 = vrot.slane %v9738, 5
        %v9800 = vsel %vm1874, %v9797, %v9799
        %v9801 = vrot.slane %v9739, 5
        %v9802 = vrot.slane %v9740, 5
        %v9803 = vsel %vm1874, %v9801, %v9802
        %v9804 = vrot.slane %v9741, 5
        %v9805 = vsel %vm1874, %v9802, %v9804
        %v9822 = vadd.f32 %v9566, %v9768
        %v9823 = vadd.f32 %v9567, %v9770
        %v9824 = vadd.f32 %v9568, %v9773
        %v9825 = vadd.f32 %v9569, %v9775
        %v9826 = vadd.f32 %v9570, %v9778
        %v9827 = vadd.f32 %v9571, %v9780
        %v9828 = vadd.f32 %v9572, %v9783
        %v9829 = vadd.f32 %v9573, %v9785
        %v9830 = vadd.f32 %v9574, %v9788
        %v9831 = vadd.f32 %v9575, %v9790
        %v9832 = vadd.f32 %v9576, %v9793
        %v9833 = vadd.f32 %v9577, %v9795
        %v9834 = vadd.f32 %v9578, %v9798
        %v9835 = vadd.f32 %v9579, %v9800
        %v9836 = vadd.f32 %v9580, %v9803
        %v9837 = vadd.f32 %v9581, %v9805
        %v9838 = vmul.f32 %v6782, %v3596
        %v9839 = vmul.f32 %v6783, %v3596
        %v9840 = vmul.f32 %v6784, %v3596
        %v9841 = vmul.f32 %v6785, %v3596
        %v9842 = vmul.f32 %v6786, %v3596
        %v9843 = vmul.f32 %v6787, %v3596
        %v9844 = vmul.f32 %v6788, %v3596
        %v9845 = vmul.f32 %v6789, %v3596
        %v9846 = vmul.f32 %v6790, %v3596
        %v9847 = vmul.f32 %v6791, %v3596
        %v9848 = vmul.f32 %v6792, %v3596
        %v9849 = vmul.f32 %v6793, %v3596
        %v9850 = vmul.f32 %v6794, %v3596
        %v9851 = vmul.f32 %v6795, %v3596
        %v9852 = vmul.f32 %v6796, %v3596
        %v9853 = vmul.f32 %v7509, %v3596
        %v9854 = vmul.f32 %v7510, %v3596
        %v9855 = vmul.f32 %v7511, %v3596
        %v9856 = vmul.f32 %v8384, %v3596
        %v9857 = vmul.f32 %v8385, %v3596
        %v9858 = vmul.f32 %v8386, %v3596
        %v9859 = vmul.f32 %v9099, %v3596
        %v9860 = vmul.f32 %v9100, %v3596
        %v9861 = vmul.f32 %v9101, %v3596
        %v9886 = vrot.slane %v9838, 5
        %v9887 = vrot.slane %v9839, 5
        %v9888 = vsel %vm1874, %v9886, %v9887
        %v9889 = vrot.slane %v9840, 5
        %v9890 = vsel %vm1874, %v9887, %v9889
        %v9891 = vrot.slane %v9841, 5
        %v9892 = vrot.slane %v9842, 5
        %v9893 = vsel %vm1874, %v9891, %v9892
        %v9894 = vrot.slane %v9843, 5
        %v9895 = vsel %vm1874, %v9892, %v9894
        %v9896 = vrot.slane %v9844, 5
        %v9897 = vrot.slane %v9845, 5
        %v9898 = vsel %vm1874, %v9896, %v9897
        %v9899 = vrot.slane %v9846, 5
        %v9900 = vsel %vm1874, %v9897, %v9899
        %v9901 = vrot.slane %v9847, 5
        %v9902 = vrot.slane %v9848, 5
        %v9903 = vsel %vm1874, %v9901, %v9902
        %v9904 = vrot.slane %v9849, 5
        %v9905 = vsel %vm1874, %v9902, %v9904
        %v9906 = vrot.slane %v9850, 5
        %v9907 = vrot.slane %v9851, 5
        %v9908 = vsel %vm1874, %v9906, %v9907
        %v9909 = vrot.slane %v9852, 5
        %v9910 = vsel %vm1874, %v9907, %v9909
        %v9911 = vrot.slane %v9853, 5
        %v9912 = vrot.slane %v9854, 5
        %v9913 = vsel %vm1874, %v9911, %v9912
        %v9914 = vrot.slane %v9855, 5
        %v9915 = vsel %vm1874, %v9912, %v9914
        %v9916 = vrot.slane %v9856, 5
        %v9917 = vrot.slane %v9857, 5
        %v9918 = vsel %vm1874, %v9916, %v9917
        %v9919 = vrot.slane %v9858, 5
        %v9920 = vsel %vm1874, %v9917, %v9919
        %v9921 = vrot.slane %v9859, 5
        %v9922 = vrot.slane %v9860, 5
        %v9923 = vsel %vm1874, %v9921, %v9922
        %v9924 = vrot.slane %v9861, 5
        %v9925 = vsel %vm1874, %v9922, %v9924
        %v9950 = vadd.f32 %v9694, %v9888
        %v9951 = vadd.f32 %v9695, %v9890
        %v9952 = vadd.f32 %v9696, %v9889
        %v9953 = vadd.f32 %v9697, %v9893
        %v9954 = vadd.f32 %v9698, %v9895
        %v9955 = vadd.f32 %v9699, %v9894
        %v9956 = vadd.f32 %v9700, %v9898
        %v9957 = vadd.f32 %v9701, %v9900
        %v9958 = vadd.f32 %v9702, %v9899
        %v9959 = vadd.f32 %v9703, %v9903
        %v9960 = vadd.f32 %v9704, %v9905
        %v9961 = vadd.f32 %v9705, %v9904
        %v9962 = vadd.f32 %v9706, %v9908
        %v9963 = vadd.f32 %v9707, %v9910
        %v9964 = vadd.f32 %v9708, %v9909
        %v9965 = vadd.f32 %v9709, %v9913
        %v9966 = vadd.f32 %v9710, %v9915
        %v9967 = vadd.f32 %v9711, %v9914
        %v9968 = vadd.f32 %v9712, %v9918
        %v9969 = vadd.f32 %v9713, %v9920
        %v9970 = vadd.f32 %v9714, %v9919
        %v9971 = vadd.f32 %v9715, %v9923
        %v9972 = vadd.f32 %v9716, %v9925
        %v9973 = vadd.f32 %v9717, %v9924
        %v9974 = vunpack.c.l.bf16 %v6764
        %v9975 = vunpack.c.l.bf16 %v6765
        %v9976 = vunpack.c.l.bf16 %v6766
        %v9977 = vmul.f32 %v6785, %v3739
        %v9978 = vmul.f32 %v6786, %v3739
        %v9979 = vmul.f32 %v6788, %v3739
        %v9980 = vmul.f32 %v6789, %v3739
        %v9981 = vmul.f32 %v6791, %v3739
        %v9982 = vmul.f32 %v6792, %v3739
        %v9983 = vmul.f32 %v6794, %v3739
        %v9984 = vmul.f32 %v6795, %v3739
        %v9985 = vmul.f32 %v7509, %v3739
        %v9986 = vmul.f32 %v7510, %v3739
        %v9987 = vmul.f32 %v8384, %v3739
        %v9988 = vmul.f32 %v8385, %v3739
        %v9989 = vmul.f32 %v9099, %v3739
        %v9990 = vmul.f32 %v9100, %v3739
        %v9991 = vmul.f32 %v9974, %v3739
        %v9992 = vmul.f32 %v9975, %v3739
        %v9993 = vadd.f32 %v9822, %v9977
        %v9994 = vadd.f32 %v9823, %v9978
        %v9995 = vadd.f32 %v9824, %v9979
        %v9996 = vadd.f32 %v9825, %v9980
        %v9997 = vadd.f32 %v9826, %v9981
        %v9998 = vadd.f32 %v9827, %v9982
        %v9999 = vadd.f32 %v9828, %v9983
        %v10000 = vadd.f32 %v9829, %v9984
        %v10001 = vadd.f32 %v9830, %v9985
        %v10002 = vadd.f32 %v9831, %v9986
        %v10003 = vadd.f32 %v9832, %v9987
        %v10004 = vadd.f32 %v9833, %v9988
        %v10005 = vadd.f32 %v9834, %v9989
        %v10006 = vadd.f32 %v9835, %v9990
        %v10007 = vadd.f32 %v9836, %v9991
        %v10008 = vadd.f32 %v9837, %v9992
        %v10009 = vmul.f32 %v6785, %v3775
        %v10010 = vmul.f32 %v6786, %v3775
        %v10011 = vmul.f32 %v6787, %v3775
        %v10012 = vmul.f32 %v6788, %v3775
        %v10013 = vmul.f32 %v6789, %v3775
        %v10014 = vmul.f32 %v6790, %v3775
        %v10015 = vmul.f32 %v6791, %v3775
        %v10016 = vmul.f32 %v6792, %v3775
        %v10017 = vmul.f32 %v6793, %v3775
        %v10018 = vmul.f32 %v6794, %v3775
        %v10019 = vmul.f32 %v6795, %v3775
        %v10020 = vmul.f32 %v6796, %v3775
        %v10021 = vmul.f32 %v7509, %v3775
        %v10022 = vmul.f32 %v7510, %v3775
        %v10023 = vmul.f32 %v7511, %v3775
        %v10024 = vmul.f32 %v8384, %v3775
        %v10025 = vmul.f32 %v8385, %v3775
        %v10026 = vmul.f32 %v8386, %v3775
        %v10027 = vmul.f32 %v9099, %v3775
        %v10028 = vmul.f32 %v9100, %v3775
        %v10029 = vmul.f32 %v9101, %v3775
        %v10030 = vmul.f32 %v9974, %v3775
        %v10031 = vmul.f32 %v9975, %v3775
        %v10032 = vmul.f32 %v9976, %v3775
        %v10033 = vadd.f32 %v9950, %v10009
        %v10034 = vadd.f32 %v9951, %v10010
        %v10035 = vadd.f32 %v9952, %v10011
        %v10036 = vadd.f32 %v9953, %v10012
        %v10037 = vadd.f32 %v9954, %v10013
        %v10038 = vadd.f32 %v9955, %v10014
        %v10039 = vadd.f32 %v9956, %v10015
        %v10040 = vadd.f32 %v9957, %v10016
        %v10041 = vadd.f32 %v9958, %v10017
        %v10042 = vadd.f32 %v9959, %v10018
        %v10043 = vadd.f32 %v9960, %v10019
        %v10044 = vadd.f32 %v9961, %v10020
        %v10045 = vadd.f32 %v9962, %v10021
        %v10046 = vadd.f32 %v9963, %v10022
        %v10047 = vadd.f32 %v9964, %v10023
        %v10048 = vadd.f32 %v9965, %v10024
        %v10049 = vadd.f32 %v9966, %v10025
        %v10050 = vadd.f32 %v9967, %v10026
        %v10051 = vadd.f32 %v9968, %v10027
        %v10052 = vadd.f32 %v9969, %v10028
        %v10053 = vadd.f32 %v9970, %v10029
        %v10054 = vadd.f32 %v9971, %v10030
        %v10055 = vadd.f32 %v9972, %v10031
        %v10056 = vadd.f32 %v9973, %v10032
        %v10057 = vmul.f32 %v6785, %v3827
        %v10058 = vmul.f32 %v6786, %v3827
        %v10059 = vmul.f32 %v6787, %v3827
        %v10060 = vmul.f32 %v6788, %v3827
        %v10061 = vmul.f32 %v6789, %v3827
        %v10062 = vmul.f32 %v6790, %v3827
        %v10063 = vmul.f32 %v6791, %v3827
        %v10064 = vmul.f32 %v6792, %v3827
        %v10065 = vmul.f32 %v6793, %v3827
        %v10066 = vmul.f32 %v6794, %v3827
        %v10067 = vmul.f32 %v6795, %v3827
        %v10068 = vmul.f32 %v6796, %v3827
        %v10069 = vmul.f32 %v7509, %v3827
        %v10070 = vmul.f32 %v7510, %v3827
        %v10071 = vmul.f32 %v7511, %v3827
        %v10072 = vmul.f32 %v8384, %v3827
        %v10073 = vmul.f32 %v8385, %v3827
        %v10074 = vmul.f32 %v8386, %v3827
        %v10075 = vmul.f32 %v9099, %v3827
        %v10076 = vmul.f32 %v9100, %v3827
        %v10077 = vmul.f32 %v9101, %v3827
        %v10078 = vmul.f32 %v9974, %v3827
        %v10079 = vmul.f32 %v9975, %v3827
        %v10080 = vmul.f32 %v9976, %v3827
        %v10105 = vrot.slane %v10057, 2
        %v10106 = vrot.slane %v10058, 2
        %v10107 = vsel %vm577, %v10105, %v10106
        %v10108 = vrot.slane %v10059, 2
        %v10109 = vsel %vm577, %v10106, %v10108
        %v10110 = vrot.slane %v10060, 2
        %v10111 = vrot.slane %v10061, 2
        %v10112 = vsel %vm577, %v10110, %v10111
        %v10113 = vrot.slane %v10062, 2
        %v10114 = vsel %vm577, %v10111, %v10113
        %v10115 = vrot.slane %v10063, 2
        %v10116 = vrot.slane %v10064, 2
        %v10117 = vsel %vm577, %v10115, %v10116
        %v10118 = vrot.slane %v10065, 2
        %v10119 = vsel %vm577, %v10116, %v10118
        %v10120 = vrot.slane %v10066, 2
        %v10121 = vrot.slane %v10067, 2
        %v10122 = vsel %vm577, %v10120, %v10121
        %v10123 = vrot.slane %v10068, 2
        %v10124 = vsel %vm577, %v10121, %v10123
        %v10125 = vrot.slane %v10069, 2
        %v10126 = vrot.slane %v10070, 2
        %v10127 = vsel %vm577, %v10125, %v10126
        %v10128 = vrot.slane %v10071, 2
        %v10129 = vsel %vm577, %v10126, %v10128
        %v10130 = vrot.slane %v10072, 2
        %v10131 = vrot.slane %v10073, 2
        %v10132 = vsel %vm577, %v10130, %v10131
        %v10133 = vrot.slane %v10074, 2
        %v10134 = vsel %vm577, %v10131, %v10133
        %v10135 = vrot.slane %v10075, 2
        %v10136 = vrot.slane %v10076, 2
        %v10137 = vsel %vm577, %v10135, %v10136
        %v10138 = vrot.slane %v10077, 2
        %v10139 = vsel %vm577, %v10136, %v10138
        %v10140 = vrot.slane %v10078, 2
        %v10141 = vrot.slane %v10079, 2
        %v10142 = vsel %vm577, %v10140, %v10141
        %v10143 = vrot.slane %v10080, 2
        %v10144 = vsel %vm577, %v10141, %v10143
        %v10161 = vadd.f32 %v9993, %v10107
        %v10162 = vadd.f32 %v9994, %v10109
        %v10163 = vadd.f32 %v9995, %v10112
        %v10164 = vadd.f32 %v9996, %v10114
        %v10165 = vadd.f32 %v9997, %v10117
        %v10166 = vadd.f32 %v9998, %v10119
        %v10167 = vadd.f32 %v9999, %v10122
        %v10168 = vadd.f32 %v10000, %v10124
        %v10169 = vadd.f32 %v10001, %v10127
        %v10170 = vadd.f32 %v10002, %v10129
        %v10171 = vadd.f32 %v10003, %v10132
        %v10172 = vadd.f32 %v10004, %v10134
        %v10173 = vadd.f32 %v10005, %v10137
        %v10174 = vadd.f32 %v10006, %v10139
        %v10175 = vadd.f32 %v10007, %v10142
        %v10176 = vadd.f32 %v10008, %v10144
        %v10177 = vmul.f32 %v6785, %v3951
        %v10178 = vmul.f32 %v6786, %v3951
        %v10179 = vmul.f32 %v6787, %v3951
        %v10180 = vmul.f32 %v6788, %v3951
        %v10181 = vmul.f32 %v6789, %v3951
        %v10182 = vmul.f32 %v6790, %v3951
        %v10183 = vmul.f32 %v6791, %v3951
        %v10184 = vmul.f32 %v6792, %v3951
        %v10185 = vmul.f32 %v6793, %v3951
        %v10186 = vmul.f32 %v6794, %v3951
        %v10187 = vmul.f32 %v6795, %v3951
        %v10188 = vmul.f32 %v6796, %v3951
        %v10189 = vmul.f32 %v7509, %v3951
        %v10190 = vmul.f32 %v7510, %v3951
        %v10191 = vmul.f32 %v7511, %v3951
        %v10192 = vmul.f32 %v8384, %v3951
        %v10193 = vmul.f32 %v8385, %v3951
        %v10194 = vmul.f32 %v8386, %v3951
        %v10195 = vmul.f32 %v9099, %v3951
        %v10196 = vmul.f32 %v9100, %v3951
        %v10197 = vmul.f32 %v9101, %v3951
        %v10198 = vmul.f32 %v9974, %v3951
        %v10199 = vmul.f32 %v9975, %v3951
        %v10200 = vmul.f32 %v9976, %v3951
        %v10225 = vrot.slane %v10177, 2
        %v10226 = vrot.slane %v10178, 2
        %v10227 = vsel %vm577, %v10225, %v10226
        %v10228 = vrot.slane %v10179, 2
        %v10229 = vsel %vm577, %v10226, %v10228
        %v10230 = vrot.slane %v10180, 2
        %v10231 = vrot.slane %v10181, 2
        %v10232 = vsel %vm577, %v10230, %v10231
        %v10233 = vrot.slane %v10182, 2
        %v10234 = vsel %vm577, %v10231, %v10233
        %v10235 = vrot.slane %v10183, 2
        %v10236 = vrot.slane %v10184, 2
        %v10237 = vsel %vm577, %v10235, %v10236
        %v10238 = vrot.slane %v10185, 2
        %v10239 = vsel %vm577, %v10236, %v10238
        %v10240 = vrot.slane %v10186, 2
        %v10241 = vrot.slane %v10187, 2
        %v10242 = vsel %vm577, %v10240, %v10241
        %v10243 = vrot.slane %v10188, 2
        %v10244 = vsel %vm577, %v10241, %v10243
        %v10245 = vrot.slane %v10189, 2
        %v10246 = vrot.slane %v10190, 2
        %v10247 = vsel %vm577, %v10245, %v10246
        %v10248 = vrot.slane %v10191, 2
        %v10249 = vsel %vm577, %v10246, %v10248
        %v10250 = vrot.slane %v10192, 2
        %v10251 = vrot.slane %v10193, 2
        %v10252 = vsel %vm577, %v10250, %v10251
        %v10253 = vrot.slane %v10194, 2
        %v10254 = vsel %vm577, %v10251, %v10253
        %v10255 = vrot.slane %v10195, 2
        %v10256 = vrot.slane %v10196, 2
        %v10257 = vsel %vm577, %v10255, %v10256
        %v10258 = vrot.slane %v10197, 2
        %v10259 = vsel %vm577, %v10256, %v10258
        %v10260 = vrot.slane %v10198, 2
        %v10261 = vrot.slane %v10199, 2
        %v10262 = vsel %vm577, %v10260, %v10261
        %v10263 = vrot.slane %v10200, 2
        %v10264 = vsel %vm577, %v10261, %v10263
        %v10289 = vadd.f32 %v10033, %v10227
        %v10290 = vadd.f32 %v10034, %v10229
        %v10291 = vadd.f32 %v10035, %v10228
        %v10292 = vadd.f32 %v10036, %v10232
        %v10293 = vadd.f32 %v10037, %v10234
        %v10294 = vadd.f32 %v10038, %v10233
        %v10295 = vadd.f32 %v10039, %v10237
        %v10296 = vadd.f32 %v10040, %v10239
        %v10297 = vadd.f32 %v10041, %v10238
        %v10298 = vadd.f32 %v10042, %v10242
        %v10299 = vadd.f32 %v10043, %v10244
        %v10300 = vadd.f32 %v10044, %v10243
        %v10301 = vadd.f32 %v10045, %v10247
        %v10302 = vadd.f32 %v10046, %v10249
        %v10303 = vadd.f32 %v10047, %v10248
        %v10304 = vadd.f32 %v10048, %v10252
        %v10305 = vadd.f32 %v10049, %v10254
        %v10306 = vadd.f32 %v10050, %v10253
        %v10307 = vadd.f32 %v10051, %v10257
        %v10308 = vadd.f32 %v10052, %v10259
        %v10309 = vadd.f32 %v10053, %v10258
        %v10310 = vadd.f32 %v10054, %v10262
        %v10311 = vadd.f32 %v10055, %v10264
        %v10312 = vadd.f32 %v10056, %v10263
        %v10313 = vmul.f32 %v6785, %v4091
        %v10314 = vmul.f32 %v6786, %v4091
        %v10315 = vmul.f32 %v6787, %v4091
        %v10316 = vmul.f32 %v6788, %v4091
        %v10317 = vmul.f32 %v6789, %v4091
        %v10318 = vmul.f32 %v6790, %v4091
        %v10319 = vmul.f32 %v6791, %v4091
        %v10320 = vmul.f32 %v6792, %v4091
        %v10321 = vmul.f32 %v6793, %v4091
        %v10322 = vmul.f32 %v6794, %v4091
        %v10323 = vmul.f32 %v6795, %v4091
        %v10324 = vmul.f32 %v6796, %v4091
        %v10325 = vmul.f32 %v7509, %v4091
        %v10326 = vmul.f32 %v7510, %v4091
        %v10327 = vmul.f32 %v7511, %v4091
        %v10328 = vmul.f32 %v8384, %v4091
        %v10329 = vmul.f32 %v8385, %v4091
        %v10330 = vmul.f32 %v8386, %v4091
        %v10331 = vmul.f32 %v9099, %v4091
        %v10332 = vmul.f32 %v9100, %v4091
        %v10333 = vmul.f32 %v9101, %v4091
        %v10334 = vmul.f32 %v9974, %v4091
        %v10335 = vmul.f32 %v9975, %v4091
        %v10336 = vmul.f32 %v9976, %v4091
        %v10361 = vrot.slane %v10313, 4
        %v10362 = vrot.slane %v10314, 4
        %v10363 = vsel %vm842, %v10361, %v10362
        %v10364 = vrot.slane %v10315, 4
        %v10365 = vsel %vm842, %v10362, %v10364
        %v10366 = vrot.slane %v10316, 4
        %v10367 = vrot.slane %v10317, 4
        %v10368 = vsel %vm842, %v10366, %v10367
        %v10369 = vrot.slane %v10318, 4
        %v10370 = vsel %vm842, %v10367, %v10369
        %v10371 = vrot.slane %v10319, 4
        %v10372 = vrot.slane %v10320, 4
        %v10373 = vsel %vm842, %v10371, %v10372
        %v10374 = vrot.slane %v10321, 4
        %v10375 = vsel %vm842, %v10372, %v10374
        %v10376 = vrot.slane %v10322, 4
        %v10377 = vrot.slane %v10323, 4
        %v10378 = vsel %vm842, %v10376, %v10377
        %v10379 = vrot.slane %v10324, 4
        %v10380 = vsel %vm842, %v10377, %v10379
        %v10381 = vrot.slane %v10325, 4
        %v10382 = vrot.slane %v10326, 4
        %v10383 = vsel %vm842, %v10381, %v10382
        %v10384 = vrot.slane %v10327, 4
        %v10385 = vsel %vm842, %v10382, %v10384
        %v10386 = vrot.slane %v10328, 4
        %v10387 = vrot.slane %v10329, 4
        %v10388 = vsel %vm842, %v10386, %v10387
        %v10389 = vrot.slane %v10330, 4
        %v10390 = vsel %vm842, %v10387, %v10389
        %v10391 = vrot.slane %v10331, 4
        %v10392 = vrot.slane %v10332, 4
        %v10393 = vsel %vm842, %v10391, %v10392
        %v10394 = vrot.slane %v10333, 4
        %v10395 = vsel %vm842, %v10392, %v10394
        %v10396 = vrot.slane %v10334, 4
        %v10397 = vrot.slane %v10335, 4
        %v10398 = vsel %vm842, %v10396, %v10397
        %v10399 = vrot.slane %v10336, 4
        %v10400 = vsel %vm842, %v10397, %v10399
        %v10417 = vadd.f32 %v10161, %v10363
        %v10418 = vadd.f32 %v10162, %v10365
        %v10419 = vadd.f32 %v10163, %v10368
        %v10420 = vadd.f32 %v10164, %v10370
        %v10421 = vadd.f32 %v10165, %v10373
        %v10422 = vadd.f32 %v10166, %v10375
        %v10423 = vadd.f32 %v10167, %v10378
        %v10424 = vadd.f32 %v10168, %v10380
        %v10425 = vadd.f32 %v10169, %v10383
        %v10426 = vadd.f32 %v10170, %v10385
        %v10427 = vadd.f32 %v10171, %v10388
        %v10428 = vadd.f32 %v10172, %v10390
        %v10429 = vadd.f32 %v10173, %v10393
        %v10430 = vadd.f32 %v10174, %v10395
        %v10431 = vadd.f32 %v10175, %v10398
        %v10432 = vadd.f32 %v10176, %v10400
        %v10433 = vmul.f32 %v6785, %v4215
        %v10434 = vmul.f32 %v6786, %v4215
        %v10435 = vmul.f32 %v6787, %v4215
        %v10436 = vmul.f32 %v6788, %v4215
        %v10437 = vmul.f32 %v6789, %v4215
        %v10438 = vmul.f32 %v6790, %v4215
        %v10439 = vmul.f32 %v6791, %v4215
        %v10440 = vmul.f32 %v6792, %v4215
        %v10441 = vmul.f32 %v6793, %v4215
        %v10442 = vmul.f32 %v6794, %v4215
        %v10443 = vmul.f32 %v6795, %v4215
        %v10444 = vmul.f32 %v6796, %v4215
        %v10445 = vmul.f32 %v7509, %v4215
        %v10446 = vmul.f32 %v7510, %v4215
        %v10447 = vmul.f32 %v7511, %v4215
        %v10448 = vmul.f32 %v8384, %v4215
        %v10449 = vmul.f32 %v8385, %v4215
        %v10450 = vmul.f32 %v8386, %v4215
        %v10451 = vmul.f32 %v9099, %v4215
        %v10452 = vmul.f32 %v9100, %v4215
        %v10453 = vmul.f32 %v9101, %v4215
        %v10454 = vmul.f32 %v9974, %v4215
        %v10455 = vmul.f32 %v9975, %v4215
        %v10456 = vmul.f32 %v9976, %v4215
        %v10481 = vrot.slane %v10433, 4
        %v10482 = vrot.slane %v10434, 4
        %v10483 = vsel %vm842, %v10481, %v10482
        %v10484 = vrot.slane %v10435, 4
        %v10485 = vsel %vm842, %v10482, %v10484
        %v10486 = vrot.slane %v10436, 4
        %v10487 = vrot.slane %v10437, 4
        %v10488 = vsel %vm842, %v10486, %v10487
        %v10489 = vrot.slane %v10438, 4
        %v10490 = vsel %vm842, %v10487, %v10489
        %v10491 = vrot.slane %v10439, 4
        %v10492 = vrot.slane %v10440, 4
        %v10493 = vsel %vm842, %v10491, %v10492
        %v10494 = vrot.slane %v10441, 4
        %v10495 = vsel %vm842, %v10492, %v10494
        %v10496 = vrot.slane %v10442, 4
        %v10497 = vrot.slane %v10443, 4
        %v10498 = vsel %vm842, %v10496, %v10497
        %v10499 = vrot.slane %v10444, 4
        %v10500 = vsel %vm842, %v10497, %v10499
        %v10501 = vrot.slane %v10445, 4
        %v10502 = vrot.slane %v10446, 4
        %v10503 = vsel %vm842, %v10501, %v10502
        %v10504 = vrot.slane %v10447, 4
        %v10505 = vsel %vm842, %v10502, %v10504
        %v10506 = vrot.slane %v10448, 4
        %v10507 = vrot.slane %v10449, 4
        %v10508 = vsel %vm842, %v10506, %v10507
        %v10509 = vrot.slane %v10450, 4
        %v10510 = vsel %vm842, %v10507, %v10509
        %v10511 = vrot.slane %v10451, 4
        %v10512 = vrot.slane %v10452, 4
        %v10513 = vsel %vm842, %v10511, %v10512
        %v10514 = vrot.slane %v10453, 4
        %v10515 = vsel %vm842, %v10512, %v10514
        %v10516 = vrot.slane %v10454, 4
        %v10517 = vrot.slane %v10455, 4
        %v10518 = vsel %vm842, %v10516, %v10517
        %v10519 = vrot.slane %v10456, 4
        %v10520 = vsel %vm842, %v10517, %v10519
        %v10545 = vadd.f32 %v10289, %v10483
        %v10546 = vadd.f32 %v10290, %v10485
        %v10547 = vadd.f32 %v10291, %v10484
        %v10548 = vadd.f32 %v10292, %v10488
        %v10549 = vadd.f32 %v10293, %v10490
        %v10550 = vadd.f32 %v10294, %v10489
        %v10551 = vadd.f32 %v10295, %v10493
        %v10552 = vadd.f32 %v10296, %v10495
        %v10553 = vadd.f32 %v10297, %v10494
        %v10554 = vadd.f32 %v10298, %v10498
        %v10555 = vadd.f32 %v10299, %v10500
        %v10556 = vadd.f32 %v10300, %v10499
        %v10557 = vadd.f32 %v10301, %v10503
        %v10558 = vadd.f32 %v10302, %v10505
        %v10559 = vadd.f32 %v10303, %v10504
        %v10560 = vadd.f32 %v10304, %v10508
        %v10561 = vadd.f32 %v10305, %v10510
        %v10562 = vadd.f32 %v10306, %v10509
        %v10563 = vadd.f32 %v10307, %v10513
        %v10564 = vadd.f32 %v10308, %v10515
        %v10565 = vadd.f32 %v10309, %v10514
        %v10566 = vadd.f32 %v10310, %v10518
        %v10567 = vadd.f32 %v10311, %v10520
        %v10568 = vadd.f32 %v10312, %v10519
        %v10569 = vmul.f32 %v6785, %v4355
        %v10570 = vmul.f32 %v6786, %v4355
        %v10571 = vmul.f32 %v6787, %v4355
        %v10572 = vmul.f32 %v6788, %v4355
        %v10573 = vmul.f32 %v6789, %v4355
        %v10574 = vmul.f32 %v6790, %v4355
        %v10575 = vmul.f32 %v6791, %v4355
        %v10576 = vmul.f32 %v6792, %v4355
        %v10577 = vmul.f32 %v6793, %v4355
        %v10578 = vmul.f32 %v6794, %v4355
        %v10579 = vmul.f32 %v6795, %v4355
        %v10580 = vmul.f32 %v6796, %v4355
        %v10581 = vmul.f32 %v7509, %v4355
        %v10582 = vmul.f32 %v7510, %v4355
        %v10583 = vmul.f32 %v7511, %v4355
        %v10584 = vmul.f32 %v8384, %v4355
        %v10585 = vmul.f32 %v8385, %v4355
        %v10586 = vmul.f32 %v8386, %v4355
        %v10587 = vmul.f32 %v9099, %v4355
        %v10588 = vmul.f32 %v9100, %v4355
        %v10589 = vmul.f32 %v9101, %v4355
        %v10590 = vmul.f32 %v9974, %v4355
        %v10591 = vmul.f32 %v9975, %v4355
        %v10592 = vmul.f32 %v9976, %v4355
        %v10617 = vrot.slane %v10569, 6
        %v10618 = vrot.slane %v10570, 6
        %v10619 = vsel %vm1107, %v10617, %v10618
        %v10620 = vrot.slane %v10571, 6
        %v10621 = vsel %vm1107, %v10618, %v10620
        %v10622 = vrot.slane %v10572, 6
        %v10623 = vrot.slane %v10573, 6
        %v10624 = vsel %vm1107, %v10622, %v10623
        %v10625 = vrot.slane %v10574, 6
        %v10626 = vsel %vm1107, %v10623, %v10625
        %v10627 = vrot.slane %v10575, 6
        %v10628 = vrot.slane %v10576, 6
        %v10629 = vsel %vm1107, %v10627, %v10628
        %v10630 = vrot.slane %v10577, 6
        %v10631 = vsel %vm1107, %v10628, %v10630
        %v10632 = vrot.slane %v10578, 6
        %v10633 = vrot.slane %v10579, 6
        %v10634 = vsel %vm1107, %v10632, %v10633
        %v10635 = vrot.slane %v10580, 6
        %v10636 = vsel %vm1107, %v10633, %v10635
        %v10637 = vrot.slane %v10581, 6
        %v10638 = vrot.slane %v10582, 6
        %v10639 = vsel %vm1107, %v10637, %v10638
        %v10640 = vrot.slane %v10583, 6
        %v10641 = vsel %vm1107, %v10638, %v10640
        %v10642 = vrot.slane %v10584, 6
        %v10643 = vrot.slane %v10585, 6
        %v10644 = vsel %vm1107, %v10642, %v10643
        %v10645 = vrot.slane %v10586, 6
        %v10646 = vsel %vm1107, %v10643, %v10645
        %v10647 = vrot.slane %v10587, 6
        %v10648 = vrot.slane %v10588, 6
        %v10649 = vsel %vm1107, %v10647, %v10648
        %v10650 = vrot.slane %v10589, 6
        %v10651 = vsel %vm1107, %v10648, %v10650
        %v10652 = vrot.slane %v10590, 6
        %v10653 = vrot.slane %v10591, 6
        %v10654 = vsel %vm1107, %v10652, %v10653
        %v10655 = vrot.slane %v10592, 6
        %v10656 = vsel %vm1107, %v10653, %v10655
        %v10673 = vadd.f32 %v10417, %v10619
        %v10674 = vadd.f32 %v10418, %v10621
        %v10675 = vadd.f32 %v10419, %v10624
        %v10676 = vadd.f32 %v10420, %v10626
        %v10677 = vadd.f32 %v10421, %v10629
        %v10678 = vadd.f32 %v10422, %v10631
        %v10679 = vadd.f32 %v10423, %v10634
        %v10680 = vadd.f32 %v10424, %v10636
        %v10681 = vadd.f32 %v10425, %v10639
        %v10682 = vadd.f32 %v10426, %v10641
        %v10683 = vadd.f32 %v10427, %v10644
        %v10684 = vadd.f32 %v10428, %v10646
        %v10685 = vadd.f32 %v10429, %v10649
        %v10686 = vadd.f32 %v10430, %v10651
        %v10687 = vadd.f32 %v10431, %v10654
        %v10688 = vadd.f32 %v10432, %v10656
        %v10689 = vunpack.c.l.bf16 %v6767
        %v10690 = vunpack.c.l.bf16 %v6768
        %v10691 = vunpack.c.l.bf16 %v6769
        %v10692 = vmul.f32 %v6788, %v4482
        %v10693 = vmul.f32 %v6789, %v4482
        %v10694 = vmul.f32 %v6791, %v4482
        %v10695 = vmul.f32 %v6792, %v4482
        %v10696 = vmul.f32 %v6794, %v4482
        %v10697 = vmul.f32 %v6795, %v4482
        %v10698 = vmul.f32 %v7509, %v4482
        %v10699 = vmul.f32 %v7510, %v4482
        %v10700 = vmul.f32 %v8384, %v4482
        %v10701 = vmul.f32 %v8385, %v4482
        %v10702 = vmul.f32 %v9099, %v4482
        %v10703 = vmul.f32 %v9100, %v4482
        %v10704 = vmul.f32 %v9974, %v4482
        %v10705 = vmul.f32 %v9975, %v4482
        %v10706 = vmul.f32 %v10689, %v4482
        %v10707 = vmul.f32 %v10690, %v4482
        %v10724 = vrot.slane %v10692, 7
        %v10725 = vrot.slane %v10693, 7
        %v10726 = vsel %vm1219, %v10724, %v10725
        %v10727 = vrot.slane %v10694, 7
        %v10728 = vrot.slane %v10695, 7
        %v10729 = vsel %vm1219, %v10727, %v10728
        %v10730 = vrot.slane %v10696, 7
        %v10731 = vrot.slane %v10697, 7
        %v10732 = vsel %vm1219, %v10730, %v10731
        %v10733 = vrot.slane %v10698, 7
        %v10734 = vrot.slane %v10699, 7
        %v10735 = vsel %vm1219, %v10733, %v10734
        %v10736 = vrot.slane %v10700, 7
        %v10737 = vrot.slane %v10701, 7
        %v10738 = vsel %vm1219, %v10736, %v10737
        %v10739 = vrot.slane %v10702, 7
        %v10740 = vrot.slane %v10703, 7
        %v10741 = vsel %vm1219, %v10739, %v10740
        %v10742 = vrot.slane %v10704, 7
        %v10743 = vrot.slane %v10705, 7
        %v10744 = vsel %vm1219, %v10742, %v10743
        %v10745 = vrot.slane %v10706, 7
        %v10746 = vrot.slane %v10707, 7
        %v10747 = vsel %vm1219, %v10745, %v10746
        %v10772 = vadd.f32 %v10545, %v10724
        %v10773 = vadd.f32 %v10546, %v10726
        %v10774 = vadd.f32 %v10547, %v10725
        %v10775 = vadd.f32 %v10548, %v10727
        %v10776 = vadd.f32 %v10549, %v10729
        %v10777 = vadd.f32 %v10550, %v10728
        %v10778 = vadd.f32 %v10551, %v10730
        %v10779 = vadd.f32 %v10552, %v10732
        %v10780 = vadd.f32 %v10553, %v10731
        %v10781 = vadd.f32 %v10554, %v10733
        %v10782 = vadd.f32 %v10555, %v10735
        %v10783 = vadd.f32 %v10556, %v10734
        %v10784 = vadd.f32 %v10557, %v10736
        %v10785 = vadd.f32 %v10558, %v10738
        %v10786 = vadd.f32 %v10559, %v10737
        %v10787 = vadd.f32 %v10560, %v10739
        %v10788 = vadd.f32 %v10561, %v10741
        %v10789 = vadd.f32 %v10562, %v10740
        %v10790 = vadd.f32 %v10563, %v10742
        %v10791 = vadd.f32 %v10564, %v10744
        %v10792 = vadd.f32 %v10565, %v10743
        %v10793 = vadd.f32 %v10566, %v10745
        %v10794 = vadd.f32 %v10567, %v10747
        %v10795 = vadd.f32 %v10568, %v10746
        %v10796 = vmul.f32 %v6788, %v4590
        %v10797 = vmul.f32 %v6789, %v4590
        %v10798 = vmul.f32 %v6790, %v4590
        %v10799 = vmul.f32 %v6791, %v4590
        %v10800 = vmul.f32 %v6792, %v4590
        %v10801 = vmul.f32 %v6793, %v4590
        %v10802 = vmul.f32 %v6794, %v4590
        %v10803 = vmul.f32 %v6795, %v4590
        %v10804 = vmul.f32 %v6796, %v4590
        %v10805 = vmul.f32 %v7509, %v4590
        %v10806 = vmul.f32 %v7510, %v4590
        %v10807 = vmul.f32 %v7511, %v4590
        %v10808 = vmul.f32 %v8384, %v4590
        %v10809 = vmul.f32 %v8385, %v4590
        %v10810 = vmul.f32 %v8386, %v4590
        %v10811 = vmul.f32 %v9099, %v4590
        %v10812 = vmul.f32 %v9100, %v4590
        %v10813 = vmul.f32 %v9101, %v4590
        %v10814 = vmul.f32 %v9974, %v4590
        %v10815 = vmul.f32 %v9975, %v4590
        %v10816 = vmul.f32 %v9976, %v4590
        %v10817 = vmul.f32 %v10689, %v4590
        %v10818 = vmul.f32 %v10690, %v4590
        %v10819 = vmul.f32 %v10691, %v4590
        %v10844 = vrot.slane %v10796, 1
        %v10845 = vrot.slane %v10797, 1
        %v10846 = vsel %vm1344, %v10844, %v10845
        %v10847 = vrot.slane %v10798, 1
        %v10848 = vsel %vm1344, %v10845, %v10847
        %v10849 = vrot.slane %v10799, 1
        %v10850 = vrot.slane %v10800, 1
        %v10851 = vsel %vm1344, %v10849, %v10850
        %v10852 = vrot.slane %v10801, 1
        %v10853 = vsel %vm1344, %v10850, %v10852
        %v10854 = vrot.slane %v10802, 1
        %v10855 = vrot.slane %v10803, 1
        %v10856 = vsel %vm1344, %v10854, %v10855
        %v10857 = vrot.slane %v10804, 1
        %v10858 = vsel %vm1344, %v10855, %v10857
        %v10859 = vrot.slane %v10805, 1
        %v10860 = vrot.slane %v10806, 1
        %v10861 = vsel %vm1344, %v10859, %v10860
        %v10862 = vrot.slane %v10807, 1
        %v10863 = vsel %vm1344, %v10860, %v10862
        %v10864 = vrot.slane %v10808, 1
        %v10865 = vrot.slane %v10809, 1
        %v10866 = vsel %vm1344, %v10864, %v10865
        %v10867 = vrot.slane %v10810, 1
        %v10868 = vsel %vm1344, %v10865, %v10867
        %v10869 = vrot.slane %v10811, 1
        %v10870 = vrot.slane %v10812, 1
        %v10871 = vsel %vm1344, %v10869, %v10870
        %v10872 = vrot.slane %v10813, 1
        %v10873 = vsel %vm1344, %v10870, %v10872
        %v10874 = vrot.slane %v10814, 1
        %v10875 = vrot.slane %v10815, 1
        %v10876 = vsel %vm1344, %v10874, %v10875
        %v10877 = vrot.slane %v10816, 1
        %v10878 = vsel %vm1344, %v10875, %v10877
        %v10879 = vrot.slane %v10817, 1
        %v10880 = vrot.slane %v10818, 1
        %v10881 = vsel %vm1344, %v10879, %v10880
        %v10882 = vrot.slane %v10819, 1
        %v10883 = vsel %vm1344, %v10880, %v10882
        %v10900 = vadd.f32 %v10673, %v10846
        %v10901 = vadd.f32 %v10674, %v10848
        %v10902 = vadd.f32 %v10675, %v10851
        %v10903 = vadd.f32 %v10676, %v10853
        %v10904 = vadd.f32 %v10677, %v10856
        %v10905 = vadd.f32 %v10678, %v10858
        %v10906 = vadd.f32 %v10679, %v10861
        %v10907 = vadd.f32 %v10680, %v10863
        %v10908 = vadd.f32 %v10681, %v10866
        %v10909 = vadd.f32 %v10682, %v10868
        %v10910 = vadd.f32 %v10683, %v10871
        %v10911 = vadd.f32 %v10684, %v10873
        %v10912 = vadd.f32 %v10685, %v10876
        %v10913 = vadd.f32 %v10686, %v10878
        %v10914 = vadd.f32 %v10687, %v10881
        %v10915 = vadd.f32 %v10688, %v10883
        %v10916 = vmul.f32 %v6788, %v4714
        %v10917 = vmul.f32 %v6789, %v4714
        %v10918 = vmul.f32 %v6790, %v4714
        %v10919 = vmul.f32 %v6791, %v4714
        %v10920 = vmul.f32 %v6792, %v4714
        %v10921 = vmul.f32 %v6793, %v4714
        %v10922 = vmul.f32 %v6794, %v4714
        %v10923 = vmul.f32 %v6795, %v4714
        %v10924 = vmul.f32 %v6796, %v4714
        %v10925 = vmul.f32 %v7509, %v4714
        %v10926 = vmul.f32 %v7510, %v4714
        %v10927 = vmul.f32 %v7511, %v4714
        %v10928 = vmul.f32 %v8384, %v4714
        %v10929 = vmul.f32 %v8385, %v4714
        %v10930 = vmul.f32 %v8386, %v4714
        %v10931 = vmul.f32 %v9099, %v4714
        %v10932 = vmul.f32 %v9100, %v4714
        %v10933 = vmul.f32 %v9101, %v4714
        %v10934 = vmul.f32 %v9974, %v4714
        %v10935 = vmul.f32 %v9975, %v4714
        %v10936 = vmul.f32 %v9976, %v4714
        %v10937 = vmul.f32 %v10689, %v4714
        %v10938 = vmul.f32 %v10690, %v4714
        %v10939 = vmul.f32 %v10691, %v4714
        %v10964 = vrot.slane %v10916, 1
        %v10965 = vrot.slane %v10917, 1
        %v10966 = vsel %vm1344, %v10964, %v10965
        %v10967 = vrot.slane %v10918, 1
        %v10968 = vsel %vm1344, %v10965, %v10967
        %v10969 = vrot.slane %v10919, 1
        %v10970 = vrot.slane %v10920, 1
        %v10971 = vsel %vm1344, %v10969, %v10970
        %v10972 = vrot.slane %v10921, 1
        %v10973 = vsel %vm1344, %v10970, %v10972
        %v10974 = vrot.slane %v10922, 1
        %v10975 = vrot.slane %v10923, 1
        %v10976 = vsel %vm1344, %v10974, %v10975
        %v10977 = vrot.slane %v10924, 1
        %v10978 = vsel %vm1344, %v10975, %v10977
        %v10979 = vrot.slane %v10925, 1
        %v10980 = vrot.slane %v10926, 1
        %v10981 = vsel %vm1344, %v10979, %v10980
        %v10982 = vrot.slane %v10927, 1
        %v10983 = vsel %vm1344, %v10980, %v10982
        %v10984 = vrot.slane %v10928, 1
        %v10985 = vrot.slane %v10929, 1
        %v10986 = vsel %vm1344, %v10984, %v10985
        %v10987 = vrot.slane %v10930, 1
        %v10988 = vsel %vm1344, %v10985, %v10987
        %v10989 = vrot.slane %v10931, 1
        %v10990 = vrot.slane %v10932, 1
        %v10991 = vsel %vm1344, %v10989, %v10990
        %v10992 = vrot.slane %v10933, 1
        %v10993 = vsel %vm1344, %v10990, %v10992
        %v10994 = vrot.slane %v10934, 1
        %v10995 = vrot.slane %v10935, 1
        %v10996 = vsel %vm1344, %v10994, %v10995
        %v10997 = vrot.slane %v10936, 1
        %v10998 = vsel %vm1344, %v10995, %v10997
        %v10999 = vrot.slane %v10937, 1
        %v11000 = vrot.slane %v10938, 1
        %v11001 = vsel %vm1344, %v10999, %v11000
        %v11002 = vrot.slane %v10939, 1
        %v11003 = vsel %vm1344, %v11000, %v11002
        %v11028 = vadd.f32 %v10772, %v10966
        %v11029 = vadd.f32 %v10773, %v10968
        %v11030 = vadd.f32 %v10774, %v10967
        %v11031 = vadd.f32 %v10775, %v10971
        %v11032 = vadd.f32 %v10776, %v10973
        %v11033 = vadd.f32 %v10777, %v10972
        %v11034 = vadd.f32 %v10778, %v10976
        %v11035 = vadd.f32 %v10779, %v10978
        %v11036 = vadd.f32 %v10780, %v10977
        %v11037 = vadd.f32 %v10781, %v10981
        %v11038 = vadd.f32 %v10782, %v10983
        %v11039 = vadd.f32 %v10783, %v10982
        %v11040 = vadd.f32 %v10784, %v10986
        %v11041 = vadd.f32 %v10785, %v10988
        %v11042 = vadd.f32 %v10786, %v10987
        %v11043 = vadd.f32 %v10787, %v10991
        %v11044 = vadd.f32 %v10788, %v10993
        %v11045 = vadd.f32 %v10789, %v10992
        %v11046 = vadd.f32 %v10790, %v10996
        %v11047 = vadd.f32 %v10791, %v10998
        %v11048 = vadd.f32 %v10792, %v10997
        %v11049 = vadd.f32 %v10793, %v11001
        %v11050 = vadd.f32 %v10794, %v11003
        %v11051 = vadd.f32 %v10795, %v11002
        %v11052 = vmul.f32 %v6788, %v4854
        %v11053 = vmul.f32 %v6789, %v4854
        %v11054 = vmul.f32 %v6790, %v4854
        %v11055 = vmul.f32 %v6791, %v4854
        %v11056 = vmul.f32 %v6792, %v4854
        %v11057 = vmul.f32 %v6793, %v4854
        %v11058 = vmul.f32 %v6794, %v4854
        %v11059 = vmul.f32 %v6795, %v4854
        %v11060 = vmul.f32 %v6796, %v4854
        %v11061 = vmul.f32 %v7509, %v4854
        %v11062 = vmul.f32 %v7510, %v4854
        %v11063 = vmul.f32 %v7511, %v4854
        %v11064 = vmul.f32 %v8384, %v4854
        %v11065 = vmul.f32 %v8385, %v4854
        %v11066 = vmul.f32 %v8386, %v4854
        %v11067 = vmul.f32 %v9099, %v4854
        %v11068 = vmul.f32 %v9100, %v4854
        %v11069 = vmul.f32 %v9101, %v4854
        %v11070 = vmul.f32 %v9974, %v4854
        %v11071 = vmul.f32 %v9975, %v4854
        %v11072 = vmul.f32 %v9976, %v4854
        %v11073 = vmul.f32 %v10689, %v4854
        %v11074 = vmul.f32 %v10690, %v4854
        %v11075 = vmul.f32 %v10691, %v4854
        %v11100 = vrot.slane %v11052, 3
        %v11101 = vrot.slane %v11053, 3
        %v11102 = vsel %vm1609, %v11100, %v11101
        %v11103 = vrot.slane %v11054, 3
        %v11104 = vsel %vm1609, %v11101, %v11103
        %v11105 = vrot.slane %v11055, 3
        %v11106 = vrot.slane %v11056, 3
        %v11107 = vsel %vm1609, %v11105, %v11106
        %v11108 = vrot.slane %v11057, 3
        %v11109 = vsel %vm1609, %v11106, %v11108
        %v11110 = vrot.slane %v11058, 3
        %v11111 = vrot.slane %v11059, 3
        %v11112 = vsel %vm1609, %v11110, %v11111
        %v11113 = vrot.slane %v11060, 3
        %v11114 = vsel %vm1609, %v11111, %v11113
        %v11115 = vrot.slane %v11061, 3
        %v11116 = vrot.slane %v11062, 3
        %v11117 = vsel %vm1609, %v11115, %v11116
        %v11118 = vrot.slane %v11063, 3
        %v11119 = vsel %vm1609, %v11116, %v11118
        %v11120 = vrot.slane %v11064, 3
        %v11121 = vrot.slane %v11065, 3
        %v11122 = vsel %vm1609, %v11120, %v11121
        %v11123 = vrot.slane %v11066, 3
        %v11124 = vsel %vm1609, %v11121, %v11123
        %v11125 = vrot.slane %v11067, 3
        %v11126 = vrot.slane %v11068, 3
        %v11127 = vsel %vm1609, %v11125, %v11126
        %v11128 = vrot.slane %v11069, 3
        %v11129 = vsel %vm1609, %v11126, %v11128
        %v11130 = vrot.slane %v11070, 3
        %v11131 = vrot.slane %v11071, 3
        %v11132 = vsel %vm1609, %v11130, %v11131
        %v11133 = vrot.slane %v11072, 3
        %v11134 = vsel %vm1609, %v11131, %v11133
        %v11135 = vrot.slane %v11073, 3
        %v11136 = vrot.slane %v11074, 3
        %v11137 = vsel %vm1609, %v11135, %v11136
        %v11138 = vrot.slane %v11075, 3
        %v11139 = vsel %vm1609, %v11136, %v11138
        %v11156 = vadd.f32 %v10900, %v11102
        %v11157 = vadd.f32 %v10901, %v11104
        %v11158 = vadd.f32 %v10902, %v11107
        %v11159 = vadd.f32 %v10903, %v11109
        %v11160 = vadd.f32 %v10904, %v11112
        %v11161 = vadd.f32 %v10905, %v11114
        %v11162 = vadd.f32 %v10906, %v11117
        %v11163 = vadd.f32 %v10907, %v11119
        %v11164 = vadd.f32 %v10908, %v11122
        %v11165 = vadd.f32 %v10909, %v11124
        %v11166 = vadd.f32 %v10910, %v11127
        %v11167 = vadd.f32 %v10911, %v11129
        %v11168 = vadd.f32 %v10912, %v11132
        %v11169 = vadd.f32 %v10913, %v11134
        %v11170 = vadd.f32 %v10914, %v11137
        %v11171 = vadd.f32 %v10915, %v11139
        %v11172 = vmul.f32 %v6788, %v4978
        %v11173 = vmul.f32 %v6789, %v4978
        %v11174 = vmul.f32 %v6790, %v4978
        %v11175 = vmul.f32 %v6791, %v4978
        %v11176 = vmul.f32 %v6792, %v4978
        %v11177 = vmul.f32 %v6793, %v4978
        %v11178 = vmul.f32 %v6794, %v4978
        %v11179 = vmul.f32 %v6795, %v4978
        %v11180 = vmul.f32 %v6796, %v4978
        %v11181 = vmul.f32 %v7509, %v4978
        %v11182 = vmul.f32 %v7510, %v4978
        %v11183 = vmul.f32 %v7511, %v4978
        %v11184 = vmul.f32 %v8384, %v4978
        %v11185 = vmul.f32 %v8385, %v4978
        %v11186 = vmul.f32 %v8386, %v4978
        %v11187 = vmul.f32 %v9099, %v4978
        %v11188 = vmul.f32 %v9100, %v4978
        %v11189 = vmul.f32 %v9101, %v4978
        %v11190 = vmul.f32 %v9974, %v4978
        %v11191 = vmul.f32 %v9975, %v4978
        %v11192 = vmul.f32 %v9976, %v4978
        %v11193 = vmul.f32 %v10689, %v4978
        %v11194 = vmul.f32 %v10690, %v4978
        %v11195 = vmul.f32 %v10691, %v4978
        %v11220 = vrot.slane %v11172, 3
        %v11221 = vrot.slane %v11173, 3
        %v11222 = vsel %vm1609, %v11220, %v11221
        %v11223 = vrot.slane %v11174, 3
        %v11224 = vsel %vm1609, %v11221, %v11223
        %v11225 = vrot.slane %v11175, 3
        %v11226 = vrot.slane %v11176, 3
        %v11227 = vsel %vm1609, %v11225, %v11226
        %v11228 = vrot.slane %v11177, 3
        %v11229 = vsel %vm1609, %v11226, %v11228
        %v11230 = vrot.slane %v11178, 3
        %v11231 = vrot.slane %v11179, 3
        %v11232 = vsel %vm1609, %v11230, %v11231
        %v11233 = vrot.slane %v11180, 3
        %v11234 = vsel %vm1609, %v11231, %v11233
        %v11235 = vrot.slane %v11181, 3
        %v11236 = vrot.slane %v11182, 3
        %v11237 = vsel %vm1609, %v11235, %v11236
        %v11238 = vrot.slane %v11183, 3
        %v11239 = vsel %vm1609, %v11236, %v11238
        %v11240 = vrot.slane %v11184, 3
        %v11241 = vrot.slane %v11185, 3
        %v11242 = vsel %vm1609, %v11240, %v11241
        %v11243 = vrot.slane %v11186, 3
        %v11244 = vsel %vm1609, %v11241, %v11243
        %v11245 = vrot.slane %v11187, 3
        %v11246 = vrot.slane %v11188, 3
        %v11247 = vsel %vm1609, %v11245, %v11246
        %v11248 = vrot.slane %v11189, 3
        %v11249 = vsel %vm1609, %v11246, %v11248
        %v11250 = vrot.slane %v11190, 3
        %v11251 = vrot.slane %v11191, 3
        %v11252 = vsel %vm1609, %v11250, %v11251
        %v11253 = vrot.slane %v11192, 3
        %v11254 = vsel %vm1609, %v11251, %v11253
        %v11255 = vrot.slane %v11193, 3
        %v11256 = vrot.slane %v11194, 3
        %v11257 = vsel %vm1609, %v11255, %v11256
        %v11258 = vrot.slane %v11195, 3
        %v11259 = vsel %vm1609, %v11256, %v11258
        %v11284 = vadd.f32 %v11028, %v11222
        %v11285 = vadd.f32 %v11029, %v11224
        %v11286 = vadd.f32 %v11030, %v11223
        %v11287 = vadd.f32 %v11031, %v11227
        %v11288 = vadd.f32 %v11032, %v11229
        %v11289 = vadd.f32 %v11033, %v11228
        %v11290 = vadd.f32 %v11034, %v11232
        %v11291 = vadd.f32 %v11035, %v11234
        %v11292 = vadd.f32 %v11036, %v11233
        %v11293 = vadd.f32 %v11037, %v11237
        %v11294 = vadd.f32 %v11038, %v11239
        %v11295 = vadd.f32 %v11039, %v11238
        %v11296 = vadd.f32 %v11040, %v11242
        %v11297 = vadd.f32 %v11041, %v11244
        %v11298 = vadd.f32 %v11042, %v11243
        %v11299 = vadd.f32 %v11043, %v11247
        %v11300 = vadd.f32 %v11044, %v11249
        %v11301 = vadd.f32 %v11045, %v11248
        %v11302 = vadd.f32 %v11046, %v11252
        %v11303 = vadd.f32 %v11047, %v11254
        %v11304 = vadd.f32 %v11048, %v11253
        %v11305 = vadd.f32 %v11049, %v11257
        %v11306 = vadd.f32 %v11050, %v11259
        %v11307 = vadd.f32 %v11051, %v11258
        %v11308 = vmul.f32 %v6788, %v5118
        %v11309 = vmul.f32 %v6789, %v5118
        %v11310 = vmul.f32 %v6790, %v5118
        %v11311 = vmul.f32 %v6791, %v5118
        %v11312 = vmul.f32 %v6792, %v5118
        %v11313 = vmul.f32 %v6793, %v5118
        %v11314 = vmul.f32 %v6794, %v5118
        %v11315 = vmul.f32 %v6795, %v5118
        %v11316 = vmul.f32 %v6796, %v5118
        %v11317 = vmul.f32 %v7509, %v5118
        %v11318 = vmul.f32 %v7510, %v5118
        %v11319 = vmul.f32 %v7511, %v5118
        %v11320 = vmul.f32 %v8384, %v5118
        %v11321 = vmul.f32 %v8385, %v5118
        %v11322 = vmul.f32 %v8386, %v5118
        %v11323 = vmul.f32 %v9099, %v5118
        %v11324 = vmul.f32 %v9100, %v5118
        %v11325 = vmul.f32 %v9101, %v5118
        %v11326 = vmul.f32 %v9974, %v5118
        %v11327 = vmul.f32 %v9975, %v5118
        %v11328 = vmul.f32 %v9976, %v5118
        %v11329 = vmul.f32 %v10689, %v5118
        %v11330 = vmul.f32 %v10690, %v5118
        %v11331 = vmul.f32 %v10691, %v5118
        %v11356 = vrot.slane %v11308, 5
        %v11357 = vrot.slane %v11309, 5
        %v11358 = vsel %vm1874, %v11356, %v11357
        %v11359 = vrot.slane %v11310, 5
        %v11360 = vsel %vm1874, %v11357, %v11359
        %v11361 = vrot.slane %v11311, 5
        %v11362 = vrot.slane %v11312, 5
        %v11363 = vsel %vm1874, %v11361, %v11362
        %v11364 = vrot.slane %v11313, 5
        %v11365 = vsel %vm1874, %v11362, %v11364
        %v11366 = vrot.slane %v11314, 5
        %v11367 = vrot.slane %v11315, 5
        %v11368 = vsel %vm1874, %v11366, %v11367
        %v11369 = vrot.slane %v11316, 5
        %v11370 = vsel %vm1874, %v11367, %v11369
        %v11371 = vrot.slane %v11317, 5
        %v11372 = vrot.slane %v11318, 5
        %v11373 = vsel %vm1874, %v11371, %v11372
        %v11374 = vrot.slane %v11319, 5
        %v11375 = vsel %vm1874, %v11372, %v11374
        %v11376 = vrot.slane %v11320, 5
        %v11377 = vrot.slane %v11321, 5
        %v11378 = vsel %vm1874, %v11376, %v11377
        %v11379 = vrot.slane %v11322, 5
        %v11380 = vsel %vm1874, %v11377, %v11379
        %v11381 = vrot.slane %v11323, 5
        %v11382 = vrot.slane %v11324, 5
        %v11383 = vsel %vm1874, %v11381, %v11382
        %v11384 = vrot.slane %v11325, 5
        %v11385 = vsel %vm1874, %v11382, %v11384
        %v11386 = vrot.slane %v11326, 5
        %v11387 = vrot.slane %v11327, 5
        %v11388 = vsel %vm1874, %v11386, %v11387
        %v11389 = vrot.slane %v11328, 5
        %v11390 = vsel %vm1874, %v11387, %v11389
        %v11391 = vrot.slane %v11329, 5
        %v11392 = vrot.slane %v11330, 5
        %v11393 = vsel %vm1874, %v11391, %v11392
        %v11394 = vrot.slane %v11331, 5
        %v11395 = vsel %vm1874, %v11392, %v11394
        %v11412 = vadd.f32 %v11156, %v11358
        %v11413 = vadd.f32 %v11157, %v11360
        %v11414 = vadd.f32 %v11158, %v11363
        %v11415 = vadd.f32 %v11159, %v11365
        %v11416 = vadd.f32 %v11160, %v11368
        %v11417 = vadd.f32 %v11161, %v11370
        %v11418 = vadd.f32 %v11162, %v11373
        %v11419 = vadd.f32 %v11163, %v11375
        %v11420 = vadd.f32 %v11164, %v11378
        %v11421 = vadd.f32 %v11165, %v11380
        %v11422 = vadd.f32 %v11166, %v11383
        %v11423 = vadd.f32 %v11167, %v11385
        %v11424 = vadd.f32 %v11168, %v11388
        %v11425 = vadd.f32 %v11169, %v11390
        %v11426 = vadd.f32 %v11170, %v11393
        %v11427 = vadd.f32 %v11171, %v11395
        %v11428 = vmul.f32 %v6788, %v5242
        %v11429 = vmul.f32 %v6789, %v5242
        %v11430 = vmul.f32 %v6790, %v5242
        %v11431 = vmul.f32 %v6791, %v5242
        %v11432 = vmul.f32 %v6792, %v5242
        %v11433 = vmul.f32 %v6793, %v5242
        %v11434 = vmul.f32 %v6794, %v5242
        %v11435 = vmul.f32 %v6795, %v5242
        %v11436 = vmul.f32 %v6796, %v5242
        %v11437 = vmul.f32 %v7509, %v5242
        %v11438 = vmul.f32 %v7510, %v5242
        %v11439 = vmul.f32 %v7511, %v5242
        %v11440 = vmul.f32 %v8384, %v5242
        %v11441 = vmul.f32 %v8385, %v5242
        %v11442 = vmul.f32 %v8386, %v5242
        %v11443 = vmul.f32 %v9099, %v5242
        %v11444 = vmul.f32 %v9100, %v5242
        %v11445 = vmul.f32 %v9101, %v5242
        %v11446 = vmul.f32 %v9974, %v5242
        %v11447 = vmul.f32 %v9975, %v5242
        %v11448 = vmul.f32 %v9976, %v5242
        %v11449 = vmul.f32 %v10689, %v5242
        %v11450 = vmul.f32 %v10690, %v5242
        %v11451 = vmul.f32 %v10691, %v5242
        %v11476 = vrot.slane %v11428, 5
        %v11477 = vrot.slane %v11429, 5
        %v11478 = vsel %vm1874, %v11476, %v11477
        %v11479 = vrot.slane %v11430, 5
        %v11480 = vsel %vm1874, %v11477, %v11479
        %v11481 = vrot.slane %v11431, 5
        %v11482 = vrot.slane %v11432, 5
        %v11483 = vsel %vm1874, %v11481, %v11482
        %v11484 = vrot.slane %v11433, 5
        %v11485 = vsel %vm1874, %v11482, %v11484
        %v11486 = vrot.slane %v11434, 5
        %v11487 = vrot.slane %v11435, 5
        %v11488 = vsel %vm1874, %v11486, %v11487
        %v11489 = vrot.slane %v11436, 5
        %v11490 = vsel %vm1874, %v11487, %v11489
        %v11491 = vrot.slane %v11437, 5
        %v11492 = vrot.slane %v11438, 5
        %v11493 = vsel %vm1874, %v11491, %v11492
        %v11494 = vrot.slane %v11439, 5
        %v11495 = vsel %vm1874, %v11492, %v11494
        %v11496 = vrot.slane %v11440, 5
        %v11497 = vrot.slane %v11441, 5
        %v11498 = vsel %vm1874, %v11496, %v11497
        %v11499 = vrot.slane %v11442, 5
        %v11500 = vsel %vm1874, %v11497, %v11499
        %v11501 = vrot.slane %v11443, 5
        %v11502 = vrot.slane %v11444, 5
        %v11503 = vsel %vm1874, %v11501, %v11502
        %v11504 = vrot.slane %v11445, 5
        %v11505 = vsel %vm1874, %v11502, %v11504
        %v11506 = vrot.slane %v11446, 5
        %v11507 = vrot.slane %v11447, 5
        %v11508 = vsel %vm1874, %v11506, %v11507
        %v11509 = vrot.slane %v11448, 5
        %v11510 = vsel %vm1874, %v11507, %v11509
        %v11511 = vrot.slane %v11449, 5
        %v11512 = vrot.slane %v11450, 5
        %v11513 = vsel %vm1874, %v11511, %v11512
        %v11514 = vrot.slane %v11451, 5
        %v11515 = vsel %vm1874, %v11512, %v11514
        %v11540 = vadd.f32 %v11284, %v11478
        %v11541 = vadd.f32 %v11285, %v11480
        %v11542 = vadd.f32 %v11286, %v11479
        %v11543 = vadd.f32 %v11287, %v11483
        %v11544 = vadd.f32 %v11288, %v11485
        %v11545 = vadd.f32 %v11289, %v11484
        %v11546 = vadd.f32 %v11290, %v11488
        %v11547 = vadd.f32 %v11291, %v11490
        %v11548 = vadd.f32 %v11292, %v11489
        %v11549 = vadd.f32 %v11293, %v11493
        %v11550 = vadd.f32 %v11294, %v11495
        %v11551 = vadd.f32 %v11295, %v11494
        %v11552 = vadd.f32 %v11296, %v11498
        %v11553 = vadd.f32 %v11297, %v11500
        %v11554 = vadd.f32 %v11298, %v11499
        %v11555 = vadd.f32 %v11299, %v11503
        %v11556 = vadd.f32 %v11300, %v11505
        %v11557 = vadd.f32 %v11301, %v11504
        %v11558 = vadd.f32 %v11302, %v11508
        %v11559 = vadd.f32 %v11303, %v11510
        %v11560 = vadd.f32 %v11304, %v11509
        %v11561 = vadd.f32 %v11305, %v11513
        %v11562 = vadd.f32 %v11306, %v11515
        %v11563 = vadd.f32 %v11307, %v11514
        %v11564 = vunpack.c.l.bf16 %v6770
        %v11565 = vunpack.c.l.bf16 %v6771
        %v11566 = vunpack.c.l.bf16 %v6772
        %v11567 = vmul.f32 %v6791, %v5385
        %v11568 = vmul.f32 %v6792, %v5385
        %v11569 = vmul.f32 %v6794, %v5385
        %v11570 = vmul.f32 %v6795, %v5385
        %v11571 = vmul.f32 %v7509, %v5385
        %v11572 = vmul.f32 %v7510, %v5385
        %v11573 = vmul.f32 %v8384, %v5385
        %v11574 = vmul.f32 %v8385, %v5385
        %v11575 = vmul.f32 %v9099, %v5385
        %v11576 = vmul.f32 %v9100, %v5385
        %v11577 = vmul.f32 %v9974, %v5385
        %v11578 = vmul.f32 %v9975, %v5385
        %v11579 = vmul.f32 %v10689, %v5385
        %v11580 = vmul.f32 %v10690, %v5385
        %v11581 = vmul.f32 %v11564, %v5385
        %v11582 = vmul.f32 %v11565, %v5385
        %v11583 = vadd.f32 %v11412, %v11567
        %v11584 = vadd.f32 %v11413, %v11568
        %v11585 = vadd.f32 %v11414, %v11569
        %v11586 = vadd.f32 %v11415, %v11570
        %v11587 = vadd.f32 %v11416, %v11571
        %v11588 = vadd.f32 %v11417, %v11572
        %v11589 = vadd.f32 %v11418, %v11573
        %v11590 = vadd.f32 %v11419, %v11574
        %v11591 = vadd.f32 %v11420, %v11575
        %v11592 = vadd.f32 %v11421, %v11576
        %v11593 = vadd.f32 %v11422, %v11577
        %v11594 = vadd.f32 %v11423, %v11578
        %v11595 = vadd.f32 %v11424, %v11579
        %v11596 = vadd.f32 %v11425, %v11580
        %v11597 = vadd.f32 %v11426, %v11581
        %v11598 = vadd.f32 %v11427, %v11582
        %v11599 = vmul.f32 %v6791, %v5421
        %v11600 = vmul.f32 %v6792, %v5421
        %v11601 = vmul.f32 %v6793, %v5421
        %v11602 = vmul.f32 %v6794, %v5421
        %v11603 = vmul.f32 %v6795, %v5421
        %v11604 = vmul.f32 %v6796, %v5421
        %v11605 = vmul.f32 %v7509, %v5421
        %v11606 = vmul.f32 %v7510, %v5421
        %v11607 = vmul.f32 %v7511, %v5421
        %v11608 = vmul.f32 %v8384, %v5421
        %v11609 = vmul.f32 %v8385, %v5421
        %v11610 = vmul.f32 %v8386, %v5421
        %v11611 = vmul.f32 %v9099, %v5421
        %v11612 = vmul.f32 %v9100, %v5421
        %v11613 = vmul.f32 %v9101, %v5421
        %v11614 = vmul.f32 %v9974, %v5421
        %v11615 = vmul.f32 %v9975, %v5421
        %v11616 = vmul.f32 %v9976, %v5421
        %v11617 = vmul.f32 %v10689, %v5421
        %v11618 = vmul.f32 %v10690, %v5421
        %v11619 = vmul.f32 %v10691, %v5421
        %v11620 = vmul.f32 %v11564, %v5421
        %v11621 = vmul.f32 %v11565, %v5421
        %v11622 = vmul.f32 %v11566, %v5421
        %v11623 = vadd.f32 %v11540, %v11599
        %v11624 = vadd.f32 %v11541, %v11600
        %v11625 = vadd.f32 %v11542, %v11601
        %v11626 = vadd.f32 %v11543, %v11602
        %v11627 = vadd.f32 %v11544, %v11603
        %v11628 = vadd.f32 %v11545, %v11604
        %v11629 = vadd.f32 %v11546, %v11605
        %v11630 = vadd.f32 %v11547, %v11606
        %v11631 = vadd.f32 %v11548, %v11607
        %v11632 = vadd.f32 %v11549, %v11608
        %v11633 = vadd.f32 %v11550, %v11609
        %v11634 = vadd.f32 %v11551, %v11610
        %v11635 = vadd.f32 %v11552, %v11611
        %v11636 = vadd.f32 %v11553, %v11612
        %v11637 = vadd.f32 %v11554, %v11613
        %v11638 = vadd.f32 %v11555, %v11614
        %v11639 = vadd.f32 %v11556, %v11615
        %v11640 = vadd.f32 %v11557, %v11616
        %v11641 = vadd.f32 %v11558, %v11617
        %v11642 = vadd.f32 %v11559, %v11618
        %v11643 = vadd.f32 %v11560, %v11619
        %v11644 = vadd.f32 %v11561, %v11620
        %v11645 = vadd.f32 %v11562, %v11621
        %v11646 = vadd.f32 %v11563, %v11622
        %v11647 = vmul.f32 %v6791, %v5473
        %v11648 = vmul.f32 %v6792, %v5473
        %v11649 = vmul.f32 %v6793, %v5473
        %v11650 = vmul.f32 %v6794, %v5473
        %v11651 = vmul.f32 %v6795, %v5473
        %v11652 = vmul.f32 %v6796, %v5473
        %v11653 = vmul.f32 %v7509, %v5473
        %v11654 = vmul.f32 %v7510, %v5473
        %v11655 = vmul.f32 %v7511, %v5473
        %v11656 = vmul.f32 %v8384, %v5473
        %v11657 = vmul.f32 %v8385, %v5473
        %v11658 = vmul.f32 %v8386, %v5473
        %v11659 = vmul.f32 %v9099, %v5473
        %v11660 = vmul.f32 %v9100, %v5473
        %v11661 = vmul.f32 %v9101, %v5473
        %v11662 = vmul.f32 %v9974, %v5473
        %v11663 = vmul.f32 %v9975, %v5473
        %v11664 = vmul.f32 %v9976, %v5473
        %v11665 = vmul.f32 %v10689, %v5473
        %v11666 = vmul.f32 %v10690, %v5473
        %v11667 = vmul.f32 %v10691, %v5473
        %v11668 = vmul.f32 %v11564, %v5473
        %v11669 = vmul.f32 %v11565, %v5473
        %v11670 = vmul.f32 %v11566, %v5473
        %v11695 = vrot.slane %v11647, 2
        %v11696 = vrot.slane %v11648, 2
        %v11697 = vsel %vm577, %v11695, %v11696
        %v11698 = vrot.slane %v11649, 2
        %v11699 = vsel %vm577, %v11696, %v11698
        %v11700 = vrot.slane %v11650, 2
        %v11701 = vrot.slane %v11651, 2
        %v11702 = vsel %vm577, %v11700, %v11701
        %v11703 = vrot.slane %v11652, 2
        %v11704 = vsel %vm577, %v11701, %v11703
        %v11705 = vrot.slane %v11653, 2
        %v11706 = vrot.slane %v11654, 2
        %v11707 = vsel %vm577, %v11705, %v11706
        %v11708 = vrot.slane %v11655, 2
        %v11709 = vsel %vm577, %v11706, %v11708
        %v11710 = vrot.slane %v11656, 2
        %v11711 = vrot.slane %v11657, 2
        %v11712 = vsel %vm577, %v11710, %v11711
        %v11713 = vrot.slane %v11658, 2
        %v11714 = vsel %vm577, %v11711, %v11713
        %v11715 = vrot.slane %v11659, 2
        %v11716 = vrot.slane %v11660, 2
        %v11717 = vsel %vm577, %v11715, %v11716
        %v11718 = vrot.slane %v11661, 2
        %v11719 = vsel %vm577, %v11716, %v11718
        %v11720 = vrot.slane %v11662, 2
        %v11721 = vrot.slane %v11663, 2
        %v11722 = vsel %vm577, %v11720, %v11721
        %v11723 = vrot.slane %v11664, 2
        %v11724 = vsel %vm577, %v11721, %v11723
        %v11725 = vrot.slane %v11665, 2
        %v11726 = vrot.slane %v11666, 2
        %v11727 = vsel %vm577, %v11725, %v11726
        %v11728 = vrot.slane %v11667, 2
        %v11729 = vsel %vm577, %v11726, %v11728
        %v11730 = vrot.slane %v11668, 2
        %v11731 = vrot.slane %v11669, 2
        %v11732 = vsel %vm577, %v11730, %v11731
        %v11733 = vrot.slane %v11670, 2
        %v11734 = vsel %vm577, %v11731, %v11733
        %v11751 = vadd.f32 %v11583, %v11697
        %v11752 = vadd.f32 %v11584, %v11699
        %v11753 = vadd.f32 %v11585, %v11702
        %v11754 = vadd.f32 %v11586, %v11704
        %v11755 = vadd.f32 %v11587, %v11707
        %v11756 = vadd.f32 %v11588, %v11709
        %v11757 = vadd.f32 %v11589, %v11712
        %v11758 = vadd.f32 %v11590, %v11714
        %v11759 = vadd.f32 %v11591, %v11717
        %v11760 = vadd.f32 %v11592, %v11719
        %v11761 = vadd.f32 %v11593, %v11722
        %v11762 = vadd.f32 %v11594, %v11724
        %v11763 = vadd.f32 %v11595, %v11727
        %v11764 = vadd.f32 %v11596, %v11729
        %v11765 = vadd.f32 %v11597, %v11732
        %v11766 = vadd.f32 %v11598, %v11734
        %v11767 = vmul.f32 %v6791, %v5597
        %v11768 = vmul.f32 %v6792, %v5597
        %v11769 = vmul.f32 %v6793, %v5597
        %v11770 = vmul.f32 %v6794, %v5597
        %v11771 = vmul.f32 %v6795, %v5597
        %v11772 = vmul.f32 %v6796, %v5597
        %v11773 = vmul.f32 %v7509, %v5597
        %v11774 = vmul.f32 %v7510, %v5597
        %v11775 = vmul.f32 %v7511, %v5597
        %v11776 = vmul.f32 %v8384, %v5597
        %v11777 = vmul.f32 %v8385, %v5597
        %v11778 = vmul.f32 %v8386, %v5597
        %v11779 = vmul.f32 %v9099, %v5597
        %v11780 = vmul.f32 %v9100, %v5597
        %v11781 = vmul.f32 %v9101, %v5597
        %v11782 = vmul.f32 %v9974, %v5597
        %v11783 = vmul.f32 %v9975, %v5597
        %v11784 = vmul.f32 %v9976, %v5597
        %v11785 = vmul.f32 %v10689, %v5597
        %v11786 = vmul.f32 %v10690, %v5597
        %v11787 = vmul.f32 %v10691, %v5597
        %v11788 = vmul.f32 %v11564, %v5597
        %v11789 = vmul.f32 %v11565, %v5597
        %v11790 = vmul.f32 %v11566, %v5597
        %v11815 = vrot.slane %v11767, 2
        %v11816 = vrot.slane %v11768, 2
        %v11817 = vsel %vm577, %v11815, %v11816
        %v11818 = vrot.slane %v11769, 2
        %v11819 = vsel %vm577, %v11816, %v11818
        %v11820 = vrot.slane %v11770, 2
        %v11821 = vrot.slane %v11771, 2
        %v11822 = vsel %vm577, %v11820, %v11821
        %v11823 = vrot.slane %v11772, 2
        %v11824 = vsel %vm577, %v11821, %v11823
        %v11825 = vrot.slane %v11773, 2
        %v11826 = vrot.slane %v11774, 2
        %v11827 = vsel %vm577, %v11825, %v11826
        %v11828 = vrot.slane %v11775, 2
        %v11829 = vsel %vm577, %v11826, %v11828
        %v11830 = vrot.slane %v11776, 2
        %v11831 = vrot.slane %v11777, 2
        %v11832 = vsel %vm577, %v11830, %v11831
        %v11833 = vrot.slane %v11778, 2
        %v11834 = vsel %vm577, %v11831, %v11833
        %v11835 = vrot.slane %v11779, 2
        %v11836 = vrot.slane %v11780, 2
        %v11837 = vsel %vm577, %v11835, %v11836
        %v11838 = vrot.slane %v11781, 2
        %v11839 = vsel %vm577, %v11836, %v11838
        %v11840 = vrot.slane %v11782, 2
        %v11841 = vrot.slane %v11783, 2
        %v11842 = vsel %vm577, %v11840, %v11841
        %v11843 = vrot.slane %v11784, 2
        %v11844 = vsel %vm577, %v11841, %v11843
        %v11845 = vrot.slane %v11785, 2
        %v11846 = vrot.slane %v11786, 2
        %v11847 = vsel %vm577, %v11845, %v11846
        %v11848 = vrot.slane %v11787, 2
        %v11849 = vsel %vm577, %v11846, %v11848
        %v11850 = vrot.slane %v11788, 2
        %v11851 = vrot.slane %v11789, 2
        %v11852 = vsel %vm577, %v11850, %v11851
        %v11853 = vrot.slane %v11790, 2
        %v11854 = vsel %vm577, %v11851, %v11853
        %v11879 = vadd.f32 %v11623, %v11817
        %v11880 = vadd.f32 %v11624, %v11819
        %v11881 = vadd.f32 %v11625, %v11818
        %v11882 = vadd.f32 %v11626, %v11822
        %v11883 = vadd.f32 %v11627, %v11824
        %v11884 = vadd.f32 %v11628, %v11823
        %v11885 = vadd.f32 %v11629, %v11827
        %v11886 = vadd.f32 %v11630, %v11829
        %v11887 = vadd.f32 %v11631, %v11828
        %v11888 = vadd.f32 %v11632, %v11832
        %v11889 = vadd.f32 %v11633, %v11834
        %v11890 = vadd.f32 %v11634, %v11833
        %v11891 = vadd.f32 %v11635, %v11837
        %v11892 = vadd.f32 %v11636, %v11839
        %v11893 = vadd.f32 %v11637, %v11838
        %v11894 = vadd.f32 %v11638, %v11842
        %v11895 = vadd.f32 %v11639, %v11844
        %v11896 = vadd.f32 %v11640, %v11843
        %v11897 = vadd.f32 %v11641, %v11847
        %v11898 = vadd.f32 %v11642, %v11849
        %v11899 = vadd.f32 %v11643, %v11848
        %v11900 = vadd.f32 %v11644, %v11852
        %v11901 = vadd.f32 %v11645, %v11854
        %v11902 = vadd.f32 %v11646, %v11853
        %v11903 = vmul.f32 %v6791, %v5737
        %v11904 = vmul.f32 %v6792, %v5737
        %v11905 = vmul.f32 %v6793, %v5737
        %v11906 = vmul.f32 %v6794, %v5737
        %v11907 = vmul.f32 %v6795, %v5737
        %v11908 = vmul.f32 %v6796, %v5737
        %v11909 = vmul.f32 %v7509, %v5737
        %v11910 = vmul.f32 %v7510, %v5737
        %v11911 = vmul.f32 %v7511, %v5737
        %v11912 = vmul.f32 %v8384, %v5737
        %v11913 = vmul.f32 %v8385, %v5737
        %v11914 = vmul.f32 %v8386, %v5737
        %v11915 = vmul.f32 %v9099, %v5737
        %v11916 = vmul.f32 %v9100, %v5737
        %v11917 = vmul.f32 %v9101, %v5737
        %v11918 = vmul.f32 %v9974, %v5737
        %v11919 = vmul.f32 %v9975, %v5737
        %v11920 = vmul.f32 %v9976, %v5737
        %v11921 = vmul.f32 %v10689, %v5737
        %v11922 = vmul.f32 %v10690, %v5737
        %v11923 = vmul.f32 %v10691, %v5737
        %v11924 = vmul.f32 %v11564, %v5737
        %v11925 = vmul.f32 %v11565, %v5737
        %v11926 = vmul.f32 %v11566, %v5737
        %v11951 = vrot.slane %v11903, 4
        %v11952 = vrot.slane %v11904, 4
        %v11953 = vsel %vm842, %v11951, %v11952
        %v11954 = vrot.slane %v11905, 4
        %v11955 = vsel %vm842, %v11952, %v11954
        %v11956 = vrot.slane %v11906, 4
        %v11957 = vrot.slane %v11907, 4
        %v11958 = vsel %vm842, %v11956, %v11957
        %v11959 = vrot.slane %v11908, 4
        %v11960 = vsel %vm842, %v11957, %v11959
        %v11961 = vrot.slane %v11909, 4
        %v11962 = vrot.slane %v11910, 4
        %v11963 = vsel %vm842, %v11961, %v11962
        %v11964 = vrot.slane %v11911, 4
        %v11965 = vsel %vm842, %v11962, %v11964
        %v11966 = vrot.slane %v11912, 4
        %v11967 = vrot.slane %v11913, 4
        %v11968 = vsel %vm842, %v11966, %v11967
        %v11969 = vrot.slane %v11914, 4
        %v11970 = vsel %vm842, %v11967, %v11969
        %v11971 = vrot.slane %v11915, 4
        %v11972 = vrot.slane %v11916, 4
        %v11973 = vsel %vm842, %v11971, %v11972
        %v11974 = vrot.slane %v11917, 4
        %v11975 = vsel %vm842, %v11972, %v11974
        %v11976 = vrot.slane %v11918, 4
        %v11977 = vrot.slane %v11919, 4
        %v11978 = vsel %vm842, %v11976, %v11977
        %v11979 = vrot.slane %v11920, 4
        %v11980 = vsel %vm842, %v11977, %v11979
        %v11981 = vrot.slane %v11921, 4
        %v11982 = vrot.slane %v11922, 4
        %v11983 = vsel %vm842, %v11981, %v11982
        %v11984 = vrot.slane %v11923, 4
        %v11985 = vsel %vm842, %v11982, %v11984
        %v11986 = vrot.slane %v11924, 4
        %v11987 = vrot.slane %v11925, 4
        %v11988 = vsel %vm842, %v11986, %v11987
        %v11989 = vrot.slane %v11926, 4
        %v11990 = vsel %vm842, %v11987, %v11989
        %v12007 = vadd.f32 %v11751, %v11953
        %v12008 = vadd.f32 %v11752, %v11955
        %v12009 = vadd.f32 %v11753, %v11958
        %v12010 = vadd.f32 %v11754, %v11960
        %v12011 = vadd.f32 %v11755, %v11963
        %v12012 = vadd.f32 %v11756, %v11965
        %v12013 = vadd.f32 %v11757, %v11968
        %v12014 = vadd.f32 %v11758, %v11970
        %v12015 = vadd.f32 %v11759, %v11973
        %v12016 = vadd.f32 %v11760, %v11975
        %v12017 = vadd.f32 %v11761, %v11978
        %v12018 = vadd.f32 %v11762, %v11980
        %v12019 = vadd.f32 %v11763, %v11983
        %v12020 = vadd.f32 %v11764, %v11985
        %v12021 = vadd.f32 %v11765, %v11988
        %v12022 = vadd.f32 %v11766, %v11990
        %v12023 = vmul.f32 %v6791, %v5861
        %v12024 = vmul.f32 %v6792, %v5861
        %v12025 = vmul.f32 %v6793, %v5861
        %v12026 = vmul.f32 %v6794, %v5861
        %v12027 = vmul.f32 %v6795, %v5861
        %v12028 = vmul.f32 %v6796, %v5861
        %v12029 = vmul.f32 %v7509, %v5861
        %v12030 = vmul.f32 %v7510, %v5861
        %v12031 = vmul.f32 %v7511, %v5861
        %v12032 = vmul.f32 %v8384, %v5861
        %v12033 = vmul.f32 %v8385, %v5861
        %v12034 = vmul.f32 %v8386, %v5861
        %v12035 = vmul.f32 %v9099, %v5861
        %v12036 = vmul.f32 %v9100, %v5861
        %v12037 = vmul.f32 %v9101, %v5861
        %v12038 = vmul.f32 %v9974, %v5861
        %v12039 = vmul.f32 %v9975, %v5861
        %v12040 = vmul.f32 %v9976, %v5861
        %v12041 = vmul.f32 %v10689, %v5861
        %v12042 = vmul.f32 %v10690, %v5861
        %v12043 = vmul.f32 %v10691, %v5861
        %v12044 = vmul.f32 %v11564, %v5861
        %v12045 = vmul.f32 %v11565, %v5861
        %v12046 = vmul.f32 %v11566, %v5861
        %v12071 = vrot.slane %v12023, 4
        %v12072 = vrot.slane %v12024, 4
        %v12073 = vsel %vm842, %v12071, %v12072
        %v12074 = vrot.slane %v12025, 4
        %v12075 = vsel %vm842, %v12072, %v12074
        %v12076 = vrot.slane %v12026, 4
        %v12077 = vrot.slane %v12027, 4
        %v12078 = vsel %vm842, %v12076, %v12077
        %v12079 = vrot.slane %v12028, 4
        %v12080 = vsel %vm842, %v12077, %v12079
        %v12081 = vrot.slane %v12029, 4
        %v12082 = vrot.slane %v12030, 4
        %v12083 = vsel %vm842, %v12081, %v12082
        %v12084 = vrot.slane %v12031, 4
        %v12085 = vsel %vm842, %v12082, %v12084
        %v12086 = vrot.slane %v12032, 4
        %v12087 = vrot.slane %v12033, 4
        %v12088 = vsel %vm842, %v12086, %v12087
        %v12089 = vrot.slane %v12034, 4
        %v12090 = vsel %vm842, %v12087, %v12089
        %v12091 = vrot.slane %v12035, 4
        %v12092 = vrot.slane %v12036, 4
        %v12093 = vsel %vm842, %v12091, %v12092
        %v12094 = vrot.slane %v12037, 4
        %v12095 = vsel %vm842, %v12092, %v12094
        %v12096 = vrot.slane %v12038, 4
        %v12097 = vrot.slane %v12039, 4
        %v12098 = vsel %vm842, %v12096, %v12097
        %v12099 = vrot.slane %v12040, 4
        %v12100 = vsel %vm842, %v12097, %v12099
        %v12101 = vrot.slane %v12041, 4
        %v12102 = vrot.slane %v12042, 4
        %v12103 = vsel %vm842, %v12101, %v12102
        %v12104 = vrot.slane %v12043, 4
        %v12105 = vsel %vm842, %v12102, %v12104
        %v12106 = vrot.slane %v12044, 4
        %v12107 = vrot.slane %v12045, 4
        %v12108 = vsel %vm842, %v12106, %v12107
        %v12109 = vrot.slane %v12046, 4
        %v12110 = vsel %vm842, %v12107, %v12109
        %v12135 = vadd.f32 %v11879, %v12073
        %v12136 = vadd.f32 %v11880, %v12075
        %v12137 = vadd.f32 %v11881, %v12074
        %v12138 = vadd.f32 %v11882, %v12078
        %v12139 = vadd.f32 %v11883, %v12080
        %v12140 = vadd.f32 %v11884, %v12079
        %v12141 = vadd.f32 %v11885, %v12083
        %v12142 = vadd.f32 %v11886, %v12085
        %v12143 = vadd.f32 %v11887, %v12084
        %v12144 = vadd.f32 %v11888, %v12088
        %v12145 = vadd.f32 %v11889, %v12090
        %v12146 = vadd.f32 %v11890, %v12089
        %v12147 = vadd.f32 %v11891, %v12093
        %v12148 = vadd.f32 %v11892, %v12095
        %v12149 = vadd.f32 %v11893, %v12094
        %v12150 = vadd.f32 %v11894, %v12098
        %v12151 = vadd.f32 %v11895, %v12100
        %v12152 = vadd.f32 %v11896, %v12099
        %v12153 = vadd.f32 %v11897, %v12103
        %v12154 = vadd.f32 %v11898, %v12105
        %v12155 = vadd.f32 %v11899, %v12104
        %v12156 = vadd.f32 %v11900, %v12108
        %v12157 = vadd.f32 %v11901, %v12110
        %v12158 = vadd.f32 %v11902, %v12109
        %v12159 = vmul.f32 %v6791, %v6001
        %v12160 = vmul.f32 %v6792, %v6001
        %v12161 = vmul.f32 %v6793, %v6001
        %v12162 = vmul.f32 %v6794, %v6001
        %v12163 = vmul.f32 %v6795, %v6001
        %v12164 = vmul.f32 %v6796, %v6001
        %v12165 = vmul.f32 %v7509, %v6001
        %v12166 = vmul.f32 %v7510, %v6001
        %v12167 = vmul.f32 %v7511, %v6001
        %v12168 = vmul.f32 %v8384, %v6001
        %v12169 = vmul.f32 %v8385, %v6001
        %v12170 = vmul.f32 %v8386, %v6001
        %v12171 = vmul.f32 %v9099, %v6001
        %v12172 = vmul.f32 %v9100, %v6001
        %v12173 = vmul.f32 %v9101, %v6001
        %v12174 = vmul.f32 %v9974, %v6001
        %v12175 = vmul.f32 %v9975, %v6001
        %v12176 = vmul.f32 %v9976, %v6001
        %v12177 = vmul.f32 %v10689, %v6001
        %v12178 = vmul.f32 %v10690, %v6001
        %v12179 = vmul.f32 %v10691, %v6001
        %v12180 = vmul.f32 %v11564, %v6001
        %v12181 = vmul.f32 %v11565, %v6001
        %v12182 = vmul.f32 %v11566, %v6001
        %v12207 = vrot.slane %v12159, 6
        %v12208 = vrot.slane %v12160, 6
        %v12209 = vsel %vm1107, %v12207, %v12208
        %v12210 = vrot.slane %v12161, 6
        %v12211 = vsel %vm1107, %v12208, %v12210
        %v12212 = vrot.slane %v12162, 6
        %v12213 = vrot.slane %v12163, 6
        %v12214 = vsel %vm1107, %v12212, %v12213
        %v12215 = vrot.slane %v12164, 6
        %v12216 = vsel %vm1107, %v12213, %v12215
        %v12217 = vrot.slane %v12165, 6
        %v12218 = vrot.slane %v12166, 6
        %v12219 = vsel %vm1107, %v12217, %v12218
        %v12220 = vrot.slane %v12167, 6
        %v12221 = vsel %vm1107, %v12218, %v12220
        %v12222 = vrot.slane %v12168, 6
        %v12223 = vrot.slane %v12169, 6
        %v12224 = vsel %vm1107, %v12222, %v12223
        %v12225 = vrot.slane %v12170, 6
        %v12226 = vsel %vm1107, %v12223, %v12225
        %v12227 = vrot.slane %v12171, 6
        %v12228 = vrot.slane %v12172, 6
        %v12229 = vsel %vm1107, %v12227, %v12228
        %v12230 = vrot.slane %v12173, 6
        %v12231 = vsel %vm1107, %v12228, %v12230
        %v12232 = vrot.slane %v12174, 6
        %v12233 = vrot.slane %v12175, 6
        %v12234 = vsel %vm1107, %v12232, %v12233
        %v12235 = vrot.slane %v12176, 6
        %v12236 = vsel %vm1107, %v12233, %v12235
        %v12237 = vrot.slane %v12177, 6
        %v12238 = vrot.slane %v12178, 6
        %v12239 = vsel %vm1107, %v12237, %v12238
        %v12240 = vrot.slane %v12179, 6
        %v12241 = vsel %vm1107, %v12238, %v12240
        %v12242 = vrot.slane %v12180, 6
        %v12243 = vrot.slane %v12181, 6
        %v12244 = vsel %vm1107, %v12242, %v12243
        %v12245 = vrot.slane %v12182, 6
        %v12246 = vsel %vm1107, %v12243, %v12245
        %v12263 = vadd.f32 %v12007, %v12209
        %v12264 = vadd.f32 %v12008, %v12211
        %v12265 = vadd.f32 %v12009, %v12214
        %v12266 = vadd.f32 %v12010, %v12216
        %v12267 = vadd.f32 %v12011, %v12219
        %v12268 = vadd.f32 %v12012, %v12221
        %v12269 = vadd.f32 %v12013, %v12224
        %v12270 = vadd.f32 %v12014, %v12226
        %v12271 = vadd.f32 %v12015, %v12229
        %v12272 = vadd.f32 %v12016, %v12231
        %v12273 = vadd.f32 %v12017, %v12234
        %v12274 = vadd.f32 %v12018, %v12236
        %v12275 = vadd.f32 %v12019, %v12239
        %v12276 = vadd.f32 %v12020, %v12241
        %v12277 = vadd.f32 %v12021, %v12244
        %v12278 = vadd.f32 %v12022, %v12246
        %v12303 = vrot.slane %v12135, 1
        %v12304 = vrot.slane %v12136, 1
        %v12305 = vsel %vm1344, %v12303, %v12304
        %v12306 = vrot.slane %v12137, 1
        %v12307 = vsel %vm1344, %v12304, %v12306
        %v12308 = vrot.slane %v12138, 1
        %v12309 = vrot.slane %v12139, 1
        %v12310 = vsel %vm1344, %v12308, %v12309
        %v12311 = vrot.slane %v12140, 1
        %v12312 = vsel %vm1344, %v12309, %v12311
        %v12313 = vrot.slane %v12141, 1
        %v12314 = vrot.slane %v12142, 1
        %v12315 = vsel %vm1344, %v12313, %v12314
        %v12316 = vrot.slane %v12143, 1
        %v12317 = vsel %vm1344, %v12314, %v12316
        %v12318 = vrot.slane %v12144, 1
        %v12319 = vrot.slane %v12145, 1
        %v12320 = vsel %vm1344, %v12318, %v12319
        %v12321 = vrot.slane %v12146, 1
        %v12322 = vsel %vm1344, %v12319, %v12321
        %v12323 = vrot.slane %v12147, 1
        %v12324 = vrot.slane %v12148, 1
        %v12325 = vsel %vm1344, %v12323, %v12324
        %v12326 = vrot.slane %v12149, 1
        %v12327 = vsel %vm1344, %v12324, %v12326
        %v12328 = vrot.slane %v12150, 1
        %v12329 = vrot.slane %v12151, 1
        %v12330 = vsel %vm1344, %v12328, %v12329
        %v12331 = vrot.slane %v12152, 1
        %v12332 = vsel %vm1344, %v12329, %v12331
        %v12333 = vrot.slane %v12153, 1
        %v12334 = vrot.slane %v12154, 1
        %v12335 = vsel %vm1344, %v12333, %v12334
        %v12336 = vrot.slane %v12155, 1
        %v12337 = vsel %vm1344, %v12334, %v12336
        %v12338 = vrot.slane %v12156, 1
        %v12339 = vrot.slane %v12157, 1
        %v12340 = vsel %vm1344, %v12338, %v12339
        %v12341 = vrot.slane %v12158, 1
        %v12342 = vsel %vm1344, %v12339, %v12341
        %v12359 = vadd.f32 %v12263, %v12305
        %v12360 = vadd.f32 %v12264, %v12307
        %v12361 = vadd.f32 %v12265, %v12310
        %v12362 = vadd.f32 %v12266, %v12312
        %v12363 = vadd.f32 %v12267, %v12315
        %v12364 = vadd.f32 %v12268, %v12317
        %v12365 = vadd.f32 %v12269, %v12320
        %v12366 = vadd.f32 %v12270, %v12322
        %v12367 = vadd.f32 %v12271, %v12325
        %v12368 = vadd.f32 %v12272, %v12327
        %v12369 = vadd.f32 %v12273, %v12330
        %v12370 = vadd.f32 %v12274, %v12332
        %v12371 = vadd.f32 %v12275, %v12335
        %v12372 = vadd.f32 %v12276, %v12337
        %v12373 = vadd.f32 %v12277, %v12340
        %v12374 = vadd.f32 %v12278, %v12342
        %v12375 = vpack.c.bf16 %v12360, %v12359
        %v12376 = vpack.c.bf16 %v12362, %v12361
        %v12377 = vpack.c.bf16 %v12364, %v12363
        %v12378 = vpack.c.bf16 %v12366, %v12365
        %v12379 = vpack.c.bf16 %v12368, %v12367
        %v12380 = vpack.c.bf16 %v12370, %v12369
        %v12381 = vpack.c.bf16 %v12372, %v12371
        %v12382 = vpack.c.bf16 %v12374, %v12373
        %12383 = vmatprep.subr.bf16.mxu0 0
        %12384 = vmatpush1.bf16.msra.mxu0 %v6271
        %12385 = vmatprep.subr.bf16.mxu0 0
        %12386 = vmatpush1.bf16.msra.mxu0 %v6270
        %12387 = vmatprep.subr.bf16.mxu0 0
        %12388 = vmatpush1.bf16.msra.mxu0 %v6269
        %12389 = vmatprep.subr.bf16.mxu0 0
        %12390 = vmatpush1.bf16.msra.mxu0 %v6268
        %12391 = vmatprep.subr.bf16.mxu0 0
        %12392 = vmatpush1.bf16.msra.mxu0 %v6267
        %12393 = vmatprep.subr.bf16.mxu0 0
        %12394 = vmatpush1.bf16.msra.mxu0 %v6266
        %12395 = vmatprep.subr.bf16.mxu0 0
        %12396 = vmatpush1.bf16.msra.mxu0 %v6265
        %12397 = vmatprep.subr.bf16.mxu0 0
        %12398 = vmatpush1.bf16.msra.mxu0 %v6264
        %12399 = vmatprep.subr.bf16.mxu0 0
        %12400 = vmatpush2.bf16.msra.mxu0 0
        %12401 = vmatprep.subr.bf16.mxu0 0
        %12402 = vmatpush2.bf16.msra.mxu0 0
        %12403 = vmatprep.subr.bf16.mxu0 0
        %12404 = vmatpush2.bf16.msra.mxu0 0
        %12405 = vmatprep.subr.bf16.mxu0 0
        %12406 = vmatpush2.bf16.msra.mxu0 0
        %12407 = vmatprep.subr.bf16.mxu0 0
        %12408 = vmatpush2.bf16.msra.mxu0 0
        %12409 = vmatprep.subr.bf16.mxu0 0
        %12410 = vmatpush2.bf16.msra.mxu0 0
        %12411 = vmatprep.subr.bf16.mxu0 0
        %12412 = vmatpush2.bf16.msra.mxu0 0
        %12413 = vmatprep.subr.bf16.mxu0 0
        %12414 = vmatpush2.bf16.msra.mxu0 0
        %12415 = vmatprep.mubr.bf16.mxu0 0
        %12416 = vmatmul.mubr.bf16.gmra.mxu0 %v12375
        %v12417 = vpop.f32.mrf.mxu0
        %v12418 = vadd.f32 %v6230, %v12417
        %v12419 = vpop.f32.mrf.mxu0
        %v12420 = vpop.f32.mrf.mxu0
        %v12421 = vadd.f32 %v6230, %v12420
        %v12422 = vpop.f32.mrf.mxu0
        %12423 = vmatprep.mubr.bf16.mxu0 0
        %12424 = vmatmul.mubr.bf16.gmra.mxu0 %v12376
        %v12425 = vpop.f32.mrf.mxu0
        %v12426 = vadd.f32 %v6230, %v12425
        %v12427 = vpop.f32.mrf.mxu0
        %v12428 = vpop.f32.mrf.mxu0
        %v12429 = vadd.f32 %v6230, %v12428
        %v12430 = vpop.f32.mrf.mxu0
        %12431 = vmatprep.mubr.bf16.mxu0 0
        %12432 = vmatmul.mubr.bf16.gmra.mxu0 %v12377
        %v12433 = vpop.f32.mrf.mxu0
        %v12434 = vadd.f32 %v6230, %v12433
        %v12435 = vpop.f32.mrf.mxu0
        %v12436 = vpop.f32.mrf.mxu0
        %v12437 = vadd.f32 %v6230, %v12436
        %v12438 = vpop.f32.mrf.mxu0
        %12439 = vmatprep.mubr.bf16.mxu0 0
        %12440 = vmatmul.mubr.bf16.gmra.mxu0 %v12378
        %v12441 = vpop.f32.mrf.mxu0
        %v12442 = vadd.f32 %v6230, %v12441
        %v12443 = vpop.f32.mrf.mxu0
        %v12444 = vpop.f32.mrf.mxu0
        %v12445 = vadd.f32 %v6230, %v12444
        %v12446 = vpop.f32.mrf.mxu0
        %12447 = vmatprep.mubr.bf16.mxu0 0
        %12448 = vmatmul.mubr.bf16.gmra.mxu0 %v12379
        %v12449 = vpop.f32.mrf.mxu0
        %v12450 = vadd.f32 %v6230, %v12449
        %v12451 = vpop.f32.mrf.mxu0
        %v12452 = vpop.f32.mrf.mxu0
        %v12453 = vadd.f32 %v6230, %v12452
        %v12454 = vpop.f32.mrf.mxu0
        %12455 = vmatprep.mubr.bf16.mxu0 0
        %12456 = vmatmul.mubr.bf16.gmra.mxu0 %v12380
        %v12457 = vpop.f32.mrf.mxu0
        %v12458 = vadd.f32 %v6230, %v12457
        %v12459 = vpop.f32.mrf.mxu0
        %v12460 = vpop.f32.mrf.mxu0
        %v12461 = vadd.f32 %v6230, %v12460
        %v12462 = vpop.f32.mrf.mxu0
        %12463 = vmatprep.mubr.bf16.mxu0 0
        %12464 = vmatmul.mubr.bf16.gmra.mxu0 %v12381
        %v12465 = vpop.f32.mrf.mxu0
        %v12466 = vadd.f32 %v6230, %v12465
        %v12467 = vpop.f32.mrf.mxu0
        %v12468 = vpop.f32.mrf.mxu0
        %v12469 = vadd.f32 %v6230, %v12468
        %v12470 = vpop.f32.mrf.mxu0
        %12471 = vmatprep.mubr.bf16.mxu0 0
        %12472 = vmatmul.mubr.bf16.gmra.mxu0 %v12382
        %v12473 = vpop.f32.mrf.mxu0
        %v12474 = vadd.f32 %v6230, %v12473
        %v12475 = vpop.f32.mrf.mxu0
        %v12476 = vpop.f32.mrf.mxu0
        %v12477 = vadd.f32 %v6230, %v12476
        %v12478 = vpop.f32.mrf.mxu0
        %12479 = vdwg.mxu0
        %v12480 = vmul.f32 %v12418, 0.5
        %v12481 = vmul.f32 %v12421, 0.5
        %v12482 = vmul.f32 %v12426, 0.5
        %v12483 = vmul.f32 %v12429, 0.5
        %v12484 = vmul.f32 %v12434, 0.5
        %v12485 = vmul.f32 %v12437, 0.5
        %v12486 = vmul.f32 %v12442, 0.5
        %v12487 = vmul.f32 %v12445, 0.5
        %v12488 = vmul.f32 %v12450, 0.5
        %v12489 = vmul.f32 %v12453, 0.5
        %v12490 = vmul.f32 %v12458, 0.5
        %v12491 = vmul.f32 %v12461, 0.5
        %v12492 = vmul.f32 %v12466, 0.5
        %v12493 = vmul.f32 %v12469, 0.5
        %v12494 = vmul.f32 %v12474, 0.5
        %v12495 = vmul.f32 %v12477, 0.5
        %v12496 = vmul.f32 %v12418, 0.70710677
        %v12497 = vmul.f32 %v12421, 0.70710677
        %v12498 = vmul.f32 %v12426, 0.70710677
        %v12499 = vmul.f32 %v12429, 0.70710677
        %v12500 = vmul.f32 %v12434, 0.70710677
        %v12501 = vmul.f32 %v12437, 0.70710677
        %v12502 = vmul.f32 %v12442, 0.70710677
        %v12503 = vmul.f32 %v12445, 0.70710677
        %v12504 = vmul.f32 %v12450, 0.70710677
        %v12505 = vmul.f32 %v12453, 0.70710677
        %v12506 = vmul.f32 %v12458, 0.70710677
        %v12507 = vmul.f32 %v12461, 0.70710677
        %v12508 = vmul.f32 %v12466, 0.70710677
        %v12509 = vmul.f32 %v12469, 0.70710677
        %v12510 = vmul.f32 %v12474, 0.70710677
        %v12511 = vmul.f32 %v12477, 0.70710677
        %v12512 = verf.f32.pop %v12496
        %v12513 = verf.f32.pop %v12497
        %v12514 = verf.f32.pop %v12498
        %v12515 = verf.f32.pop %v12499
        %v12516 = verf.f32.pop %v12500
        %v12517 = verf.f32.pop %v12501
        %v12518 = verf.f32.pop %v12502
        %v12519 = verf.f32.pop %v12503
        %v12520 = verf.f32.pop %v12504
        %v12521 = verf.f32.pop %v12505
        %v12522 = verf.f32.pop %v12506
        %v12523 = verf.f32.pop %v12507
        %v12524 = verf.f32.pop %v12508
        %v12525 = verf.f32.pop %v12509
        %v12526 = verf.f32.pop %v12510
        %v12527 = verf.f32.pop %v12511
        %v12528 = vadd.f32 %v12512, 1.0
        %v12529 = vadd.f32 %v12513, 1.0
        %v12530 = vadd.f32 %v12514, 1.0
        %v12531 = vadd.f32 %v12515, 1.0
        %v12532 = vadd.f32 %v12516, 1.0
        %v12533 = vadd.f32 %v12517, 1.0
        %v12534 = vadd.f32 %v12518, 1.0
        %v12535 = vadd.f32 %v12519, 1.0
        %v12536 = vadd.f32 %v12520, 1.0
        %v12537 = vadd.f32 %v12521, 1.0
        %v12538 = vadd.f32 %v12522, 1.0
        %v12539 = vadd.f32 %v12523, 1.0
        %v12540 = vadd.f32 %v12524, 1.0
        %v12541 = vadd.f32 %v12525, 1.0
        %v12542 = vadd.f32 %v12526, 1.0
        %v12543 = vadd.f32 %v12527, 1.0
        %v12544 = vmul.f32 %v12480, %v12528
        %v12545 = vmul.f32 %v12481, %v12529
        %v12546 = vmul.f32 %v12482, %v12530
        %v12547 = vmul.f32 %v12483, %v12531
        %v12548 = vmul.f32 %v12484, %v12532
        %v12549 = vmul.f32 %v12485, %v12533
        %v12550 = vmul.f32 %v12486, %v12534
        %v12551 = vmul.f32 %v12487, %v12535
        %v12552 = vmul.f32 %v12488, %v12536
        %v12553 = vmul.f32 %v12489, %v12537
        %v12554 = vmul.f32 %v12490, %v12538
        %v12555 = vmul.f32 %v12491, %v12539
        %v12556 = vmul.f32 %v12492, %v12540
        %v12557 = vmul.f32 %v12493, %v12541
        %v12558 = vmul.f32 %v12494, %v12542
        %v12559 = vmul.f32 %v12495, %v12543
        %v12560 = vpack.c.bf16 %v12545, %v12544
        %v12561 = vpack.c.bf16 %v12547, %v12546
        %v12562 = vpack.c.bf16 %v12549, %v12548
        %v12563 = vpack.c.bf16 %v12551, %v12550
        %v12564 = vpack.c.bf16 %v12553, %v12552
        %v12565 = vpack.c.bf16 %v12555, %v12554
        %v12566 = vpack.c.bf16 %v12557, %v12556
        %v12567 = vpack.c.bf16 %v12559, %v12558
        %12568 = vmatprep.subr.bf16.mxu0 0
        %12569 = vmatpush1.bf16.msra.mxu0 %v6510
        %12570 = vmatprep.subr.bf16.mxu0 0
        %12571 = vmatpush1.bf16.msra.mxu0 %v6509
        %12572 = vmatprep.subr.bf16.mxu0 0
        %12573 = vmatpush1.bf16.msra.mxu0 %v6508
        %12574 = vmatprep.subr.bf16.mxu0 0
        %12575 = vmatpush1.bf16.msra.mxu0 %v6507
        %12576 = vmatprep.subr.bf16.mxu0 0
        %12577 = vmatpush1.bf16.msra.mxu0 %v6506
        %12578 = vmatprep.subr.bf16.mxu0 0
        %12579 = vmatpush1.bf16.msra.mxu0 %v6505
        %12580 = vmatprep.subr.bf16.mxu0 0
        %12581 = vmatpush1.bf16.msra.mxu0 %v6504
        %12582 = vmatprep.subr.bf16.mxu0 0
        %12583 = vmatpush1.bf16.msra.mxu0 %v6503
        %12584 = vmatprep.subr.bf16.mxu0 0
        %12585 = vmatpush2.bf16.msra.mxu0 0
        %12586 = vmatprep.subr.bf16.mxu0 0
        %12587 = vmatpush2.bf16.msra.mxu0 0
        %12588 = vmatprep.subr.bf16.mxu0 0
        %12589 = vmatpush2.bf16.msra.mxu0 0
        %12590 = vmatprep.subr.bf16.mxu0 0
        %12591 = vmatpush2.bf16.msra.mxu0 0
        %12592 = vmatprep.subr.bf16.mxu0 0
        %12593 = vmatpush2.bf16.msra.mxu0 0
        %12594 = vmatprep.subr.bf16.mxu0 0
        %12595 = vmatpush2.bf16.msra.mxu0 0
        %12596 = vmatprep.subr.bf16.mxu0 0
        %12597 = vmatpush2.bf16.msra.mxu0 0
        %12598 = vmatprep.subr.bf16.mxu0 0
        %12599 = vmatpush2.bf16.msra.mxu0 0
        %12600 = vmatprep.mubr.bf16.mxu0 0
        %12601 = vmatmul.mubr.bf16.gmra.mxu0 %v12560
        %v12602 = vpop.f32.mrf.mxu0
        %v12603 = vadd.f32 %v6469, %v12602
        %v12604 = vpop.f32.mrf.mxu0
        %v12605 = vpop.f32.mrf.mxu0
        %v12606 = vadd.f32 %v6469, %v12605
        %v12607 = vpop.f32.mrf.mxu0
        %12608 = vmatprep.mubr.bf16.mxu0 0
        %12609 = vmatmul.mubr.bf16.gmra.mxu0 %v12561
        %v12610 = vpop.f32.mrf.mxu0
        %v12611 = vadd.f32 %v6469, %v12610
        %v12612 = vpop.f32.mrf.mxu0
        %v12613 = vpop.f32.mrf.mxu0
        %v12614 = vadd.f32 %v6469, %v12613
        %v12615 = vpop.f32.mrf.mxu0
        %12616 = vmatprep.mubr.bf16.mxu0 0
        %12617 = vmatmul.mubr.bf16.gmra.mxu0 %v12562
        %v12618 = vpop.f32.mrf.mxu0
        %v12619 = vadd.f32 %v6469, %v12618
        %v12620 = vpop.f32.mrf.mxu0
        %v12621 = vpop.f32.mrf.mxu0
        %v12622 = vadd.f32 %v6469, %v12621
        %v12623 = vpop.f32.mrf.mxu0
        %12624 = vmatprep.mubr.bf16.mxu0 0
        %12625 = vmatmul.mubr.bf16.gmra.mxu0 %v12563
        %v12626 = vpop.f32.mrf.mxu0
        %v12627 = vadd.f32 %v6469, %v12626
        %v12628 = vpop.f32.mrf.mxu0
        %v12629 = vpop.f32.mrf.mxu0
        %v12630 = vadd.f32 %v6469, %v12629
        %v12631 = vpop.f32.mrf.mxu0
        %12632 = vmatprep.mubr.bf16.mxu0 0
        %12633 = vmatmul.mubr.bf16.gmra.mxu0 %v12564
        %v12634 = vpop.f32.mrf.mxu0
        %v12635 = vadd.f32 %v6469, %v12634
        %v12636 = vpop.f32.mrf.mxu0
        %v12637 = vpop.f32.mrf.mxu0
        %v12638 = vadd.f32 %v6469, %v12637
        %v12639 = vpop.f32.mrf.mxu0
        %12640 = vmatprep.mubr.bf16.mxu0 0
        %12641 = vmatmul.mubr.bf16.gmra.mxu0 %v12565
        %v12642 = vpop.f32.mrf.mxu0
        %v12643 = vadd.f32 %v6469, %v12642
        %v12644 = vpop.f32.mrf.mxu0
        %v12645 = vpop.f32.mrf.mxu0
        %v12646 = vadd.f32 %v6469, %v12645
        %v12647 = vpop.f32.mrf.mxu0
        %12648 = vmatprep.mubr.bf16.mxu0 0
        %12649 = vmatmul.mubr.bf16.gmra.mxu0 %v12566
        %v12650 = vpop.f32.mrf.mxu0
        %v12651 = vadd.f32 %v6469, %v12650
        %v12652 = vpop.f32.mrf.mxu0
        %v12653 = vpop.f32.mrf.mxu0
        %v12654 = vadd.f32 %v6469, %v12653
        %v12655 = vpop.f32.mrf.mxu0
        %12656 = vmatprep.mubr.bf16.mxu0 0
        %12657 = vmatmul.mubr.bf16.gmra.mxu0 %v12567
        %v12658 = vpop.f32.mrf.mxu0
        %v12659 = vadd.f32 %v6469, %v12658
        %v12660 = vpop.f32.mrf.mxu0
        %v12661 = vpop.f32.mrf.mxu0
        %v12662 = vadd.f32 %v6469, %v12661
        %v12663 = vpop.f32.mrf.mxu0
        %12664 = vdwg.mxu0
        %v12681 = vrot.slane %v12603, 5
        %v12682 = vrot.slane %v12606, 5
        %v12683 = vsel %vm1874, %v12681, %v12682
        %v12684 = vrot.slane %v12611, 5
        %v12685 = vrot.slane %v12614, 5
        %v12686 = vsel %vm1874, %v12684, %v12685
        %v12687 = vrot.slane %v12619, 5
        %v12688 = vrot.slane %v12622, 5
        %v12689 = vsel %vm1874, %v12687, %v12688
        %v12690 = vrot.slane %v12627, 5
        %v12691 = vrot.slane %v12630, 5
        %v12692 = vsel %vm1874, %v12690, %v12691
        %v12693 = vrot.slane %v12635, 5
        %v12694 = vrot.slane %v12638, 5
        %v12695 = vsel %vm1874, %v12693, %v12694
        %v12696 = vrot.slane %v12643, 5
        %v12697 = vrot.slane %v12646, 5
        %v12698 = vsel %vm1874, %v12696, %v12697
        %v12699 = vrot.slane %v12651, 5
        %v12700 = vrot.slane %v12654, 5
        %v12701 = vsel %vm1874, %v12699, %v12700
        %v12702 = vrot.slane %v12659, 5
        %v12703 = vrot.slane %v12662, 5
        %v12704 = vsel %vm1874, %v12702, %v12703
        %v12729 = vadd.f32 %v6782, %v12681
        %v12730 = vadd.f32 %v6783, %v12683
        %v12731 = vadd.f32 %v6784, %v12682
        %v12732 = vadd.f32 %v6785, %v12684
        %v12733 = vadd.f32 %v6786, %v12686
        %v12734 = vadd.f32 %v6787, %v12685
        %v12735 = vadd.f32 %v6788, %v12687
        %v12736 = vadd.f32 %v6789, %v12689
        %v12737 = vadd.f32 %v6790, %v12688
        %v12738 = vadd.f32 %v6791, %v12690
        %v12739 = vadd.f32 %v6792, %v12692
        %v12740 = vadd.f32 %v6793, %v12691
        %v12741 = vadd.f32 %v6794, %v12693
        %v12742 = vadd.f32 %v6795, %v12695
        %v12743 = vadd.f32 %v6796, %v12694
        %v12744 = vadd.f32 %v7509, %v12696
        %v12745 = vadd.f32 %v7510, %v12698
        %v12746 = vadd.f32 %v7511, %v12697
        %v12747 = vadd.f32 %v8384, %v12699
        %v12748 = vadd.f32 %v8385, %v12701
        %v12749 = vadd.f32 %v8386, %v12700
        %v12750 = vadd.f32 %v9099, %v12702
        %v12751 = vadd.f32 %v9100, %v12704
        %v12752 = vadd.f32 %v9101, %v12703
        %s12753 = scalar_lea.vmem %s261, 128 [#allocation10]
        %12754 = vst [vmem:[%s12753 - $0x3] sm:$0xf8] %v12729
        %12755 = vst [vmem:[%s12753 + $0x5] sm:$0xff] %v12730
        %12756 = vst [vmem:[%s12753 + $0xd] sm:$0x7] %v12731
        %12757 = vst [vmem:[%s12753 + $0xd] sm:$0xf8] %v12732
        %12758 = vst [vmem:[%s12753 + $0x15] sm:$0xff] %v12733
        %12759 = vst [vmem:[%s12753 + $0x1d] sm:$0x7] %v12734
        %12760 = vst [vmem:[%s12753 + $0x1d] sm:$0xf8] %v12735
        %12761 = vst [vmem:[%s12753 + $0x25] sm:$0xff] %v12736
        %12762 = vst [vmem:[%s12753 + $0x2d] sm:$0x7] %v12737
        %12763 = vst [vmem:[%s12753 + $0x2d] sm:$0xf8] %v12738
        %12764 = vst [vmem:[%s12753 + $0x35] sm:$0xff] %v12739
        %12765 = vst [vmem:[%s12753 + $0x3d] sm:$0x7] %v12740
        %12766 = vst [vmem:[%s12753 + $0x3d] sm:$0xf8] %v12741
        %12767 = vst [vmem:[%s12753 + $0x45] sm:$0xff] %v12742
        %12768 = vst [vmem:[%s12753 + $0x4d] sm:$0x7] %v12743
        %12769 = vst [vmem:[%s12753 + $0x4d] sm:$0xf8] %v12744
        %12770 = vst [vmem:[%s12753 + $0x55] sm:$0xff] %v12745
        %12771 = vst [vmem:[%s12753 + $0x5d] sm:$0x7] %v12746
        %12772 = vst [vmem:[%s12753 + $0x5d] sm:$0xf8] %v12747
        %12773 = vst [vmem:[%s12753 + $0x65] sm:$0xff] %v12748
        %12774 = vst [vmem:[%s12753 + $0x6d] sm:$0x7] %v12749
        %12775 = vst [vmem:[%s12753 + $0x6d] sm:$0xf8] %v12750
        %12776 = vst [vmem:[%s12753 + $0x75] sm:$0xff] %v12751
        %12777 = vst [vmem:[%s12753 + $0x7d] sm:$0x7] %v12752
        %s12778 = sand.u32 %s149, 1
        %s12779 = scalar_lea.sflag [#allocation6], %s12778
        %s12780 = sand.u32 %s149, 1
        %s12781 = smul.addr %s12780, 256
        %s12782 = scalar_lea.vmem [#allocation10], %s12781
        // Predicated region
        $region69: #{tpu_custom_call.1} parent=39 // pred_check
          %p12783 = pneg %p159
        $region70: #{tpu_custom_call.1} parent=39 // pred_check_branch
          %12785 = sbr.rel (%p12783) target = $region72
        $region71: #{tpu_custom_call.1} parent=39 // pred_region
          %s12786 = smul.u32 16, %s27
          %s12788 = ssub.s32 4096, 4096
          %12789 = vsyncadd %s12779, %s12788
          %s12790 = smul.addr %s12786, 2
          %s12791 = smul.addr %s26, 32
          %s12792 = sadd.s32 %s12790, %s12791
          %s12793 = smul.addr %s12792, 128
          %s12794 = scalar_lea.hbm %s6, %s12793
          %s12795 = sshll.u32 %s12782, 4
          %s12796 = int_to_ptr.vmem [resolvable:$true] %s12795
          %12801 = dma.vmem_to_hbm [thread:$0]  %s12796, 4096, %s12794, %s12779, 128, 128, 8
        $region72: #{tpu_custom_call.1} parent=39 // pred_fallthru
          _
      $region40: #{tpu_custom_call.1} parent=5 // pred_fallthru
        _
      %p12802 = scmp.le.s32.totalorder 2, %s17
      // Predicated region
      $region73: #{tpu_custom_call.1} parent=5 // pred_check
        %p12803 = pneg %p12802
      $region74: #{tpu_custom_call.1} parent=5 // pred_check_branch
        %12805 = sbr.rel (%p12803) target = $region76
      $region75: #{tpu_custom_call.1} parent=5 // pred_region
        %s12806 = ssub.s32 %s17, 2
        // Predicated region
        $region77: #{tpu_custom_call.1} parent=75 // pred_check
          %p12807 = pneg %p165
        $region78: #{tpu_custom_call.1} parent=75 // pred_check_branch
          %12809 = sbr.rel (%p12807) target = $region80
        $region79: #{tpu_custom_call.1} parent=75 // pred_region
          %s12810 = sand.u32 %s150, 1
          %s12811 = scalar_lea.sflag [#allocation6], %s12810
          %s12812 = sand.u32 %s150, 1
          %s12813 = smul.addr %s12812, 256
          %s12814 = scalar_lea.vmem [#allocation10], %s12813
          %12815 = dma.done %s12811, 4096
        $region80: #{tpu_custom_call.1} parent=75 // pred_fallthru
          _
      $region76: #{tpu_custom_call.1} parent=5 // pred_fallthru
        _
    $region6: #{tpu_custom_call.1} parent=1 // loop_footer
      %s21 = sadd.s32 1, %s17
    $region7: #{tpu_custom_call.1} parent=1 // loop_footer_branch
      %16 = sbr.rel target = $region3
    $region8: #{tpu_custom_call.1} parent=1 // loop_exit
      _
    %12816 = vsyncpa [#allocation5], 1
    %s12817 = scalar_lea.sflag [#allocation5], 1
    %12818 = vsyncpa %s12817, 1
    %12819 = vsyncpa [#allocation8], 1
    %12820 = vsyncpa [#allocation6], 1
    %s12821 = scalar_lea.sflag [#allocation6], 1
    %12822 = vsyncpa %s12821, 1
  %12823 = vsyncmov [#allocation3]
  %s12824 = vpop.sfrf %12823
  %p12825 = scmp.eq.s32.totalorder %s12824, 0
  %p12826 = pneg %p12825
  %12828 = shalt.err (%p12826)
  %s12829 = scalar_lea.sflag [#allocation3], 1
  %12830 = vsyncmov %s12829
  %s12831 = vpop.sfrf %12830
  %p12832 = scmp.eq.s32.totalorder %s12831, 0
  %p12833 = pneg %p12832
  %12835 = shalt.err (%p12833)

</llo_original>
